<compile_context>
chip_gen: v7x
topology: tpu7x:2x2x1
jax: 0.10.0
libtpu: 0.0.40
codegen_flags: <defaults>
</compile_context>

<pallas_src>
import functools

import jax
import jax.numpy as jnp
from jax import lax
from jax.experimental import pallas as pl
from jax.experimental.pallas import tpu as pltpu


# -----------------------------------------------------------------------------
# Fused kernel.  One grid step = one batch element x one strip of TH output rows.
# -----------------------------------------------------------------------------
def _superres_fused_kernel(x_ref, w1_ref, b1_ref, w2_ref, b2_ref, w3_ref,
                           b3_ref, w4_ref, b4_ref, lrow_ref, pcol_ref, o_ref,
                           *, H, W, TH, r, compute_dtype):
    f32 = jnp.float32
    r0 = pl.program_id(1) * TH                     # first output row of strip
    row_start = pl.multiple_of(r0, TH)

    # Input strip: image rows r0-5 .. r0+TH+4 (wrapper zero-pads by (5, 2)).
    # The 1-channel input is tiny, so the whole padded image is kept VMEM
    # resident per batch element and only the strip window is sliced here.
    x0 = x_ref[0, pl.ds(row_start, TH + 10), :]    # (TH+10, W+4) bf16
    R1 = TH + 6                                    # conv1 rows incl. 3+3 halo

    def row_keep(nrows, first_row):
        # (rows,1,1) halo mask; for interior strips this is all-ones and the
        # multiply is a single cheap VPU pass.
        ridx = lax.broadcasted_iota(jnp.int32, (nrows, 1, 1), 0) + first_row
        return jnp.logical_and(ridx >= 0, ridx < H).astype(f32)

    # ------------------------------------------------------------------ conv1
    # Single (R1*W, 25) x (25, 64) MXU matmul for the whole strip.
    taps = [x0[kh:kh + R1, kw:kw + W] for kh in range(5) for kw in range(5)]
    lhs1 = jnp.swapaxes(jnp.stack(taps, axis=1), 1, 2)      # (R1, W, 25)
    lhs1 = lhs1.reshape(R1 * W, 25)
    acc1 = jnp.dot(lhs1, w1_ref[...], preferred_element_type=f32)
    acc1 = jnp.maximum(acc1 + b1_ref[...], 0.0)             # (R1*W, 64) f32
    act1 = (acc1.reshape(R1, W, 64) *
            row_keep(R1, r0 - 3)).astype(compute_dtype)     # (R1, W, 64)

    def col_pad(a):                  # SAME zero padding along width
        z = jnp.zeros((a.shape[0], 1, a.shape[2]), a.dtype)
        return jnp.concatenate([z, a, z], axis=1)

    def conv3x3(a3d, w_ref, b_ref, relu):
        """3x3 conv, SAME over width, VALID over rows.

        9 tap matmuls (K = cin) accumulated into one f32 buffer -- no 9x
        duplicated im2col buffer is ever materialized.
        """
        rin, _, cin = a3d.shape
        rout = rin - 2
        cout = w_ref.shape[1]
        ap = col_pad(a3d)                                   # (rin, W+2, cin)
        acc = jnp.zeros((rout * W, cout), f32)
        for kh in range(3):
            for kw in range(3):
                t = kh * 3 + kw
                lhs = ap[kh:kh + rout, kw:kw + W, :].reshape(rout * W, cin)
                acc = acc + jnp.dot(lhs, w_ref[t * cin:(t + 1) * cin, :],
                                    preferred_element_type=f32)
        acc = acc + b_ref[...]
        if relu:
            acc = jnp.maximum(acc, 0.0)
        return acc, rout                                    # (rout*W, cout)

    # -------------------------------------------------------------- conv2/3/4
    acc2, R2 = conv3x3(act1, w2_ref, b2_ref, relu=True)     # 64 -> 64
    act2 = (acc2.reshape(R2, W, 64) *
            row_keep(R2, r0 - 2)).astype(compute_dtype)

    acc3, R3 = conv3x3(act2, w3_ref, b3_ref, relu=True)     # 64 -> 32
    act3 = (acc3.reshape(R3, W, 32) *
            row_keep(R3, r0 - 1)).astype(compute_dtype)

    acc4, _ = conv3x3(act3, w4_ref, b4_ref, relu=False)     # (TH*W, r*r)

    # ---------------------------------------------- fused PixelShuffle (batched)
    # out[h*r+i, w*r+j] = acc4[h*W+w, i*r+j].  Build S_all[i*TH+h, j*W+w] with
    # one batched transpose + concats, then apply two one-hot matmuls against
    # constants hoisted into the wrapper (bf16; the permutation is exact).
    a3t = jnp.swapaxes(acc4.astype(compute_dtype).reshape(TH, W, r * r), 1, 2)
    s_cols = []
    for j in range(r):
        s_cols.append(jnp.concatenate(
            [a3t[:, c:c + 1, :].reshape(TH, W)
             for c in (i * r + j for i in range(r))], axis=0))      # (r*TH, W)
    s_all = jnp.concatenate(s_cols, axis=1)                         # (r*TH, r*W)
    t_perm = jnp.dot(s_all, pcol_ref[...], preferred_element_type=f32)
    out = jnp.dot(lrow_ref[...], t_perm.astype(compute_dtype),
                  preferred_element_type=f32)                       # (TH*r, W*r)
    o_ref[0] = out.astype(o_ref.dtype)


# -----------------------------------------------------------------------------
# Wrapper
# -----------------------------------------------------------------------------
def _pick_block_rows(H, r, max_rows=32):
    """Largest divisor of H (<= max_rows) whose output block is (8,128)-legal."""
    best = None
    for th in range(1, min(H, max_rows) + 1):
        if H % th == 0 and (th == H or (th * r) % 8 == 0):
            best = th
    if best is None:
        if H <= 2 * max_rows:          # whole-image strip is still small
            return H
        raise ValueError(
            f"No legal strip size <= {max_rows} for H={H}, r={r}; "
            "pass block_rows explicitly.")
    return best


def super_resolution_forward(params, x_nchw, upscale_factor, *,
                             block_rows=None, compute_dtype=jnp.bfloat16):
    r = int(upscale_factor)
    N, C, H, W = x_nchw.shape
    assert C == 1, "SuperResolutionNet expects a single input channel"
    TH = int(block_rows) if block_rows is not None else _pick_block_rows(H, r)
    assert H % TH == 0 and (TH == H or (TH * r) % 8 == 0), (H, TH, r)

    # Single zero pad of the tiny 1-channel input: 2 rows/cols for conv1's own
    # SAME padding + 3 halo rows for the fused conv2/3/4 row strips.
    x_pad = jnp.pad(x_nchw[:, 0], ((0, 0), (5, 5), (2, 2))).astype(compute_dtype)

    # HWIO weights -> flat (KH*KW*Cin, Cout) matrices matching the im2col order.
    w1 = params["w1"].reshape(25, 64).astype(compute_dtype)
    b1 = params["b1"].reshape(1, 64).astype(jnp.float32)
    w2 = params["w2"].reshape(9 * 64, 64).astype(compute_dtype)
    b2 = params["b2"].reshape(1, 64).astype(jnp.float32)
    w3 = params["w3"].reshape(9 * 64, 32).astype(compute_dtype)
    b3 = params["b3"].reshape(1, 32).astype(jnp.float32)
    w4 = params["w4"].reshape(9 * 32, r * r).astype(compute_dtype)
    b4 = params["b4"].reshape(1, r * r).astype(jnp.float32)

    # Hoisted one-hot PixelShuffle constants (grid-invariant, DMA'd once).
    a_idx = jnp.arange(TH * r)
    lrow = (jnp.arange(r * TH)[None, :] ==
            ((a_idx % r) * TH + a_idx // r)[:, None]).astype(compute_dtype)
    p_idx = jnp.arange(r * W)
    pcol = (jnp.arange(W * r)[None, :] ==
            ((p_idx % W) * r + p_idx // W)[:, None]).astype(compute_dtype)

    kern = functools.partial(_superres_fused_kernel, H=H, W=W, TH=TH, r=r,
                             compute_dtype=compute_dtype)
    rep2 = lambda n, s: (0, 0)
    out = pl.pallas_call(
        kern,
        out_shape=jax.ShapeDtypeStruct((N, H * r, W * r), jnp.float32),
        grid_spec=pltpu.PrefetchScalarGridSpec(
            num_scalar_prefetch=0,
            grid=(N, H // TH),
            in_specs=[
                pl.BlockSpec((1, H + 10, W + 4), lambda n, s: (n, 0, 0)),
                pl.BlockSpec((25, 64), rep2),
                pl.BlockSpec((1, 64), rep2),
                pl.BlockSpec((9 * 64, 64), rep2),
                pl.BlockSpec((1, 64), rep2),
                pl.BlockSpec((9 * 64, 32), rep2),
                pl.BlockSpec((1, 32), rep2),
                pl.BlockSpec((9 * 32, r * r), rep2),
                pl.BlockSpec((1, r * r), rep2),
                pl.BlockSpec((TH * r, r * TH), rep2),
                pl.BlockSpec((r * W, W * r), rep2),
            ],
            out_specs=pl.BlockSpec((1, TH * r, W * r), lambda n, s: (n, s, 0)),
        ),
        compiler_params=pltpu.CompilerParams(
            dimension_semantics=("parallel", "parallel"),
            vmem_limit_bytes=32 * 1024 * 1024),
    )(x_pad, w1, b1, w2, b2, w3, b3, w4, b4, lrow, pcol)
    return out.reshape(N, 1, H * r, W * r)                          # NCHW


# -----------------------------------------------------------------------------
# Parameter init (deterministic, synthetic)
# -----------------------------------------------------------------------------
def init_params(key, upscale_factor):
    # TODO(synk): torch uses init.orthogonal_ with relu gain; a scaled normal
    # init is used here since this is a synthetic kernel, not a checkpoint load.
    def conv_w(k, kh, kw, cin, cout, gain):
        fan_in = kh * kw * cin
        return (gain / jnp.sqrt(fan_in)) * jax.random.normal(
            k, (kh, kw, cin, cout), jnp.float32)

    ks = jax.random.split(key, 8)
    g = jnp.sqrt(2.0)
    r2 = upscale_factor ** 2
    return {
        "w1": conv_w(ks[0], 5, 5, 1, 64, g),
        "b1": 0.01 * jax.random.normal(ks[1], (64,), jnp.float32),
        "w2": conv_w(ks[2], 3, 3, 64, 64, g),
        "b2": 0.01 * jax.random.normal(ks[3], (64,), jnp.float32),
        "w3": conv_w(ks[4], 3, 3, 64, 32, g),
        "b3": 0.01 * jax.random.normal(ks[5], (32,), jnp.float32),
        "w4": conv_w(ks[6], 3, 3, 32, r2, 1.0),
        "b4": 0.01 * jax.random.normal(ks[7], (r2,), jnp.float32),
    }


# -----------------------------------------------------------------------------
# Pure-JAX reference (mirrors the kernel's bf16 quantization points)
# -----------------------------------------------------------------------------
def _ref_forward(params, x_nchw, upscale_factor, compute_dtype=jnp.bfloat16):
    r = upscale_factor

    def conv(x, w, b, relu):
        y = lax.conv_general_dilated(
            x.astype(compute_dtype), w.astype(compute_dtype),
            window_strides=(1, 1), padding="SAME",
            dimension_numbers=("NHWC", "HWIO", "NHWC"),
            preferred_element_type=jnp.float32)
        y = y + b.reshape(1, 1, 1, -1).astype(jnp.float32)
        return jnp.maximum(y, 0.0) if relu else y

    x = jnp.transpose(x_nchw, (0, 2, 3, 1))
    x = conv(x, params["w1"], params["b1"], True)
    x = conv(x, params["w2"], params["b2"], True)
    x = conv(x, params["w3"], params["b3"], True)
    x = conv(x, params["w4"], params["b4"], False)
    N, H, W, _ = x.shape
    x = x.reshape(N, H, W, r, r)
    x = jnp.transpose(x, (0, 1, 3, 2, 4))
    return x.reshape(N, 1, H * r, W * r)


if __name__ == "__main__":
    upscale = 3
    key = jax.random.PRNGKey(0)
    pkey, xkey = jax.random.split(key)

    params = init_params(pkey, upscale)
    # Small NCHW input consistent with the module (nominal torch size is
    # (1, 1, 224, 224)).  block_rows=8 exercises the multi-strip + halo path.
    x = jax.random.normal(xkey, (2, 1, 16, 16), jnp.float32)

    out = super_resolution_forward(params, x, upscale, block_rows=8)
    out = jax.block_until_ready(out)

    assert out.shape == (2, 1, 16 * upscale, 16 * upscale), out.shape
    ref = _ref_forward(params, x, upscale)
    err = float(jnp.max(jnp.abs(out - ref)))
    assert jnp.allclose(out, ref, atol=3e-2, rtol=3e-2), err

    print("KERNEL_OK")
</pallas_src>

<mosaic_0001>
module attributes {stable_mosaic.version = 11 : i64} {
  func.func @_superres_fused_kernel(%arg0: i32, %arg1: i32, %arg2: memref<1x26x20xbf16, #tpu.memory_space<vmem>>, %arg3: memref<25x64xbf16, #tpu.memory_space<vmem>>, %arg4: memref<1x64xf32, #tpu.memory_space<vmem>>, %arg5: memref<576x64xbf16, #tpu.memory_space<vmem>>, %arg6: memref<1x64xf32, #tpu.memory_space<vmem>>, %arg7: memref<576x32xbf16, #tpu.memory_space<vmem>>, %arg8: memref<1x32xf32, #tpu.memory_space<vmem>>, %arg9: memref<288x9xbf16, #tpu.memory_space<vmem>>, %arg10: memref<1x9xf32, #tpu.memory_space<vmem>>, %arg11: memref<24x24xbf16, #tpu.memory_space<vmem>>, %arg12: memref<48x48xbf16, #tpu.memory_space<vmem>>, %arg13: memref<1x24x48xf32, #tpu.memory_space<vmem>>) attributes {dimension_semantics = [#tpu.dimension_semantics<parallel>, #tpu.dimension_semantics<parallel>], iteration_bounds = array<i64: 2, 2>, scalar_prefetch = 0 : i64, scratch_operands = 0 : i64, tpu.core_type = #tpu.core_type<tc>, window_params = [{transform_indices = @transform_0, window_bounds = array<i64: 1, 26, 20>}, {pipeline_mode = #tpu.pipeline_mode<synchronous>, transform_indices = @transform_1, window_bounds = array<i64: 25, 64>}, {pipeline_mode = #tpu.pipeline_mode<synchronous>, transform_indices = @transform_2, window_bounds = array<i64: 1, 64>}, {pipeline_mode = #tpu.pipeline_mode<synchronous>, transform_indices = @transform_3, window_bounds = array<i64: 576, 64>}, {pipeline_mode = #tpu.pipeline_mode<synchronous>, transform_indices = @transform_4, window_bounds = array<i64: 1, 64>}, {pipeline_mode = #tpu.pipeline_mode<synchronous>, transform_indices = @transform_5, window_bounds = array<i64: 576, 32>}, {pipeline_mode = #tpu.pipeline_mode<synchronous>, transform_indices = @transform_6, window_bounds = array<i64: 1, 32>}, {pipeline_mode = #tpu.pipeline_mode<synchronous>, transform_indices = @transform_7, window_bounds = array<i64: 288, 9>}, {pipeline_mode = #tpu.pipeline_mode<synchronous>, transform_indices = @transform_8, window_bounds = array<i64: 1, 9>}, {pipeline_mode = #tpu.pipeline_mode<synchronous>, transform_indices = @transform_9, window_bounds = array<i64: 24, 24>}, {pipeline_mode = #tpu.pipeline_mode<synchronous>, transform_indices = @transform_10, window_bounds = array<i64: 48, 48>}, {transform_indices = @transform_11, window_bounds = array<i64: 1, 24, 48>}]} {
    %c8_i32 = arith.constant 8 : i32
    %0 = arith.muli %arg1, %c8_i32 : i32
    %1 = tpu.assume_multiple %0, 8 : i32
    %c0 = arith.constant 0 : index
    %2 = arith.index_cast %1 : i32 to index
    %c0_0 = arith.constant 0 : index
    %3 = vector.load %arg2[%c0, %2, %c0_0] : memref<1x26x20xbf16, #tpu.memory_space<vmem>>, vector<1x18x20xbf16>
    %4 = vector.shape_cast %3 : vector<1x18x20xbf16> to vector<18x20xbf16>
    %5 = vector.extract_strided_slice %4 {offsets = [0, 0], sizes = [14, 16], strides = [1, 1]} : vector<18x20xbf16> to vector<14x16xbf16>
    %6 = vector.extract_strided_slice %4 {offsets = [0, 1], sizes = [14, 16], strides = [1, 1]} : vector<18x20xbf16> to vector<14x16xbf16>
    %7 = vector.extract_strided_slice %4 {offsets = [0, 2], sizes = [14, 16], strides = [1, 1]} : vector<18x20xbf16> to vector<14x16xbf16>
    %8 = vector.extract_strided_slice %4 {offsets = [0, 3], sizes = [14, 16], strides = [1, 1]} : vector<18x20xbf16> to vector<14x16xbf16>
    %9 = vector.extract_strided_slice %4 {offsets = [0, 4], sizes = [14, 16], strides = [1, 1]} : vector<18x20xbf16> to vector<14x16xbf16>
    %10 = vector.extract_strided_slice %4 {offsets = [1, 0], sizes = [14, 16], strides = [1, 1]} : vector<18x20xbf16> to vector<14x16xbf16>
    %11 = vector.extract_strided_slice %4 {offsets = [1, 1], sizes = [14, 16], strides = [1, 1]} : vector<18x20xbf16> to vector<14x16xbf16>
    %12 = vector.extract_strided_slice %4 {offsets = [1, 2], sizes = [14, 16], strides = [1, 1]} : vector<18x20xbf16> to vector<14x16xbf16>
    %13 = vector.extract_strided_slice %4 {offsets = [1, 3], sizes = [14, 16], strides = [1, 1]} : vector<18x20xbf16> to vector<14x16xbf16>
    %14 = vector.extract_strided_slice %4 {offsets = [1, 4], sizes = [14, 16], strides = [1, 1]} : vector<18x20xbf16> to vector<14x16xbf16>
    %15 = vector.extract_strided_slice %4 {offsets = [2, 0], sizes = [14, 16], strides = [1, 1]} : vector<18x20xbf16> to vector<14x16xbf16>
    %16 = vector.extract_strided_slice %4 {offsets = [2, 1], sizes = [14, 16], strides = [1, 1]} : vector<18x20xbf16> to vector<14x16xbf16>
    %17 = vector.extract_strided_slice %4 {offsets = [2, 2], sizes = [14, 16], strides = [1, 1]} : vector<18x20xbf16> to vector<14x16xbf16>
    %18 = vector.extract_strided_slice %4 {offsets = [2, 3], sizes = [14, 16], strides = [1, 1]} : vector<18x20xbf16> to vector<14x16xbf16>
    %19 = vector.extract_strided_slice %4 {offsets = [2, 4], sizes = [14, 16], strides = [1, 1]} : vector<18x20xbf16> to vector<14x16xbf16>
    %20 = vector.extract_strided_slice %4 {offsets = [3, 0], sizes = [14, 16], strides = [1, 1]} : vector<18x20xbf16> to vector<14x16xbf16>
    %21 = vector.extract_strided_slice %4 {offsets = [3, 1], sizes = [14, 16], strides = [1, 1]} : vector<18x20xbf16> to vector<14x16xbf16>
    %22 = vector.extract_strided_slice %4 {offsets = [3, 2], sizes = [14, 16], strides = [1, 1]} : vector<18x20xbf16> to vector<14x16xbf16>
    %23 = vector.extract_strided_slice %4 {offsets = [3, 3], sizes = [14, 16], strides = [1, 1]} : vector<18x20xbf16> to vector<14x16xbf16>
    %24 = vector.extract_strided_slice %4 {offsets = [3, 4], sizes = [14, 16], strides = [1, 1]} : vector<18x20xbf16> to vector<14x16xbf16>
    %25 = vector.extract_strided_slice %4 {offsets = [4, 0], sizes = [14, 16], strides = [1, 1]} : vector<18x20xbf16> to vector<14x16xbf16>
    %26 = vector.extract_strided_slice %4 {offsets = [4, 1], sizes = [14, 16], strides = [1, 1]} : vector<18x20xbf16> to vector<14x16xbf16>
    %27 = vector.extract_strided_slice %4 {offsets = [4, 2], sizes = [14, 16], strides = [1, 1]} : vector<18x20xbf16> to vector<14x16xbf16>
    %28 = vector.extract_strided_slice %4 {offsets = [4, 3], sizes = [14, 16], strides = [1, 1]} : vector<18x20xbf16> to vector<14x16xbf16>
    %29 = vector.extract_strided_slice %4 {offsets = [4, 4], sizes = [14, 16], strides = [1, 1]} : vector<18x20xbf16> to vector<14x16xbf16>
    %30 = vector.shape_cast %5 : vector<14x16xbf16> to vector<14x1x16xbf16>
    %31 = vector.shape_cast %6 : vector<14x16xbf16> to vector<14x1x16xbf16>
    %32 = vector.shape_cast %7 : vector<14x16xbf16> to vector<14x1x16xbf16>
    %33 = vector.shape_cast %8 : vector<14x16xbf16> to vector<14x1x16xbf16>
    %34 = vector.shape_cast %9 : vector<14x16xbf16> to vector<14x1x16xbf16>
    %35 = vector.shape_cast %10 : vector<14x16xbf16> to vector<14x1x16xbf16>
    %36 = vector.shape_cast %11 : vector<14x16xbf16> to vector<14x1x16xbf16>
    %37 = vector.shape_cast %12 : vector<14x16xbf16> to vector<14x1x16xbf16>
    %38 = vector.shape_cast %13 : vector<14x16xbf16> to vector<14x1x16xbf16>
    %39 = vector.shape_cast %14 : vector<14x16xbf16> to vector<14x1x16xbf16>
    %40 = vector.shape_cast %15 : vector<14x16xbf16> to vector<14x1x16xbf16>
    %41 = vector.shape_cast %16 : vector<14x16xbf16> to vector<14x1x16xbf16>
    %42 = vector.shape_cast %17 : vector<14x16xbf16> to vector<14x1x16xbf16>
    %43 = vector.shape_cast %18 : vector<14x16xbf16> to vector<14x1x16xbf16>
    %44 = vector.shape_cast %19 : vector<14x16xbf16> to vector<14x1x16xbf16>
    %45 = vector.shape_cast %20 : vector<14x16xbf16> to vector<14x1x16xbf16>
    %46 = vector.shape_cast %21 : vector<14x16xbf16> to vector<14x1x16xbf16>
    %47 = vector.shape_cast %22 : vector<14x16xbf16> to vector<14x1x16xbf16>
    %48 = vector.shape_cast %23 : vector<14x16xbf16> to vector<14x1x16xbf16>
    %49 = vector.shape_cast %24 : vector<14x16xbf16> to vector<14x1x16xbf16>
    %50 = vector.shape_cast %25 : vector<14x16xbf16> to vector<14x1x16xbf16>
    %51 = vector.shape_cast %26 : vector<14x16xbf16> to vector<14x1x16xbf16>
    %52 = vector.shape_cast %27 : vector<14x16xbf16> to vector<14x1x16xbf16>
    %53 = vector.shape_cast %28 : vector<14x16xbf16> to vector<14x1x16xbf16>
    %54 = vector.shape_cast %29 : vector<14x16xbf16> to vector<14x1x16xbf16>
    %55 = tpu.concatenate %30, %31, %32, %33, %34, %35, %36, %37, %38, %39, %40, %41, %42, %43, %44, %45 in 1 : vector<14x1x16xbf16>, vector<14x1x16xbf16>, vector<14x1x16xbf16>, vector<14x1x16xbf16>, vector<14x1x16xbf16>, vector<14x1x16xbf16>, vector<14x1x16xbf16>, vector<14x1x16xbf16>, vector<14x1x16xbf16>, vector<14x1x16xbf16>, vector<14x1x16xbf16>, vector<14x1x16xbf16>, vector<14x1x16xbf16>, vector<14x1x16xbf16>, vector<14x1x16xbf16>, vector<14x1x16xbf16> -> vector<14x16x16xbf16>
    %56 = tpu.concatenate %46, %47, %48, %49, %50, %51, %52, %53, %54 in 1 : vector<14x1x16xbf16>, vector<14x1x16xbf16>, vector<14x1x16xbf16>, vector<14x1x16xbf16>, vector<14x1x16xbf16>, vector<14x1x16xbf16>, vector<14x1x16xbf16>, vector<14x1x16xbf16>, vector<14x1x16xbf16> -> vector<14x9x16xbf16>
    %57 = tpu.concatenate %55, %56 in 1 : vector<14x16x16xbf16>, vector<14x9x16xbf16> -> vector<14x25x16xbf16>
    %58 = tpu.transpose %57, [0, 2, 1] : vector<14x25x16xbf16> -> vector<14x16x25xbf16>
    %59 = vector.shape_cast %58 : vector<14x16x25xbf16> to vector<224x25xbf16>
    %c0_1 = arith.constant 0 : index
    %c0_2 = arith.constant 0 : index
    %60 = vector.load %arg3[%c0_1, %c0_2] : memref<25x64xbf16, #tpu.memory_space<vmem>>, vector<25x64xbf16>
    %cst = arith.constant dense<0.000000e+00> : vector<224x64xf32>
    %61 = tpu.matmul %59, %60, %cst {dimension_numbers = #tpu.dot_dimension_numbers<[1], [0], [0], [1], [0, 0, 1, 1], [], []>} : vector<224x25xbf16>, vector<25x64xbf16>, vector<224x64xf32> -> vector<224x64xf32>
    %c0_3 = arith.constant 0 : index
    %c0_4 = arith.constant 0 : index
    %62 = vector.load %arg4[%c0_3, %c0_4] : memref<1x64xf32, #tpu.memory_space<vmem>>, vector<1x64xf32>
    %63 = vector.broadcast %62 : vector<1x64xf32> to vector<224x64xf32>
    %64 = arith.addf %61, %63 : vector<224x64xf32>
    %cst_5 = arith.constant 0.000000e+00 : f32
    %65 = vector.broadcast %cst_5 : f32 to vector<224x64xf32>
    %66 = arith.maximumf %64, %65 : vector<224x64xf32>
    %67 = vector.shape_cast %66 : vector<224x64xf32> to vector<14x16x64xf32>
    %c3_i32 = arith.constant 3 : i32
    %68 = arith.subi %0, %c3_i32 : i32
    %69 = tpu.iota {dimensions = array<i32: 0>} : vector<14x1x1xi32>
    %70 = vector.broadcast %68 : i32 to vector<14x1x1xi32>
    %71 = arith.addi %69, %70 : vector<14x1x1xi32>
    %c0_i32 = arith.constant 0 : i32
    %72 = vector.broadcast %c0_i32 : i32 to vector<14x1x1xi32>
    %73 = arith.cmpi sge, %71, %72 : vector<14x1x1xi32>
    %c16_i32 = arith.constant 16 : i32
    %74 = vector.broadcast %c16_i32 : i32 to vector<14x1x1xi32>
    %75 = arith.cmpi slt, %71, %74 : vector<14x1x1xi32>
    %76 = arith.andi %73, %75 : vector<14x1x1xi1>
    %77 = arith.extui %76 : vector<14x1x1xi1> to vector<14x1x1xi32>
    %78 = arith.sitofp %77 : vector<14x1x1xi32> to vector<14x1x1xf32>
    %79 = vector.broadcast %78 : vector<14x1x1xf32> to vector<14x16x64xf32>
    %80 = arith.mulf %67, %79 : vector<14x16x64xf32>
    %81 = arith.truncf %80 : vector<14x16x64xf32> to vector<14x16x64xbf16>
    %cst_6 = arith.constant 0.000000e+00 : bf16
    %82 = vector.broadcast %cst_6 : bf16 to vector<14x1x64xbf16>
    %83 = tpu.concatenate %82, %81, %82 in 1 : vector<14x1x64xbf16>, vector<14x16x64xbf16>, vector<14x1x64xbf16> -> vector<14x18x64xbf16>
    %cst_7 = arith.constant 0.000000e+00 : f32
    %84 = vector.broadcast %cst_7 : f32 to vector<192x64xf32>
    %85 = vector.extract_strided_slice %83 {offsets = [0, 0, 0], sizes = [12, 16, 64], strides = [1, 1, 1]} : vector<14x18x64xbf16> to vector<12x16x64xbf16>
    %86 = vector.shape_cast %85 : vector<12x16x64xbf16> to vector<192x64xbf16>
    %c0_8 = arith.constant 0 : index
    %c0_9 = arith.constant 0 : index
    %87 = vector.load %arg5[%c0_8, %c0_9] : memref<576x64xbf16, #tpu.memory_space<vmem>>, vector<64x64xbf16>
    %cst_10 = arith.constant dense<0.000000e+00> : vector<192x64xf32>
    %88 = tpu.matmul %86, %87, %cst_10 {dimension_numbers = #tpu.dot_dimension_numbers<[1], [0], [0], [1], [0, 0, 1, 1], [], []>} : vector<192x64xbf16>, vector<64x64xbf16>, vector<192x64xf32> -> vector<192x64xf32>
    %89 = arith.addf %84, %88 : vector<192x64xf32>
    %90 = vector.extract_strided_slice %83 {offsets = [0, 1, 0], sizes = [12, 16, 64], strides = [1, 1, 1]} : vector<14x18x64xbf16> to vector<12x16x64xbf16>
    %91 = vector.shape_cast %90 : vector<12x16x64xbf16> to vector<192x64xbf16>
    %c64 = arith.constant 64 : index
    %c0_11 = arith.constant 0 : index
    %92 = vector.load %arg5[%c64, %c0_11] : memref<576x64xbf16, #tpu.memory_space<vmem>>, vector<64x64xbf16>
    %cst_12 = arith.constant dense<0.000000e+00> : vector<192x64xf32>
    %93 = tpu.matmul %91, %92, %cst_12 {dimension_numbers = #tpu.dot_dimension_numbers<[1], [0], [0], [1], [0, 0, 1, 1], [], []>} : vector<192x64xbf16>, vector<64x64xbf16>, vector<192x64xf32> -> vector<192x64xf32>
    %94 = arith.addf %89, %93 : vector<192x64xf32>
    %95 = vector.extract_strided_slice %83 {offsets = [0, 2, 0], sizes = [12, 16, 64], strides = [1, 1, 1]} : vector<14x18x64xbf16> to vector<12x16x64xbf16>
    %96 = vector.shape_cast %95 : vector<12x16x64xbf16> to vector<192x64xbf16>
    %c128 = arith.constant 128 : index
    %c0_13 = arith.constant 0 : index
    %97 = vector.load %arg5[%c128, %c0_13] : memref<576x64xbf16, #tpu.memory_space<vmem>>, vector<64x64xbf16>
    %cst_14 = arith.constant dense<0.000000e+00> : vector<192x64xf32>
    %98 = tpu.matmul %96, %97, %cst_14 {dimension_numbers = #tpu.dot_dimension_numbers<[1], [0], [0], [1], [0, 0, 1, 1], [], []>} : vector<192x64xbf16>, vector<64x64xbf16>, vector<192x64xf32> -> vector<192x64xf32>
    %99 = arith.addf %94, %98 : vector<192x64xf32>
    %100 = vector.extract_strided_slice %83 {offsets = [1, 0, 0], sizes = [12, 16, 64], strides = [1, 1, 1]} : vector<14x18x64xbf16> to vector<12x16x64xbf16>
    %101 = vector.shape_cast %100 : vector<12x16x64xbf16> to vector<192x64xbf16>
    %c192 = arith.constant 192 : index
    %c0_15 = arith.constant 0 : index
    %102 = vector.load %arg5[%c192, %c0_15] : memref<576x64xbf16, #tpu.memory_space<vmem>>, vector<64x64xbf16>
    %cst_16 = arith.constant dense<0.000000e+00> : vector<192x64xf32>
    %103 = tpu.matmul %101, %102, %cst_16 {dimension_numbers = #tpu.dot_dimension_numbers<[1], [0], [0], [1], [0, 0, 1, 1], [], []>} : vector<192x64xbf16>, vector<64x64xbf16>, vector<192x64xf32> -> vector<192x64xf32>
    %104 = arith.addf %99, %103 : vector<192x64xf32>
    %105 = vector.extract_strided_slice %83 {offsets = [1, 1, 0], sizes = [12, 16, 64], strides = [1, 1, 1]} : vector<14x18x64xbf16> to vector<12x16x64xbf16>
    %106 = vector.shape_cast %105 : vector<12x16x64xbf16> to vector<192x64xbf16>
    %c256 = arith.constant 256 : index
    %c0_17 = arith.constant 0 : index
    %107 = vector.load %arg5[%c256, %c0_17] : memref<576x64xbf16, #tpu.memory_space<vmem>>, vector<64x64xbf16>
    %cst_18 = arith.constant dense<0.000000e+00> : vector<192x64xf32>
    %108 = tpu.matmul %106, %107, %cst_18 {dimension_numbers = #tpu.dot_dimension_numbers<[1], [0], [0], [1], [0, 0, 1, 1], [], []>} : vector<192x64xbf16>, vector<64x64xbf16>, vector<192x64xf32> -> vector<192x64xf32>
    %109 = arith.addf %104, %108 : vector<192x64xf32>
    %110 = vector.extract_strided_slice %83 {offsets = [1, 2, 0], sizes = [12, 16, 64], strides = [1, 1, 1]} : vector<14x18x64xbf16> to vector<12x16x64xbf16>
    %111 = vector.shape_cast %110 : vector<12x16x64xbf16> to vector<192x64xbf16>
    %c320 = arith.constant 320 : index
    %c0_19 = arith.constant 0 : index
    %112 = vector.load %arg5[%c320, %c0_19] : memref<576x64xbf16, #tpu.memory_space<vmem>>, vector<64x64xbf16>
    %cst_20 = arith.constant dense<0.000000e+00> : vector<192x64xf32>
    %113 = tpu.matmul %111, %112, %cst_20 {dimension_numbers = #tpu.dot_dimension_numbers<[1], [0], [0], [1], [0, 0, 1, 1], [], []>} : vector<192x64xbf16>, vector<64x64xbf16>, vector<192x64xf32> -> vector<192x64xf32>
    %114 = arith.addf %109, %113 : vector<192x64xf32>
    %115 = vector.extract_strided_slice %83 {offsets = [2, 0, 0], sizes = [12, 16, 64], strides = [1, 1, 1]} : vector<14x18x64xbf16> to vector<12x16x64xbf16>
    %116 = vector.shape_cast %115 : vector<12x16x64xbf16> to vector<192x64xbf16>
    %c384 = arith.constant 384 : index
    %c0_21 = arith.constant 0 : index
    %117 = vector.load %arg5[%c384, %c0_21] : memref<576x64xbf16, #tpu.memory_space<vmem>>, vector<64x64xbf16>
    %cst_22 = arith.constant dense<0.000000e+00> : vector<192x64xf32>
    %118 = tpu.matmul %116, %117, %cst_22 {dimension_numbers = #tpu.dot_dimension_numbers<[1], [0], [0], [1], [0, 0, 1, 1], [], []>} : vector<192x64xbf16>, vector<64x64xbf16>, vector<192x64xf32> -> vector<192x64xf32>
    %119 = arith.addf %114, %118 : vector<192x64xf32>
    %120 = vector.extract_strided_slice %83 {offsets = [2, 1, 0], sizes = [12, 16, 64], strides = [1, 1, 1]} : vector<14x18x64xbf16> to vector<12x16x64xbf16>
    %121 = vector.shape_cast %120 : vector<12x16x64xbf16> to vector<192x64xbf16>
    %c448 = arith.constant 448 : index
    %c0_23 = arith.constant 0 : index
    %122 = vector.load %arg5[%c448, %c0_23] : memref<576x64xbf16, #tpu.memory_space<vmem>>, vector<64x64xbf16>
    %cst_24 = arith.constant dense<0.000000e+00> : vector<192x64xf32>
    %123 = tpu.matmul %121, %122, %cst_24 {dimension_numbers = #tpu.dot_dimension_numbers<[1], [0], [0], [1], [0, 0, 1, 1], [], []>} : vector<192x64xbf16>, vector<64x64xbf16>, vector<192x64xf32> -> vector<192x64xf32>
    %124 = arith.addf %119, %123 : vector<192x64xf32>
    %125 = vector.extract_strided_slice %83 {offsets = [2, 2, 0], sizes = [12, 16, 64], strides = [1, 1, 1]} : vector<14x18x64xbf16> to vector<12x16x64xbf16>
    %126 = vector.shape_cast %125 : vector<12x16x64xbf16> to vector<192x64xbf16>
    %c512 = arith.constant 512 : index
    %c0_25 = arith.constant 0 : index
    %127 = vector.load %arg5[%c512, %c0_25] : memref<576x64xbf16, #tpu.memory_space<vmem>>, vector<64x64xbf16>
    %cst_26 = arith.constant dense<0.000000e+00> : vector<192x64xf32>
    %128 = tpu.matmul %126, %127, %cst_26 {dimension_numbers = #tpu.dot_dimension_numbers<[1], [0], [0], [1], [0, 0, 1, 1], [], []>} : vector<192x64xbf16>, vector<64x64xbf16>, vector<192x64xf32> -> vector<192x64xf32>
    %129 = arith.addf %124, %128 : vector<192x64xf32>
    %c0_27 = arith.constant 0 : index
    %c0_28 = arith.constant 0 : index
    %130 = vector.load %arg6[%c0_27, %c0_28] : memref<1x64xf32, #tpu.memory_space<vmem>>, vector<1x64xf32>
    %131 = vector.broadcast %130 : vector<1x64xf32> to vector<192x64xf32>
    %132 = arith.addf %129, %131 : vector<192x64xf32>
    %cst_29 = arith.constant 0.000000e+00 : f32
    %133 = vector.broadcast %cst_29 : f32 to vector<192x64xf32>
    %134 = arith.maximumf %132, %133 : vector<192x64xf32>
    %135 = vector.shape_cast %134 : vector<192x64xf32> to vector<12x16x64xf32>
    %c2_i32 = arith.constant 2 : i32
    %136 = arith.subi %0, %c2_i32 : i32
    %137 = tpu.iota {dimensions = array<i32: 0>} : vector<12x1x1xi32>
    %138 = vector.broadcast %136 : i32 to vector<12x1x1xi32>
    %139 = arith.addi %137, %138 : vector<12x1x1xi32>
    %c0_i32_30 = arith.constant 0 : i32
    %140 = vector.broadcast %c0_i32_30 : i32 to vector<12x1x1xi32>
    %141 = arith.cmpi sge, %139, %140 : vector<12x1x1xi32>
    %c16_i32_31 = arith.constant 16 : i32
    %142 = vector.broadcast %c16_i32_31 : i32 to vector<12x1x1xi32>
    %143 = arith.cmpi slt, %139, %142 : vector<12x1x1xi32>
    %144 = arith.andi %141, %143 : vector<12x1x1xi1>
    %145 = arith.extui %144 : vector<12x1x1xi1> to vector<12x1x1xi32>
    %146 = arith.sitofp %145 : vector<12x1x1xi32> to vector<12x1x1xf32>
    %147 = vector.broadcast %146 : vector<12x1x1xf32> to vector<12x16x64xf32>
    %148 = arith.mulf %135, %147 : vector<12x16x64xf32>
    %149 = arith.truncf %148 : vector<12x16x64xf32> to vector<12x16x64xbf16>
    %cst_32 = arith.constant 0.000000e+00 : bf16
    %150 = vector.broadcast %cst_32 : bf16 to vector<12x1x64xbf16>
    %151 = tpu.concatenate %150, %149, %150 in 1 : vector<12x1x64xbf16>, vector<12x16x64xbf16>, vector<12x1x64xbf16> -> vector<12x18x64xbf16>
    %cst_33 = arith.constant 0.000000e+00 : f32
    %152 = vector.broadcast %cst_33 : f32 to vector<160x32xf32>
    %153 = vector.extract_strided_slice %151 {offsets = [0, 0, 0], sizes = [10, 16, 64], strides = [1, 1, 1]} : vector<12x18x64xbf16> to vector<10x16x64xbf16>
    %154 = vector.shape_cast %153 : vector<10x16x64xbf16> to vector<160x64xbf16>
    %c0_34 = arith.constant 0 : index
    %c0_35 = arith.constant 0 : index
    %155 = vector.load %arg7[%c0_34, %c0_35] : memref<576x32xbf16, #tpu.memory_space<vmem>>, vector<64x32xbf16>
    %cst_36 = arith.constant dense<0.000000e+00> : vector<160x32xf32>
    %156 = tpu.matmul %154, %155, %cst_36 {dimension_numbers = #tpu.dot_dimension_numbers<[1], [0], [0], [1], [0, 0, 1, 1], [], []>} : vector<160x64xbf16>, vector<64x32xbf16>, vector<160x32xf32> -> vector<160x32xf32>
    %157 = arith.addf %152, %156 : vector<160x32xf32>
    %158 = vector.extract_strided_slice %151 {offsets = [0, 1, 0], sizes = [10, 16, 64], strides = [1, 1, 1]} : vector<12x18x64xbf16> to vector<10x16x64xbf16>
    %159 = vector.shape_cast %158 : vector<10x16x64xbf16> to vector<160x64xbf16>
    %c64_37 = arith.constant 64 : index
    %c0_38 = arith.constant 0 : index
    %160 = vector.load %arg7[%c64_37, %c0_38] : memref<576x32xbf16, #tpu.memory_space<vmem>>, vector<64x32xbf16>
    %cst_39 = arith.constant dense<0.000000e+00> : vector<160x32xf32>
    %161 = tpu.matmul %159, %160, %cst_39 {dimension_numbers = #tpu.dot_dimension_numbers<[1], [0], [0], [1], [0, 0, 1, 1], [], []>} : vector<160x64xbf16>, vector<64x32xbf16>, vector<160x32xf32> -> vector<160x32xf32>
    %162 = arith.addf %157, %161 : vector<160x32xf32>
    %163 = vector.extract_strided_slice %151 {offsets = [0, 2, 0], sizes = [10, 16, 64], strides = [1, 1, 1]} : vector<12x18x64xbf16> to vector<10x16x64xbf16>
    %164 = vector.shape_cast %163 : vector<10x16x64xbf16> to vector<160x64xbf16>
    %c128_40 = arith.constant 128 : index
    %c0_41 = arith.constant 0 : index
    %165 = vector.load %arg7[%c128_40, %c0_41] : memref<576x32xbf16, #tpu.memory_space<vmem>>, vector<64x32xbf16>
    %cst_42 = arith.constant dense<0.000000e+00> : vector<160x32xf32>
    %166 = tpu.matmul %164, %165, %cst_42 {dimension_numbers = #tpu.dot_dimension_numbers<[1], [0], [0], [1], [0, 0, 1, 1], [], []>} : vector<160x64xbf16>, vector<64x32xbf16>, vector<160x32xf32> -> vector<160x32xf32>
    %167 = arith.addf %162, %166 : vector<160x32xf32>
    %168 = vector.extract_strided_slice %151 {offsets = [1, 0, 0], sizes = [10, 16, 64], strides = [1, 1, 1]} : vector<12x18x64xbf16> to vector<10x16x64xbf16>
    %169 = vector.shape_cast %168 : vector<10x16x64xbf16> to vector<160x64xbf16>
    %c192_43 = arith.constant 192 : index
    %c0_44 = arith.constant 0 : index
    %170 = vector.load %arg7[%c192_43, %c0_44] : memref<576x32xbf16, #tpu.memory_space<vmem>>, vector<64x32xbf16>
    %cst_45 = arith.constant dense<0.000000e+00> : vector<160x32xf32>
    %171 = tpu.matmul %169, %170, %cst_45 {dimension_numbers = #tpu.dot_dimension_numbers<[1], [0], [0], [1], [0, 0, 1, 1], [], []>} : vector<160x64xbf16>, vector<64x32xbf16>, vector<160x32xf32> -> vector<160x32xf32>
    %172 = arith.addf %167, %171 : vector<160x32xf32>
    %173 = vector.extract_strided_slice %151 {offsets = [1, 1, 0], sizes = [10, 16, 64], strides = [1, 1, 1]} : vector<12x18x64xbf16> to vector<10x16x64xbf16>
    %174 = vector.shape_cast %173 : vector<10x16x64xbf16> to vector<160x64xbf16>
    %c256_46 = arith.constant 256 : index
    %c0_47 = arith.constant 0 : index
    %175 = vector.load %arg7[%c256_46, %c0_47] : memref<576x32xbf16, #tpu.memory_space<vmem>>, vector<64x32xbf16>
    %cst_48 = arith.constant dense<0.000000e+00> : vector<160x32xf32>
    %176 = tpu.matmul %174, %175, %cst_48 {dimension_numbers = #tpu.dot_dimension_numbers<[1], [0], [0], [1], [0, 0, 1, 1], [], []>} : vector<160x64xbf16>, vector<64x32xbf16>, vector<160x32xf32> -> vector<160x32xf32>
    %177 = arith.addf %172, %176 : vector<160x32xf32>
    %178 = vector.extract_strided_slice %151 {offsets = [1, 2, 0], sizes = [10, 16, 64], strides = [1, 1, 1]} : vector<12x18x64xbf16> to vector<10x16x64xbf16>
    %179 = vector.shape_cast %178 : vector<10x16x64xbf16> to vector<160x64xbf16>
    %c320_49 = arith.constant 320 : index
    %c0_50 = arith.constant 0 : index
    %180 = vector.load %arg7[%c320_49, %c0_50] : memref<576x32xbf16, #tpu.memory_space<vmem>>, vector<64x32xbf16>
    %cst_51 = arith.constant dense<0.000000e+00> : vector<160x32xf32>
    %181 = tpu.matmul %179, %180, %cst_51 {dimension_numbers = #tpu.dot_dimension_numbers<[1], [0], [0], [1], [0, 0, 1, 1], [], []>} : vector<160x64xbf16>, vector<64x32xbf16>, vector<160x32xf32> -> vector<160x32xf32>
    %182 = arith.addf %177, %181 : vector<160x32xf32>
    %183 = vector.extract_strided_slice %151 {offsets = [2, 0, 0], sizes = [10, 16, 64], strides = [1, 1, 1]} : vector<12x18x64xbf16> to vector<10x16x64xbf16>
    %184 = vector.shape_cast %183 : vector<10x16x64xbf16> to vector<160x64xbf16>
    %c384_52 = arith.constant 384 : index
    %c0_53 = arith.constant 0 : index
    %185 = vector.load %arg7[%c384_52, %c0_53] : memref<576x32xbf16, #tpu.memory_space<vmem>>, vector<64x32xbf16>
    %cst_54 = arith.constant dense<0.000000e+00> : vector<160x32xf32>
    %186 = tpu.matmul %184, %185, %cst_54 {dimension_numbers = #tpu.dot_dimension_numbers<[1], [0], [0], [1], [0, 0, 1, 1], [], []>} : vector<160x64xbf16>, vector<64x32xbf16>, vector<160x32xf32> -> vector<160x32xf32>
    %187 = arith.addf %182, %186 : vector<160x32xf32>
    %188 = vector.extract_strided_slice %151 {offsets = [2, 1, 0], sizes = [10, 16, 64], strides = [1, 1, 1]} : vector<12x18x64xbf16> to vector<10x16x64xbf16>
    %189 = vector.shape_cast %188 : vector<10x16x64xbf16> to vector<160x64xbf16>
    %c448_55 = arith.constant 448 : index
    %c0_56 = arith.constant 0 : index
    %190 = vector.load %arg7[%c448_55, %c0_56] : memref<576x32xbf16, #tpu.memory_space<vmem>>, vector<64x32xbf16>
    %cst_57 = arith.constant dense<0.000000e+00> : vector<160x32xf32>
    %191 = tpu.matmul %189, %190, %cst_57 {dimension_numbers = #tpu.dot_dimension_numbers<[1], [0], [0], [1], [0, 0, 1, 1], [], []>} : vector<160x64xbf16>, vector<64x32xbf16>, vector<160x32xf32> -> vector<160x32xf32>
    %192 = arith.addf %187, %191 : vector<160x32xf32>
    %193 = vector.extract_strided_slice %151 {offsets = [2, 2, 0], sizes = [10, 16, 64], strides = [1, 1, 1]} : vector<12x18x64xbf16> to vector<10x16x64xbf16>
    %194 = vector.shape_cast %193 : vector<10x16x64xbf16> to vector<160x64xbf16>
    %c512_58 = arith.constant 512 : index
    %c0_59 = arith.constant 0 : index
    %195 = vector.load %arg7[%c512_58, %c0_59] : memref<576x32xbf16, #tpu.memory_space<vmem>>, vector<64x32xbf16>
    %cst_60 = arith.constant dense<0.000000e+00> : vector<160x32xf32>
    %196 = tpu.matmul %194, %195, %cst_60 {dimension_numbers = #tpu.dot_dimension_numbers<[1], [0], [0], [1], [0, 0, 1, 1], [], []>} : vector<160x64xbf16>, vector<64x32xbf16>, vector<160x32xf32> -> vector<160x32xf32>
    %197 = arith.addf %192, %196 : vector<160x32xf32>
    %c0_61 = arith.constant 0 : index
    %c0_62 = arith.constant 0 : index
    %198 = vector.load %arg8[%c0_61, %c0_62] : memref<1x32xf32, #tpu.memory_space<vmem>>, vector<1x32xf32>
    %199 = vector.broadcast %198 : vector<1x32xf32> to vector<160x32xf32>
    %200 = arith.addf %197, %199 : vector<160x32xf32>
    %cst_63 = arith.constant 0.000000e+00 : f32
    %201 = vector.broadcast %cst_63 : f32 to vector<160x32xf32>
    %202 = arith.maximumf %200, %201 : vector<160x32xf32>
    %203 = vector.shape_cast %202 : vector<160x32xf32> to vector<10x16x32xf32>
    %c1_i32 = arith.constant 1 : i32
    %204 = arith.subi %0, %c1_i32 : i32
    %205 = tpu.iota {dimensions = array<i32: 0>} : vector<10x1x1xi32>
    %206 = vector.broadcast %204 : i32 to vector<10x1x1xi32>
    %207 = arith.addi %205, %206 : vector<10x1x1xi32>
    %c0_i32_64 = arith.constant 0 : i32
    %208 = vector.broadcast %c0_i32_64 : i32 to vector<10x1x1xi32>
    %209 = arith.cmpi sge, %207, %208 : vector<10x1x1xi32>
    %c16_i32_65 = arith.constant 16 : i32
    %210 = vector.broadcast %c16_i32_65 : i32 to vector<10x1x1xi32>
    %211 = arith.cmpi slt, %207, %210 : vector<10x1x1xi32>
    %212 = arith.andi %209, %211 : vector<10x1x1xi1>
    %213 = arith.extui %212 : vector<10x1x1xi1> to vector<10x1x1xi32>
    %214 = arith.sitofp %213 : vector<10x1x1xi32> to vector<10x1x1xf32>
    %215 = vector.broadcast %214 : vector<10x1x1xf32> to vector<10x16x32xf32>
    %216 = arith.mulf %203, %215 : vector<10x16x32xf32>
    %217 = arith.truncf %216 : vector<10x16x32xf32> to vector<10x16x32xbf16>
    %cst_66 = arith.constant 0.000000e+00 : bf16
    %218 = vector.broadcast %cst_66 : bf16 to vector<10x1x32xbf16>
    %219 = tpu.concatenate %218, %217, %218 in 1 : vector<10x1x32xbf16>, vector<10x16x32xbf16>, vector<10x1x32xbf16> -> vector<10x18x32xbf16>
    %cst_67 = arith.constant 0.000000e+00 : f32
    %220 = vector.broadcast %cst_67 : f32 to vector<128x9xf32>
    %221 = vector.extract_strided_slice %219 {offsets = [0, 0, 0], sizes = [8, 16, 32], strides = [1, 1, 1]} : vector<10x18x32xbf16> to vector<8x16x32xbf16>
    %222 = vector.shape_cast %221 : vector<8x16x32xbf16> to vector<128x32xbf16>
    %c0_68 = arith.constant 0 : index
    %c0_69 = arith.constant 0 : index
    %223 = vector.load %arg9[%c0_68, %c0_69] : memref<288x9xbf16, #tpu.memory_space<vmem>>, vector<32x9xbf16>
    %cst_70 = arith.constant dense<0.000000e+00> : vector<128x9xf32>
    %224 = tpu.matmul %222, %223, %cst_70 {dimension_numbers = #tpu.dot_dimension_numbers<[1], [0], [0], [1], [0, 0, 1, 1], [], []>} : vector<128x32xbf16>, vector<32x9xbf16>, vector<128x9xf32> -> vector<128x9xf32>
    %225 = arith.addf %220, %224 : vector<128x9xf32>
    %226 = vector.extract_strided_slice %219 {offsets = [0, 1, 0], sizes = [8, 16, 32], strides = [1, 1, 1]} : vector<10x18x32xbf16> to vector<8x16x32xbf16>
    %227 = vector.shape_cast %226 : vector<8x16x32xbf16> to vector<128x32xbf16>
    %c32 = arith.constant 32 : index
    %c0_71 = arith.constant 0 : index
    %228 = vector.load %arg9[%c32, %c0_71] : memref<288x9xbf16, #tpu.memory_space<vmem>>, vector<32x9xbf16>
    %cst_72 = arith.constant dense<0.000000e+00> : vector<128x9xf32>
    %229 = tpu.matmul %227, %228, %cst_72 {dimension_numbers = #tpu.dot_dimension_numbers<[1], [0], [0], [1], [0, 0, 1, 1], [], []>} : vector<128x32xbf16>, vector<32x9xbf16>, vector<128x9xf32> -> vector<128x9xf32>
    %230 = arith.addf %225, %229 : vector<128x9xf32>
    %231 = vector.extract_strided_slice %219 {offsets = [0, 2, 0], sizes = [8, 16, 32], strides = [1, 1, 1]} : vector<10x18x32xbf16> to vector<8x16x32xbf16>
    %232 = vector.shape_cast %231 : vector<8x16x32xbf16> to vector<128x32xbf16>
    %c64_73 = arith.constant 64 : index
    %c0_74 = arith.constant 0 : index
    %233 = vector.load %arg9[%c64_73, %c0_74] : memref<288x9xbf16, #tpu.memory_space<vmem>>, vector<32x9xbf16>
    %cst_75 = arith.constant dense<0.000000e+00> : vector<128x9xf32>
    %234 = tpu.matmul %232, %233, %cst_75 {dimension_numbers = #tpu.dot_dimension_numbers<[1], [0], [0], [1], [0, 0, 1, 1], [], []>} : vector<128x32xbf16>, vector<32x9xbf16>, vector<128x9xf32> -> vector<128x9xf32>
    %235 = arith.addf %230, %234 : vector<128x9xf32>
    %236 = vector.extract_strided_slice %219 {offsets = [1, 0, 0], sizes = [8, 16, 32], strides = [1, 1, 1]} : vector<10x18x32xbf16> to vector<8x16x32xbf16>
    %237 = vector.shape_cast %236 : vector<8x16x32xbf16> to vector<128x32xbf16>
    %c96 = arith.constant 96 : index
    %c0_76 = arith.constant 0 : index
    %238 = vector.load %arg9[%c96, %c0_76] : memref<288x9xbf16, #tpu.memory_space<vmem>>, vector<32x9xbf16>
    %cst_77 = arith.constant dense<0.000000e+00> : vector<128x9xf32>
    %239 = tpu.matmul %237, %238, %cst_77 {dimension_numbers = #tpu.dot_dimension_numbers<[1], [0], [0], [1], [0, 0, 1, 1], [], []>} : vector<128x32xbf16>, vector<32x9xbf16>, vector<128x9xf32> -> vector<128x9xf32>
    %240 = arith.addf %235, %239 : vector<128x9xf32>
    %241 = vector.extract_strided_slice %219 {offsets = [1, 1, 0], sizes = [8, 16, 32], strides = [1, 1, 1]} : vector<10x18x32xbf16> to vector<8x16x32xbf16>
    %242 = vector.shape_cast %241 : vector<8x16x32xbf16> to vector<128x32xbf16>
    %c128_78 = arith.constant 128 : index
    %c0_79 = arith.constant 0 : index
    %243 = vector.load %arg9[%c128_78, %c0_79] : memref<288x9xbf16, #tpu.memory_space<vmem>>, vector<32x9xbf16>
    %cst_80 = arith.constant dense<0.000000e+00> : vector<128x9xf32>
    %244 = tpu.matmul %242, %243, %cst_80 {dimension_numbers = #tpu.dot_dimension_numbers<[1], [0], [0], [1], [0, 0, 1, 1], [], []>} : vector<128x32xbf16>, vector<32x9xbf16>, vector<128x9xf32> -> vector<128x9xf32>
    %245 = arith.addf %240, %244 : vector<128x9xf32>
    %246 = vector.extract_strided_slice %219 {offsets = [1, 2, 0], sizes = [8, 16, 32], strides = [1, 1, 1]} : vector<10x18x32xbf16> to vector<8x16x32xbf16>
    %247 = vector.shape_cast %246 : vector<8x16x32xbf16> to vector<128x32xbf16>
    %c160 = arith.constant 160 : index
    %c0_81 = arith.constant 0 : index
    %248 = vector.load %arg9[%c160, %c0_81] : memref<288x9xbf16, #tpu.memory_space<vmem>>, vector<32x9xbf16>
    %cst_82 = arith.constant dense<0.000000e+00> : vector<128x9xf32>
    %249 = tpu.matmul %247, %248, %cst_82 {dimension_numbers = #tpu.dot_dimension_numbers<[1], [0], [0], [1], [0, 0, 1, 1], [], []>} : vector<128x32xbf16>, vector<32x9xbf16>, vector<128x9xf32> -> vector<128x9xf32>
    %250 = arith.addf %245, %249 : vector<128x9xf32>
    %251 = vector.extract_strided_slice %219 {offsets = [2, 0, 0], sizes = [8, 16, 32], strides = [1, 1, 1]} : vector<10x18x32xbf16> to vector<8x16x32xbf16>
    %252 = vector.shape_cast %251 : vector<8x16x32xbf16> to vector<128x32xbf16>
    %c192_83 = arith.constant 192 : index
    %c0_84 = arith.constant 0 : index
    %253 = vector.load %arg9[%c192_83, %c0_84] : memref<288x9xbf16, #tpu.memory_space<vmem>>, vector<32x9xbf16>
    %cst_85 = arith.constant dense<0.000000e+00> : vector<128x9xf32>
    %254 = tpu.matmul %252, %253, %cst_85 {dimension_numbers = #tpu.dot_dimension_numbers<[1], [0], [0], [1], [0, 0, 1, 1], [], []>} : vector<128x32xbf16>, vector<32x9xbf16>, vector<128x9xf32> -> vector<128x9xf32>
    %255 = arith.addf %250, %254 : vector<128x9xf32>
    %256 = vector.extract_strided_slice %219 {offsets = [2, 1, 0], sizes = [8, 16, 32], strides = [1, 1, 1]} : vector<10x18x32xbf16> to vector<8x16x32xbf16>
    %257 = vector.shape_cast %256 : vector<8x16x32xbf16> to vector<128x32xbf16>
    %c224 = arith.constant 224 : index
    %c0_86 = arith.constant 0 : index
    %258 = vector.load %arg9[%c224, %c0_86] : memref<288x9xbf16, #tpu.memory_space<vmem>>, vector<32x9xbf16>
    %cst_87 = arith.constant dense<0.000000e+00> : vector<128x9xf32>
    %259 = tpu.matmul %257, %258, %cst_87 {dimension_numbers = #tpu.dot_dimension_numbers<[1], [0], [0], [1], [0, 0, 1, 1], [], []>} : vector<128x32xbf16>, vector<32x9xbf16>, vector<128x9xf32> -> vector<128x9xf32>
    %260 = arith.addf %255, %259 : vector<128x9xf32>
    %261 = vector.extract_strided_slice %219 {offsets = [2, 2, 0], sizes = [8, 16, 32], strides = [1, 1, 1]} : vector<10x18x32xbf16> to vector<8x16x32xbf16>
    %262 = vector.shape_cast %261 : vector<8x16x32xbf16> to vector<128x32xbf16>
    %c256_88 = arith.constant 256 : index
    %c0_89 = arith.constant 0 : index
    %263 = vector.load %arg9[%c256_88, %c0_89] : memref<288x9xbf16, #tpu.memory_space<vmem>>, vector<32x9xbf16>
    %cst_90 = arith.constant dense<0.000000e+00> : vector<128x9xf32>
    %264 = tpu.matmul %262, %263, %cst_90 {dimension_numbers = #tpu.dot_dimension_numbers<[1], [0], [0], [1], [0, 0, 1, 1], [], []>} : vector<128x32xbf16>, vector<32x9xbf16>, vector<128x9xf32> -> vector<128x9xf32>
    %265 = arith.addf %260, %264 : vector<128x9xf32>
    %c0_91 = arith.constant 0 : index
    %c0_92 = arith.constant 0 : index
    %266 = vector.load %arg10[%c0_91, %c0_92] : memref<1x9xf32, #tpu.memory_space<vmem>>, vector<1x9xf32>
    %267 = vector.broadcast %266 : vector<1x9xf32> to vector<128x9xf32>
    %268 = arith.addf %265, %267 : vector<128x9xf32>
    %269 = arith.truncf %268 : vector<128x9xf32> to vector<128x9xbf16>
    %270 = vector.shape_cast %269 : vector<128x9xbf16> to vector<8x16x9xbf16>
    %271 = tpu.transpose %270, [0, 2, 1] : vector<8x16x9xbf16> -> vector<8x9x16xbf16>
    %272 = vector.extract_strided_slice %271 {offsets = [0, 0, 0], sizes = [8, 1, 16], strides = [1, 1, 1]} : vector<8x9x16xbf16> to vector<8x1x16xbf16>
    %273 = vector.shape_cast %272 : vector<8x1x16xbf16> to vector<8x16xbf16>
    %274 = vector.extract_strided_slice %271 {offsets = [0, 3, 0], sizes = [8, 1, 16], strides = [1, 1, 1]} : vector<8x9x16xbf16> to vector<8x1x16xbf16>
    %275 = vector.shape_cast %274 : vector<8x1x16xbf16> to vector<8x16xbf16>
    %276 = vector.extract_strided_slice %271 {offsets = [0, 6, 0], sizes = [8, 1, 16], strides = [1, 1, 1]} : vector<8x9x16xbf16> to vector<8x1x16xbf16>
    %277 = vector.shape_cast %276 : vector<8x1x16xbf16> to vector<8x16xbf16>
    %278 = tpu.concatenate %273, %275, %277 in 0 : vector<8x16xbf16>, vector<8x16xbf16>, vector<8x16xbf16> -> vector<24x16xbf16>
    %279 = vector.extract_strided_slice %271 {offsets = [0, 1, 0], sizes = [8, 1, 16], strides = [1, 1, 1]} : vector<8x9x16xbf16> to vector<8x1x16xbf16>
    %280 = vector.shape_cast %279 : vector<8x1x16xbf16> to vector<8x16xbf16>
    %281 = vector.extract_strided_slice %271 {offsets = [0, 4, 0], sizes = [8, 1, 16], strides = [1, 1, 1]} : vector<8x9x16xbf16> to vector<8x1x16xbf16>
    %282 = vector.shape_cast %281 : vector<8x1x16xbf16> to vector<8x16xbf16>
    %283 = vector.extract_strided_slice %271 {offsets = [0, 7, 0], sizes = [8, 1, 16], strides = [1, 1, 1]} : vector<8x9x16xbf16> to vector<8x1x16xbf16>
    %284 = vector.shape_cast %283 : vector<8x1x16xbf16> to vector<8x16xbf16>
    %285 = tpu.concatenate %280, %282, %284 in 0 : vector<8x16xbf16>, vector<8x16xbf16>, vector<8x16xbf16> -> vector<24x16xbf16>
    %286 = vector.extract_strided_slice %271 {offsets = [0, 2, 0], sizes = [8, 1, 16], strides = [1, 1, 1]} : vector<8x9x16xbf16> to vector<8x1x16xbf16>
    %287 = vector.shape_cast %286 : vector<8x1x16xbf16> to vector<8x16xbf16>
    %288 = vector.extract_strided_slice %271 {offsets = [0, 5, 0], sizes = [8, 1, 16], strides = [1, 1, 1]} : vector<8x9x16xbf16> to vector<8x1x16xbf16>
    %289 = vector.shape_cast %288 : vector<8x1x16xbf16> to vector<8x16xbf16>
    %290 = vector.extract_strided_slice %271 {offsets = [0, 8, 0], sizes = [8, 1, 16], strides = [1, 1, 1]} : vector<8x9x16xbf16> to vector<8x1x16xbf16>
    %291 = vector.shape_cast %290 : vector<8x1x16xbf16> to vector<8x16xbf16>
    %292 = tpu.concatenate %287, %289, %291 in 0 : vector<8x16xbf16>, vector<8x16xbf16>, vector<8x16xbf16> -> vector<24x16xbf16>
    %293 = tpu.concatenate %278, %285, %292 in 1 : vector<24x16xbf16>, vector<24x16xbf16>, vector<24x16xbf16> -> vector<24x48xbf16>
    %c0_93 = arith.constant 0 : index
    %c0_94 = arith.constant 0 : index
    %294 = vector.load %arg12[%c0_93, %c0_94] : memref<48x48xbf16, #tpu.memory_space<vmem>>, vector<48x48xbf16>
    %cst_95 = arith.constant dense<0.000000e+00> : vector<24x48xf32>
    %295 = tpu.matmul %293, %294, %cst_95 {dimension_numbers = #tpu.dot_dimension_numbers<[1], [0], [0], [1], [0, 0, 1, 1], [], []>} : vector<24x48xbf16>, vector<48x48xbf16>, vector<24x48xf32> -> vector<24x48xf32>
    %c0_96 = arith.constant 0 : index
    %c0_97 = arith.constant 0 : index
    %296 = vector.load %arg11[%c0_96, %c0_97] : memref<24x24xbf16, #tpu.memory_space<vmem>>, vector<24x24xbf16>
    %297 = arith.truncf %295 : vector<24x48xf32> to vector<24x48xbf16>
    %cst_98 = arith.constant dense<0.000000e+00> : vector<24x48xf32>
    %298 = tpu.matmul %296, %297, %cst_98 {dimension_numbers = #tpu.dot_dimension_numbers<[1], [0], [0], [1], [0, 0, 1, 1], [], []>} : vector<24x24xbf16>, vector<24x48xbf16>, vector<24x48xf32> -> vector<24x48xf32>
    %c0_99 = arith.constant 0 : index
    %c0_100 = arith.constant 0 : index
    %c0_101 = arith.constant 0 : index
    %299 = vector.load %arg13[%c0_99, %c0_100, %c0_101] : memref<1x24x48xf32, #tpu.memory_space<vmem>>, vector<1x24x48xf32>
    %300 = vector.shape_cast %299 : vector<1x24x48xf32> to vector<24x48xf32>
    %301 = vector.shape_cast %298 : vector<24x48xf32> to vector<1x24x48xf32>
    tpu.vector_store %arg13[%c0_99, %c0_100, %c0_101], %301 {strides = array<i32>} : memref<1x24x48xf32, #tpu.memory_space<vmem>>, vector<1x24x48xf32>,
    return
  }
  func.func @transform_0(%arg0: i32, %arg1: i32) -> (i32, i32, i32) {
    %c0_i32 = arith.constant 0 : i32
    %c0_i32_0 = arith.constant 0 : i32
    %c0_i32_1 = arith.constant 0 : i32
    return %arg0, %c0_i32, %c0_i32_0 : i32, i32, i32
  }
  func.func @transform_1(%arg0: i32, %arg1: i32) -> (i32, i32) {
    %c0_i32 = arith.constant 0 : i32
    %c0_i32_0 = arith.constant 0 : i32
    %c0_i32_1 = arith.constant 0 : i32
    return %c0_i32, %c0_i32_0 : i32, i32
  }
  func.func @transform_2(%arg0: i32, %arg1: i32) -> (i32, i32) {
    %c0_i32 = arith.constant 0 : i32
    %c0_i32_0 = arith.constant 0 : i32
    %c0_i32_1 = arith.constant 0 : i32
    return %c0_i32, %c0_i32_0 : i32, i32
  }
  func.func @transform_3(%arg0: i32, %arg1: i32) -> (i32, i32) {
    %c0_i32 = arith.constant 0 : i32
    %c0_i32_0 = arith.constant 0 : i32
    %c0_i32_1 = arith.constant 0 : i32
    return %c0_i32, %c0_i32_0 : i32, i32
  }
  func.func @transform_4(%arg0: i32, %arg1: i32) -> (i32, i32) {
    %c0_i32 = arith.constant 0 : i32
    %c0_i32_0 = arith.constant 0 : i32
    %c0_i32_1 = arith.constant 0 : i32
    return %c0_i32, %c0_i32_0 : i32, i32
  }
  func.func @transform_5(%arg0: i32, %arg1: i32) -> (i32, i32) {
    %c0_i32 = arith.constant 0 : i32
    %c0_i32_0 = arith.constant 0 : i32
    %c0_i32_1 = arith.constant 0 : i32
    return %c0_i32, %c0_i32_0 : i32, i32
  }
  func.func @transform_6(%arg0: i32, %arg1: i32) -> (i32, i32) {
    %c0_i32 = arith.constant 0 : i32
    %c0_i32_0 = arith.constant 0 : i32
    %c0_i32_1 = arith.constant 0 : i32
    return %c0_i32, %c0_i32_0 : i32, i32
  }
  func.func @transform_7(%arg0: i32, %arg1: i32) -> (i32, i32) {
    %c0_i32 = arith.constant 0 : i32
    %c0_i32_0 = arith.constant 0 : i32
    %c0_i32_1 = arith.constant 0 : i32
    return %c0_i32, %c0_i32_0 : i32, i32
  }
  func.func @transform_8(%arg0: i32, %arg1: i32) -> (i32, i32) {
    %c0_i32 = arith.constant 0 : i32
    %c0_i32_0 = arith.constant 0 : i32
    %c0_i32_1 = arith.constant 0 : i32
    return %c0_i32, %c0_i32_0 : i32, i32
  }
  func.func @transform_9(%arg0: i32, %arg1: i32) -> (i32, i32) {
    %c0_i32 = arith.constant 0 : i32
    %c0_i32_0 = arith.constant 0 : i32
    %c0_i32_1 = arith.constant 0 : i32
    return %c0_i32, %c0_i32_0 : i32, i32
  }
  func.func @transform_10(%arg0: i32, %arg1: i32) -> (i32, i32) {
    %c0_i32 = arith.constant 0 : i32
    %c0_i32_0 = arith.constant 0 : i32
    %c0_i32_1 = arith.constant 0 : i32
    return %c0_i32, %c0_i32_0 : i32, i32
  }
  func.func @transform_11(%arg0: i32, %arg1: i32) -> (i32, i32, i32) {
    %c0_i32 = arith.constant 0 : i32
    %c0_i32_0 = arith.constant 0 : i32
    return %arg0, %arg1, %c0_i32 : i32, i32, i32
  }
}

</mosaic_0001>

<llo_original>
// kernel: tpu_custom_call.1
$region0: #{tpu_custom_call.1}
  #allocation0 [shape = 'u32[]', space=smem, size = 0x4, offset = 0x4, fixed_abs, tag = 'smem constant byte address 0x4 - core index']
  #allocation1 [shape = 'u32[144,128]{1,0:T(1,128)}', space=vmem, size = 0x12000, scoped, tag = 'internal scratch']
  %s0 = inlined_call_operand.vmem [shape: bf16[2,26,20], index: 0, kind: input, shape index: {}]
  %s1 = inlined_call_operand.vmem [shape: bf16[25,64], index: 1, kind: input, shape index: {}]
  %s2 = inlined_call_operand.vmem [shape: f32[1,64], index: 2, kind: input, shape index: {}]
  %s3 = inlined_call_operand.vmem [shape: bf16[576,64], index: 3, kind: input, shape index: {}]
  %s4 = inlined_call_operand.vmem [shape: f32[1,64], index: 4, kind: input, shape index: {}]
  %s5 = inlined_call_operand.vmem [shape: bf16[576,32], index: 5, kind: input, shape index: {}]
  %s6 = inlined_call_operand.vmem [shape: f32[1,32], index: 6, kind: input, shape index: {}]
  %s7 = inlined_call_operand.vmem [shape: bf16[288,9], index: 7, kind: input, shape index: {}]
  %s8 = inlined_call_operand.vmem [shape: f32[1,9], index: 8, kind: input, shape index: {}]
  %s9 = inlined_call_operand.vmem [shape: bf16[24,24], index: 9, kind: input, shape index: {}]
  %s10 = inlined_call_operand.vmem [shape: bf16[48,48], index: 10, kind: input, shape index: {}]
  %s11 = inlined_call_operand.hbm [shape: f32[2,48,48], index: 11, kind: output, shape index: {}]
  %s12 = sld [smem:[#allocation0]]
  $region77: #{tpu_custom_call.1} parent=0
    _
  %s14 = ssub.s32 1, %s12
  %s15 = scalar_select 0, %s14, %s12
  $region1: #{tpu_custom_call.1} parent=0
    #allocation2 [shape = 'u8[24576]{0}', space=vmem, size = 0x6000, scoped, tag = 'output window, operand 0']
    #allocation3 [shape = 's32[2]{0}', space=sflag, size = 0x8, scoped, tag = 'scoped memory for tpu_custom_call.1']
    %16 = vsyncpa [#allocation3], 0
    %s17 = scalar_lea.sflag [#allocation3], 1
    %18 = vsyncpa %s17, 0
    loop: start=0, step=1, limit=6
    $region2: #{tpu_custom_call.1} parent=1 // loop_pre_header
      _
    $region3: #{tpu_custom_call.1} parent=1 // loop_header
      %s20 = sphi 0, %s24
      %p21 = scmp.ge.s32.totalorder %s20, 6
      %s27 = sphi 0, %s39
      %s28 = sphi 0, %s35
      %s29 = sphi 0, %s27
      %s30 = sphi 0, %s28
      %s31 = sphi 0, %s29
      %s32 = sphi 0, %s30
      %s42 = sphi 0, %s44
      %s45 = sphi 0, %s42
      %s46 = sphi 0, %s45
      %s62 = sphi 0, %s46
      %s66 = sphi 0, %s66
      %s68 = sphi 0, %s66
      %s69 = sphi 0, %s68
      %s83 = sphi 0, %s69
      %s87 = sphi 0, %s87
      %s89 = sphi 0, %s87
      %s90 = sphi 0, %s89
      %s104 = sphi 0, %s90
      %s108 = sphi 0, %s108
      %s110 = sphi 0, %s108
      %s111 = sphi 0, %s110
      %s125 = sphi 0, %s111
      %s129 = sphi 0, %s129
      %s131 = sphi 0, %s129
      %s132 = sphi 0, %s131
      %s146 = sphi 0, %s132
      %s150 = sphi 0, %s150
      %s152 = sphi 0, %s150
      %s153 = sphi 0, %s152
      %s167 = sphi 0, %s153
      %s171 = sphi 0, %s171
      %s173 = sphi 0, %s171
      %s174 = sphi 0, %s173
      %s188 = sphi 0, %s174
      %s192 = sphi 0, %s192
      %s194 = sphi 0, %s192
      %s195 = sphi 0, %s194
      %s209 = sphi 0, %s195
      %s213 = sphi 0, %s213
      %s215 = sphi 0, %s213
      %s216 = sphi 0, %s215
      %s230 = sphi 0, %s216
      %s234 = sphi 0, %s234
      %s236 = sphi 0, %s234
      %s237 = sphi 0, %s236
      %s251 = sphi 0, %s237
      %s255 = sphi 0, %s255
      %s257 = sphi 0, %s255
      %s258 = sphi 0, %s257
      %s272 = sphi 0, %s258
      %s280 = sphi 0, %s282
      %s283 = sphi 0, %s280
      %s284 = sphi 0, %s283
      %s300 = sphi 0, %s284
    $region4: #{tpu_custom_call.1} parent=1 // loop_header_branch
      %23 = sbr.rel (%p21) target = $region8
    $region5: #{tpu_custom_call.1} parent=1 // loop_body
      %s25 = ssub.s32 %s20, 1
      %s26 = ssub.s32 %s20, 2
      %s33 = sadd.s32 1, %s28
      %p34 = scmp.ge.s32.totalorder %s33, 2
      %s35 = scalar_select %p34, 0, %s33
      %s36 = sadd.s32 1, %s27
      %s37 = scalar_select %p34, %s36, %s27
      %p38 = scmp.ge.s32.totalorder %s37, 2
      %s39 = scalar_select %p38, 0, %s37
      %s40 = ssub.s32 %s27, %s39
      %p41 = scmp.eq.s32.totalorder %s40, 0
      %s43 = sadd.s32 %s42, 1
      %s44 = scalar_select %p41, %s42, %s43
      %p47 = pneg %p41
      %p48 = scmp.eq.s32.totalorder %s20, 3
      %p49 = por %p47, %p48
      %p50 = scmp.ne.s32.totalorder %s42, %s45
      %p51 = scmp.eq.s32.totalorder %s20, 0
      %p52 = por %p50, %p51
      %p53 = scmp.ne.s32.totalorder %s42, %s45
      %p54 = scmp.eq.s32.totalorder %s25, 3
      %p55 = por %p53, %p54
      %p56 = scmp.ne.s32.totalorder %s45, %s46
      %p57 = scmp.eq.s32.totalorder %s25, 0
      %p58 = por %p56, %p57
      %p59 = scmp.ne.s32.totalorder %s45, %s46
      %p60 = scmp.eq.s32.totalorder %s26, 3
      %p61 = por %p59, %p60
      %p63 = scmp.ne.s32.totalorder %s46, %s62
      %p64 = scmp.eq.s32.totalorder %s26, 0
      %p65 = por %p63, %p64
      %s67 = sadd.s32 %s66, 1
      %p70 = scmp.eq.s32.totalorder %s20, 3
      %p71 = scmp.ne.s32.totalorder %s66, %s68
      %p72 = scmp.eq.s32.totalorder %s20, 0
      %p73 = por %p71, %p72
      %p74 = scmp.ne.s32.totalorder %s66, %s68
      %p75 = scmp.eq.s32.totalorder %s25, 3
      %p76 = por %p74, %p75
      %p77 = scmp.ne.s32.totalorder %s68, %s69
      %p78 = scmp.eq.s32.totalorder %s25, 0
      %p79 = por %p77, %p78
      %p80 = scmp.ne.s32.totalorder %s68, %s69
      %p81 = scmp.eq.s32.totalorder %s26, 3
      %p82 = por %p80, %p81
      %p84 = scmp.ne.s32.totalorder %s69, %s83
      %p85 = scmp.eq.s32.totalorder %s26, 0
      %p86 = por %p84, %p85
      %s88 = sadd.s32 %s87, 1
      %p91 = scmp.eq.s32.totalorder %s20, 3
      %p92 = scmp.ne.s32.totalorder %s87, %s89
      %p93 = scmp.eq.s32.totalorder %s20, 0
      %p94 = por %p92, %p93
      %p95 = scmp.ne.s32.totalorder %s87, %s89
      %p96 = scmp.eq.s32.totalorder %s25, 3
      %p97 = por %p95, %p96
      %p98 = scmp.ne.s32.totalorder %s89, %s90
      %p99 = scmp.eq.s32.totalorder %s25, 0
      %p100 = por %p98, %p99
      %p101 = scmp.ne.s32.totalorder %s89, %s90
      %p102 = scmp.eq.s32.totalorder %s26, 3
      %p103 = por %p101, %p102
      %p105 = scmp.ne.s32.totalorder %s90, %s104
      %p106 = scmp.eq.s32.totalorder %s26, 0
      %p107 = por %p105, %p106
      %s109 = sadd.s32 %s108, 1
      %p112 = scmp.eq.s32.totalorder %s20, 3
      %p113 = scmp.ne.s32.totalorder %s108, %s110
      %p114 = scmp.eq.s32.totalorder %s20, 0
      %p115 = por %p113, %p114
      %p116 = scmp.ne.s32.totalorder %s108, %s110
      %p117 = scmp.eq.s32.totalorder %s25, 3
      %p118 = por %p116, %p117
      %p119 = scmp.ne.s32.totalorder %s110, %s111
      %p120 = scmp.eq.s32.totalorder %s25, 0
      %p121 = por %p119, %p120
      %p122 = scmp.ne.s32.totalorder %s110, %s111
      %p123 = scmp.eq.s32.totalorder %s26, 3
      %p124 = por %p122, %p123
      %p126 = scmp.ne.s32.totalorder %s111, %s125
      %p127 = scmp.eq.s32.totalorder %s26, 0
      %p128 = por %p126, %p127
      %s130 = sadd.s32 %s129, 1
      %p133 = scmp.eq.s32.totalorder %s20, 3
      %p134 = scmp.ne.s32.totalorder %s129, %s131
      %p135 = scmp.eq.s32.totalorder %s20, 0
      %p136 = por %p134, %p135
      %p137 = scmp.ne.s32.totalorder %s129, %s131
      %p138 = scmp.eq.s32.totalorder %s25, 3
      %p139 = por %p137, %p138
      %p140 = scmp.ne.s32.totalorder %s131, %s132
      %p141 = scmp.eq.s32.totalorder %s25, 0
      %p142 = por %p140, %p141
      %p143 = scmp.ne.s32.totalorder %s131, %s132
      %p144 = scmp.eq.s32.totalorder %s26, 3
      %p145 = por %p143, %p144
      %p147 = scmp.ne.s32.totalorder %s132, %s146
      %p148 = scmp.eq.s32.totalorder %s26, 0
      %p149 = por %p147, %p148
      %s151 = sadd.s32 %s150, 1
      %p154 = scmp.eq.s32.totalorder %s20, 3
      %p155 = scmp.ne.s32.totalorder %s150, %s152
      %p156 = scmp.eq.s32.totalorder %s20, 0
      %p157 = por %p155, %p156
      %p158 = scmp.ne.s32.totalorder %s150, %s152
      %p159 = scmp.eq.s32.totalorder %s25, 3
      %p160 = por %p158, %p159
      %p161 = scmp.ne.s32.totalorder %s152, %s153
      %p162 = scmp.eq.s32.totalorder %s25, 0
      %p163 = por %p161, %p162
      %p164 = scmp.ne.s32.totalorder %s152, %s153
      %p165 = scmp.eq.s32.totalorder %s26, 3
      %p166 = por %p164, %p165
      %p168 = scmp.ne.s32.totalorder %s153, %s167
      %p169 = scmp.eq.s32.totalorder %s26, 0
      %p170 = por %p168, %p169
      %s172 = sadd.s32 %s171, 1
      %p175 = scmp.eq.s32.totalorder %s20, 3
      %p176 = scmp.ne.s32.totalorder %s171, %s173
      %p177 = scmp.eq.s32.totalorder %s20, 0
      %p178 = por %p176, %p177
      %p179 = scmp.ne.s32.totalorder %s171, %s173
      %p180 = scmp.eq.s32.totalorder %s25, 3
      %p181 = por %p179, %p180
      %p182 = scmp.ne.s32.totalorder %s173, %s174
      %p183 = scmp.eq.s32.totalorder %s25, 0
      %p184 = por %p182, %p183
      %p185 = scmp.ne.s32.totalorder %s173, %s174
      %p186 = scmp.eq.s32.totalorder %s26, 3
      %p187 = por %p185, %p186
      %p189 = scmp.ne.s32.totalorder %s174, %s188
      %p190 = scmp.eq.s32.totalorder %s26, 0
      %p191 = por %p189, %p190
      %s193 = sadd.s32 %s192, 1
      %p196 = scmp.eq.s32.totalorder %s20, 3
      %p197 = scmp.ne.s32.totalorder %s192, %s194
      %p198 = scmp.eq.s32.totalorder %s20, 0
      %p199 = por %p197, %p198
      %p200 = scmp.ne.s32.totalorder %s192, %s194
      %p201 = scmp.eq.s32.totalorder %s25, 3
      %p202 = por %p200, %p201
      %p203 = scmp.ne.s32.totalorder %s194, %s195
      %p204 = scmp.eq.s32.totalorder %s25, 0
      %p205 = por %p203, %p204
      %p206 = scmp.ne.s32.totalorder %s194, %s195
      %p207 = scmp.eq.s32.totalorder %s26, 3
      %p208 = por %p206, %p207
      %p210 = scmp.ne.s32.totalorder %s195, %s209
      %p211 = scmp.eq.s32.totalorder %s26, 0
      %p212 = por %p210, %p211
      %s214 = sadd.s32 %s213, 1
      %p217 = scmp.eq.s32.totalorder %s20, 3
      %p218 = scmp.ne.s32.totalorder %s213, %s215
      %p219 = scmp.eq.s32.totalorder %s20, 0
      %p220 = por %p218, %p219
      %p221 = scmp.ne.s32.totalorder %s213, %s215
      %p222 = scmp.eq.s32.totalorder %s25, 3
      %p223 = por %p221, %p222
      %p224 = scmp.ne.s32.totalorder %s215, %s216
      %p225 = scmp.eq.s32.totalorder %s25, 0
      %p226 = por %p224, %p225
      %p227 = scmp.ne.s32.totalorder %s215, %s216
      %p228 = scmp.eq.s32.totalorder %s26, 3
      %p229 = por %p227, %p228
      %p231 = scmp.ne.s32.totalorder %s216, %s230
      %p232 = scmp.eq.s32.totalorder %s26, 0
      %p233 = por %p231, %p232
      %s235 = sadd.s32 %s234, 1
      %p238 = scmp.eq.s32.totalorder %s20, 3
      %p239 = scmp.ne.s32.totalorder %s234, %s236
      %p240 = scmp.eq.s32.totalorder %s20, 0
      %p241 = por %p239, %p240
      %p242 = scmp.ne.s32.totalorder %s234, %s236
      %p243 = scmp.eq.s32.totalorder %s25, 3
      %p244 = por %p242, %p243
      %p245 = scmp.ne.s32.totalorder %s236, %s237
      %p246 = scmp.eq.s32.totalorder %s25, 0
      %p247 = por %p245, %p246
      %p248 = scmp.ne.s32.totalorder %s236, %s237
      %p249 = scmp.eq.s32.totalorder %s26, 3
      %p250 = por %p248, %p249
      %p252 = scmp.ne.s32.totalorder %s237, %s251
      %p253 = scmp.eq.s32.totalorder %s26, 0
      %p254 = por %p252, %p253
      %s256 = sadd.s32 %s255, 1
      %p259 = scmp.eq.s32.totalorder %s20, 3
      %p260 = scmp.ne.s32.totalorder %s255, %s257
      %p261 = scmp.eq.s32.totalorder %s20, 0
      %p262 = por %p260, %p261
      %p263 = scmp.ne.s32.totalorder %s255, %s257
      %p264 = scmp.eq.s32.totalorder %s25, 3
      %p265 = por %p263, %p264
      %p266 = scmp.ne.s32.totalorder %s257, %s258
      %p267 = scmp.eq.s32.totalorder %s25, 0
      %p268 = por %p266, %p267
      %p269 = scmp.ne.s32.totalorder %s257, %s258
      %p270 = scmp.eq.s32.totalorder %s26, 3
      %p271 = por %p269, %p270
      %p273 = scmp.ne.s32.totalorder %s258, %s272
      %p274 = scmp.eq.s32.totalorder %s26, 0
      %p275 = por %p273, %p274
      %s276 = ssub.s32 %s27, %s39
      %s277 = ssub.s32 %s28, %s35
      %s278 = sor.u32 %s276, %s277
      %p279 = scmp.eq.s32.totalorder %s278, 0
      %s281 = sadd.s32 %s280, 1
      %s282 = scalar_select %p279, %s280, %s281
      %p285 = pneg %p279
      %p286 = scmp.eq.s32.totalorder %s20, 3
      %p287 = por %p285, %p286
      %p288 = scmp.ne.s32.totalorder %s280, %s283
      %p289 = scmp.eq.s32.totalorder %s20, 0
      %p290 = por %p288, %p289
      %p291 = scmp.ne.s32.totalorder %s280, %s283
      %p292 = scmp.eq.s32.totalorder %s25, 3
      %p293 = por %p291, %p292
      %p294 = scmp.ne.s32.totalorder %s283, %s284
      %p295 = scmp.eq.s32.totalorder %s25, 0
      %p296 = por %p294, %p295
      %p297 = scmp.ne.s32.totalorder %s283, %s284
      %p298 = scmp.eq.s32.totalorder %s26, 3
      %p299 = por %p297, %p298
      %p301 = scmp.ne.s32.totalorder %s284, %s300
      %p302 = scmp.eq.s32.totalorder %s26, 0
      %p303 = por %p301, %p302
      %p304 = scmp.le.s32.totalorder 1, %s20
      %p305 = scmp.lt.s32.totalorder %s20, 5
      %p306 = pnand %p304, %p305
      %p307 = pneg %p306
      // Predicated region
      $region9: #{tpu_custom_call.1} parent=5 // pred_check
        _
      $region10: #{tpu_custom_call.1} parent=5 // pred_check_branch
        %309 = sbr.rel (%p306) target = $region12
      $region11: #{tpu_custom_call.1} parent=5 // pred_region
        %s310 = ssub.s32 %s20, 1
        // Predicated region
        $region13: #{tpu_custom_call.1} parent=11 // pred_check
          %p311 = pneg %p79
        $region14: #{tpu_custom_call.1} parent=11 // pred_check_branch
          %313 = sbr.rel (%p311) target = $region16
        $region15: #{tpu_custom_call.1} parent=11 // pred_region
          _
        $region16: #{tpu_custom_call.1} parent=11 // pred_fallthru
          _
        // Predicated region
        $region17: #{tpu_custom_call.1} parent=11 // pred_check
          %p314 = pneg %p100
        $region18: #{tpu_custom_call.1} parent=11 // pred_check_branch
          %316 = sbr.rel (%p314) target = $region20
        $region19: #{tpu_custom_call.1} parent=11 // pred_region
          _
        $region20: #{tpu_custom_call.1} parent=11 // pred_fallthru
          _
        // Predicated region
        $region21: #{tpu_custom_call.1} parent=11 // pred_check
          %p317 = pneg %p121
        $region22: #{tpu_custom_call.1} parent=11 // pred_check_branch
          %319 = sbr.rel (%p317) target = $region24
        $region23: #{tpu_custom_call.1} parent=11 // pred_region
          _
        $region24: #{tpu_custom_call.1} parent=11 // pred_fallthru
          _
        // Predicated region
        $region25: #{tpu_custom_call.1} parent=11 // pred_check
          %p320 = pneg %p142
        $region26: #{tpu_custom_call.1} parent=11 // pred_check_branch
          %322 = sbr.rel (%p320) target = $region28
        $region27: #{tpu_custom_call.1} parent=11 // pred_region
          _
        $region28: #{tpu_custom_call.1} parent=11 // pred_fallthru
          _
        // Predicated region
        $region29: #{tpu_custom_call.1} parent=11 // pred_check
          %p323 = pneg %p163
        $region30: #{tpu_custom_call.1} parent=11 // pred_check_branch
          %325 = sbr.rel (%p323) target = $region32
        $region31: #{tpu_custom_call.1} parent=11 // pred_region
          _
        $region32: #{tpu_custom_call.1} parent=11 // pred_fallthru
          _
        // Predicated region
        $region33: #{tpu_custom_call.1} parent=11 // pred_check
          %p326 = pneg %p184
        $region34: #{tpu_custom_call.1} parent=11 // pred_check_branch
          %328 = sbr.rel (%p326) target = $region36
        $region35: #{tpu_custom_call.1} parent=11 // pred_region
          _
        $region36: #{tpu_custom_call.1} parent=11 // pred_fallthru
          _
        // Predicated region
        $region37: #{tpu_custom_call.1} parent=11 // pred_check
          %p329 = pneg %p205
        $region38: #{tpu_custom_call.1} parent=11 // pred_check_branch
          %331 = sbr.rel (%p329) target = $region40
        $region39: #{tpu_custom_call.1} parent=11 // pred_region
          _
        $region40: #{tpu_custom_call.1} parent=11 // pred_fallthru
          _
        // Predicated region
        $region41: #{tpu_custom_call.1} parent=11 // pred_check
          %p332 = pneg %p226
        $region42: #{tpu_custom_call.1} parent=11 // pred_check_branch
          %334 = sbr.rel (%p332) target = $region44
        $region43: #{tpu_custom_call.1} parent=11 // pred_region
          _
        $region44: #{tpu_custom_call.1} parent=11 // pred_fallthru
          _
        // Predicated region
        $region45: #{tpu_custom_call.1} parent=11 // pred_check
          %p335 = pneg %p247
        $region46: #{tpu_custom_call.1} parent=11 // pred_check_branch
          %337 = sbr.rel (%p335) target = $region48
        $region47: #{tpu_custom_call.1} parent=11 // pred_region
          _
        $region48: #{tpu_custom_call.1} parent=11 // pred_fallthru
          _
        // Predicated region
        $region49: #{tpu_custom_call.1} parent=11 // pred_check
          %p338 = pneg %p268
        $region50: #{tpu_custom_call.1} parent=11 // pred_check_branch
          %340 = sbr.rel (%p338) target = $region52
        $region51: #{tpu_custom_call.1} parent=11 // pred_region
          _
        $region52: #{tpu_custom_call.1} parent=11 // pred_fallthru
          _
      $region12: #{tpu_custom_call.1} parent=5 // pred_fallthru
        _
      %p341 = scmp.lt.s32.totalorder %s20, 4
      // Predicated region
      $region53: #{tpu_custom_call.1} parent=5 // pred_check
        %p342 = pneg %p341
      $region54: #{tpu_custom_call.1} parent=5 // pred_check_branch
        %344 = sbr.rel (%p342) target = $region56
      $region55: #{tpu_custom_call.1} parent=5 // pred_region
        // Predicated region
        $region57: #{tpu_custom_call.1} parent=55 // pred_check
          %p345 = pneg %p52
        $region58: #{tpu_custom_call.1} parent=55 // pred_check_branch
          %347 = sbr.rel (%p345) target = $region60
        $region59: #{tpu_custom_call.1} parent=55 // pred_region
          %p348 = scmp.lt.s32.totalorder %s27, 1
          %s349 = scalar_select %p348, %s27, 1
          %s350 = smul.addr %s349, 4
          %s351 = smul.addr %s350, 4
          %s352 = scalar_lea.vmem %s0, %s351
        $region60: #{tpu_custom_call.1} parent=55 // pred_fallthru
          _
      $region56: #{tpu_custom_call.1} parent=5 // pred_fallthru
        _
      %p353 = scmp.le.s32.totalorder 1, %s20
      %p354 = scmp.lt.s32.totalorder %s20, 5
      %p355 = pnand %p353, %p354
      %p356 = pneg %p355
      // Predicated region
      $region61: #{tpu_custom_call.1} parent=5 // pred_check
        _
      $region62: #{tpu_custom_call.1} parent=5 // pred_check_branch
        %358 = sbr.rel (%p355) target = $region64
      $region63: #{tpu_custom_call.1} parent=5 // pred_region
        %s359 = ssub.s32 %s20, 1
        %p360 = scmp.lt.s32.totalorder %s29, 1
        %s361 = scalar_select %p360, %s29, 1
        %s362 = smul.addr %s361, 4
        %s363 = smul.addr %s362, 4
        %s364 = scalar_lea.vmem %s0, %s363
        %p365 = pneg %p58
        %p366 = pneg %p55
        %p367 = pneg %p79
        %p368 = pneg %p76
        %p369 = pneg %p100
        %p370 = pneg %p97
        %p371 = pneg %p121
        %p372 = pneg %p118
        %p373 = pneg %p142
        %p374 = pneg %p139
        %p375 = pneg %p163
        %p376 = pneg %p160
        %p377 = pneg %p184
        %p378 = pneg %p181
        %p379 = pneg %p205
        %p380 = pneg %p202
        %p381 = pneg %p226
        %p382 = pneg %p223
        %p383 = pneg %p247
        %p384 = pneg %p244
        %p385 = pneg %p268
        %p386 = pneg %p265
        %p387 = pneg %p296
        %p388 = pneg %p293
        %s389 = sand.u32 %s283, 1
        %s390 = scalar_lea.sflag [#allocation3], %s389
        %s391 = sand.u32 %s283, 1
        %s392 = smul.addr %s391, 24
        %s393 = scalar_lea.vmem [#allocation2], %s392
        %p394 = scmp.lt.s32.totalorder %s29, 1
        %s395 = scalar_select %p394, %s29, 1
        %s396 = smul.addr %s395, 4
        %s397 = smul.addr %s396, 4
        %s398 = scalar_lea.vmem %s0, %s397
        %s399 = smul.u32 3, %s30
        %s401 = smul.u32 %s30, 8
        %s402 = sshra.s32 %s401, 3
        %s403 = sand.u32 %s401, 7
        %s404 = smul.addr %s402, 4
        %s405 = scalar_lea.vmem %s398, %s404
        %v406 = vld [vmem:[%s405] sm:$0xf]
        %v407 = vld [vmem:[%s405 + $0x4] sm:$0xf]
        %v408 = vld [vmem:[%s405 + $0x8] sm:$0x1]
        %v412 = vunpack.c.l.s4 1966171168
        %v413 = vunpack.c.0.s8 %v412
        %v414 = vlaneseq
        %v415 = vshrl.u32 %v414, 7
        %v416 = vsub.s32 %v413, %v415
        %v417 = vrot.slane %v406, %v416
        %v418 = vcombine.high %v417, %v417
        %v420 = vunpack.c.l.s4 1966171168
        %v421 = vunpack.c.0.s8 %v420
        %v422 = vlaneseq
        %v423 = vshrl.u32 %v422, 7
        %v424 = vsub.s32 %v421, %v423
        %v425 = vrot.slane %v417, %v424
        %v427 = vunpack.c.l.s4 1966171168
        %v428 = vunpack.c.0.s8 %v427
        %v429 = vlaneseq
        %v430 = vshrl.u32 %v429, 7
        %v431 = vsub.s32 %v428, %v430
        %v432 = vrot.slane %v418, %v431
        %v433 = vcombine.high %v425, %v425
        %v434 = vcombine.high %v432, %v432
        %v436 = vunpack.c.l.s4 1966171168
        %v437 = vunpack.c.0.s8 %v436
        %v438 = vlaneseq
        %v439 = vshrl.u32 %v438, 7
        %v440 = vsub.s32 %v437, %v439
        %v441 = vrot.slane %v407, %v440
        %v442 = vcombine.high %v441, %v441
        %v444 = vunpack.c.l.s4 1966171168
        %v445 = vunpack.c.0.s8 %v444
        %v446 = vlaneseq
        %v447 = vshrl.u32 %v446, 7
        %v448 = vsub.s32 %v445, %v447
        %v449 = vrot.slane %v441, %v448
        %v451 = vunpack.c.l.s4 1966171168
        %v452 = vunpack.c.0.s8 %v451
        %v453 = vlaneseq
        %v454 = vshrl.u32 %v453, 7
        %v455 = vsub.s32 %v452, %v454
        %v456 = vrot.slane %v442, %v455
        %v457 = vcombine.high %v449, %v449
        %v458 = vunpack.i.l.s16 %v425
        %v459 = vunpack.i.h.s16 %v425
        %v460 = vunpack.i.l.s16 %v432
        %v461 = vunpack.i.h.s16 %v432
        %v462 = vunpack.i.l.s16 %v433
        %v463 = vunpack.i.h.s16 %v433
        %v464 = vunpack.i.l.s16 %v434
        %v465 = vunpack.i.h.s16 %v434
        %v466 = vunpack.i.l.s16 %v449
        %v467 = vunpack.i.h.s16 %v449
        %v468 = vunpack.i.l.s16 %v456
        %v469 = vunpack.i.h.s16 %v456
        %v470 = vunpack.i.l.s16 %v457
        %v471 = vunpack.i.h.s16 %v457
        %v472 = vcombine.high %v456, %v456
        %v473 = vunpack.i.l.s16 %v472
        %v474 = vunpack.i.h.s16 %v472
        %v477 = vunpack.c.l.s4 1966171168
        %v478 = vunpack.c.0.s8 %v477
        %v479 = vlaneseq
        %v480 = vshrl.u32 %v479, 7
        %v481 = vsub.s32 %v478, %v480
        %v482 = vrot.slane %v408, %v481
        %v484 = vunpack.c.l.s4 1966171168
        %v485 = vunpack.c.0.s8 %v484
        %v486 = vlaneseq
        %v487 = vshrl.u32 %v486, 7
        %v488 = vsub.s32 %v485, %v487
        %v489 = vrot.slane %v482, %v488
        %v490 = vunpack.i.l.s16 %v489
        %v491 = vunpack.i.h.s16 %v489
        %v492 = vpack.i.b16 %v458, %v458
        %v493 = vpack.i.b16 %v459, %v459
        %v494 = vpack.i.b16 %v460, %v460
        %v495 = vpack.i.b16 %v461, %v461
        %v496 = vpack.i.b16 %v462, %v462
        %v497 = vpack.i.b16 %v463, %v463
        %v498 = vpack.i.b16 %v464, %v464
        %v499 = vpack.i.b16 %v465, %v465
        %v500 = vpack.i.b16 %v466, %v466
        %v501 = vpack.i.b16 %v467, %v467
        %v502 = vpack.i.b16 %v468, %v468
        %v503 = vpack.i.b16 %v469, %v469
        %v504 = vpack.i.b16 %v470, %v470
        %v505 = vpack.i.b16 %v471, %v471
        %v506 = vlaneseq
        %v507 = vshrl.u32 %v506, 7
        %v508 = vsub.s32 0, %v507
        %v509 = vrot.slane %v492, %v508
        %v510 = vlaneseq
        %v511 = vshrl.u32 %v510, 7
        %v512 = vsub.s32 0, %v511
        %v513 = vrot.slane %v493, %v512
        %v514 = vlaneseq
        %v515 = vshrl.u32 %v514, 7
        %v516 = vsub.s32 0, %v515
        %v517 = vrot.slane %v494, %v516
        %v518 = vlaneseq
        %v519 = vshrl.u32 %v518, 7
        %v520 = vsub.s32 0, %v519
        %v521 = vrot.slane %v495, %v520
        %v522 = vlaneseq
        %v523 = vshrl.u32 %v522, 7
        %v524 = vsub.s32 0, %v523
        %v525 = vrot.slane %v496, %v524
        %v526 = vlaneseq
        %v527 = vshrl.u32 %v526, 7
        %v528 = vsub.s32 0, %v527
        %v529 = vrot.slane %v497, %v528
        %v530 = vlaneseq
        %v531 = vshrl.u32 %v530, 7
        %v532 = vsub.s32 0, %v531
        %v533 = vrot.slane %v498, %v532
        %v534 = vlaneseq
        %v535 = vshrl.u32 %v534, 7
        %v536 = vsub.s32 0, %v535
        %v537 = vrot.slane %v499, %v536
        %v538 = vlaneseq
        %v539 = vshrl.u32 %v538, 7
        %v540 = vsub.s32 0, %v539
        %v541 = vrot.slane %v500, %v540
        %v542 = vlaneseq
        %v543 = vshrl.u32 %v542, 7
        %v544 = vsub.s32 0, %v543
        %v545 = vrot.slane %v501, %v544
        %v546 = vlaneseq
        %v547 = vshrl.u32 %v546, 7
        %v548 = vsub.s32 0, %v547
        %v549 = vrot.slane %v502, %v548
        %v550 = vlaneseq
        %v551 = vshrl.u32 %v550, 7
        %v552 = vsub.s32 0, %v551
        %v553 = vrot.slane %v503, %v552
        %v554 = vlaneseq
        %v555 = vshrl.u32 %v554, 7
        %v556 = vsub.s32 0, %v555
        %v557 = vrot.slane %v504, %v556
        %v558 = vlaneseq
        %v559 = vshrl.u32 %v558, 7
        %v560 = vsub.s32 0, %v559
        %v561 = vrot.slane %v505, %v560
        %576 = vrot.lane.b32.xlu0 %v509, 127
        %v577 = vpop.permute.xlu0 %576
        %578 = vrot.lane.b32.xlu0 %v513, 127
        %v579 = vpop.permute.xlu0 %578
        %580 = vrot.lane.b32.xlu0 %v517, 127
        %v581 = vpop.permute.xlu0 %580
        %582 = vrot.lane.b32.xlu0 %v521, 127
        %v583 = vpop.permute.xlu0 %582
        %584 = vrot.lane.b32.xlu0 %v525, 127
        %v585 = vpop.permute.xlu0 %584
        %586 = vrot.lane.b32.xlu0 %v529, 127
        %v587 = vpop.permute.xlu0 %586
        %588 = vrot.lane.b32.xlu0 %v533, 127
        %v589 = vpop.permute.xlu0 %588
        %590 = vrot.lane.b32.xlu0 %v537, 127
        %v591 = vpop.permute.xlu0 %590
        %592 = vrot.lane.b32.xlu0 %v541, 127
        %v593 = vpop.permute.xlu0 %592
        %594 = vrot.lane.b32.xlu0 %v545, 127
        %v595 = vpop.permute.xlu0 %594
        %596 = vrot.lane.b32.xlu0 %v549, 127
        %v597 = vpop.permute.xlu0 %596
        %598 = vrot.lane.b32.xlu0 %v553, 127
        %v599 = vpop.permute.xlu0 %598
        %600 = vrot.lane.b32.xlu0 %v557, 127
        %v601 = vpop.permute.xlu0 %600
        %602 = vrot.lane.b32.xlu0 %v561, 127
        %v603 = vpop.permute.xlu0 %602
        %618 = vrot.lane.b32.xlu0 %v509, 126
        %v619 = vpop.permute.xlu0 %618
        %620 = vrot.lane.b32.xlu0 %v513, 126
        %v621 = vpop.permute.xlu0 %620
        %622 = vrot.lane.b32.xlu0 %v517, 126
        %v623 = vpop.permute.xlu0 %622
        %624 = vrot.lane.b32.xlu0 %v521, 126
        %v625 = vpop.permute.xlu0 %624
        %626 = vrot.lane.b32.xlu0 %v525, 126
        %v627 = vpop.permute.xlu0 %626
        %628 = vrot.lane.b32.xlu0 %v529, 126
        %v629 = vpop.permute.xlu0 %628
        %630 = vrot.lane.b32.xlu0 %v533, 126
        %v631 = vpop.permute.xlu0 %630
        %632 = vrot.lane.b32.xlu0 %v537, 126
        %v633 = vpop.permute.xlu0 %632
        %634 = vrot.lane.b32.xlu0 %v541, 126
        %v635 = vpop.permute.xlu0 %634
        %636 = vrot.lane.b32.xlu0 %v545, 126
        %v637 = vpop.permute.xlu0 %636
        %638 = vrot.lane.b32.xlu0 %v549, 126
        %v639 = vpop.permute.xlu0 %638
        %640 = vrot.lane.b32.xlu0 %v553, 126
        %v641 = vpop.permute.xlu0 %640
        %642 = vrot.lane.b32.xlu0 %v557, 126
        %v643 = vpop.permute.xlu0 %642
        %644 = vrot.lane.b32.xlu0 %v561, 126
        %v645 = vpop.permute.xlu0 %644
        %646 = vrot.lane.b32.xlu0 %v509, 125
        %v647 = vpop.permute.xlu0 %646
        %648 = vrot.lane.b32.xlu0 %v513, 125
        %v649 = vpop.permute.xlu0 %648
        %650 = vrot.lane.b32.xlu0 %v517, 125
        %v651 = vpop.permute.xlu0 %650
        %652 = vrot.lane.b32.xlu0 %v521, 125
        %v653 = vpop.permute.xlu0 %652
        %654 = vrot.lane.b32.xlu0 %v525, 125
        %v655 = vpop.permute.xlu0 %654
        %656 = vrot.lane.b32.xlu0 %v529, 125
        %v657 = vpop.permute.xlu0 %656
        %658 = vrot.lane.b32.xlu0 %v533, 125
        %v659 = vpop.permute.xlu0 %658
        %660 = vrot.lane.b32.xlu0 %v537, 125
        %v661 = vpop.permute.xlu0 %660
        %662 = vrot.lane.b32.xlu0 %v541, 125
        %v663 = vpop.permute.xlu0 %662
        %664 = vrot.lane.b32.xlu0 %v545, 125
        %v665 = vpop.permute.xlu0 %664
        %666 = vrot.lane.b32.xlu0 %v549, 125
        %v667 = vpop.permute.xlu0 %666
        %668 = vrot.lane.b32.xlu0 %v553, 125
        %v669 = vpop.permute.xlu0 %668
        %670 = vrot.lane.b32.xlu0 %v557, 125
        %v671 = vpop.permute.xlu0 %670
        %672 = vrot.lane.b32.xlu0 %v561, 125
        %v673 = vpop.permute.xlu0 %672
        %688 = vrot.lane.b32.xlu0 %v509, 124
        %v689 = vpop.permute.xlu0 %688
        %690 = vrot.lane.b32.xlu0 %v513, 124
        %v691 = vpop.permute.xlu0 %690
        %692 = vrot.lane.b32.xlu0 %v517, 124
        %v693 = vpop.permute.xlu0 %692
        %694 = vrot.lane.b32.xlu0 %v521, 124
        %v695 = vpop.permute.xlu0 %694
        %696 = vrot.lane.b32.xlu0 %v525, 124
        %v697 = vpop.permute.xlu0 %696
        %698 = vrot.lane.b32.xlu0 %v529, 124
        %v699 = vpop.permute.xlu0 %698
        %700 = vrot.lane.b32.xlu0 %v533, 124
        %v701 = vpop.permute.xlu0 %700
        %702 = vrot.lane.b32.xlu0 %v537, 124
        %v703 = vpop.permute.xlu0 %702
        %704 = vrot.lane.b32.xlu0 %v541, 124
        %v705 = vpop.permute.xlu0 %704
        %706 = vrot.lane.b32.xlu0 %v545, 124
        %v707 = vpop.permute.xlu0 %706
        %708 = vrot.lane.b32.xlu0 %v549, 124
        %v709 = vpop.permute.xlu0 %708
        %710 = vrot.lane.b32.xlu0 %v553, 124
        %v711 = vpop.permute.xlu0 %710
        %712 = vrot.lane.b32.xlu0 %v557, 124
        %v713 = vpop.permute.xlu0 %712
        %714 = vrot.lane.b32.xlu0 %v561, 124
        %v715 = vpop.permute.xlu0 %714
        %v716 = vpack.i.b16 %v473, %v473
        %v717 = vlaneseq
        %v718 = vshrl.u32 %v717, 7
        %v719 = vsub.s32 0, %v718
        %v720 = vrot.slane %v716, %v719
        %722 = vrot.lane.b32.xlu0 %v720, 127
        %v723 = vpop.permute.xlu0 %722
        %724 = vrot.lane.b32.xlu0 %v720, 126
        %v725 = vpop.permute.xlu0 %724
        %740 = vrot.lane.b32.xlu0 %v720, 125
        %v741 = vpop.permute.xlu0 %740
        %742 = vrot.lane.b32.xlu0 %v720, 124
        %v743 = vpop.permute.xlu0 %742
        %v758 = vpack.i.b16 %v474, %v474
        %v759 = vlaneseq
        %v760 = vshrl.u32 %v759, 7
        %v761 = vsub.s32 0, %v760
        %v762 = vrot.slane %v758, %v761
        %763 = vrot.lane.b32.xlu0 %v762, 127
        %v764 = vpop.permute.xlu0 %763
        %767 = vrot.lane.b32.xlu0 %v762, 126
        %v768 = vpop.permute.xlu0 %767
        %769 = vrot.lane.b32.xlu0 %v762, 125
        %v770 = vpop.permute.xlu0 %769
        %773 = vrot.lane.b32.xlu0 %v762, 124
        %v774 = vpop.permute.xlu0 %773
        %v775 = vpack.i.b16 %v490, %v490
        %v776 = vlaneseq
        %v777 = vshrl.u32 %v776, 7
        %v778 = vsub.s32 0, %v777
        %v779 = vrot.slane %v775, %v778
        %vm782 = vcmask 1040384
        %vm783 = vsmask.f32 256
        %vm784 = vmand %vm782, %vm783
        %v785 = vsel %vm784, %v509, %v577
        %v786 = vsel %vm784, %v513, %v579
        %v787 = vsel %vm784, %v517, %v581
        %v788 = vsel %vm784, %v521, %v583
        %v789 = vsel %vm784, %v525, %v585
        %v790 = vsel %vm784, %v529, %v587
        %v791 = vsel %vm784, %v533, %v589
        %v792 = vsel %vm784, %v537, %v591
        %v793 = vsel %vm784, %v541, %v593
        %v794 = vsel %vm784, %v545, %v595
        %v795 = vsel %vm784, %v549, %v597
        %v796 = vsel %vm784, %v553, %v599
        %v797 = vsel %vm784, %v557, %v601
        %v798 = vsel %vm784, %v561, %v603
        %vm799 = vcmask 1040384
        %v802 = vsel %vm799, %v785, %v619
        %v806 = vsel %vm799, %v786, %v621
        %v810 = vsel %vm799, %v787, %v623
        %v814 = vsel %vm799, %v788, %v625
        %v818 = vsel %vm799, %v789, %v627
        %v822 = vsel %vm799, %v790, %v629
        %v826 = vsel %vm799, %v791, %v631
        %v830 = vsel %vm799, %v792, %v633
        %v834 = vsel %vm799, %v793, %v635
        %v838 = vsel %vm799, %v794, %v637
        %v842 = vsel %vm799, %v795, %v639
        %v846 = vsel %vm799, %v796, %v641
        %v850 = vsel %vm799, %v797, %v643
        %v854 = vsel %vm799, %v798, %v645
        %vm856 = vcmask 1041408
        %vm857 = vsmask.f32 1280
        %vm858 = vmand %vm856, %vm857
        %v859 = vsel %vm858, %v802, %v647
        %v860 = vsel %vm858, %v806, %v649
        %v861 = vsel %vm858, %v810, %v651
        %v862 = vsel %vm858, %v814, %v653
        %v863 = vsel %vm858, %v818, %v655
        %v864 = vsel %vm858, %v822, %v657
        %v865 = vsel %vm858, %v826, %v659
        %v866 = vsel %vm858, %v830, %v661
        %v867 = vsel %vm858, %v834, %v663
        %v868 = vsel %vm858, %v838, %v665
        %v869 = vsel %vm858, %v842, %v667
        %v870 = vsel %vm858, %v846, %v669
        %v871 = vsel %vm858, %v850, %v671
        %v872 = vsel %vm858, %v854, %v673
        %vm873 = vcmask 1041408
        %v876 = vsel %vm873, %v859, %v689
        %v880 = vsel %vm873, %v860, %v691
        %v884 = vsel %vm873, %v861, %v693
        %v888 = vsel %vm873, %v862, %v695
        %v892 = vsel %vm873, %v863, %v697
        %v896 = vsel %vm873, %v864, %v699
        %v900 = vsel %vm873, %v865, %v701
        %v904 = vsel %vm873, %v866, %v703
        %v908 = vsel %vm873, %v867, %v705
        %v912 = vsel %vm873, %v868, %v707
        %v916 = vsel %vm873, %v869, %v709
        %v920 = vsel %vm873, %v870, %v711
        %v924 = vsel %vm873, %v871, %v713
        %v928 = vsel %vm873, %v872, %v715
        %vm930 = vcmask 1042432
        %vm931 = vsmask.f32 2304
        %vm932 = vmand %vm930, %vm931
        %v933 = vsel %vm932, %v876, %v513
        %v934 = vsel %vm932, %v880, %v517
        %v935 = vsel %vm932, %v884, %v521
        %v936 = vsel %vm932, %v888, %v525
        %v937 = vsel %vm932, %v892, %v529
        %v938 = vsel %vm932, %v896, %v533
        %v939 = vsel %vm932, %v900, %v537
        %v940 = vsel %vm932, %v904, %v541
        %v941 = vsel %vm932, %v908, %v545
        %v942 = vsel %vm932, %v912, %v549
        %v943 = vsel %vm932, %v916, %v553
        %v944 = vsel %vm932, %v920, %v557
        %v945 = vsel %vm932, %v924, %v561
        %v946 = vsel %vm932, %v928, %v720
        %vm947 = vcmask 1042432
        %v950 = vsel %vm947, %v933, %v579
        %v954 = vsel %vm947, %v934, %v581
        %v958 = vsel %vm947, %v935, %v583
        %v962 = vsel %vm947, %v936, %v585
        %v966 = vsel %vm947, %v937, %v587
        %v970 = vsel %vm947, %v938, %v589
        %v974 = vsel %vm947, %v939, %v591
        %v978 = vsel %vm947, %v940, %v593
        %v982 = vsel %vm947, %v941, %v595
        %v986 = vsel %vm947, %v942, %v597
        %v990 = vsel %vm947, %v943, %v599
        %v994 = vsel %vm947, %v944, %v601
        %v998 = vsel %vm947, %v945, %v603
        %v1002 = vsel %vm947, %v946, %v723
        %vm1004 = vcmask 1043456
        %vm1005 = vsmask.f32 3328
        %vm1006 = vmand %vm1004, %vm1005
        %v1007 = vsel %vm1006, %v950, %v621
        %v1008 = vsel %vm1006, %v954, %v623
        %v1009 = vsel %vm1006, %v958, %v625
        %v1010 = vsel %vm1006, %v962, %v627
        %v1011 = vsel %vm1006, %v966, %v629
        %v1012 = vsel %vm1006, %v970, %v631
        %v1013 = vsel %vm1006, %v974, %v633
        %v1014 = vsel %vm1006, %v978, %v635
        %v1015 = vsel %vm1006, %v982, %v637
        %v1016 = vsel %vm1006, %v986, %v639
        %v1017 = vsel %vm1006, %v990, %v641
        %v1018 = vsel %vm1006, %v994, %v643
        %v1019 = vsel %vm1006, %v998, %v645
        %v1020 = vsel %vm1006, %v1002, %v725
        %vm1021 = vcmask 1043456
        %v1024 = vsel %vm1021, %v1007, %v649
        %v1028 = vsel %vm1021, %v1008, %v651
        %v1032 = vsel %vm1021, %v1009, %v653
        %v1036 = vsel %vm1021, %v1010, %v655
        %v1040 = vsel %vm1021, %v1011, %v657
        %v1044 = vsel %vm1021, %v1012, %v659
        %v1048 = vsel %vm1021, %v1013, %v661
        %v1052 = vsel %vm1021, %v1014, %v663
        %v1056 = vsel %vm1021, %v1015, %v665
        %v1060 = vsel %vm1021, %v1016, %v667
        %v1064 = vsel %vm1021, %v1017, %v669
        %v1068 = vsel %vm1021, %v1018, %v671
        %v1072 = vsel %vm1021, %v1019, %v673
        %v1076 = vsel %vm1021, %v1020, %v741
        %vm1078 = vcmask 1044480
        %vm1079 = vsmask.f32 4352
        %vm1080 = vmand %vm1078, %vm1079
        %v1081 = vsel %vm1080, %v1024, %v691
        %v1082 = vsel %vm1080, %v1028, %v693
        %v1083 = vsel %vm1080, %v1032, %v695
        %v1084 = vsel %vm1080, %v1036, %v697
        %v1085 = vsel %vm1080, %v1040, %v699
        %v1086 = vsel %vm1080, %v1044, %v701
        %v1087 = vsel %vm1080, %v1048, %v703
        %v1088 = vsel %vm1080, %v1052, %v705
        %v1089 = vsel %vm1080, %v1056, %v707
        %v1090 = vsel %vm1080, %v1060, %v709
        %v1091 = vsel %vm1080, %v1064, %v711
        %v1092 = vsel %vm1080, %v1068, %v713
        %v1093 = vsel %vm1080, %v1072, %v715
        %v1094 = vsel %vm1080, %v1076, %v743
        %vm1095 = vcmask 1044480
        %v1098 = vsel %vm1095, %v1081, %v517
        %v1102 = vsel %vm1095, %v1082, %v521
        %v1106 = vsel %vm1095, %v1083, %v525
        %v1110 = vsel %vm1095, %v1084, %v529
        %v1114 = vsel %vm1095, %v1085, %v533
        %v1118 = vsel %vm1095, %v1086, %v537
        %v1122 = vsel %vm1095, %v1087, %v541
        %v1126 = vsel %vm1095, %v1088, %v545
        %v1130 = vsel %vm1095, %v1089, %v549
        %v1134 = vsel %vm1095, %v1090, %v553
        %v1138 = vsel %vm1095, %v1091, %v557
        %v1142 = vsel %vm1095, %v1092, %v561
        %v1146 = vsel %vm1095, %v1093, %v720
        %v1150 = vsel %vm1095, %v1094, %v762
        %vm1152 = vcmask 1045504
        %vm1153 = vsmask.f32 5376
        %vm1154 = vmand %vm1152, %vm1153
        %v1155 = vsel %vm1154, %v1098, %v581
        %v1156 = vsel %vm1154, %v1102, %v583
        %v1157 = vsel %vm1154, %v1106, %v585
        %v1158 = vsel %vm1154, %v1110, %v587
        %v1159 = vsel %vm1154, %v1114, %v589
        %v1160 = vsel %vm1154, %v1118, %v591
        %v1161 = vsel %vm1154, %v1122, %v593
        %v1162 = vsel %vm1154, %v1126, %v595
        %v1163 = vsel %vm1154, %v1130, %v597
        %v1164 = vsel %vm1154, %v1134, %v599
        %v1165 = vsel %vm1154, %v1138, %v601
        %v1166 = vsel %vm1154, %v1142, %v603
        %v1167 = vsel %vm1154, %v1146, %v723
        %v1168 = vsel %vm1154, %v1150, %v764
        %vm1169 = vcmask 1045504
        %v1171 = vsel %vm1169, %v1155, %v623
        %v1174 = vsel %vm1169, %v1156, %v625
        %v1177 = vsel %vm1169, %v1157, %v627
        %v1180 = vsel %vm1169, %v1158, %v629
        %v1183 = vsel %vm1169, %v1159, %v631
        %v1186 = vsel %vm1169, %v1160, %v633
        %v1189 = vsel %vm1169, %v1161, %v635
        %v1192 = vsel %vm1169, %v1162, %v637
        %v1195 = vsel %vm1169, %v1163, %v639
        %v1198 = vsel %vm1169, %v1164, %v641
        %v1201 = vsel %vm1169, %v1165, %v643
        %v1204 = vsel %vm1169, %v1166, %v645
        %v1208 = vsel %vm1169, %v1167, %v725
        %v1212 = vsel %vm1169, %v1168, %v768
        %vm1214 = vcmask 1046528
        %vm1215 = vsmask.f32 6400
        %vm1216 = vmand %vm1214, %vm1215
        %v1217 = vsel %vm1216, %v1171, %v651
        %v1218 = vsel %vm1216, %v1174, %v653
        %v1219 = vsel %vm1216, %v1177, %v655
        %v1220 = vsel %vm1216, %v1180, %v657
        %v1221 = vsel %vm1216, %v1183, %v659
        %v1222 = vsel %vm1216, %v1186, %v661
        %v1223 = vsel %vm1216, %v1189, %v663
        %v1224 = vsel %vm1216, %v1192, %v665
        %v1225 = vsel %vm1216, %v1195, %v667
        %v1226 = vsel %vm1216, %v1198, %v669
        %v1227 = vsel %vm1216, %v1201, %v671
        %v1228 = vsel %vm1216, %v1204, %v673
        %v1229 = vsel %vm1216, %v1208, %v741
        %v1230 = vsel %vm1216, %v1212, %v770
        %vm1231 = vcmask 1046528
        %v1233 = vsel %vm1231, %v1217, %v693
        %v1236 = vsel %vm1231, %v1218, %v695
        %v1239 = vsel %vm1231, %v1219, %v697
        %v1242 = vsel %vm1231, %v1220, %v699
        %v1245 = vsel %vm1231, %v1221, %v701
        %v1248 = vsel %vm1231, %v1222, %v703
        %v1251 = vsel %vm1231, %v1223, %v705
        %v1254 = vsel %vm1231, %v1224, %v707
        %v1257 = vsel %vm1231, %v1225, %v709
        %v1260 = vsel %vm1231, %v1226, %v711
        %v1263 = vsel %vm1231, %v1227, %v713
        %v1266 = vsel %vm1231, %v1228, %v715
        %v1270 = vsel %vm1231, %v1229, %v743
        %v1274 = vsel %vm1231, %v1230, %v774
        %vm1276 = vcmask 1047552
        %vm1277 = vsmask.f32 7424
        %vm1278 = vmand %vm1276, %vm1277
        %v1279 = vsel %vm1278, %v1233, %v521
        %v1280 = vsel %vm1278, %v1236, %v525
        %v1281 = vsel %vm1278, %v1239, %v529
        %v1282 = vsel %vm1278, %v1242, %v533
        %v1283 = vsel %vm1278, %v1245, %v537
        %v1284 = vsel %vm1278, %v1248, %v541
        %v1285 = vsel %vm1278, %v1251, %v545
        %v1286 = vsel %vm1278, %v1254, %v549
        %v1287 = vsel %vm1278, %v1257, %v553
        %v1288 = vsel %vm1278, %v1260, %v557
        %v1289 = vsel %vm1278, %v1263, %v561
        %v1290 = vsel %vm1278, %v1266, %v720
        %v1291 = vsel %vm1278, %v1270, %v762
        %v1292 = vsel %vm1278, %v1274, %v779
        %1293 = vrot.lane.b32.xlu0 %v779, 127
        %v1294 = vpop.permute.xlu0 %1293
        %1296 = vrot.lane.b32.xlu0 %v779, 126
        %v1297 = vpop.permute.xlu0 %1296
        %1298 = vrot.lane.b32.xlu0 %v779, 125
        %v1299 = vpop.permute.xlu0 %1298
        %v1301 = vpack.i.b16 %v491, %v491
        %v1302 = vlaneseq
        %v1303 = vshrl.u32 %v1302, 7
        %v1304 = vsub.s32 0, %v1303
        %v1305 = vrot.slane %v1301, %v1304
        %1306 = vrot.lane.b32.xlu0 %v525, 1
        %v1307 = vpop.permute.xlu0 %1306
        %1308 = vrot.lane.b32.xlu0 %v529, 1
        %v1309 = vpop.permute.xlu0 %1308
        %1310 = vrot.lane.b32.xlu0 %v533, 1
        %v1311 = vpop.permute.xlu0 %1310
        %1312 = vrot.lane.b32.xlu0 %v537, 1
        %v1313 = vpop.permute.xlu0 %1312
        %1314 = vrot.lane.b32.xlu0 %v541, 1
        %v1315 = vpop.permute.xlu0 %1314
        %1316 = vrot.lane.b32.xlu0 %v545, 1
        %v1317 = vpop.permute.xlu0 %1316
        %1318 = vrot.lane.b32.xlu0 %v549, 1
        %v1319 = vpop.permute.xlu0 %1318
        %1320 = vrot.lane.b32.xlu0 %v553, 1
        %v1321 = vpop.permute.xlu0 %1320
        %1322 = vrot.lane.b32.xlu0 %v557, 1
        %v1323 = vpop.permute.xlu0 %1322
        %1324 = vrot.lane.b32.xlu0 %v561, 1
        %v1325 = vpop.permute.xlu0 %1324
        %1326 = vrot.lane.b32.xlu0 %v720, 1
        %v1327 = vpop.permute.xlu0 %1326
        %1328 = vrot.lane.b32.xlu0 %v762, 1
        %v1329 = vpop.permute.xlu0 %1328
        %1330 = vrot.lane.b32.xlu0 %v779, 1
        %v1331 = vpop.permute.xlu0 %1330
        %1332 = vrot.lane.b32.xlu0 %v1305, 1
        %v1333 = vpop.permute.xlu0 %1332
        %1335 = vrot.lane.b32.xlu0 %v1305, 127
        %v1336 = vpop.permute.xlu0 %1335
        %1337 = vrot.lane.b32.xlu0 %v1305, 126
        %v1338 = vpop.permute.xlu0 %1337
        %1342 = vrot.lane.b32.xlu0 %v1305, 125
        %v1343 = vpop.permute.xlu0 %1342
        %v1344 = vsel %vm784, %v720, %v723
        %v1345 = vsel %vm784, %v762, %v764
        %v1346 = vsel %vm784, %v779, %v1294
        %v1348 = vsel %vm799, %v1344, %v725
        %v1351 = vsel %vm799, %v1345, %v768
        %v1355 = vsel %vm799, %v1346, %v1297
        %v1357 = vsel %vm858, %v1348, %v741
        %v1358 = vsel %vm858, %v1351, %v770
        %v1359 = vsel %vm858, %v1355, %v1299
        %v1361 = vsel %vm873, %v862, %v1307
        %v1364 = vsel %vm873, %v863, %v1309
        %v1367 = vsel %vm873, %v864, %v1311
        %v1370 = vsel %vm873, %v865, %v1313
        %v1373 = vsel %vm873, %v866, %v1315
        %v1376 = vsel %vm873, %v867, %v1317
        %v1379 = vsel %vm873, %v868, %v1319
        %v1382 = vsel %vm873, %v869, %v1321
        %v1385 = vsel %vm873, %v870, %v1323
        %v1388 = vsel %vm873, %v871, %v1325
        %v1391 = vsel %vm873, %v872, %v1327
        %v1395 = vsel %vm873, %v1357, %v1329
        %v1399 = vsel %vm873, %v1358, %v1331
        %v1403 = vsel %vm873, %v1359, %v1333
        %v1405 = vsel %vm932, %v1361, %v525
        %v1406 = vsel %vm932, %v1364, %v529
        %v1407 = vsel %vm932, %v1367, %v533
        %v1408 = vsel %vm932, %v1370, %v537
        %v1409 = vsel %vm932, %v1373, %v541
        %v1410 = vsel %vm932, %v1376, %v545
        %v1411 = vsel %vm932, %v1379, %v549
        %v1412 = vsel %vm932, %v1382, %v553
        %v1413 = vsel %vm932, %v1385, %v557
        %v1414 = vsel %vm932, %v1388, %v561
        %v1415 = vsel %vm932, %v1391, %v720
        %v1416 = vsel %vm932, %v1395, %v762
        %v1417 = vsel %vm932, %v1399, %v779
        %v1418 = vsel %vm932, %v1403, %v1305
        %v1420 = vsel %vm947, %v1405, %v585
        %v1423 = vsel %vm947, %v1406, %v587
        %v1426 = vsel %vm947, %v1407, %v589
        %v1429 = vsel %vm947, %v1408, %v591
        %v1432 = vsel %vm947, %v1409, %v593
        %v1435 = vsel %vm947, %v1410, %v595
        %v1438 = vsel %vm947, %v1411, %v597
        %v1441 = vsel %vm947, %v1412, %v599
        %v1444 = vsel %vm947, %v1413, %v601
        %v1447 = vsel %vm947, %v1414, %v603
        %v1450 = vsel %vm947, %v1415, %v723
        %v1454 = vsel %vm947, %v1416, %v764
        %v1458 = vsel %vm947, %v1417, %v1294
        %v1462 = vsel %vm947, %v1418, %v1336
        %v1464 = vsel %vm1006, %v1420, %v627
        %v1465 = vsel %vm1006, %v1423, %v629
        %v1466 = vsel %vm1006, %v1426, %v631
        %v1467 = vsel %vm1006, %v1429, %v633
        %v1468 = vsel %vm1006, %v1432, %v635
        %v1469 = vsel %vm1006, %v1435, %v637
        %v1470 = vsel %vm1006, %v1438, %v639
        %v1471 = vsel %vm1006, %v1441, %v641
        %v1472 = vsel %vm1006, %v1444, %v643
        %v1473 = vsel %vm1006, %v1447, %v645
        %v1474 = vsel %vm1006, %v1450, %v725
        %v1475 = vsel %vm1006, %v1454, %v768
        %v1476 = vsel %vm1006, %v1458, %v1297
        %v1477 = vsel %vm1006, %v1462, %v1338
        %v1479 = vsel %vm1021, %v1464, %v655
        %v1481 = vsel %vm1021, %v1465, %v657
        %v1483 = vsel %vm1021, %v1466, %v659
        %v1485 = vsel %vm1021, %v1467, %v661
        %v1487 = vsel %vm1021, %v1468, %v663
        %v1489 = vsel %vm1021, %v1469, %v665
        %v1491 = vsel %vm1021, %v1470, %v667
        %v1493 = vsel %vm1021, %v1471, %v669
        %v1495 = vsel %vm1021, %v1472, %v671
        %v1497 = vsel %vm1021, %v1473, %v673
        %v1499 = vsel %vm1021, %v1474, %v741
        %v1502 = vsel %vm1021, %v1475, %v770
        %v1505 = vsel %vm1021, %v1476, %v1299
        %v1508 = vsel %vm1021, %v1477, %v1343
        %1523 = vrot.lane.b32.xlu0 %v1479, 127
        %v1524 = vpop.permute.xlu0 %1523
        %1525 = vrot.lane.b32.xlu0 %v1481, 127
        %v1526 = vpop.permute.xlu0 %1525
        %1527 = vrot.lane.b32.xlu0 %v1483, 127
        %v1528 = vpop.permute.xlu0 %1527
        %1529 = vrot.lane.b32.xlu0 %v1485, 127
        %v1530 = vpop.permute.xlu0 %1529
        %1531 = vrot.lane.b32.xlu0 %v1487, 127
        %v1532 = vpop.permute.xlu0 %1531
        %1533 = vrot.lane.b32.xlu0 %v1489, 127
        %v1534 = vpop.permute.xlu0 %1533
        %1535 = vrot.lane.b32.xlu0 %v1491, 127
        %v1536 = vpop.permute.xlu0 %1535
        %1537 = vrot.lane.b32.xlu0 %v1493, 127
        %v1538 = vpop.permute.xlu0 %1537
        %1539 = vrot.lane.b32.xlu0 %v1495, 127
        %v1540 = vpop.permute.xlu0 %1539
        %1541 = vrot.lane.b32.xlu0 %v1497, 127
        %v1542 = vpop.permute.xlu0 %1541
        %1543 = vrot.lane.b32.xlu0 %v1499, 127
        %v1544 = vpop.permute.xlu0 %1543
        %1545 = vrot.lane.b32.xlu0 %v1502, 127
        %v1546 = vpop.permute.xlu0 %1545
        %1547 = vrot.lane.b32.xlu0 %v1505, 127
        %v1548 = vpop.permute.xlu0 %1547
        %1549 = vrot.lane.b32.xlu0 %v1508, 127
        %v1550 = vpop.permute.xlu0 %1549
        %1565 = vxpose.xlu0.c.b16.start [1/8] %v1279, 128
        %1566 = vxpose.xlu0.c.b16.cont [2/8] %v1524, 128
        %1567 = vxpose.xlu0.c.b16.cont [3/8] 0, 128
        %1568 = vxpose.xlu0.c.b16.cont [4/8] 0, 128
        %1569 = vxpose.xlu0.c.b16.cont [5/8] 0, 128
        %1570 = vxpose.xlu0.c.b16.cont [6/8] 0, 128
        %1571 = vxpose.xlu0.c.b16.cont [7/8] 0, 128
        %1572 = vxpose.xlu0.c.b16.end [8/8] 0, 128
        %v1573 = vpop.trf.xlu0
        %v1574 = vpop.trf.xlu0
        %v1575 = vpop.trf.xlu0
        %v1576 = vpop.trf.xlu0
        %v1577 = vpop.trf.xlu0
        %v1578 = vpop.trf.xlu0
        %v1579 = vpop.trf.xlu0
        %v1580 = vpop.trf.xlu0
        %1581 = vxpose.xlu0.c.b16.start [1/8] %v1280, 128
        %1582 = vxpose.xlu0.c.b16.cont [2/8] %v1526, 128
        %1583 = vxpose.xlu0.c.b16.cont [3/8] 0, 128
        %1584 = vxpose.xlu0.c.b16.cont [4/8] 0, 128
        %1585 = vxpose.xlu0.c.b16.cont [5/8] 0, 128
        %1586 = vxpose.xlu0.c.b16.cont [6/8] 0, 128
        %1587 = vxpose.xlu0.c.b16.cont [7/8] 0, 128
        %1588 = vxpose.xlu0.c.b16.end [8/8] 0, 128
        %v1589 = vpop.trf.xlu0
        %v1590 = vpop.trf.xlu0
        %v1591 = vpop.trf.xlu0
        %v1592 = vpop.trf.xlu0
        %v1593 = vpop.trf.xlu0
        %v1594 = vpop.trf.xlu0
        %v1595 = vpop.trf.xlu0
        %v1596 = vpop.trf.xlu0
        %1597 = vxpose.xlu0.c.b16.start [1/8] %v1281, 128
        %1598 = vxpose.xlu0.c.b16.cont [2/8] %v1528, 128
        %1599 = vxpose.xlu0.c.b16.cont [3/8] 0, 128
        %1600 = vxpose.xlu0.c.b16.cont [4/8] 0, 128
        %1601 = vxpose.xlu0.c.b16.cont [5/8] 0, 128
        %1602 = vxpose.xlu0.c.b16.cont [6/8] 0, 128
        %1603 = vxpose.xlu0.c.b16.cont [7/8] 0, 128
        %1604 = vxpose.xlu0.c.b16.end [8/8] 0, 128
        %v1605 = vpop.trf.xlu0
        %v1606 = vpop.trf.xlu0
        %v1607 = vpop.trf.xlu0
        %v1608 = vpop.trf.xlu0
        %v1609 = vpop.trf.xlu0
        %v1610 = vpop.trf.xlu0
        %v1611 = vpop.trf.xlu0
        %v1612 = vpop.trf.xlu0
        %1613 = vxpose.xlu0.c.b16.start [1/8] %v1282, 128
        %1614 = vxpose.xlu0.c.b16.cont [2/8] %v1530, 128
        %1615 = vxpose.xlu0.c.b16.cont [3/8] 0, 128
        %1616 = vxpose.xlu0.c.b16.cont [4/8] 0, 128
        %1617 = vxpose.xlu0.c.b16.cont [5/8] 0, 128
        %1618 = vxpose.xlu0.c.b16.cont [6/8] 0, 128
        %1619 = vxpose.xlu0.c.b16.cont [7/8] 0, 128
        %1620 = vxpose.xlu0.c.b16.end [8/8] 0, 128
        %v1621 = vpop.trf.xlu0
        %v1622 = vpop.trf.xlu0
        %v1623 = vpop.trf.xlu0
        %v1624 = vpop.trf.xlu0
        %v1625 = vpop.trf.xlu0
        %v1626 = vpop.trf.xlu0
        %v1627 = vpop.trf.xlu0
        %v1628 = vpop.trf.xlu0
        %1629 = vxpose.xlu0.c.b16.start [1/8] %v1283, 128
        %1630 = vxpose.xlu0.c.b16.cont [2/8] %v1532, 128
        %1631 = vxpose.xlu0.c.b16.cont [3/8] 0, 128
        %1632 = vxpose.xlu0.c.b16.cont [4/8] 0, 128
        %1633 = vxpose.xlu0.c.b16.cont [5/8] 0, 128
        %1634 = vxpose.xlu0.c.b16.cont [6/8] 0, 128
        %1635 = vxpose.xlu0.c.b16.cont [7/8] 0, 128
        %1636 = vxpose.xlu0.c.b16.end [8/8] 0, 128
        %v1637 = vpop.trf.xlu0
        %v1638 = vpop.trf.xlu0
        %v1639 = vpop.trf.xlu0
        %v1640 = vpop.trf.xlu0
        %v1641 = vpop.trf.xlu0
        %v1642 = vpop.trf.xlu0
        %v1643 = vpop.trf.xlu0
        %v1644 = vpop.trf.xlu0
        %1645 = vxpose.xlu0.c.b16.start [1/8] %v1284, 128
        %1646 = vxpose.xlu0.c.b16.cont [2/8] %v1534, 128
        %1647 = vxpose.xlu0.c.b16.cont [3/8] 0, 128
        %1648 = vxpose.xlu0.c.b16.cont [4/8] 0, 128
        %1649 = vxpose.xlu0.c.b16.cont [5/8] 0, 128
        %1650 = vxpose.xlu0.c.b16.cont [6/8] 0, 128
        %1651 = vxpose.xlu0.c.b16.cont [7/8] 0, 128
        %1652 = vxpose.xlu0.c.b16.end [8/8] 0, 128
        %v1653 = vpop.trf.xlu0
        %v1654 = vpop.trf.xlu0
        %v1655 = vpop.trf.xlu0
        %v1656 = vpop.trf.xlu0
        %v1657 = vpop.trf.xlu0
        %v1658 = vpop.trf.xlu0
        %v1659 = vpop.trf.xlu0
        %v1660 = vpop.trf.xlu0
        %1661 = vxpose.xlu0.c.b16.start [1/8] %v1285, 128
        %1662 = vxpose.xlu0.c.b16.cont [2/8] %v1536, 128
        %1663 = vxpose.xlu0.c.b16.cont [3/8] 0, 128
        %1664 = vxpose.xlu0.c.b16.cont [4/8] 0, 128
        %1665 = vxpose.xlu0.c.b16.cont [5/8] 0, 128
        %1666 = vxpose.xlu0.c.b16.cont [6/8] 0, 128
        %1667 = vxpose.xlu0.c.b16.cont [7/8] 0, 128
        %1668 = vxpose.xlu0.c.b16.end [8/8] 0, 128
        %v1669 = vpop.trf.xlu0
        %v1670 = vpop.trf.xlu0
        %v1671 = vpop.trf.xlu0
        %v1672 = vpop.trf.xlu0
        %v1673 = vpop.trf.xlu0
        %v1674 = vpop.trf.xlu0
        %v1675 = vpop.trf.xlu0
        %v1676 = vpop.trf.xlu0
        %1677 = vxpose.xlu0.c.b16.start [1/8] %v1286, 128
        %1678 = vxpose.xlu0.c.b16.cont [2/8] %v1538, 128
        %1679 = vxpose.xlu0.c.b16.cont [3/8] 0, 128
        %1680 = vxpose.xlu0.c.b16.cont [4/8] 0, 128
        %1681 = vxpose.xlu0.c.b16.cont [5/8] 0, 128
        %1682 = vxpose.xlu0.c.b16.cont [6/8] 0, 128
        %1683 = vxpose.xlu0.c.b16.cont [7/8] 0, 128
        %1684 = vxpose.xlu0.c.b16.end [8/8] 0, 128
        %v1685 = vpop.trf.xlu0
        %v1686 = vpop.trf.xlu0
        %v1687 = vpop.trf.xlu0
        %v1688 = vpop.trf.xlu0
        %v1689 = vpop.trf.xlu0
        %v1690 = vpop.trf.xlu0
        %v1691 = vpop.trf.xlu0
        %v1692 = vpop.trf.xlu0
        %1693 = vxpose.xlu0.c.b16.start [1/8] %v1287, 128
        %1694 = vxpose.xlu0.c.b16.cont [2/8] %v1540, 128
        %1695 = vxpose.xlu0.c.b16.cont [3/8] 0, 128
        %1696 = vxpose.xlu0.c.b16.cont [4/8] 0, 128
        %1697 = vxpose.xlu0.c.b16.cont [5/8] 0, 128
        %1698 = vxpose.xlu0.c.b16.cont [6/8] 0, 128
        %1699 = vxpose.xlu0.c.b16.cont [7/8] 0, 128
        %1700 = vxpose.xlu0.c.b16.end [8/8] 0, 128
        %v1701 = vpop.trf.xlu0
        %v1702 = vpop.trf.xlu0
        %v1703 = vpop.trf.xlu0
        %v1704 = vpop.trf.xlu0
        %v1705 = vpop.trf.xlu0
        %v1706 = vpop.trf.xlu0
        %v1707 = vpop.trf.xlu0
        %v1708 = vpop.trf.xlu0
        %1709 = vxpose.xlu0.c.b16.start [1/8] %v1288, 128
        %1710 = vxpose.xlu0.c.b16.cont [2/8] %v1542, 128
        %1711 = vxpose.xlu0.c.b16.cont [3/8] 0, 128
        %1712 = vxpose.xlu0.c.b16.cont [4/8] 0, 128
        %1713 = vxpose.xlu0.c.b16.cont [5/8] 0, 128
        %1714 = vxpose.xlu0.c.b16.cont [6/8] 0, 128
        %1715 = vxpose.xlu0.c.b16.cont [7/8] 0, 128
        %1716 = vxpose.xlu0.c.b16.end [8/8] 0, 128
        %v1717 = vpop.trf.xlu0
        %v1718 = vpop.trf.xlu0
        %v1719 = vpop.trf.xlu0
        %v1720 = vpop.trf.xlu0
        %v1721 = vpop.trf.xlu0
        %v1722 = vpop.trf.xlu0
        %v1723 = vpop.trf.xlu0
        %v1724 = vpop.trf.xlu0
        %1725 = vxpose.xlu0.c.b16.start [1/8] %v1289, 128
        %1726 = vxpose.xlu0.c.b16.cont [2/8] %v1544, 128
        %1727 = vxpose.xlu0.c.b16.cont [3/8] 0, 128
        %1728 = vxpose.xlu0.c.b16.cont [4/8] 0, 128
        %1729 = vxpose.xlu0.c.b16.cont [5/8] 0, 128
        %1730 = vxpose.xlu0.c.b16.cont [6/8] 0, 128
        %1731 = vxpose.xlu0.c.b16.cont [7/8] 0, 128
        %1732 = vxpose.xlu0.c.b16.end [8/8] 0, 128
        %v1733 = vpop.trf.xlu0
        %v1734 = vpop.trf.xlu0
        %v1735 = vpop.trf.xlu0
        %v1736 = vpop.trf.xlu0
        %v1737 = vpop.trf.xlu0
        %v1738 = vpop.trf.xlu0
        %v1739 = vpop.trf.xlu0
        %v1740 = vpop.trf.xlu0
        %1741 = vxpose.xlu0.c.b16.start [1/8] %v1290, 128
        %1742 = vxpose.xlu0.c.b16.cont [2/8] %v1546, 128
        %1743 = vxpose.xlu0.c.b16.cont [3/8] 0, 128
        %1744 = vxpose.xlu0.c.b16.cont [4/8] 0, 128
        %1745 = vxpose.xlu0.c.b16.cont [5/8] 0, 128
        %1746 = vxpose.xlu0.c.b16.cont [6/8] 0, 128
        %1747 = vxpose.xlu0.c.b16.cont [7/8] 0, 128
        %1748 = vxpose.xlu0.c.b16.end [8/8] 0, 128
        %v1749 = vpop.trf.xlu0
        %v1750 = vpop.trf.xlu0
        %v1751 = vpop.trf.xlu0
        %v1752 = vpop.trf.xlu0
        %v1753 = vpop.trf.xlu0
        %v1754 = vpop.trf.xlu0
        %v1755 = vpop.trf.xlu0
        %v1756 = vpop.trf.xlu0
        %1757 = vxpose.xlu0.c.b16.start [1/8] %v1291, 128
        %1758 = vxpose.xlu0.c.b16.cont [2/8] %v1548, 128
        %1759 = vxpose.xlu0.c.b16.cont [3/8] 0, 128
        %1760 = vxpose.xlu0.c.b16.cont [4/8] 0, 128
        %1761 = vxpose.xlu0.c.b16.cont [5/8] 0, 128
        %1762 = vxpose.xlu0.c.b16.cont [6/8] 0, 128
        %1763 = vxpose.xlu0.c.b16.cont [7/8] 0, 128
        %1764 = vxpose.xlu0.c.b16.end [8/8] 0, 128
        %v1765 = vpop.trf.xlu0
        %v1766 = vpop.trf.xlu0
        %v1767 = vpop.trf.xlu0
        %v1768 = vpop.trf.xlu0
        %v1769 = vpop.trf.xlu0
        %v1770 = vpop.trf.xlu0
        %v1771 = vpop.trf.xlu0
        %v1772 = vpop.trf.xlu0
        %1773 = vxpose.xlu0.c.b16.start [1/8] %v1292, 128
        %1774 = vxpose.xlu0.c.b16.cont [2/8] %v1550, 128
        %1775 = vxpose.xlu0.c.b16.cont [3/8] 0, 128
        %1776 = vxpose.xlu0.c.b16.cont [4/8] 0, 128
        %1777 = vxpose.xlu0.c.b16.cont [5/8] 0, 128
        %1778 = vxpose.xlu0.c.b16.cont [6/8] 0, 128
        %1779 = vxpose.xlu0.c.b16.cont [7/8] 0, 128
        %1780 = vxpose.xlu0.c.b16.end [8/8] 0, 128
        %v1781 = vpop.trf.xlu0
        %v1782 = vpop.trf.xlu0
        %v1783 = vpop.trf.xlu0
        %v1784 = vpop.trf.xlu0
        %v1785 = vpop.trf.xlu0
        %v1786 = vpop.trf.xlu0
        %v1787 = vpop.trf.xlu0
        %v1788 = vpop.trf.xlu0
        %v1789 = vld [vmem:[%s1] sm:$0xf]
        %v1790 = vld [vmem:[%s1 + $0x4] sm:$0xf]
        %v1791 = vld [vmem:[%s1 + $0x8] sm:$0xf]
        %v1792 = vld [vmem:[%s1 + $0xc] sm:$0x1]
        %v1793 = vld [vmem:[%s2] sm:$0x1]
        %v1795 = vlaneseq
        %v1796 = vshrl.u32 %v1795, 7
        %v1797 = vsub.s32 0, %v1796
        %v1798 = vrot.slane %v1793, %v1797
        %v1804 = vunpack.c.l.b16 %v1789
        %v1805 = vunpack.c.l.b16 %v1790
        %v1806 = vunpack.c.l.b16 %v1791
        %v1807 = vunpack.c.l.b16 %v1792
        %v1808 = vpack.c.b16 %v1805, %v1804
        %v1809 = vpack.c.b16 %v1807, %v1806
        %vm1811 = vcmask 203776
        %v1813 = vsel %vm1811, %v1573, 0
        %v1816 = vsel %vm1811, %v1589, 0
        %v1819 = vsel %vm1811, %v1605, 0
        %v1822 = vsel %vm1811, %v1621, 0
        %v1825 = vsel %vm1811, %v1637, 0
        %v1828 = vsel %vm1811, %v1653, 0
        %v1831 = vsel %vm1811, %v1669, 0
        %v1834 = vsel %vm1811, %v1685, 0
        %v1837 = vsel %vm1811, %v1701, 0
        %v1840 = vsel %vm1811, %v1717, 0
        %v1843 = vsel %vm1811, %v1733, 0
        %v1846 = vsel %vm1811, %v1749, 0
        %v1849 = vsel %vm1811, %v1765, 0
        %v1852 = vsel %vm1811, %v1781, 0
        %v1854 = vsel %vm1021, 4294967295, 65535
        %v1855 = vsel %vm1095, %v1854, 0
        %v1857 = vand.u32 %v1809, %v1855
        %1859 = vmatprep.subr.bf16.mxu0 0
        %1860 = vmatpush1.bf16.msra.mxu0 %v1808
        %1861 = vmatprep.subr.bf16.mxu0 0
        %1862 = vmatpush1.bf16.msra.mxu0 %v1857
        %1863 = vmatprep.subr.bf16.mxu0 0
        %1864 = vmatpush1.bf16.msra.mxu0 0
        %1865 = vmatprep.subr.bf16.mxu0 0
        %1866 = vmatpush1.bf16.msra.mxu0 0
        %1867 = vmatprep.subr.bf16.mxu0 0
        %1868 = vmatpush1.bf16.msra.mxu0 0
        %1869 = vmatprep.subr.bf16.mxu0 0
        %1870 = vmatpush1.bf16.msra.mxu0 0
        %1871 = vmatprep.subr.bf16.mxu0 0
        %1872 = vmatpush1.bf16.msra.mxu0 0
        %1873 = vmatprep.subr.bf16.mxu0 0
        %1874 = vmatpush1.bf16.msra.mxu0 0
        %1875 = vmatprep.subr.bf16.mxu0 0
        %1876 = vmatpush1.bf16.msra.mxu0 0
        %1877 = vmatprep.subr.bf16.mxu0 0
        %1878 = vmatpush1.bf16.msra.mxu0 0
        %1879 = vmatprep.subr.bf16.mxu0 0
        %1880 = vmatpush1.bf16.msra.mxu0 0
        %1881 = vmatprep.subr.bf16.mxu0 0
        %1882 = vmatpush1.bf16.msra.mxu0 0
        %1883 = vmatprep.subr.bf16.mxu0 0
        %1884 = vmatpush1.bf16.msra.mxu0 0
        %1885 = vmatprep.subr.bf16.mxu0 0
        %1886 = vmatpush1.bf16.msra.mxu0 0
        %1887 = vmatprep.subr.bf16.mxu0 0
        %1888 = vmatpush1.bf16.msra.mxu0 0
        %1889 = vmatprep.subr.bf16.mxu0 0
        %1890 = vmatpush1.bf16.msra.mxu0 0
        %1891 = vmatprep.mubr.bf16.mxu0 0
        %1892 = vmatmul.mubr.bf16.gmra.mrb[0].mxu0 %v1813
        %v1893 = vpop.f32.mrb[0].mxu0
        %v1894 = vadd.f32 %v1798, %v1893
        %v1895 = vpop.f32.mrb[0].mxu0
        %v1896 = vpop.f32.mrb[0].mxu0
        %v1897 = vadd.f32 %v1798, %v1896
        %v1898 = vpop.f32.mrb[0].mxu0
        %1899 = vmatprep.mubr.bf16.mxu0 0
        %1900 = vmatmul.mubr.bf16.gmra.mrb[0].mxu0 %v1816
        %v1901 = vpop.f32.mrb[0].mxu0
        %v1902 = vadd.f32 %v1798, %v1901
        %v1903 = vpop.f32.mrb[0].mxu0
        %v1904 = vpop.f32.mrb[0].mxu0
        %v1905 = vadd.f32 %v1798, %v1904
        %v1906 = vpop.f32.mrb[0].mxu0
        %1907 = vmatprep.mubr.bf16.mxu0 0
        %1908 = vmatmul.mubr.bf16.gmra.mrb[0].mxu0 %v1819
        %v1909 = vpop.f32.mrb[0].mxu0
        %v1910 = vadd.f32 %v1798, %v1909
        %v1911 = vpop.f32.mrb[0].mxu0
        %v1912 = vpop.f32.mrb[0].mxu0
        %v1913 = vadd.f32 %v1798, %v1912
        %v1914 = vpop.f32.mrb[0].mxu0
        %1915 = vmatprep.mubr.bf16.mxu0 0
        %1916 = vmatmul.mubr.bf16.gmra.mrb[0].mxu0 %v1822
        %v1917 = vpop.f32.mrb[0].mxu0
        %v1918 = vadd.f32 %v1798, %v1917
        %v1919 = vpop.f32.mrb[0].mxu0
        %v1920 = vpop.f32.mrb[0].mxu0
        %v1921 = vadd.f32 %v1798, %v1920
        %v1922 = vpop.f32.mrb[0].mxu0
        %1923 = vmatprep.mubr.bf16.mxu0 0
        %1924 = vmatmul.mubr.bf16.gmra.mrb[0].mxu0 %v1825
        %v1925 = vpop.f32.mrb[0].mxu0
        %v1926 = vadd.f32 %v1798, %v1925
        %v1927 = vpop.f32.mrb[0].mxu0
        %v1928 = vpop.f32.mrb[0].mxu0
        %v1929 = vadd.f32 %v1798, %v1928
        %v1930 = vpop.f32.mrb[0].mxu0
        %1931 = vmatprep.mubr.bf16.mxu0 0
        %1932 = vmatmul.mubr.bf16.gmra.mrb[0].mxu0 %v1828
        %v1933 = vpop.f32.mrb[0].mxu0
        %v1934 = vadd.f32 %v1798, %v1933
        %v1935 = vpop.f32.mrb[0].mxu0
        %v1936 = vpop.f32.mrb[0].mxu0
        %v1937 = vadd.f32 %v1798, %v1936
        %v1938 = vpop.f32.mrb[0].mxu0
        %1939 = vmatprep.mubr.bf16.mxu0 0
        %1940 = vmatmul.mubr.bf16.gmra.mrb[0].mxu0 %v1831
        %v1941 = vpop.f32.mrb[0].mxu0
        %v1942 = vadd.f32 %v1798, %v1941
        %v1943 = vpop.f32.mrb[0].mxu0
        %v1944 = vpop.f32.mrb[0].mxu0
        %v1945 = vadd.f32 %v1798, %v1944
        %v1946 = vpop.f32.mrb[0].mxu0
        %1947 = vmatprep.mubr.bf16.mxu0 0
        %1948 = vmatmul.mubr.bf16.gmra.mrb[0].mxu0 %v1834
        %v1949 = vpop.f32.mrb[0].mxu0
        %v1950 = vadd.f32 %v1798, %v1949
        %v1951 = vpop.f32.mrb[0].mxu0
        %v1952 = vpop.f32.mrb[0].mxu0
        %v1953 = vadd.f32 %v1798, %v1952
        %v1954 = vpop.f32.mrb[0].mxu0
        %1955 = vmatprep.mubr.bf16.mxu0 0
        %1956 = vmatmul.mubr.bf16.gmra.mrb[0].mxu0 %v1837
        %v1957 = vpop.f32.mrb[0].mxu0
        %v1958 = vadd.f32 %v1798, %v1957
        %v1959 = vpop.f32.mrb[0].mxu0
        %v1960 = vpop.f32.mrb[0].mxu0
        %v1961 = vadd.f32 %v1798, %v1960
        %v1962 = vpop.f32.mrb[0].mxu0
        %1963 = vmatprep.mubr.bf16.mxu0 0
        %1964 = vmatmul.mubr.bf16.gmra.mrb[0].mxu0 %v1840
        %v1965 = vpop.f32.mrb[0].mxu0
        %v1966 = vadd.f32 %v1798, %v1965
        %v1967 = vpop.f32.mrb[0].mxu0
        %v1968 = vpop.f32.mrb[0].mxu0
        %v1969 = vadd.f32 %v1798, %v1968
        %v1970 = vpop.f32.mrb[0].mxu0
        %1971 = vmatprep.mubr.bf16.mxu0 0
        %1972 = vmatmul.mubr.bf16.gmra.mrb[0].mxu0 %v1843
        %v1973 = vpop.f32.mrb[0].mxu0
        %v1974 = vadd.f32 %v1798, %v1973
        %v1975 = vpop.f32.mrb[0].mxu0
        %v1976 = vpop.f32.mrb[0].mxu0
        %v1977 = vadd.f32 %v1798, %v1976
        %v1978 = vpop.f32.mrb[0].mxu0
        %1979 = vmatprep.mubr.bf16.mxu0 0
        %1980 = vmatmul.mubr.bf16.gmra.mrb[0].mxu0 %v1846
        %v1981 = vpop.f32.mrb[0].mxu0
        %v1982 = vadd.f32 %v1798, %v1981
        %v1983 = vpop.f32.mrb[0].mxu0
        %v1984 = vpop.f32.mrb[0].mxu0
        %v1985 = vadd.f32 %v1798, %v1984
        %v1986 = vpop.f32.mrb[0].mxu0
        %1987 = vmatprep.mubr.bf16.mxu0 0
        %1988 = vmatmul.mubr.bf16.gmra.mrb[0].mxu0 %v1849
        %v1989 = vpop.f32.mrb[0].mxu0
        %v1990 = vadd.f32 %v1798, %v1989
        %v1991 = vpop.f32.mrb[0].mxu0
        %v1992 = vpop.f32.mrb[0].mxu0
        %v1993 = vadd.f32 %v1798, %v1992
        %v1994 = vpop.f32.mrb[0].mxu0
        %1995 = vmatprep.mubr.bf16.mxu0 0
        %1996 = vmatmul.mubr.bf16.gmra.mrb[0].mxu0 %v1852
        %v1997 = vpop.f32.mrb[0].mxu0
        %v1998 = vadd.f32 %v1798, %v1997
        %v1999 = vpop.f32.mrb[0].mxu0
        %v2000 = vpop.f32.mrb[0].mxu0
        %v2001 = vadd.f32 %v1798, %v2000
        %v2002 = vpop.f32.mrb[0].mxu0
        %2003 = vdwg.mxu0
        %v2004 = vmax.f32 %v1894, 0.0
        %v2005 = vmax.f32 %v1897, 0.0
        %v2006 = vmax.f32 %v1902, 0.0
        %v2007 = vmax.f32 %v1905, 0.0
        %v2008 = vmax.f32 %v1910, 0.0
        %v2009 = vmax.f32 %v1913, 0.0
        %v2010 = vmax.f32 %v1918, 0.0
        %v2011 = vmax.f32 %v1921, 0.0
        %v2012 = vmax.f32 %v1926, 0.0
        %v2013 = vmax.f32 %v1929, 0.0
        %v2014 = vmax.f32 %v1934, 0.0
        %v2015 = vmax.f32 %v1937, 0.0
        %v2016 = vmax.f32 %v1942, 0.0
        %v2017 = vmax.f32 %v1945, 0.0
        %v2018 = vmax.f32 %v1950, 0.0
        %v2019 = vmax.f32 %v1953, 0.0
        %v2020 = vmax.f32 %v1958, 0.0
        %v2021 = vmax.f32 %v1961, 0.0
        %v2022 = vmax.f32 %v1966, 0.0
        %v2023 = vmax.f32 %v1969, 0.0
        %v2024 = vmax.f32 %v1974, 0.0
        %v2025 = vmax.f32 %v1977, 0.0
        %v2026 = vmax.f32 %v1982, 0.0
        %v2027 = vmax.f32 %v1985, 0.0
        %v2028 = vmax.f32 %v1990, 0.0
        %v2029 = vmax.f32 %v1993, 0.0
        %v2030 = vmax.f32 %v1998, 0.0
        %v2031 = vmax.f32 %v2001, 0.0
        %s2032 = ssub.s32 %s401, 3
        %v2033 = vstv %s2032
        %v2034 = vadd.s32 %v2033, 1
        %v2035 = vadd.s32 %v2033, 2
        %v2036 = vadd.s32 %v2033, 3
        %v2037 = vadd.s32 %v2033, 4
        %v2038 = vadd.s32 %v2033, 5
        %v2039 = vadd.s32 %v2033, 6
        %v2040 = vadd.s32 %v2033, 7
        %v2041 = vadd.s32 %v2033, 8
        %v2042 = vadd.s32 %v2033, 9
        %v2043 = vadd.s32 %v2033, 10
        %v2044 = vadd.s32 %v2033, 11
        %v2045 = vadd.s32 %v2033, 12
        %v2046 = vadd.s32 %v2033, 13
        %vm2047 = vcmp.ge.s32.totalorder %v2033, 0
        %vm2048 = vcmp.ge.s32.totalorder %v2034, 0
        %vm2049 = vcmp.ge.s32.totalorder %v2035, 0
        %vm2050 = vcmp.ge.s32.totalorder %v2036, 0
        %vm2051 = vcmp.ge.s32.totalorder %v2037, 0
        %vm2052 = vcmp.ge.s32.totalorder %v2038, 0
        %vm2053 = vcmp.ge.s32.totalorder %v2039, 0
        %vm2054 = vcmp.ge.s32.totalorder %v2040, 0
        %vm2055 = vcmp.ge.s32.totalorder %v2041, 0
        %vm2056 = vcmp.ge.s32.totalorder %v2042, 0
        %vm2057 = vcmp.ge.s32.totalorder %v2043, 0
        %vm2058 = vcmp.ge.s32.totalorder %v2044, 0
        %vm2059 = vcmp.ge.s32.totalorder %v2045, 0
        %vm2060 = vcmp.ge.s32.totalorder %v2046, 0
        %vm2061 = vcmp.lt.s32.totalorder %v2033, 16
        %vm2062 = vcmp.lt.s32.totalorder %v2034, 16
        %vm2063 = vcmp.lt.s32.totalorder %v2035, 16
        %vm2064 = vcmp.lt.s32.totalorder %v2036, 16
        %vm2065 = vcmp.lt.s32.totalorder %v2037, 16
        %vm2066 = vcmp.lt.s32.totalorder %v2038, 16
        %vm2067 = vcmp.lt.s32.totalorder %v2039, 16
        %vm2068 = vcmp.lt.s32.totalorder %v2040, 16
        %vm2069 = vcmp.lt.s32.totalorder %v2041, 16
        %vm2070 = vcmp.lt.s32.totalorder %v2042, 16
        %vm2071 = vcmp.lt.s32.totalorder %v2043, 16
        %vm2072 = vcmp.lt.s32.totalorder %v2044, 16
        %vm2073 = vcmp.lt.s32.totalorder %v2045, 16
        %vm2074 = vcmp.lt.s32.totalorder %v2046, 16
        %vm2075 = vmand %vm2047, %vm2061
        %vm2076 = vmand %vm2048, %vm2062
        %vm2077 = vmand %vm2049, %vm2063
        %vm2078 = vmand %vm2050, %vm2064
        %vm2079 = vmand %vm2051, %vm2065
        %vm2080 = vmand %vm2052, %vm2066
        %vm2081 = vmand %vm2053, %vm2067
        %vm2082 = vmand %vm2054, %vm2068
        %vm2083 = vmand %vm2055, %vm2069
        %vm2084 = vmand %vm2056, %vm2070
        %vm2085 = vmand %vm2057, %vm2071
        %vm2086 = vmand %vm2058, %vm2072
        %vm2087 = vmand %vm2059, %vm2073
        %vm2088 = vmand %vm2060, %vm2074
        %v2089 = vsel %vm2075, 1, 0
        %v2090 = vsel %vm2076, 1, 0
        %v2091 = vsel %vm2077, 1, 0
        %v2092 = vsel %vm2078, 1, 0
        %v2093 = vsel %vm2079, 1, 0
        %v2094 = vsel %vm2080, 1, 0
        %v2095 = vsel %vm2081, 1, 0
        %v2096 = vsel %vm2082, 1, 0
        %v2097 = vsel %vm2083, 1, 0
        %v2098 = vsel %vm2084, 1, 0
        %v2099 = vsel %vm2085, 1, 0
        %v2100 = vsel %vm2086, 1, 0
        %v2101 = vsel %vm2087, 1, 0
        %v2102 = vsel %vm2088, 1, 0
        %v2103 = vcvt.s32.f32 %v2089
        %v2104 = vcvt.s32.f32 %v2090
        %v2105 = vcvt.s32.f32 %v2091
        %v2106 = vcvt.s32.f32 %v2092
        %v2107 = vcvt.s32.f32 %v2093
        %v2108 = vcvt.s32.f32 %v2094
        %v2109 = vcvt.s32.f32 %v2095
        %v2110 = vcvt.s32.f32 %v2096
        %v2111 = vcvt.s32.f32 %v2097
        %v2112 = vcvt.s32.f32 %v2098
        %v2113 = vcvt.s32.f32 %v2099
        %v2114 = vcvt.s32.f32 %v2100
        %v2115 = vcvt.s32.f32 %v2101
        %v2116 = vcvt.s32.f32 %v2102
        %v2117 = vmul.f32 %v2004, %v2103
        %v2118 = vmul.f32 %v2005, %v2103
        %v2119 = vmul.f32 %v2006, %v2104
        %v2120 = vmul.f32 %v2007, %v2104
        %v2121 = vmul.f32 %v2008, %v2105
        %v2122 = vmul.f32 %v2009, %v2105
        %v2123 = vmul.f32 %v2010, %v2106
        %v2124 = vmul.f32 %v2011, %v2106
        %v2125 = vmul.f32 %v2012, %v2107
        %v2126 = vmul.f32 %v2013, %v2107
        %v2127 = vmul.f32 %v2014, %v2108
        %v2128 = vmul.f32 %v2015, %v2108
        %v2129 = vmul.f32 %v2016, %v2109
        %v2130 = vmul.f32 %v2017, %v2109
        %v2131 = vmul.f32 %v2018, %v2110
        %v2132 = vmul.f32 %v2019, %v2110
        %v2133 = vmul.f32 %v2020, %v2111
        %v2134 = vmul.f32 %v2021, %v2111
        %v2135 = vmul.f32 %v2022, %v2112
        %v2136 = vmul.f32 %v2023, %v2112
        %v2137 = vmul.f32 %v2024, %v2113
        %v2138 = vmul.f32 %v2025, %v2113
        %v2139 = vmul.f32 %v2026, %v2114
        %v2140 = vmul.f32 %v2027, %v2114
        %v2141 = vmul.f32 %v2028, %v2115
        %v2142 = vmul.f32 %v2029, %v2115
        %v2143 = vmul.f32 %v2030, %v2116
        %v2144 = vmul.f32 %v2031, %v2116
        %v2145 = vpack.c.bf16 %v2118, %v2117
        %v2146 = vpack.c.bf16 %v2120, %v2119
        %v2147 = vpack.c.bf16 %v2122, %v2121
        %v2148 = vpack.c.bf16 %v2124, %v2123
        %v2149 = vpack.c.bf16 %v2126, %v2125
        %v2150 = vpack.c.bf16 %v2128, %v2127
        %v2151 = vpack.c.bf16 %v2130, %v2129
        %v2152 = vpack.c.bf16 %v2132, %v2131
        %v2153 = vpack.c.bf16 %v2134, %v2133
        %v2154 = vpack.c.bf16 %v2136, %v2135
        %v2155 = vpack.c.bf16 %v2138, %v2137
        %v2156 = vpack.c.bf16 %v2140, %v2139
        %v2157 = vpack.c.bf16 %v2142, %v2141
        %v2158 = vpack.c.bf16 %v2144, %v2143
        %v2160 = vshrl.u32 %v2145, 16
        %v2162 = vrot.slane %v2160, 7
        %v2163 = vshll.u32 %v2145, 16
        %v2165 = vor.u32 %v2162, %v2163
        %v2167 = vshrl.u32 %v2146, 16
        %v2169 = vrot.slane %v2167, 7
        %v2170 = vshll.u32 %v2146, 16
        %v2172 = vor.u32 %v2169, %v2170
        %v2174 = vshrl.u32 %v2147, 16
        %v2176 = vrot.slane %v2174, 7
        %v2177 = vshll.u32 %v2147, 16
        %v2179 = vor.u32 %v2176, %v2177
        %v2181 = vshrl.u32 %v2148, 16
        %v2183 = vrot.slane %v2181, 7
        %v2184 = vshll.u32 %v2148, 16
        %v2186 = vor.u32 %v2183, %v2184
        %v2188 = vshrl.u32 %v2149, 16
        %v2190 = vrot.slane %v2188, 7
        %v2191 = vshll.u32 %v2149, 16
        %v2193 = vor.u32 %v2190, %v2191
        %v2195 = vshrl.u32 %v2150, 16
        %v2197 = vrot.slane %v2195, 7
        %v2198 = vshll.u32 %v2150, 16
        %v2200 = vor.u32 %v2197, %v2198
        %v2202 = vshrl.u32 %v2151, 16
        %v2204 = vrot.slane %v2202, 7
        %v2205 = vshll.u32 %v2151, 16
        %v2207 = vor.u32 %v2204, %v2205
        %v2209 = vshrl.u32 %v2152, 16
        %v2211 = vrot.slane %v2209, 7
        %v2212 = vshll.u32 %v2152, 16
        %v2214 = vor.u32 %v2211, %v2212
        %v2216 = vshrl.u32 %v2153, 16
        %v2218 = vrot.slane %v2216, 7
        %v2219 = vshll.u32 %v2153, 16
        %v2221 = vor.u32 %v2218, %v2219
        %v2223 = vshrl.u32 %v2154, 16
        %v2225 = vrot.slane %v2223, 7
        %v2226 = vshll.u32 %v2154, 16
        %v2228 = vor.u32 %v2225, %v2226
        %v2230 = vshrl.u32 %v2155, 16
        %v2232 = vrot.slane %v2230, 7
        %v2233 = vshll.u32 %v2155, 16
        %v2235 = vor.u32 %v2232, %v2233
        %v2237 = vshrl.u32 %v2156, 16
        %v2239 = vrot.slane %v2237, 7
        %v2240 = vshll.u32 %v2156, 16
        %v2242 = vor.u32 %v2239, %v2240
        %v2244 = vshrl.u32 %v2157, 16
        %v2246 = vrot.slane %v2244, 7
        %v2247 = vshll.u32 %v2157, 16
        %v2249 = vor.u32 %v2246, %v2247
        %v2251 = vshrl.u32 %v2158, 16
        %v2253 = vrot.slane %v2251, 7
        %v2254 = vshll.u32 %v2158, 16
        %v2256 = vor.u32 %v2253, %v2254
        %v2285 = vsel %vm784, 0, %v2165
        %v2286 = vsel %vm784, 0, %v2172
        %v2287 = vsel %vm784, 0, %v2179
        %v2288 = vsel %vm784, 0, %v2186
        %v2289 = vsel %vm784, 0, %v2193
        %v2290 = vsel %vm784, 0, %v2200
        %v2291 = vsel %vm784, 0, %v2207
        %v2292 = vsel %vm784, 0, %v2214
        %v2293 = vsel %vm784, 0, %v2221
        %v2294 = vsel %vm784, 0, %v2228
        %v2295 = vsel %vm784, 0, %v2235
        %v2296 = vsel %vm784, 0, %v2242
        %v2297 = vsel %vm784, 0, %v2249
        %v2298 = vsel %vm784, 0, %v2256
        %v2299 = vsel %vm784, %v2162, 0
        %v2300 = vsel %vm784, %v2169, 0
        %v2301 = vsel %vm784, %v2176, 0
        %v2302 = vsel %vm784, %v2183, 0
        %v2303 = vsel %vm784, %v2190, 0
        %v2304 = vsel %vm784, %v2197, 0
        %v2305 = vsel %vm784, %v2204, 0
        %v2306 = vsel %vm784, %v2211, 0
        %v2307 = vsel %vm784, %v2218, 0
        %v2308 = vsel %vm784, %v2225, 0
        %v2309 = vsel %vm784, %v2232, 0
        %v2310 = vsel %vm784, %v2239, 0
        %v2311 = vsel %vm784, %v2246, 0
        %v2312 = vsel %vm784, %v2253, 0
        %v2313 = vld [vmem:[%s3] sm:$0xf]
        %v2314 = vld [vmem:[%s3 + $0x4] sm:$0xf]
        %v2315 = vld [vmem:[%s3 + $0x8] sm:$0xf]
        %v2316 = vld [vmem:[%s3 + $0xc] sm:$0xf]
        %v2317 = vld [vmem:[%s3 + $0x10] sm:$0xf]
        %v2318 = vld [vmem:[%s3 + $0x14] sm:$0xf]
        %v2319 = vld [vmem:[%s3 + $0x18] sm:$0xf]
        %v2320 = vld [vmem:[%s3 + $0x1c] sm:$0xf]
        %v2322 = vshrl.u32 %v2285, 16
        %v2324 = vshll.u32 %v2285, 16
        %v2326 = vrot.slane %v2324, 1
        %v2327 = vor.u32 %v2322, %v2326
        %v2329 = vshll.u32 %v2299, 16
        %v2331 = vrot.slane %v2329, 1
        %v2332 = vsel %vm1277, %v2327, %v2331
        %v2334 = vshrl.u32 %v2286, 16
        %v2336 = vshll.u32 %v2286, 16
        %v2338 = vrot.slane %v2336, 1
        %v2339 = vor.u32 %v2334, %v2338
        %v2341 = vshll.u32 %v2300, 16
        %v2343 = vrot.slane %v2341, 1
        %v2344 = vsel %vm1277, %v2339, %v2343
        %v2346 = vshrl.u32 %v2287, 16
        %v2348 = vshll.u32 %v2287, 16
        %v2350 = vrot.slane %v2348, 1
        %v2351 = vor.u32 %v2346, %v2350
        %v2353 = vshll.u32 %v2301, 16
        %v2355 = vrot.slane %v2353, 1
        %v2356 = vsel %vm1277, %v2351, %v2355
        %v2358 = vshrl.u32 %v2288, 16
        %v2360 = vshll.u32 %v2288, 16
        %v2362 = vrot.slane %v2360, 1
        %v2363 = vor.u32 %v2358, %v2362
        %v2365 = vshll.u32 %v2302, 16
        %v2367 = vrot.slane %v2365, 1
        %v2368 = vsel %vm1277, %v2363, %v2367
        %v2370 = vshrl.u32 %v2289, 16
        %v2372 = vshll.u32 %v2289, 16
        %v2374 = vrot.slane %v2372, 1
        %v2375 = vor.u32 %v2370, %v2374
        %v2377 = vshll.u32 %v2303, 16
        %v2379 = vrot.slane %v2377, 1
        %v2380 = vsel %vm1277, %v2375, %v2379
        %v2382 = vshrl.u32 %v2290, 16
        %v2384 = vshll.u32 %v2290, 16
        %v2386 = vrot.slane %v2384, 1
        %v2387 = vor.u32 %v2382, %v2386
        %v2389 = vshll.u32 %v2304, 16
        %v2391 = vrot.slane %v2389, 1
        %v2392 = vsel %vm1277, %v2387, %v2391
        %v2394 = vshrl.u32 %v2291, 16
        %v2396 = vshll.u32 %v2291, 16
        %v2398 = vrot.slane %v2396, 1
        %v2399 = vor.u32 %v2394, %v2398
        %v2401 = vshll.u32 %v2305, 16
        %v2403 = vrot.slane %v2401, 1
        %v2404 = vsel %vm1277, %v2399, %v2403
        %v2406 = vshrl.u32 %v2292, 16
        %v2408 = vshll.u32 %v2292, 16
        %v2410 = vrot.slane %v2408, 1
        %v2411 = vor.u32 %v2406, %v2410
        %v2413 = vshll.u32 %v2306, 16
        %v2415 = vrot.slane %v2413, 1
        %v2416 = vsel %vm1277, %v2411, %v2415
        %v2418 = vshrl.u32 %v2293, 16
        %v2420 = vshll.u32 %v2293, 16
        %v2422 = vrot.slane %v2420, 1
        %v2423 = vor.u32 %v2418, %v2422
        %v2425 = vshll.u32 %v2307, 16
        %v2427 = vrot.slane %v2425, 1
        %v2428 = vsel %vm1277, %v2423, %v2427
        %v2430 = vshrl.u32 %v2294, 16
        %v2432 = vshll.u32 %v2294, 16
        %v2434 = vrot.slane %v2432, 1
        %v2435 = vor.u32 %v2430, %v2434
        %v2437 = vshll.u32 %v2308, 16
        %v2439 = vrot.slane %v2437, 1
        %v2440 = vsel %vm1277, %v2435, %v2439
        %v2442 = vshrl.u32 %v2295, 16
        %v2444 = vshll.u32 %v2295, 16
        %v2446 = vrot.slane %v2444, 1
        %v2447 = vor.u32 %v2442, %v2446
        %v2449 = vshll.u32 %v2309, 16
        %v2451 = vrot.slane %v2449, 1
        %v2452 = vsel %vm1277, %v2447, %v2451
        %v2454 = vshrl.u32 %v2296, 16
        %v2456 = vshll.u32 %v2296, 16
        %v2458 = vrot.slane %v2456, 1
        %v2459 = vor.u32 %v2454, %v2458
        %v2461 = vshll.u32 %v2310, 16
        %v2463 = vrot.slane %v2461, 1
        %v2464 = vsel %vm1277, %v2459, %v2463
        %v2465 = vld [vmem:[%s3 + $0x20] sm:$0xf]
        %v2466 = vld [vmem:[%s3 + $0x24] sm:$0xf]
        %v2467 = vld [vmem:[%s3 + $0x28] sm:$0xf]
        %v2468 = vld [vmem:[%s3 + $0x2c] sm:$0xf]
        %v2469 = vld [vmem:[%s3 + $0x30] sm:$0xf]
        %v2470 = vld [vmem:[%s3 + $0x34] sm:$0xf]
        %v2471 = vld [vmem:[%s3 + $0x38] sm:$0xf]
        %v2472 = vld [vmem:[%s3 + $0x3c] sm:$0xf]
        %v2481 = vunpack.c.l.b16 %v2465
        %v2482 = vunpack.c.l.b16 %v2466
        %v2483 = vunpack.c.l.b16 %v2467
        %v2484 = vunpack.c.l.b16 %v2468
        %v2485 = vunpack.c.l.b16 %v2469
        %v2486 = vunpack.c.l.b16 %v2470
        %v2487 = vunpack.c.l.b16 %v2471
        %v2488 = vunpack.c.l.b16 %v2472
        %v2489 = vpack.c.b16 %v2482, %v2481
        %v2490 = vpack.c.b16 %v2484, %v2483
        %v2491 = vpack.c.b16 %v2486, %v2485
        %v2492 = vpack.c.b16 %v2488, %v2487
        %vm2497 = vcmask 523264
        %v2499 = vsel %vm2497, %v2332, 0
        %v2502 = vsel %vm2497, %v2344, 0
        %v2505 = vsel %vm2497, %v2356, 0
        %v2508 = vsel %vm2497, %v2368, 0
        %v2511 = vsel %vm2497, %v2380, 0
        %v2514 = vsel %vm2497, %v2392, 0
        %v2517 = vsel %vm2497, %v2404, 0
        %v2520 = vsel %vm2497, %v2416, 0
        %v2523 = vsel %vm2497, %v2428, 0
        %v2526 = vsel %vm2497, %v2440, 0
        %v2529 = vsel %vm2497, %v2452, 0
        %v2532 = vsel %vm2497, %v2464, 0
        %2534 = vmatprep.subr.bf16.mxu0 0
        %2535 = vmatpush1.bf16.msra.mxu0 %v2489
        %2536 = vmatprep.subr.bf16.mxu0 0
        %2537 = vmatpush1.bf16.msra.mxu0 %v2490
        %2538 = vmatprep.subr.bf16.mxu0 0
        %2539 = vmatpush1.bf16.msra.mxu0 %v2491
        %2540 = vmatprep.subr.bf16.mxu0 0
        %2541 = vmatpush1.bf16.msra.mxu0 %v2492
        %2542 = vmatprep.subr.bf16.mxu0 0
        %2543 = vmatpush1.bf16.msra.mxu0 0
        %2544 = vmatprep.subr.bf16.mxu0 0
        %2545 = vmatpush1.bf16.msra.mxu0 0
        %2546 = vmatprep.subr.bf16.mxu0 0
        %2547 = vmatpush1.bf16.msra.mxu0 0
        %2548 = vmatprep.subr.bf16.mxu0 0
        %2549 = vmatpush1.bf16.msra.mxu0 0
        %2550 = vmatprep.subr.bf16.mxu0 0
        %2551 = vmatpush1.bf16.msra.mxu0 0
        %2552 = vmatprep.subr.bf16.mxu0 0
        %2553 = vmatpush1.bf16.msra.mxu0 0
        %2554 = vmatprep.subr.bf16.mxu0 0
        %2555 = vmatpush1.bf16.msra.mxu0 0
        %2556 = vmatprep.subr.bf16.mxu0 0
        %2557 = vmatpush1.bf16.msra.mxu0 0
        %2558 = vmatprep.subr.bf16.mxu0 0
        %2559 = vmatpush1.bf16.msra.mxu0 0
        %2560 = vmatprep.subr.bf16.mxu0 0
        %2561 = vmatpush1.bf16.msra.mxu0 0
        %2562 = vmatprep.subr.bf16.mxu0 0
        %2563 = vmatpush1.bf16.msra.mxu0 0
        %2564 = vmatprep.subr.bf16.mxu0 0
        %2565 = vmatpush1.bf16.msra.mxu0 0
        %2566 = vmatprep.mubr.bf16.mxu0 0
        %2567 = vmatmul.mubr.bf16.gmra.mrb[0].mxu0 %v2499
        %v2568 = vpop.f32.mrb[0].mxu0
        %v2569 = vadd.f32 0.0, %v2568
        %v2570 = vpop.f32.mrb[0].mxu0
        %v2571 = vpop.f32.mrb[0].mxu0
        %v2572 = vadd.f32 0.0, %v2571
        %v2573 = vpop.f32.mrb[0].mxu0
        %2574 = vmatprep.mubr.bf16.mxu0 0
        %2575 = vmatmul.mubr.bf16.gmra.mrb[0].mxu0 %v2502
        %v2576 = vpop.f32.mrb[0].mxu0
        %v2577 = vadd.f32 0.0, %v2576
        %v2578 = vpop.f32.mrb[0].mxu0
        %v2579 = vpop.f32.mrb[0].mxu0
        %v2580 = vadd.f32 0.0, %v2579
        %v2581 = vpop.f32.mrb[0].mxu0
        %2582 = vmatprep.mubr.bf16.mxu0 0
        %2583 = vmatmul.mubr.bf16.gmra.mrb[0].mxu0 %v2505
        %v2584 = vpop.f32.mrb[0].mxu0
        %v2585 = vadd.f32 0.0, %v2584
        %v2586 = vpop.f32.mrb[0].mxu0
        %v2587 = vpop.f32.mrb[0].mxu0
        %v2588 = vadd.f32 0.0, %v2587
        %v2589 = vpop.f32.mrb[0].mxu0
        %2590 = vmatprep.mubr.bf16.mxu0 0
        %2591 = vmatmul.mubr.bf16.gmra.mrb[0].mxu0 %v2508
        %v2592 = vpop.f32.mrb[0].mxu0
        %v2593 = vadd.f32 0.0, %v2592
        %v2594 = vpop.f32.mrb[0].mxu0
        %v2595 = vpop.f32.mrb[0].mxu0
        %v2596 = vadd.f32 0.0, %v2595
        %v2597 = vpop.f32.mrb[0].mxu0
        %2598 = vmatprep.mubr.bf16.mxu0 0
        %2599 = vmatmul.mubr.bf16.gmra.mrb[0].mxu0 %v2511
        %v2600 = vpop.f32.mrb[0].mxu0
        %v2601 = vadd.f32 0.0, %v2600
        %v2602 = vpop.f32.mrb[0].mxu0
        %v2603 = vpop.f32.mrb[0].mxu0
        %v2604 = vadd.f32 0.0, %v2603
        %v2605 = vpop.f32.mrb[0].mxu0
        %2606 = vmatprep.mubr.bf16.mxu0 0
        %2607 = vmatmul.mubr.bf16.gmra.mrb[0].mxu0 %v2514
        %v2608 = vpop.f32.mrb[0].mxu0
        %v2609 = vadd.f32 0.0, %v2608
        %v2610 = vpop.f32.mrb[0].mxu0
        %v2611 = vpop.f32.mrb[0].mxu0
        %v2612 = vadd.f32 0.0, %v2611
        %v2613 = vpop.f32.mrb[0].mxu0
        %2614 = vmatprep.mubr.bf16.mxu0 0
        %2615 = vmatmul.mubr.bf16.gmra.mrb[0].mxu0 %v2517
        %v2616 = vpop.f32.mrb[0].mxu0
        %v2617 = vadd.f32 0.0, %v2616
        %v2618 = vpop.f32.mrb[0].mxu0
        %v2619 = vpop.f32.mrb[0].mxu0
        %v2620 = vadd.f32 0.0, %v2619
        %v2621 = vpop.f32.mrb[0].mxu0
        %2622 = vmatprep.mubr.bf16.mxu0 0
        %2623 = vmatmul.mubr.bf16.gmra.mrb[0].mxu0 %v2520
        %v2624 = vpop.f32.mrb[0].mxu0
        %v2625 = vadd.f32 0.0, %v2624
        %v2626 = vpop.f32.mrb[0].mxu0
        %v2627 = vpop.f32.mrb[0].mxu0
        %v2628 = vadd.f32 0.0, %v2627
        %v2629 = vpop.f32.mrb[0].mxu0
        %2630 = vmatprep.mubr.bf16.mxu0 0
        %2631 = vmatmul.mubr.bf16.gmra.mrb[0].mxu0 %v2523
        %v2632 = vpop.f32.mrb[0].mxu0
        %v2633 = vadd.f32 0.0, %v2632
        %v2634 = vpop.f32.mrb[0].mxu0
        %v2635 = vpop.f32.mrb[0].mxu0
        %v2636 = vadd.f32 0.0, %v2635
        %v2637 = vpop.f32.mrb[0].mxu0
        %2638 = vmatprep.mubr.bf16.mxu0 0
        %2639 = vmatmul.mubr.bf16.gmra.mrb[0].mxu0 %v2526
        %v2640 = vpop.f32.mrb[0].mxu0
        %v2641 = vadd.f32 0.0, %v2640
        %v2642 = vpop.f32.mrb[0].mxu0
        %v2643 = vpop.f32.mrb[0].mxu0
        %v2644 = vadd.f32 0.0, %v2643
        %v2645 = vpop.f32.mrb[0].mxu0
        %2646 = vmatprep.mubr.bf16.mxu0 0
        %2647 = vmatmul.mubr.bf16.gmra.mrb[0].mxu0 %v2529
        %v2648 = vpop.f32.mrb[0].mxu0
        %v2649 = vadd.f32 0.0, %v2648
        %v2650 = vpop.f32.mrb[0].mxu0
        %v2651 = vpop.f32.mrb[0].mxu0
        %v2652 = vadd.f32 0.0, %v2651
        %v2653 = vpop.f32.mrb[0].mxu0
        %2654 = vmatprep.mubr.bf16.mxu0 0
        %2655 = vmatmul.mubr.bf16.gmra.mrb[0].mxu0 %v2532
        %v2656 = vpop.f32.mrb[0].mxu0
        %v2657 = vadd.f32 0.0, %v2656
        %v2658 = vpop.f32.mrb[0].mxu0
        %v2659 = vpop.f32.mrb[0].mxu0
        %v2660 = vadd.f32 0.0, %v2659
        %v2661 = vpop.f32.mrb[0].mxu0
        %2662 = vdwg.mxu0
        %v2671 = vunpack.c.l.b16 %v2313
        %v2672 = vunpack.c.l.b16 %v2314
        %v2673 = vunpack.c.l.b16 %v2315
        %v2674 = vunpack.c.l.b16 %v2316
        %v2675 = vunpack.c.l.b16 %v2317
        %v2676 = vunpack.c.l.b16 %v2318
        %v2677 = vunpack.c.l.b16 %v2319
        %v2678 = vunpack.c.l.b16 %v2320
        %v2679 = vpack.c.b16 %v2672, %v2671
        %v2680 = vpack.c.b16 %v2674, %v2673
        %v2681 = vpack.c.b16 %v2676, %v2675
        %v2682 = vpack.c.b16 %v2678, %v2677
        %v2687 = vsel %vm2497, %v2285, 0
        %v2689 = vsel %vm2497, %v2286, 0
        %v2691 = vsel %vm2497, %v2287, 0
        %v2693 = vsel %vm2497, %v2288, 0
        %v2695 = vsel %vm2497, %v2289, 0
        %v2697 = vsel %vm2497, %v2290, 0
        %v2699 = vsel %vm2497, %v2291, 0
        %v2701 = vsel %vm2497, %v2292, 0
        %v2703 = vsel %vm2497, %v2293, 0
        %v2705 = vsel %vm2497, %v2294, 0
        %v2707 = vsel %vm2497, %v2295, 0
        %v2709 = vsel %vm2497, %v2296, 0
        %2711 = vmatprep.subr.bf16.mxu0 0
        %2712 = vmatpush1.bf16.msra.mxu0 %v2679
        %2713 = vmatprep.subr.bf16.mxu0 0
        %2714 = vmatpush1.bf16.msra.mxu0 %v2680
        %2715 = vmatprep.subr.bf16.mxu0 0
        %2716 = vmatpush1.bf16.msra.mxu0 %v2681
        %2717 = vmatprep.subr.bf16.mxu0 0
        %2718 = vmatpush1.bf16.msra.mxu0 %v2682
        %2719 = vmatprep.subr.bf16.mxu0 0
        %2720 = vmatpush1.bf16.msra.mxu0 0
        %2721 = vmatprep.subr.bf16.mxu0 0
        %2722 = vmatpush1.bf16.msra.mxu0 0
        %2723 = vmatprep.subr.bf16.mxu0 0
        %2724 = vmatpush1.bf16.msra.mxu0 0
        %2725 = vmatprep.subr.bf16.mxu0 0
        %2726 = vmatpush1.bf16.msra.mxu0 0
        %2727 = vmatprep.subr.bf16.mxu0 0
        %2728 = vmatpush1.bf16.msra.mxu0 0
        %2729 = vmatprep.subr.bf16.mxu0 0
        %2730 = vmatpush1.bf16.msra.mxu0 0
        %2731 = vmatprep.subr.bf16.mxu0 0
        %2732 = vmatpush1.bf16.msra.mxu0 0
        %2733 = vmatprep.subr.bf16.mxu0 0
        %2734 = vmatpush1.bf16.msra.mxu0 0
        %2735 = vmatprep.subr.bf16.mxu0 0
        %2736 = vmatpush1.bf16.msra.mxu0 0
        %2737 = vmatprep.subr.bf16.mxu0 0
        %2738 = vmatpush1.bf16.msra.mxu0 0
        %2739 = vmatprep.subr.bf16.mxu0 0
        %2740 = vmatpush1.bf16.msra.mxu0 0
        %2741 = vmatprep.subr.bf16.mxu0 0
        %2742 = vmatpush1.bf16.msra.mxu0 0
        %2743 = vmatprep.mubr.bf16.mxu0 0
        %2744 = vmatmul.mubr.bf16.gmra.mrb[0].mxu0 %v2687
        %v2745 = vpop.f32.mrb[0].mxu0
        %v2746 = vadd.f32 %v2569, %v2745
        %v2747 = vpop.f32.mrb[0].mxu0
        %v2748 = vpop.f32.mrb[0].mxu0
        %v2749 = vadd.f32 %v2572, %v2748
        %v2750 = vpop.f32.mrb[0].mxu0
        %2751 = vmatprep.mubr.bf16.mxu0 0
        %2752 = vmatmul.mubr.bf16.gmra.mrb[0].mxu0 %v2689
        %v2753 = vpop.f32.mrb[0].mxu0
        %v2754 = vadd.f32 %v2577, %v2753
        %v2755 = vpop.f32.mrb[0].mxu0
        %v2756 = vpop.f32.mrb[0].mxu0
        %v2757 = vadd.f32 %v2580, %v2756
        %v2758 = vpop.f32.mrb[0].mxu0
        %2759 = vmatprep.mubr.bf16.mxu0 0
        %2760 = vmatmul.mubr.bf16.gmra.mrb[0].mxu0 %v2691
        %v2761 = vpop.f32.mrb[0].mxu0
        %v2762 = vadd.f32 %v2585, %v2761
        %v2763 = vpop.f32.mrb[0].mxu0
        %v2764 = vpop.f32.mrb[0].mxu0
        %v2765 = vadd.f32 %v2588, %v2764
        %v2766 = vpop.f32.mrb[0].mxu0
        %2767 = vmatprep.mubr.bf16.mxu0 0
        %2768 = vmatmul.mubr.bf16.gmra.mrb[0].mxu0 %v2693
        %v2769 = vpop.f32.mrb[0].mxu0
        %v2770 = vadd.f32 %v2593, %v2769
        %v2771 = vpop.f32.mrb[0].mxu0
        %v2772 = vpop.f32.mrb[0].mxu0
        %v2773 = vadd.f32 %v2596, %v2772
        %v2774 = vpop.f32.mrb[0].mxu0
        %2775 = vmatprep.mubr.bf16.mxu0 0
        %2776 = vmatmul.mubr.bf16.gmra.mrb[0].mxu0 %v2695
        %v2777 = vpop.f32.mrb[0].mxu0
        %v2778 = vadd.f32 %v2601, %v2777
        %v2779 = vpop.f32.mrb[0].mxu0
        %v2780 = vpop.f32.mrb[0].mxu0
        %v2781 = vadd.f32 %v2604, %v2780
        %v2782 = vpop.f32.mrb[0].mxu0
        %2783 = vmatprep.mubr.bf16.mxu0 0
        %2784 = vmatmul.mubr.bf16.gmra.mrb[0].mxu0 %v2697
        %v2785 = vpop.f32.mrb[0].mxu0
        %v2786 = vadd.f32 %v2609, %v2785
        %v2787 = vpop.f32.mrb[0].mxu0
        %v2788 = vpop.f32.mrb[0].mxu0
        %v2789 = vadd.f32 %v2612, %v2788
        %v2790 = vpop.f32.mrb[0].mxu0
        %2791 = vmatprep.mubr.bf16.mxu0 0
        %2792 = vmatmul.mubr.bf16.gmra.mrb[0].mxu0 %v2699
        %v2793 = vpop.f32.mrb[0].mxu0
        %v2794 = vadd.f32 %v2617, %v2793
        %v2795 = vpop.f32.mrb[0].mxu0
        %v2796 = vpop.f32.mrb[0].mxu0
        %v2797 = vadd.f32 %v2620, %v2796
        %v2798 = vpop.f32.mrb[0].mxu0
        %2799 = vmatprep.mubr.bf16.mxu0 0
        %2800 = vmatmul.mubr.bf16.gmra.mrb[0].mxu0 %v2701
        %v2801 = vpop.f32.mrb[0].mxu0
        %v2802 = vadd.f32 %v2625, %v2801
        %v2803 = vpop.f32.mrb[0].mxu0
        %v2804 = vpop.f32.mrb[0].mxu0
        %v2805 = vadd.f32 %v2628, %v2804
        %v2806 = vpop.f32.mrb[0].mxu0
        %2807 = vmatprep.mubr.bf16.mxu0 0
        %2808 = vmatmul.mubr.bf16.gmra.mrb[0].mxu0 %v2703
        %v2809 = vpop.f32.mrb[0].mxu0
        %v2810 = vadd.f32 %v2633, %v2809
        %v2811 = vpop.f32.mrb[0].mxu0
        %v2812 = vpop.f32.mrb[0].mxu0
        %v2813 = vadd.f32 %v2636, %v2812
        %v2814 = vpop.f32.mrb[0].mxu0
        %2815 = vmatprep.mubr.bf16.mxu0 0
        %2816 = vmatmul.mubr.bf16.gmra.mrb[0].mxu0 %v2705
        %v2817 = vpop.f32.mrb[0].mxu0
        %v2818 = vadd.f32 %v2641, %v2817
        %v2819 = vpop.f32.mrb[0].mxu0
        %v2820 = vpop.f32.mrb[0].mxu0
        %v2821 = vadd.f32 %v2644, %v2820
        %v2822 = vpop.f32.mrb[0].mxu0
        %2823 = vmatprep.mubr.bf16.mxu0 0
        %2824 = vmatmul.mubr.bf16.gmra.mrb[0].mxu0 %v2707
        %v2825 = vpop.f32.mrb[0].mxu0
        %v2826 = vadd.f32 %v2649, %v2825
        %v2827 = vpop.f32.mrb[0].mxu0
        %v2828 = vpop.f32.mrb[0].mxu0
        %v2829 = vadd.f32 %v2652, %v2828
        %v2830 = vpop.f32.mrb[0].mxu0
        %2831 = vmatprep.mubr.bf16.mxu0 0
        %2832 = vmatmul.mubr.bf16.gmra.mrb[0].mxu0 %v2709
        %v2833 = vpop.f32.mrb[0].mxu0
        %v2834 = vadd.f32 %v2657, %v2833
        %v2835 = vpop.f32.mrb[0].mxu0
        %v2836 = vpop.f32.mrb[0].mxu0
        %v2837 = vadd.f32 %v2660, %v2836
        %v2838 = vpop.f32.mrb[0].mxu0
        %2839 = vdwg.mxu0
        %v2864 = vrot.slane %v2285, 1
        %v2865 = vrot.slane %v2299, 1
        %v2866 = vsel %vm1214, %v2864, %v2865
        %v2867 = vrot.slane %v2286, 1
        %v2868 = vrot.slane %v2300, 1
        %v2869 = vsel %vm1214, %v2867, %v2868
        %v2870 = vrot.slane %v2287, 1
        %v2871 = vrot.slane %v2301, 1
        %v2872 = vsel %vm1214, %v2870, %v2871
        %v2873 = vrot.slane %v2288, 1
        %v2874 = vrot.slane %v2302, 1
        %v2875 = vsel %vm1214, %v2873, %v2874
        %v2876 = vrot.slane %v2289, 1
        %v2877 = vrot.slane %v2303, 1
        %v2878 = vsel %vm1214, %v2876, %v2877
        %v2879 = vrot.slane %v2290, 1
        %v2880 = vrot.slane %v2304, 1
        %v2881 = vsel %vm1214, %v2879, %v2880
        %v2882 = vrot.slane %v2291, 1
        %v2883 = vrot.slane %v2305, 1
        %v2884 = vsel %vm1214, %v2882, %v2883
        %v2885 = vrot.slane %v2292, 1
        %v2886 = vrot.slane %v2306, 1
        %v2887 = vsel %vm1214, %v2885, %v2886
        %v2888 = vrot.slane %v2293, 1
        %v2889 = vrot.slane %v2307, 1
        %v2890 = vsel %vm1214, %v2888, %v2889
        %v2891 = vrot.slane %v2294, 1
        %v2892 = vrot.slane %v2308, 1
        %v2893 = vsel %vm1214, %v2891, %v2892
        %v2894 = vrot.slane %v2295, 1
        %v2895 = vrot.slane %v2309, 1
        %v2896 = vsel %vm1214, %v2894, %v2895
        %v2897 = vrot.slane %v2296, 1
        %v2898 = vrot.slane %v2310, 1
        %v2899 = vsel %vm1214, %v2897, %v2898
        %v2900 = vld [vmem:[%s3 + $0x40] sm:$0xf]
        %v2901 = vld [vmem:[%s3 + $0x44] sm:$0xf]
        %v2902 = vld [vmem:[%s3 + $0x48] sm:$0xf]
        %v2903 = vld [vmem:[%s3 + $0x4c] sm:$0xf]
        %v2904 = vld [vmem:[%s3 + $0x50] sm:$0xf]
        %v2905 = vld [vmem:[%s3 + $0x54] sm:$0xf]
        %v2906 = vld [vmem:[%s3 + $0x58] sm:$0xf]
        %v2907 = vld [vmem:[%s3 + $0x5c] sm:$0xf]
        %v2916 = vunpack.c.l.b16 %v2900
        %v2917 = vunpack.c.l.b16 %v2901
        %v2918 = vunpack.c.l.b16 %v2902
        %v2919 = vunpack.c.l.b16 %v2903
        %v2920 = vunpack.c.l.b16 %v2904
        %v2921 = vunpack.c.l.b16 %v2905
        %v2922 = vunpack.c.l.b16 %v2906
        %v2923 = vunpack.c.l.b16 %v2907
        %v2924 = vpack.c.b16 %v2917, %v2916
        %v2925 = vpack.c.b16 %v2919, %v2918
        %v2926 = vpack.c.b16 %v2921, %v2920
        %v2927 = vpack.c.b16 %v2923, %v2922
        %v2933 = vsel %vm2497, %v2866, 0
        %v2936 = vsel %vm2497, %v2869, 0
        %v2939 = vsel %vm2497, %v2872, 0
        %v2942 = vsel %vm2497, %v2875, 0
        %v2945 = vsel %vm2497, %v2878, 0
        %v2948 = vsel %vm2497, %v2881, 0
        %v2951 = vsel %vm2497, %v2884, 0
        %v2954 = vsel %vm2497, %v2887, 0
        %v2957 = vsel %vm2497, %v2890, 0
        %v2960 = vsel %vm2497, %v2893, 0
        %v2963 = vsel %vm2497, %v2896, 0
        %v2966 = vsel %vm2497, %v2899, 0
        %2968 = vmatprep.subr.bf16.mxu0 0
        %2969 = vmatpush1.bf16.msra.mxu0 %v2924
        %2970 = vmatprep.subr.bf16.mxu0 0
        %2971 = vmatpush1.bf16.msra.mxu0 %v2925
        %2972 = vmatprep.subr.bf16.mxu0 0
        %2973 = vmatpush1.bf16.msra.mxu0 %v2926
        %2974 = vmatprep.subr.bf16.mxu0 0
        %2975 = vmatpush1.bf16.msra.mxu0 %v2927
        %2976 = vmatprep.subr.bf16.mxu0 0
        %2977 = vmatpush1.bf16.msra.mxu0 0
        %2978 = vmatprep.subr.bf16.mxu0 0
        %2979 = vmatpush1.bf16.msra.mxu0 0
        %2980 = vmatprep.subr.bf16.mxu0 0
        %2981 = vmatpush1.bf16.msra.mxu0 0
        %2982 = vmatprep.subr.bf16.mxu0 0
        %2983 = vmatpush1.bf16.msra.mxu0 0
        %2984 = vmatprep.subr.bf16.mxu0 0
        %2985 = vmatpush1.bf16.msra.mxu0 0
        %2986 = vmatprep.subr.bf16.mxu0 0
        %2987 = vmatpush1.bf16.msra.mxu0 0
        %2988 = vmatprep.subr.bf16.mxu0 0
        %2989 = vmatpush1.bf16.msra.mxu0 0
        %2990 = vmatprep.subr.bf16.mxu0 0
        %2991 = vmatpush1.bf16.msra.mxu0 0
        %2992 = vmatprep.subr.bf16.mxu0 0
        %2993 = vmatpush1.bf16.msra.mxu0 0
        %2994 = vmatprep.subr.bf16.mxu0 0
        %2995 = vmatpush1.bf16.msra.mxu0 0
        %2996 = vmatprep.subr.bf16.mxu0 0
        %2997 = vmatpush1.bf16.msra.mxu0 0
        %2998 = vmatprep.subr.bf16.mxu0 0
        %2999 = vmatpush1.bf16.msra.mxu0 0
        %3000 = vmatprep.mubr.bf16.mxu0 0
        %3001 = vmatmul.mubr.bf16.gmra.mrb[0].mxu0 %v2933
        %v3002 = vpop.f32.mrb[0].mxu0
        %v3003 = vadd.f32 0.0, %v3002
        %v3004 = vpop.f32.mrb[0].mxu0
        %v3005 = vpop.f32.mrb[0].mxu0
        %v3006 = vadd.f32 0.0, %v3005
        %v3007 = vpop.f32.mrb[0].mxu0
        %3008 = vmatprep.mubr.bf16.mxu0 0
        %3009 = vmatmul.mubr.bf16.gmra.mrb[0].mxu0 %v2936
        %v3010 = vpop.f32.mrb[0].mxu0
        %v3011 = vadd.f32 0.0, %v3010
        %v3012 = vpop.f32.mrb[0].mxu0
        %v3013 = vpop.f32.mrb[0].mxu0
        %v3014 = vadd.f32 0.0, %v3013
        %v3015 = vpop.f32.mrb[0].mxu0
        %3016 = vmatprep.mubr.bf16.mxu0 0
        %3017 = vmatmul.mubr.bf16.gmra.mrb[0].mxu0 %v2939
        %v3018 = vpop.f32.mrb[0].mxu0
        %v3019 = vadd.f32 0.0, %v3018
        %v3020 = vpop.f32.mrb[0].mxu0
        %v3021 = vpop.f32.mrb[0].mxu0
        %v3022 = vadd.f32 0.0, %v3021
        %v3023 = vpop.f32.mrb[0].mxu0
        %3024 = vmatprep.mubr.bf16.mxu0 0
        %3025 = vmatmul.mubr.bf16.gmra.mrb[0].mxu0 %v2942
        %v3026 = vpop.f32.mrb[0].mxu0
        %v3027 = vadd.f32 0.0, %v3026
        %v3028 = vpop.f32.mrb[0].mxu0
        %v3029 = vpop.f32.mrb[0].mxu0
        %v3030 = vadd.f32 0.0, %v3029
        %v3031 = vpop.f32.mrb[0].mxu0
        %3032 = vmatprep.mubr.bf16.mxu0 0
        %3033 = vmatmul.mubr.bf16.gmra.mrb[0].mxu0 %v2945
        %v3034 = vpop.f32.mrb[0].mxu0
        %v3035 = vadd.f32 0.0, %v3034
        %v3036 = vpop.f32.mrb[0].mxu0
        %v3037 = vpop.f32.mrb[0].mxu0
        %v3038 = vadd.f32 0.0, %v3037
        %v3039 = vpop.f32.mrb[0].mxu0
        %3040 = vmatprep.mubr.bf16.mxu0 0
        %3041 = vmatmul.mubr.bf16.gmra.mrb[0].mxu0 %v2948
        %v3042 = vpop.f32.mrb[0].mxu0
        %v3043 = vadd.f32 0.0, %v3042
        %v3044 = vpop.f32.mrb[0].mxu0
        %v3045 = vpop.f32.mrb[0].mxu0
        %v3046 = vadd.f32 0.0, %v3045
        %v3047 = vpop.f32.mrb[0].mxu0
        %3048 = vmatprep.mubr.bf16.mxu0 0
        %3049 = vmatmul.mubr.bf16.gmra.mrb[0].mxu0 %v2951
        %v3050 = vpop.f32.mrb[0].mxu0
        %v3051 = vadd.f32 0.0, %v3050
        %v3052 = vpop.f32.mrb[0].mxu0
        %v3053 = vpop.f32.mrb[0].mxu0
        %v3054 = vadd.f32 0.0, %v3053
        %v3055 = vpop.f32.mrb[0].mxu0
        %3056 = vmatprep.mubr.bf16.mxu0 0
        %3057 = vmatmul.mubr.bf16.gmra.mrb[0].mxu0 %v2954
        %v3058 = vpop.f32.mrb[0].mxu0
        %v3059 = vadd.f32 0.0, %v3058
        %v3060 = vpop.f32.mrb[0].mxu0
        %v3061 = vpop.f32.mrb[0].mxu0
        %v3062 = vadd.f32 0.0, %v3061
        %v3063 = vpop.f32.mrb[0].mxu0
        %3064 = vmatprep.mubr.bf16.mxu0 0
        %3065 = vmatmul.mubr.bf16.gmra.mrb[0].mxu0 %v2957
        %v3066 = vpop.f32.mrb[0].mxu0
        %v3067 = vadd.f32 0.0, %v3066
        %v3068 = vpop.f32.mrb[0].mxu0
        %v3069 = vpop.f32.mrb[0].mxu0
        %v3070 = vadd.f32 0.0, %v3069
        %v3071 = vpop.f32.mrb[0].mxu0
        %3072 = vmatprep.mubr.bf16.mxu0 0
        %3073 = vmatmul.mubr.bf16.gmra.mrb[0].mxu0 %v2960
        %v3074 = vpop.f32.mrb[0].mxu0
        %v3075 = vadd.f32 0.0, %v3074
        %v3076 = vpop.f32.mrb[0].mxu0
        %v3077 = vpop.f32.mrb[0].mxu0
        %v3078 = vadd.f32 0.0, %v3077
        %v3079 = vpop.f32.mrb[0].mxu0
        %3080 = vmatprep.mubr.bf16.mxu0 0
        %3081 = vmatmul.mubr.bf16.gmra.mrb[0].mxu0 %v2963
        %v3082 = vpop.f32.mrb[0].mxu0
        %v3083 = vadd.f32 0.0, %v3082
        %v3084 = vpop.f32.mrb[0].mxu0
        %v3085 = vpop.f32.mrb[0].mxu0
        %v3086 = vadd.f32 0.0, %v3085
        %v3087 = vpop.f32.mrb[0].mxu0
        %3088 = vmatprep.mubr.bf16.mxu0 0
        %3089 = vmatmul.mubr.bf16.gmra.mrb[0].mxu0 %v2966
        %v3090 = vpop.f32.mrb[0].mxu0
        %v3091 = vadd.f32 0.0, %v3090
        %v3092 = vpop.f32.mrb[0].mxu0
        %v3093 = vpop.f32.mrb[0].mxu0
        %v3094 = vadd.f32 0.0, %v3093
        %v3095 = vpop.f32.mrb[0].mxu0
        %3096 = vdwg.mxu0
        %v3097 = vadd.f32 %v2746, %v3003
        %v3098 = vadd.f32 %v2749, %v3006
        %v3099 = vadd.f32 %v2754, %v3011
        %v3100 = vadd.f32 %v2757, %v3014
        %v3101 = vadd.f32 %v2762, %v3019
        %v3102 = vadd.f32 %v2765, %v3022
        %v3103 = vadd.f32 %v2770, %v3027
        %v3104 = vadd.f32 %v2773, %v3030
        %v3105 = vadd.f32 %v2778, %v3035
        %v3106 = vadd.f32 %v2781, %v3038
        %v3107 = vadd.f32 %v2786, %v3043
        %v3108 = vadd.f32 %v2789, %v3046
        %v3109 = vadd.f32 %v2794, %v3051
        %v3110 = vadd.f32 %v2797, %v3054
        %v3111 = vadd.f32 %v2802, %v3059
        %v3112 = vadd.f32 %v2805, %v3062
        %v3113 = vadd.f32 %v2810, %v3067
        %v3114 = vadd.f32 %v2813, %v3070
        %v3115 = vadd.f32 %v2818, %v3075
        %v3116 = vadd.f32 %v2821, %v3078
        %v3117 = vadd.f32 %v2826, %v3083
        %v3118 = vadd.f32 %v2829, %v3086
        %v3119 = vadd.f32 %v2834, %v3091
        %v3120 = vadd.f32 %v2837, %v3094
        %v3121 = vld [vmem:[%s3 + $0x60] sm:$0xf]
        %v3122 = vld [vmem:[%s3 + $0x64] sm:$0xf]
        %v3123 = vld [vmem:[%s3 + $0x68] sm:$0xf]
        %v3124 = vld [vmem:[%s3 + $0x6c] sm:$0xf]
        %v3125 = vld [vmem:[%s3 + $0x70] sm:$0xf]
        %v3126 = vld [vmem:[%s3 + $0x74] sm:$0xf]
        %v3127 = vld [vmem:[%s3 + $0x78] sm:$0xf]
        %v3128 = vld [vmem:[%s3 + $0x7c] sm:$0xf]
        %v3137 = vunpack.c.l.b16 %v3121
        %v3138 = vunpack.c.l.b16 %v3122
        %v3139 = vunpack.c.l.b16 %v3123
        %v3140 = vunpack.c.l.b16 %v3124
        %v3141 = vunpack.c.l.b16 %v3125
        %v3142 = vunpack.c.l.b16 %v3126
        %v3143 = vunpack.c.l.b16 %v3127
        %v3144 = vunpack.c.l.b16 %v3128
        %v3145 = vpack.c.b16 %v3138, %v3137
        %v3146 = vpack.c.b16 %v3140, %v3139
        %v3147 = vpack.c.b16 %v3142, %v3141
        %v3148 = vpack.c.b16 %v3144, %v3143
        %v3154 = vsel %vm2497, %v2297, 0
        %3156 = vmatprep.subr.bf16.mxu0 0
        %3157 = vmatpush1.bf16.msra.mxu0 %v3145
        %3158 = vmatprep.subr.bf16.mxu0 0
        %3159 = vmatpush1.bf16.msra.mxu0 %v3146
        %3160 = vmatprep.subr.bf16.mxu0 0
        %3161 = vmatpush1.bf16.msra.mxu0 %v3147
        %3162 = vmatprep.subr.bf16.mxu0 0
        %3163 = vmatpush1.bf16.msra.mxu0 %v3148
        %3164 = vmatprep.subr.bf16.mxu0 0
        %3165 = vmatpush1.bf16.msra.mxu0 0
        %3166 = vmatprep.subr.bf16.mxu0 0
        %3167 = vmatpush1.bf16.msra.mxu0 0
        %3168 = vmatprep.subr.bf16.mxu0 0
        %3169 = vmatpush1.bf16.msra.mxu0 0
        %3170 = vmatprep.subr.bf16.mxu0 0
        %3171 = vmatpush1.bf16.msra.mxu0 0
        %3172 = vmatprep.subr.bf16.mxu0 0
        %3173 = vmatpush1.bf16.msra.mxu0 0
        %3174 = vmatprep.subr.bf16.mxu0 0
        %3175 = vmatpush1.bf16.msra.mxu0 0
        %3176 = vmatprep.subr.bf16.mxu0 0
        %3177 = vmatpush1.bf16.msra.mxu0 0
        %3178 = vmatprep.subr.bf16.mxu0 0
        %3179 = vmatpush1.bf16.msra.mxu0 0
        %3180 = vmatprep.subr.bf16.mxu0 0
        %3181 = vmatpush1.bf16.msra.mxu0 0
        %3182 = vmatprep.subr.bf16.mxu0 0
        %3183 = vmatpush1.bf16.msra.mxu0 0
        %3184 = vmatprep.subr.bf16.mxu0 0
        %3185 = vmatpush1.bf16.msra.mxu0 0
        %3186 = vmatprep.subr.bf16.mxu0 0
        %3187 = vmatpush1.bf16.msra.mxu0 0
        %3188 = vmatprep.mubr.bf16.mxu0 0
        %3189 = vmatmul.mubr.bf16.gmra.mrb[0].mxu0 %v2689
        %v3190 = vpop.f32.mrb[0].mxu0
        %v3191 = vadd.f32 0.0, %v3190
        %v3192 = vpop.f32.mrb[0].mxu0
        %v3193 = vpop.f32.mrb[0].mxu0
        %v3194 = vadd.f32 0.0, %v3193
        %v3195 = vpop.f32.mrb[0].mxu0
        %3196 = vmatprep.mubr.bf16.mxu0 0
        %3197 = vmatmul.mubr.bf16.gmra.mrb[0].mxu0 %v2691
        %v3198 = vpop.f32.mrb[0].mxu0
        %v3199 = vadd.f32 0.0, %v3198
        %v3200 = vpop.f32.mrb[0].mxu0
        %v3201 = vpop.f32.mrb[0].mxu0
        %v3202 = vadd.f32 0.0, %v3201
        %v3203 = vpop.f32.mrb[0].mxu0
        %3204 = vmatprep.mubr.bf16.mxu0 0
        %3205 = vmatmul.mubr.bf16.gmra.mrb[0].mxu0 %v2693
        %v3206 = vpop.f32.mrb[0].mxu0
        %v3207 = vadd.f32 0.0, %v3206
        %v3208 = vpop.f32.mrb[0].mxu0
        %v3209 = vpop.f32.mrb[0].mxu0
        %v3210 = vadd.f32 0.0, %v3209
        %v3211 = vpop.f32.mrb[0].mxu0
        %3212 = vmatprep.mubr.bf16.mxu0 0
        %3213 = vmatmul.mubr.bf16.gmra.mrb[0].mxu0 %v2695
        %v3214 = vpop.f32.mrb[0].mxu0
        %v3215 = vadd.f32 0.0, %v3214
        %v3216 = vpop.f32.mrb[0].mxu0
        %v3217 = vpop.f32.mrb[0].mxu0
        %v3218 = vadd.f32 0.0, %v3217
        %v3219 = vpop.f32.mrb[0].mxu0
        %3220 = vmatprep.mubr.bf16.mxu0 0
        %3221 = vmatmul.mubr.bf16.gmra.mrb[0].mxu0 %v2697
        %v3222 = vpop.f32.mrb[0].mxu0
        %v3223 = vadd.f32 0.0, %v3222
        %v3224 = vpop.f32.mrb[0].mxu0
        %v3225 = vpop.f32.mrb[0].mxu0
        %v3226 = vadd.f32 0.0, %v3225
        %v3227 = vpop.f32.mrb[0].mxu0
        %3228 = vmatprep.mubr.bf16.mxu0 0
        %3229 = vmatmul.mubr.bf16.gmra.mrb[0].mxu0 %v2699
        %v3230 = vpop.f32.mrb[0].mxu0
        %v3231 = vadd.f32 0.0, %v3230
        %v3232 = vpop.f32.mrb[0].mxu0
        %v3233 = vpop.f32.mrb[0].mxu0
        %v3234 = vadd.f32 0.0, %v3233
        %v3235 = vpop.f32.mrb[0].mxu0
        %3236 = vmatprep.mubr.bf16.mxu0 0
        %3237 = vmatmul.mubr.bf16.gmra.mrb[0].mxu0 %v2701
        %v3238 = vpop.f32.mrb[0].mxu0
        %v3239 = vadd.f32 0.0, %v3238
        %v3240 = vpop.f32.mrb[0].mxu0
        %v3241 = vpop.f32.mrb[0].mxu0
        %v3242 = vadd.f32 0.0, %v3241
        %v3243 = vpop.f32.mrb[0].mxu0
        %3244 = vmatprep.mubr.bf16.mxu0 0
        %3245 = vmatmul.mubr.bf16.gmra.mrb[0].mxu0 %v2703
        %v3246 = vpop.f32.mrb[0].mxu0
        %v3247 = vadd.f32 0.0, %v3246
        %v3248 = vpop.f32.mrb[0].mxu0
        %v3249 = vpop.f32.mrb[0].mxu0
        %v3250 = vadd.f32 0.0, %v3249
        %v3251 = vpop.f32.mrb[0].mxu0
        %3252 = vmatprep.mubr.bf16.mxu0 0
        %3253 = vmatmul.mubr.bf16.gmra.mrb[0].mxu0 %v2705
        %v3254 = vpop.f32.mrb[0].mxu0
        %v3255 = vadd.f32 0.0, %v3254
        %v3256 = vpop.f32.mrb[0].mxu0
        %v3257 = vpop.f32.mrb[0].mxu0
        %v3258 = vadd.f32 0.0, %v3257
        %v3259 = vpop.f32.mrb[0].mxu0
        %3260 = vmatprep.mubr.bf16.mxu0 0
        %3261 = vmatmul.mubr.bf16.gmra.mrb[0].mxu0 %v2707
        %v3262 = vpop.f32.mrb[0].mxu0
        %v3263 = vadd.f32 0.0, %v3262
        %v3264 = vpop.f32.mrb[0].mxu0
        %v3265 = vpop.f32.mrb[0].mxu0
        %v3266 = vadd.f32 0.0, %v3265
        %v3267 = vpop.f32.mrb[0].mxu0
        %3268 = vmatprep.mubr.bf16.mxu0 0
        %3269 = vmatmul.mubr.bf16.gmra.mrb[0].mxu0 %v2709
        %v3270 = vpop.f32.mrb[0].mxu0
        %v3271 = vadd.f32 0.0, %v3270
        %v3272 = vpop.f32.mrb[0].mxu0
        %v3273 = vpop.f32.mrb[0].mxu0
        %v3274 = vadd.f32 0.0, %v3273
        %v3275 = vpop.f32.mrb[0].mxu0
        %3276 = vmatprep.mubr.bf16.mxu0 0
        %3277 = vmatmul.mubr.bf16.gmra.mrb[0].mxu0 %v3154
        %v3278 = vpop.f32.mrb[0].mxu0
        %v3279 = vadd.f32 0.0, %v3278
        %v3280 = vpop.f32.mrb[0].mxu0
        %v3281 = vpop.f32.mrb[0].mxu0
        %v3282 = vadd.f32 0.0, %v3281
        %v3283 = vpop.f32.mrb[0].mxu0
        %3284 = vdwg.mxu0
        %v3285 = vadd.f32 %v3097, %v3191
        %v3286 = vadd.f32 %v3098, %v3194
        %v3287 = vadd.f32 %v3099, %v3199
        %v3288 = vadd.f32 %v3100, %v3202
        %v3289 = vadd.f32 %v3101, %v3207
        %v3290 = vadd.f32 %v3102, %v3210
        %v3291 = vadd.f32 %v3103, %v3215
        %v3292 = vadd.f32 %v3104, %v3218
        %v3293 = vadd.f32 %v3105, %v3223
        %v3294 = vadd.f32 %v3106, %v3226
        %v3295 = vadd.f32 %v3107, %v3231
        %v3296 = vadd.f32 %v3108, %v3234
        %v3297 = vadd.f32 %v3109, %v3239
        %v3298 = vadd.f32 %v3110, %v3242
        %v3299 = vadd.f32 %v3111, %v3247
        %v3300 = vadd.f32 %v3112, %v3250
        %v3301 = vadd.f32 %v3113, %v3255
        %v3302 = vadd.f32 %v3114, %v3258
        %v3303 = vadd.f32 %v3115, %v3263
        %v3304 = vadd.f32 %v3116, %v3266
        %v3305 = vadd.f32 %v3117, %v3271
        %v3306 = vadd.f32 %v3118, %v3274
        %v3307 = vadd.f32 %v3119, %v3279
        %v3308 = vadd.f32 %v3120, %v3282
        %v3309 = vshrl.u32 %v2297, 16
        %v3311 = vshll.u32 %v2297, 16
        %v3313 = vrot.slane %v3311, 1
        %v3314 = vor.u32 %v3309, %v3313
        %v3316 = vshll.u32 %v2311, 16
        %v3318 = vrot.slane %v3316, 1
        %v3319 = vsel %vm1277, %v3314, %v3318
        %v3320 = vld [vmem:[%s3 + $0x80] sm:$0xf]
        %v3321 = vld [vmem:[%s3 + $0x84] sm:$0xf]
        %v3322 = vld [vmem:[%s3 + $0x88] sm:$0xf]
        %v3323 = vld [vmem:[%s3 + $0x8c] sm:$0xf]
        %v3324 = vld [vmem:[%s3 + $0x90] sm:$0xf]
        %v3325 = vld [vmem:[%s3 + $0x94] sm:$0xf]
        %v3326 = vld [vmem:[%s3 + $0x98] sm:$0xf]
        %v3327 = vld [vmem:[%s3 + $0x9c] sm:$0xf]
        %v3336 = vunpack.c.l.b16 %v3320
        %v3337 = vunpack.c.l.b16 %v3321
        %v3338 = vunpack.c.l.b16 %v3322
        %v3339 = vunpack.c.l.b16 %v3323
        %v3340 = vunpack.c.l.b16 %v3324
        %v3341 = vunpack.c.l.b16 %v3325
        %v3342 = vunpack.c.l.b16 %v3326
        %v3343 = vunpack.c.l.b16 %v3327
        %v3344 = vpack.c.b16 %v3337, %v3336
        %v3345 = vpack.c.b16 %v3339, %v3338
        %v3346 = vpack.c.b16 %v3341, %v3340
        %v3347 = vpack.c.b16 %v3343, %v3342
        %v3353 = vsel %vm2497, %v3319, 0
        %3355 = vmatprep.subr.bf16.mxu0 0
        %3356 = vmatpush1.bf16.msra.mxu0 %v3344
        %3357 = vmatprep.subr.bf16.mxu0 0
        %3358 = vmatpush1.bf16.msra.mxu0 %v3345
        %3359 = vmatprep.subr.bf16.mxu0 0
        %3360 = vmatpush1.bf16.msra.mxu0 %v3346
        %3361 = vmatprep.subr.bf16.mxu0 0
        %3362 = vmatpush1.bf16.msra.mxu0 %v3347
        %3363 = vmatprep.subr.bf16.mxu0 0
        %3364 = vmatpush1.bf16.msra.mxu0 0
        %3365 = vmatprep.subr.bf16.mxu0 0
        %3366 = vmatpush1.bf16.msra.mxu0 0
        %3367 = vmatprep.subr.bf16.mxu0 0
        %3368 = vmatpush1.bf16.msra.mxu0 0
        %3369 = vmatprep.subr.bf16.mxu0 0
        %3370 = vmatpush1.bf16.msra.mxu0 0
        %3371 = vmatprep.subr.bf16.mxu0 0
        %3372 = vmatpush1.bf16.msra.mxu0 0
        %3373 = vmatprep.subr.bf16.mxu0 0
        %3374 = vmatpush1.bf16.msra.mxu0 0
        %3375 = vmatprep.subr.bf16.mxu0 0
        %3376 = vmatpush1.bf16.msra.mxu0 0
        %3377 = vmatprep.subr.bf16.mxu0 0
        %3378 = vmatpush1.bf16.msra.mxu0 0
        %3379 = vmatprep.subr.bf16.mxu0 0
        %3380 = vmatpush1.bf16.msra.mxu0 0
        %3381 = vmatprep.subr.bf16.mxu0 0
        %3382 = vmatpush1.bf16.msra.mxu0 0
        %3383 = vmatprep.subr.bf16.mxu0 0
        %3384 = vmatpush1.bf16.msra.mxu0 0
        %3385 = vmatprep.subr.bf16.mxu0 0
        %3386 = vmatpush1.bf16.msra.mxu0 0
        %3387 = vmatprep.mubr.bf16.mxu0 0
        %3388 = vmatmul.mubr.bf16.gmra.mrb[0].mxu0 %v2502
        %v3389 = vpop.f32.mrb[0].mxu0
        %v3390 = vadd.f32 0.0, %v3389
        %v3391 = vpop.f32.mrb[0].mxu0
        %v3392 = vpop.f32.mrb[0].mxu0
        %v3393 = vadd.f32 0.0, %v3392
        %v3394 = vpop.f32.mrb[0].mxu0
        %3395 = vmatprep.mubr.bf16.mxu0 0
        %3396 = vmatmul.mubr.bf16.gmra.mrb[0].mxu0 %v2505
        %v3397 = vpop.f32.mrb[0].mxu0
        %v3398 = vadd.f32 0.0, %v3397
        %v3399 = vpop.f32.mrb[0].mxu0
        %v3400 = vpop.f32.mrb[0].mxu0
        %v3401 = vadd.f32 0.0, %v3400
        %v3402 = vpop.f32.mrb[0].mxu0
        %3403 = vmatprep.mubr.bf16.mxu0 0
        %3404 = vmatmul.mubr.bf16.gmra.mrb[0].mxu0 %v2508
        %v3405 = vpop.f32.mrb[0].mxu0
        %v3406 = vadd.f32 0.0, %v3405
        %v3407 = vpop.f32.mrb[0].mxu0
        %v3408 = vpop.f32.mrb[0].mxu0
        %v3409 = vadd.f32 0.0, %v3408
        %v3410 = vpop.f32.mrb[0].mxu0
        %3411 = vmatprep.mubr.bf16.mxu0 0
        %3412 = vmatmul.mubr.bf16.gmra.mrb[0].mxu0 %v2511
        %v3413 = vpop.f32.mrb[0].mxu0
        %v3414 = vadd.f32 0.0, %v3413
        %v3415 = vpop.f32.mrb[0].mxu0
        %v3416 = vpop.f32.mrb[0].mxu0
        %v3417 = vadd.f32 0.0, %v3416
        %v3418 = vpop.f32.mrb[0].mxu0
        %3419 = vmatprep.mubr.bf16.mxu0 0
        %3420 = vmatmul.mubr.bf16.gmra.mrb[0].mxu0 %v2514
        %v3421 = vpop.f32.mrb[0].mxu0
        %v3422 = vadd.f32 0.0, %v3421
        %v3423 = vpop.f32.mrb[0].mxu0
        %v3424 = vpop.f32.mrb[0].mxu0
        %v3425 = vadd.f32 0.0, %v3424
        %v3426 = vpop.f32.mrb[0].mxu0
        %3427 = vmatprep.mubr.bf16.mxu0 0
        %3428 = vmatmul.mubr.bf16.gmra.mrb[0].mxu0 %v2517
        %v3429 = vpop.f32.mrb[0].mxu0
        %v3430 = vadd.f32 0.0, %v3429
        %v3431 = vpop.f32.mrb[0].mxu0
        %v3432 = vpop.f32.mrb[0].mxu0
        %v3433 = vadd.f32 0.0, %v3432
        %v3434 = vpop.f32.mrb[0].mxu0
        %3435 = vmatprep.mubr.bf16.mxu0 0
        %3436 = vmatmul.mubr.bf16.gmra.mrb[0].mxu0 %v2520
        %v3437 = vpop.f32.mrb[0].mxu0
        %v3438 = vadd.f32 0.0, %v3437
        %v3439 = vpop.f32.mrb[0].mxu0
        %v3440 = vpop.f32.mrb[0].mxu0
        %v3441 = vadd.f32 0.0, %v3440
        %v3442 = vpop.f32.mrb[0].mxu0
        %3443 = vmatprep.mubr.bf16.mxu0 0
        %3444 = vmatmul.mubr.bf16.gmra.mrb[0].mxu0 %v2523
        %v3445 = vpop.f32.mrb[0].mxu0
        %v3446 = vadd.f32 0.0, %v3445
        %v3447 = vpop.f32.mrb[0].mxu0
        %v3448 = vpop.f32.mrb[0].mxu0
        %v3449 = vadd.f32 0.0, %v3448
        %v3450 = vpop.f32.mrb[0].mxu0
        %3451 = vmatprep.mubr.bf16.mxu0 0
        %3452 = vmatmul.mubr.bf16.gmra.mrb[0].mxu0 %v2526
        %v3453 = vpop.f32.mrb[0].mxu0
        %v3454 = vadd.f32 0.0, %v3453
        %v3455 = vpop.f32.mrb[0].mxu0
        %v3456 = vpop.f32.mrb[0].mxu0
        %v3457 = vadd.f32 0.0, %v3456
        %v3458 = vpop.f32.mrb[0].mxu0
        %3459 = vmatprep.mubr.bf16.mxu0 0
        %3460 = vmatmul.mubr.bf16.gmra.mrb[0].mxu0 %v2529
        %v3461 = vpop.f32.mrb[0].mxu0
        %v3462 = vadd.f32 0.0, %v3461
        %v3463 = vpop.f32.mrb[0].mxu0
        %v3464 = vpop.f32.mrb[0].mxu0
        %v3465 = vadd.f32 0.0, %v3464
        %v3466 = vpop.f32.mrb[0].mxu0
        %3467 = vmatprep.mubr.bf16.mxu0 0
        %3468 = vmatmul.mubr.bf16.gmra.mrb[0].mxu0 %v2532
        %v3469 = vpop.f32.mrb[0].mxu0
        %v3470 = vadd.f32 0.0, %v3469
        %v3471 = vpop.f32.mrb[0].mxu0
        %v3472 = vpop.f32.mrb[0].mxu0
        %v3473 = vadd.f32 0.0, %v3472
        %v3474 = vpop.f32.mrb[0].mxu0
        %3475 = vmatprep.mubr.bf16.mxu0 0
        %3476 = vmatmul.mubr.bf16.gmra.mrb[0].mxu0 %v3353
        %v3477 = vpop.f32.mrb[0].mxu0
        %v3478 = vadd.f32 0.0, %v3477
        %v3479 = vpop.f32.mrb[0].mxu0
        %v3480 = vpop.f32.mrb[0].mxu0
        %v3481 = vadd.f32 0.0, %v3480
        %v3482 = vpop.f32.mrb[0].mxu0
        %3483 = vdwg.mxu0
        %v3484 = vadd.f32 %v3285, %v3390
        %v3485 = vadd.f32 %v3286, %v3393
        %v3486 = vadd.f32 %v3287, %v3398
        %v3487 = vadd.f32 %v3288, %v3401
        %v3488 = vadd.f32 %v3289, %v3406
        %v3489 = vadd.f32 %v3290, %v3409
        %v3490 = vadd.f32 %v3291, %v3414
        %v3491 = vadd.f32 %v3292, %v3417
        %v3492 = vadd.f32 %v3293, %v3422
        %v3493 = vadd.f32 %v3294, %v3425
        %v3494 = vadd.f32 %v3295, %v3430
        %v3495 = vadd.f32 %v3296, %v3433
        %v3496 = vadd.f32 %v3297, %v3438
        %v3497 = vadd.f32 %v3298, %v3441
        %v3498 = vadd.f32 %v3299, %v3446
        %v3499 = vadd.f32 %v3300, %v3449
        %v3500 = vadd.f32 %v3301, %v3454
        %v3501 = vadd.f32 %v3302, %v3457
        %v3502 = vadd.f32 %v3303, %v3462
        %v3503 = vadd.f32 %v3304, %v3465
        %v3504 = vadd.f32 %v3305, %v3470
        %v3505 = vadd.f32 %v3306, %v3473
        %v3506 = vadd.f32 %v3307, %v3478
        %v3507 = vadd.f32 %v3308, %v3481
        %v3510 = vrot.slane %v2297, 1
        %v3511 = vrot.slane %v2311, 1
        %v3512 = vsel %vm1214, %v3510, %v3511
        %v3513 = vld [vmem:[%s3 + $0xa0] sm:$0xf]
        %v3514 = vld [vmem:[%s3 + $0xa4] sm:$0xf]
        %v3515 = vld [vmem:[%s3 + $0xa8] sm:$0xf]
        %v3516 = vld [vmem:[%s3 + $0xac] sm:$0xf]
        %v3517 = vld [vmem:[%s3 + $0xb0] sm:$0xf]
        %v3518 = vld [vmem:[%s3 + $0xb4] sm:$0xf]
        %v3519 = vld [vmem:[%s3 + $0xb8] sm:$0xf]
        %v3520 = vld [vmem:[%s3 + $0xbc] sm:$0xf]
        %v3529 = vunpack.c.l.b16 %v3513
        %v3530 = vunpack.c.l.b16 %v3514
        %v3531 = vunpack.c.l.b16 %v3515
        %v3532 = vunpack.c.l.b16 %v3516
        %v3533 = vunpack.c.l.b16 %v3517
        %v3534 = vunpack.c.l.b16 %v3518
        %v3535 = vunpack.c.l.b16 %v3519
        %v3536 = vunpack.c.l.b16 %v3520
        %v3537 = vpack.c.b16 %v3530, %v3529
        %v3538 = vpack.c.b16 %v3532, %v3531
        %v3539 = vpack.c.b16 %v3534, %v3533
        %v3540 = vpack.c.b16 %v3536, %v3535
        %v3546 = vsel %vm2497, %v3512, 0
        %3548 = vmatprep.subr.bf16.mxu0 0
        %3549 = vmatpush1.bf16.msra.mxu0 %v3537
        %3550 = vmatprep.subr.bf16.mxu0 0
        %3551 = vmatpush1.bf16.msra.mxu0 %v3538
        %3552 = vmatprep.subr.bf16.mxu0 0
        %3553 = vmatpush1.bf16.msra.mxu0 %v3539
        %3554 = vmatprep.subr.bf16.mxu0 0
        %3555 = vmatpush1.bf16.msra.mxu0 %v3540
        %3556 = vmatprep.subr.bf16.mxu0 0
        %3557 = vmatpush1.bf16.msra.mxu0 0
        %3558 = vmatprep.subr.bf16.mxu0 0
        %3559 = vmatpush1.bf16.msra.mxu0 0
        %3560 = vmatprep.subr.bf16.mxu0 0
        %3561 = vmatpush1.bf16.msra.mxu0 0
        %3562 = vmatprep.subr.bf16.mxu0 0
        %3563 = vmatpush1.bf16.msra.mxu0 0
        %3564 = vmatprep.subr.bf16.mxu0 0
        %3565 = vmatpush1.bf16.msra.mxu0 0
        %3566 = vmatprep.subr.bf16.mxu0 0
        %3567 = vmatpush1.bf16.msra.mxu0 0
        %3568 = vmatprep.subr.bf16.mxu0 0
        %3569 = vmatpush1.bf16.msra.mxu0 0
        %3570 = vmatprep.subr.bf16.mxu0 0
        %3571 = vmatpush1.bf16.msra.mxu0 0
        %3572 = vmatprep.subr.bf16.mxu0 0
        %3573 = vmatpush1.bf16.msra.mxu0 0
        %3574 = vmatprep.subr.bf16.mxu0 0
        %3575 = vmatpush1.bf16.msra.mxu0 0
        %3576 = vmatprep.subr.bf16.mxu0 0
        %3577 = vmatpush1.bf16.msra.mxu0 0
        %3578 = vmatprep.subr.bf16.mxu0 0
        %3579 = vmatpush1.bf16.msra.mxu0 0
        %3580 = vmatprep.mubr.bf16.mxu0 0
        %3581 = vmatmul.mubr.bf16.gmra.mrb[0].mxu0 %v2936
        %v3582 = vpop.f32.mrb[0].mxu0
        %v3583 = vadd.f32 0.0, %v3582
        %v3584 = vpop.f32.mrb[0].mxu0
        %v3585 = vpop.f32.mrb[0].mxu0
        %v3586 = vadd.f32 0.0, %v3585
        %v3587 = vpop.f32.mrb[0].mxu0
        %3588 = vmatprep.mubr.bf16.mxu0 0
        %3589 = vmatmul.mubr.bf16.gmra.mrb[0].mxu0 %v2939
        %v3590 = vpop.f32.mrb[0].mxu0
        %v3591 = vadd.f32 0.0, %v3590
        %v3592 = vpop.f32.mrb[0].mxu0
        %v3593 = vpop.f32.mrb[0].mxu0
        %v3594 = vadd.f32 0.0, %v3593
        %v3595 = vpop.f32.mrb[0].mxu0
        %3596 = vmatprep.mubr.bf16.mxu0 0
        %3597 = vmatmul.mubr.bf16.gmra.mrb[0].mxu0 %v2942
        %v3598 = vpop.f32.mrb[0].mxu0
        %v3599 = vadd.f32 0.0, %v3598
        %v3600 = vpop.f32.mrb[0].mxu0
        %v3601 = vpop.f32.mrb[0].mxu0
        %v3602 = vadd.f32 0.0, %v3601
        %v3603 = vpop.f32.mrb[0].mxu0
        %3604 = vmatprep.mubr.bf16.mxu0 0
        %3605 = vmatmul.mubr.bf16.gmra.mrb[0].mxu0 %v2945
        %v3606 = vpop.f32.mrb[0].mxu0
        %v3607 = vadd.f32 0.0, %v3606
        %v3608 = vpop.f32.mrb[0].mxu0
        %v3609 = vpop.f32.mrb[0].mxu0
        %v3610 = vadd.f32 0.0, %v3609
        %v3611 = vpop.f32.mrb[0].mxu0
        %3612 = vmatprep.mubr.bf16.mxu0 0
        %3613 = vmatmul.mubr.bf16.gmra.mrb[0].mxu0 %v2948
        %v3614 = vpop.f32.mrb[0].mxu0
        %v3615 = vadd.f32 0.0, %v3614
        %v3616 = vpop.f32.mrb[0].mxu0
        %v3617 = vpop.f32.mrb[0].mxu0
        %v3618 = vadd.f32 0.0, %v3617
        %v3619 = vpop.f32.mrb[0].mxu0
        %3620 = vmatprep.mubr.bf16.mxu0 0
        %3621 = vmatmul.mubr.bf16.gmra.mrb[0].mxu0 %v2951
        %v3622 = vpop.f32.mrb[0].mxu0
        %v3623 = vadd.f32 0.0, %v3622
        %v3624 = vpop.f32.mrb[0].mxu0
        %v3625 = vpop.f32.mrb[0].mxu0
        %v3626 = vadd.f32 0.0, %v3625
        %v3627 = vpop.f32.mrb[0].mxu0
        %3628 = vmatprep.mubr.bf16.mxu0 0
        %3629 = vmatmul.mubr.bf16.gmra.mrb[0].mxu0 %v2954
        %v3630 = vpop.f32.mrb[0].mxu0
        %v3631 = vadd.f32 0.0, %v3630
        %v3632 = vpop.f32.mrb[0].mxu0
        %v3633 = vpop.f32.mrb[0].mxu0
        %v3634 = vadd.f32 0.0, %v3633
        %v3635 = vpop.f32.mrb[0].mxu0
        %3636 = vmatprep.mubr.bf16.mxu0 0
        %3637 = vmatmul.mubr.bf16.gmra.mrb[0].mxu0 %v2957
        %v3638 = vpop.f32.mrb[0].mxu0
        %v3639 = vadd.f32 0.0, %v3638
        %v3640 = vpop.f32.mrb[0].mxu0
        %v3641 = vpop.f32.mrb[0].mxu0
        %v3642 = vadd.f32 0.0, %v3641
        %v3643 = vpop.f32.mrb[0].mxu0
        %3644 = vmatprep.mubr.bf16.mxu0 0
        %3645 = vmatmul.mubr.bf16.gmra.mrb[0].mxu0 %v2960
        %v3646 = vpop.f32.mrb[0].mxu0
        %v3647 = vadd.f32 0.0, %v3646
        %v3648 = vpop.f32.mrb[0].mxu0
        %v3649 = vpop.f32.mrb[0].mxu0
        %v3650 = vadd.f32 0.0, %v3649
        %v3651 = vpop.f32.mrb[0].mxu0
        %3652 = vmatprep.mubr.bf16.mxu0 0
        %3653 = vmatmul.mubr.bf16.gmra.mrb[0].mxu0 %v2963
        %v3654 = vpop.f32.mrb[0].mxu0
        %v3655 = vadd.f32 0.0, %v3654
        %v3656 = vpop.f32.mrb[0].mxu0
        %v3657 = vpop.f32.mrb[0].mxu0
        %v3658 = vadd.f32 0.0, %v3657
        %v3659 = vpop.f32.mrb[0].mxu0
        %3660 = vmatprep.mubr.bf16.mxu0 0
        %3661 = vmatmul.mubr.bf16.gmra.mrb[0].mxu0 %v2966
        %v3662 = vpop.f32.mrb[0].mxu0
        %v3663 = vadd.f32 0.0, %v3662
        %v3664 = vpop.f32.mrb[0].mxu0
        %v3665 = vpop.f32.mrb[0].mxu0
        %v3666 = vadd.f32 0.0, %v3665
        %v3667 = vpop.f32.mrb[0].mxu0
        %3668 = vmatprep.mubr.bf16.mxu0 0
        %3669 = vmatmul.mubr.bf16.gmra.mrb[0].mxu0 %v3546
        %v3670 = vpop.f32.mrb[0].mxu0
        %v3671 = vadd.f32 0.0, %v3670
        %v3672 = vpop.f32.mrb[0].mxu0
        %v3673 = vpop.f32.mrb[0].mxu0
        %v3674 = vadd.f32 0.0, %v3673
        %v3675 = vpop.f32.mrb[0].mxu0
        %3676 = vdwg.mxu0
        %v3677 = vadd.f32 %v3484, %v3583
        %v3678 = vadd.f32 %v3485, %v3586
        %v3679 = vadd.f32 %v3486, %v3591
        %v3680 = vadd.f32 %v3487, %v3594
        %v3681 = vadd.f32 %v3488, %v3599
        %v3682 = vadd.f32 %v3489, %v3602
        %v3683 = vadd.f32 %v3490, %v3607
        %v3684 = vadd.f32 %v3491, %v3610
        %v3685 = vadd.f32 %v3492, %v3615
        %v3686 = vadd.f32 %v3493, %v3618
        %v3687 = vadd.f32 %v3494, %v3623
        %v3688 = vadd.f32 %v3495, %v3626
        %v3689 = vadd.f32 %v3496, %v3631
        %v3690 = vadd.f32 %v3497, %v3634
        %v3691 = vadd.f32 %v3498, %v3639
        %v3692 = vadd.f32 %v3499, %v3642
        %v3693 = vadd.f32 %v3500, %v3647
        %v3694 = vadd.f32 %v3501, %v3650
        %v3695 = vadd.f32 %v3502, %v3655
        %v3696 = vadd.f32 %v3503, %v3658
        %v3697 = vadd.f32 %v3504, %v3663
        %v3698 = vadd.f32 %v3505, %v3666
        %v3699 = vadd.f32 %v3506, %v3671
        %v3700 = vadd.f32 %v3507, %v3674
        %v3701 = vld [vmem:[%s3 + $0xc0] sm:$0xf]
        %v3702 = vld [vmem:[%s3 + $0xc4] sm:$0xf]
        %v3703 = vld [vmem:[%s3 + $0xc8] sm:$0xf]
        %v3704 = vld [vmem:[%s3 + $0xcc] sm:$0xf]
        %v3705 = vld [vmem:[%s3 + $0xd0] sm:$0xf]
        %v3706 = vld [vmem:[%s3 + $0xd4] sm:$0xf]
        %v3707 = vld [vmem:[%s3 + $0xd8] sm:$0xf]
        %v3708 = vld [vmem:[%s3 + $0xdc] sm:$0xf]
        %v3717 = vunpack.c.l.b16 %v3701
        %v3718 = vunpack.c.l.b16 %v3702
        %v3719 = vunpack.c.l.b16 %v3703
        %v3720 = vunpack.c.l.b16 %v3704
        %v3721 = vunpack.c.l.b16 %v3705
        %v3722 = vunpack.c.l.b16 %v3706
        %v3723 = vunpack.c.l.b16 %v3707
        %v3724 = vunpack.c.l.b16 %v3708
        %v3725 = vpack.c.b16 %v3718, %v3717
        %v3726 = vpack.c.b16 %v3720, %v3719
        %v3727 = vpack.c.b16 %v3722, %v3721
        %v3728 = vpack.c.b16 %v3724, %v3723
        %v3734 = vsel %vm2497, %v2298, 0
        %3736 = vmatprep.subr.bf16.mxu0 0
        %3737 = vmatpush1.bf16.msra.mxu0 %v3725
        %3738 = vmatprep.subr.bf16.mxu0 0
        %3739 = vmatpush1.bf16.msra.mxu0 %v3726
        %3740 = vmatprep.subr.bf16.mxu0 0
        %3741 = vmatpush1.bf16.msra.mxu0 %v3727
        %3742 = vmatprep.subr.bf16.mxu0 0
        %3743 = vmatpush1.bf16.msra.mxu0 %v3728
        %3744 = vmatprep.subr.bf16.mxu0 0
        %3745 = vmatpush1.bf16.msra.mxu0 0
        %3746 = vmatprep.subr.bf16.mxu0 0
        %3747 = vmatpush1.bf16.msra.mxu0 0
        %3748 = vmatprep.subr.bf16.mxu0 0
        %3749 = vmatpush1.bf16.msra.mxu0 0
        %3750 = vmatprep.subr.bf16.mxu0 0
        %3751 = vmatpush1.bf16.msra.mxu0 0
        %3752 = vmatprep.subr.bf16.mxu0 0
        %3753 = vmatpush1.bf16.msra.mxu0 0
        %3754 = vmatprep.subr.bf16.mxu0 0
        %3755 = vmatpush1.bf16.msra.mxu0 0
        %3756 = vmatprep.subr.bf16.mxu0 0
        %3757 = vmatpush1.bf16.msra.mxu0 0
        %3758 = vmatprep.subr.bf16.mxu0 0
        %3759 = vmatpush1.bf16.msra.mxu0 0
        %3760 = vmatprep.subr.bf16.mxu0 0
        %3761 = vmatpush1.bf16.msra.mxu0 0
        %3762 = vmatprep.subr.bf16.mxu0 0
        %3763 = vmatpush1.bf16.msra.mxu0 0
        %3764 = vmatprep.subr.bf16.mxu0 0
        %3765 = vmatpush1.bf16.msra.mxu0 0
        %3766 = vmatprep.subr.bf16.mxu0 0
        %3767 = vmatpush1.bf16.msra.mxu0 0
        %3768 = vmatprep.mubr.bf16.mxu0 0
        %3769 = vmatmul.mubr.bf16.gmra.mrb[0].mxu0 %v2691
        %v3770 = vpop.f32.mrb[0].mxu0
        %v3771 = vadd.f32 0.0, %v3770
        %v3772 = vpop.f32.mrb[0].mxu0
        %v3773 = vpop.f32.mrb[0].mxu0
        %v3774 = vadd.f32 0.0, %v3773
        %v3775 = vpop.f32.mrb[0].mxu0
        %3776 = vmatprep.mubr.bf16.mxu0 0
        %3777 = vmatmul.mubr.bf16.gmra.mrb[0].mxu0 %v2693
        %v3778 = vpop.f32.mrb[0].mxu0
        %v3779 = vadd.f32 0.0, %v3778
        %v3780 = vpop.f32.mrb[0].mxu0
        %v3781 = vpop.f32.mrb[0].mxu0
        %v3782 = vadd.f32 0.0, %v3781
        %v3783 = vpop.f32.mrb[0].mxu0
        %3784 = vmatprep.mubr.bf16.mxu0 0
        %3785 = vmatmul.mubr.bf16.gmra.mrb[0].mxu0 %v2695
        %v3786 = vpop.f32.mrb[0].mxu0
        %v3787 = vadd.f32 0.0, %v3786
        %v3788 = vpop.f32.mrb[0].mxu0
        %v3789 = vpop.f32.mrb[0].mxu0
        %v3790 = vadd.f32 0.0, %v3789
        %v3791 = vpop.f32.mrb[0].mxu0
        %3792 = vmatprep.mubr.bf16.mxu0 0
        %3793 = vmatmul.mubr.bf16.gmra.mrb[0].mxu0 %v2697
        %v3794 = vpop.f32.mrb[0].mxu0
        %v3795 = vadd.f32 0.0, %v3794
        %v3796 = vpop.f32.mrb[0].mxu0
        %v3797 = vpop.f32.mrb[0].mxu0
        %v3798 = vadd.f32 0.0, %v3797
        %v3799 = vpop.f32.mrb[0].mxu0
        %3800 = vmatprep.mubr.bf16.mxu0 0
        %3801 = vmatmul.mubr.bf16.gmra.mrb[0].mxu0 %v2699
        %v3802 = vpop.f32.mrb[0].mxu0
        %v3803 = vadd.f32 0.0, %v3802
        %v3804 = vpop.f32.mrb[0].mxu0
        %v3805 = vpop.f32.mrb[0].mxu0
        %v3806 = vadd.f32 0.0, %v3805
        %v3807 = vpop.f32.mrb[0].mxu0
        %3808 = vmatprep.mubr.bf16.mxu0 0
        %3809 = vmatmul.mubr.bf16.gmra.mrb[0].mxu0 %v2701
        %v3810 = vpop.f32.mrb[0].mxu0
        %v3811 = vadd.f32 0.0, %v3810
        %v3812 = vpop.f32.mrb[0].mxu0
        %v3813 = vpop.f32.mrb[0].mxu0
        %v3814 = vadd.f32 0.0, %v3813
        %v3815 = vpop.f32.mrb[0].mxu0
        %3816 = vmatprep.mubr.bf16.mxu0 0
        %3817 = vmatmul.mubr.bf16.gmra.mrb[0].mxu0 %v2703
        %v3818 = vpop.f32.mrb[0].mxu0
        %v3819 = vadd.f32 0.0, %v3818
        %v3820 = vpop.f32.mrb[0].mxu0
        %v3821 = vpop.f32.mrb[0].mxu0
        %v3822 = vadd.f32 0.0, %v3821
        %v3823 = vpop.f32.mrb[0].mxu0
        %3824 = vmatprep.mubr.bf16.mxu0 0
        %3825 = vmatmul.mubr.bf16.gmra.mrb[0].mxu0 %v2705
        %v3826 = vpop.f32.mrb[0].mxu0
        %v3827 = vadd.f32 0.0, %v3826
        %v3828 = vpop.f32.mrb[0].mxu0
        %v3829 = vpop.f32.mrb[0].mxu0
        %v3830 = vadd.f32 0.0, %v3829
        %v3831 = vpop.f32.mrb[0].mxu0
        %3832 = vmatprep.mubr.bf16.mxu0 0
        %3833 = vmatmul.mubr.bf16.gmra.mrb[0].mxu0 %v2707
        %v3834 = vpop.f32.mrb[0].mxu0
        %v3835 = vadd.f32 0.0, %v3834
        %v3836 = vpop.f32.mrb[0].mxu0
        %v3837 = vpop.f32.mrb[0].mxu0
        %v3838 = vadd.f32 0.0, %v3837
        %v3839 = vpop.f32.mrb[0].mxu0
        %3840 = vmatprep.mubr.bf16.mxu0 0
        %3841 = vmatmul.mubr.bf16.gmra.mrb[0].mxu0 %v2709
        %v3842 = vpop.f32.mrb[0].mxu0
        %v3843 = vadd.f32 0.0, %v3842
        %v3844 = vpop.f32.mrb[0].mxu0
        %v3845 = vpop.f32.mrb[0].mxu0
        %v3846 = vadd.f32 0.0, %v3845
        %v3847 = vpop.f32.mrb[0].mxu0
        %3848 = vmatprep.mubr.bf16.mxu0 0
        %3849 = vmatmul.mubr.bf16.gmra.mrb[0].mxu0 %v3154
        %v3850 = vpop.f32.mrb[0].mxu0
        %v3851 = vadd.f32 0.0, %v3850
        %v3852 = vpop.f32.mrb[0].mxu0
        %v3853 = vpop.f32.mrb[0].mxu0
        %v3854 = vadd.f32 0.0, %v3853
        %v3855 = vpop.f32.mrb[0].mxu0
        %3856 = vmatprep.mubr.bf16.mxu0 0
        %3857 = vmatmul.mubr.bf16.gmra.mrb[0].mxu0 %v3734
        %v3858 = vpop.f32.mrb[0].mxu0
        %v3859 = vadd.f32 0.0, %v3858
        %v3860 = vpop.f32.mrb[0].mxu0
        %v3861 = vpop.f32.mrb[0].mxu0
        %v3862 = vadd.f32 0.0, %v3861
        %v3863 = vpop.f32.mrb[0].mxu0
        %3864 = vdwg.mxu0
        %v3865 = vadd.f32 %v3677, %v3771
        %v3866 = vadd.f32 %v3678, %v3774
        %v3867 = vadd.f32 %v3679, %v3779
        %v3868 = vadd.f32 %v3680, %v3782
        %v3869 = vadd.f32 %v3681, %v3787
        %v3870 = vadd.f32 %v3682, %v3790
        %v3871 = vadd.f32 %v3683, %v3795
        %v3872 = vadd.f32 %v3684, %v3798
        %v3873 = vadd.f32 %v3685, %v3803
        %v3874 = vadd.f32 %v3686, %v3806
        %v3875 = vadd.f32 %v3687, %v3811
        %v3876 = vadd.f32 %v3688, %v3814
        %v3877 = vadd.f32 %v3689, %v3819
        %v3878 = vadd.f32 %v3690, %v3822
        %v3879 = vadd.f32 %v3691, %v3827
        %v3880 = vadd.f32 %v3692, %v3830
        %v3881 = vadd.f32 %v3693, %v3835
        %v3882 = vadd.f32 %v3694, %v3838
        %v3883 = vadd.f32 %v3695, %v3843
        %v3884 = vadd.f32 %v3696, %v3846
        %v3885 = vadd.f32 %v3697, %v3851
        %v3886 = vadd.f32 %v3698, %v3854
        %v3887 = vadd.f32 %v3699, %v3859
        %v3888 = vadd.f32 %v3700, %v3862
        %v3889 = vshrl.u32 %v2298, 16
        %v3891 = vshll.u32 %v2298, 16
        %v3893 = vrot.slane %v3891, 1
        %v3894 = vor.u32 %v3889, %v3893
        %v3896 = vshll.u32 %v2312, 16
        %v3898 = vrot.slane %v3896, 1
        %v3899 = vsel %vm1277, %v3894, %v3898
        %v3900 = vld [vmem:[%s3 + $0xe0] sm:$0xf]
        %v3901 = vld [vmem:[%s3 + $0xe4] sm:$0xf]
        %v3902 = vld [vmem:[%s3 + $0xe8] sm:$0xf]
        %v3903 = vld [vmem:[%s3 + $0xec] sm:$0xf]
        %v3904 = vld [vmem:[%s3 + $0xf0] sm:$0xf]
        %v3905 = vld [vmem:[%s3 + $0xf4] sm:$0xf]
        %v3906 = vld [vmem:[%s3 + $0xf8] sm:$0xf]
        %v3907 = vld [vmem:[%s3 + $0xfc] sm:$0xf]
        %v3916 = vunpack.c.l.b16 %v3900
        %v3917 = vunpack.c.l.b16 %v3901
        %v3918 = vunpack.c.l.b16 %v3902
        %v3919 = vunpack.c.l.b16 %v3903
        %v3920 = vunpack.c.l.b16 %v3904
        %v3921 = vunpack.c.l.b16 %v3905
        %v3922 = vunpack.c.l.b16 %v3906
        %v3923 = vunpack.c.l.b16 %v3907
        %v3924 = vpack.c.b16 %v3917, %v3916
        %v3925 = vpack.c.b16 %v3919, %v3918
        %v3926 = vpack.c.b16 %v3921, %v3920
        %v3927 = vpack.c.b16 %v3923, %v3922
        %v3933 = vsel %vm2497, %v3899, 0
        %3935 = vmatprep.subr.bf16.mxu0 0
        %3936 = vmatpush1.bf16.msra.mxu0 %v3924
        %3937 = vmatprep.subr.bf16.mxu0 0
        %3938 = vmatpush1.bf16.msra.mxu0 %v3925
        %3939 = vmatprep.subr.bf16.mxu0 0
        %3940 = vmatpush1.bf16.msra.mxu0 %v3926
        %3941 = vmatprep.subr.bf16.mxu0 0
        %3942 = vmatpush1.bf16.msra.mxu0 %v3927
        %3943 = vmatprep.subr.bf16.mxu0 0
        %3944 = vmatpush1.bf16.msra.mxu0 0
        %3945 = vmatprep.subr.bf16.mxu0 0
        %3946 = vmatpush1.bf16.msra.mxu0 0
        %3947 = vmatprep.subr.bf16.mxu0 0
        %3948 = vmatpush1.bf16.msra.mxu0 0
        %3949 = vmatprep.subr.bf16.mxu0 0
        %3950 = vmatpush1.bf16.msra.mxu0 0
        %3951 = vmatprep.subr.bf16.mxu0 0
        %3952 = vmatpush1.bf16.msra.mxu0 0
        %3953 = vmatprep.subr.bf16.mxu0 0
        %3954 = vmatpush1.bf16.msra.mxu0 0
        %3955 = vmatprep.subr.bf16.mxu0 0
        %3956 = vmatpush1.bf16.msra.mxu0 0
        %3957 = vmatprep.subr.bf16.mxu0 0
        %3958 = vmatpush1.bf16.msra.mxu0 0
        %3959 = vmatprep.subr.bf16.mxu0 0
        %3960 = vmatpush1.bf16.msra.mxu0 0
        %3961 = vmatprep.subr.bf16.mxu0 0
        %3962 = vmatpush1.bf16.msra.mxu0 0
        %3963 = vmatprep.subr.bf16.mxu0 0
        %3964 = vmatpush1.bf16.msra.mxu0 0
        %3965 = vmatprep.subr.bf16.mxu0 0
        %3966 = vmatpush1.bf16.msra.mxu0 0
        %3967 = vmatprep.mubr.bf16.mxu0 0
        %3968 = vmatmul.mubr.bf16.gmra.mrb[0].mxu0 %v2505
        %v3969 = vpop.f32.mrb[0].mxu0
        %v3970 = vadd.f32 0.0, %v3969
        %v3971 = vpop.f32.mrb[0].mxu0
        %v3972 = vpop.f32.mrb[0].mxu0
        %v3973 = vadd.f32 0.0, %v3972
        %v3974 = vpop.f32.mrb[0].mxu0
        %3975 = vmatprep.mubr.bf16.mxu0 0
        %3976 = vmatmul.mubr.bf16.gmra.mrb[0].mxu0 %v2508
        %v3977 = vpop.f32.mrb[0].mxu0
        %v3978 = vadd.f32 0.0, %v3977
        %v3979 = vpop.f32.mrb[0].mxu0
        %v3980 = vpop.f32.mrb[0].mxu0
        %v3981 = vadd.f32 0.0, %v3980
        %v3982 = vpop.f32.mrb[0].mxu0
        %3983 = vmatprep.mubr.bf16.mxu0 0
        %3984 = vmatmul.mubr.bf16.gmra.mrb[0].mxu0 %v2511
        %v3985 = vpop.f32.mrb[0].mxu0
        %v3986 = vadd.f32 0.0, %v3985
        %v3987 = vpop.f32.mrb[0].mxu0
        %v3988 = vpop.f32.mrb[0].mxu0
        %v3989 = vadd.f32 0.0, %v3988
        %v3990 = vpop.f32.mrb[0].mxu0
        %3991 = vmatprep.mubr.bf16.mxu0 0
        %3992 = vmatmul.mubr.bf16.gmra.mrb[0].mxu0 %v2514
        %v3993 = vpop.f32.mrb[0].mxu0
        %v3994 = vadd.f32 0.0, %v3993
        %v3995 = vpop.f32.mrb[0].mxu0
        %v3996 = vpop.f32.mrb[0].mxu0
        %v3997 = vadd.f32 0.0, %v3996
        %v3998 = vpop.f32.mrb[0].mxu0
        %3999 = vmatprep.mubr.bf16.mxu0 0
        %4000 = vmatmul.mubr.bf16.gmra.mrb[0].mxu0 %v2517
        %v4001 = vpop.f32.mrb[0].mxu0
        %v4002 = vadd.f32 0.0, %v4001
        %v4003 = vpop.f32.mrb[0].mxu0
        %v4004 = vpop.f32.mrb[0].mxu0
        %v4005 = vadd.f32 0.0, %v4004
        %v4006 = vpop.f32.mrb[0].mxu0
        %4007 = vmatprep.mubr.bf16.mxu0 0
        %4008 = vmatmul.mubr.bf16.gmra.mrb[0].mxu0 %v2520
        %v4009 = vpop.f32.mrb[0].mxu0
        %v4010 = vadd.f32 0.0, %v4009
        %v4011 = vpop.f32.mrb[0].mxu0
        %v4012 = vpop.f32.mrb[0].mxu0
        %v4013 = vadd.f32 0.0, %v4012
        %v4014 = vpop.f32.mrb[0].mxu0
        %4015 = vmatprep.mubr.bf16.mxu0 0
        %4016 = vmatmul.mubr.bf16.gmra.mrb[0].mxu0 %v2523
        %v4017 = vpop.f32.mrb[0].mxu0
        %v4018 = vadd.f32 0.0, %v4017
        %v4019 = vpop.f32.mrb[0].mxu0
        %v4020 = vpop.f32.mrb[0].mxu0
        %v4021 = vadd.f32 0.0, %v4020
        %v4022 = vpop.f32.mrb[0].mxu0
        %4023 = vmatprep.mubr.bf16.mxu0 0
        %4024 = vmatmul.mubr.bf16.gmra.mrb[0].mxu0 %v2526
        %v4025 = vpop.f32.mrb[0].mxu0
        %v4026 = vadd.f32 0.0, %v4025
        %v4027 = vpop.f32.mrb[0].mxu0
        %v4028 = vpop.f32.mrb[0].mxu0
        %v4029 = vadd.f32 0.0, %v4028
        %v4030 = vpop.f32.mrb[0].mxu0
        %4031 = vmatprep.mubr.bf16.mxu0 0
        %4032 = vmatmul.mubr.bf16.gmra.mrb[0].mxu0 %v2529
        %v4033 = vpop.f32.mrb[0].mxu0
        %v4034 = vadd.f32 0.0, %v4033
        %v4035 = vpop.f32.mrb[0].mxu0
        %v4036 = vpop.f32.mrb[0].mxu0
        %v4037 = vadd.f32 0.0, %v4036
        %v4038 = vpop.f32.mrb[0].mxu0
        %4039 = vmatprep.mubr.bf16.mxu0 0
        %4040 = vmatmul.mubr.bf16.gmra.mrb[0].mxu0 %v2532
        %v4041 = vpop.f32.mrb[0].mxu0
        %v4042 = vadd.f32 0.0, %v4041
        %v4043 = vpop.f32.mrb[0].mxu0
        %v4044 = vpop.f32.mrb[0].mxu0
        %v4045 = vadd.f32 0.0, %v4044
        %v4046 = vpop.f32.mrb[0].mxu0
        %4047 = vmatprep.mubr.bf16.mxu0 0
        %4048 = vmatmul.mubr.bf16.gmra.mrb[0].mxu0 %v3353
        %v4049 = vpop.f32.mrb[0].mxu0
        %v4050 = vadd.f32 0.0, %v4049
        %v4051 = vpop.f32.mrb[0].mxu0
        %v4052 = vpop.f32.mrb[0].mxu0
        %v4053 = vadd.f32 0.0, %v4052
        %v4054 = vpop.f32.mrb[0].mxu0
        %4055 = vmatprep.mubr.bf16.mxu0 0
        %4056 = vmatmul.mubr.bf16.gmra.mrb[0].mxu0 %v3933
        %v4057 = vpop.f32.mrb[0].mxu0
        %v4058 = vadd.f32 0.0, %v4057
        %v4059 = vpop.f32.mrb[0].mxu0
        %v4060 = vpop.f32.mrb[0].mxu0
        %v4061 = vadd.f32 0.0, %v4060
        %v4062 = vpop.f32.mrb[0].mxu0
        %4063 = vdwg.mxu0
        %v4064 = vadd.f32 %v3865, %v3970
        %v4065 = vadd.f32 %v3866, %v3973
        %v4066 = vadd.f32 %v3867, %v3978
        %v4067 = vadd.f32 %v3868, %v3981
        %v4068 = vadd.f32 %v3869, %v3986
        %v4069 = vadd.f32 %v3870, %v3989
        %v4070 = vadd.f32 %v3871, %v3994
        %v4071 = vadd.f32 %v3872, %v3997
        %v4072 = vadd.f32 %v3873, %v4002
        %v4073 = vadd.f32 %v3874, %v4005
        %v4074 = vadd.f32 %v3875, %v4010
        %v4075 = vadd.f32 %v3876, %v4013
        %v4076 = vadd.f32 %v3877, %v4018
        %v4077 = vadd.f32 %v3878, %v4021
        %v4078 = vadd.f32 %v3879, %v4026
        %v4079 = vadd.f32 %v3880, %v4029
        %v4080 = vadd.f32 %v3881, %v4034
        %v4081 = vadd.f32 %v3882, %v4037
        %v4082 = vadd.f32 %v3883, %v4042
        %v4083 = vadd.f32 %v3884, %v4045
        %v4084 = vadd.f32 %v3885, %v4050
        %v4085 = vadd.f32 %v3886, %v4053
        %v4086 = vadd.f32 %v3887, %v4058
        %v4087 = vadd.f32 %v3888, %v4061
        %v4090 = vrot.slane %v2298, 1
        %v4091 = vrot.slane %v2312, 1
        %v4092 = vsel %vm1214, %v4090, %v4091
        %v4093 = vld [vmem:[%s3 + $0x100] sm:$0xf]
        %v4094 = vld [vmem:[%s3 + $0x104] sm:$0xf]
        %v4095 = vld [vmem:[%s3 + $0x108] sm:$0xf]
        %v4096 = vld [vmem:[%s3 + $0x10c] sm:$0xf]
        %v4097 = vld [vmem:[%s3 + $0x110] sm:$0xf]
        %v4098 = vld [vmem:[%s3 + $0x114] sm:$0xf]
        %v4099 = vld [vmem:[%s3 + $0x118] sm:$0xf]
        %v4100 = vld [vmem:[%s3 + $0x11c] sm:$0xf]
        %v4109 = vunpack.c.l.b16 %v4093
        %v4110 = vunpack.c.l.b16 %v4094
        %v4111 = vunpack.c.l.b16 %v4095
        %v4112 = vunpack.c.l.b16 %v4096
        %v4113 = vunpack.c.l.b16 %v4097
        %v4114 = vunpack.c.l.b16 %v4098
        %v4115 = vunpack.c.l.b16 %v4099
        %v4116 = vunpack.c.l.b16 %v4100
        %v4117 = vpack.c.b16 %v4110, %v4109
        %v4118 = vpack.c.b16 %v4112, %v4111
        %v4119 = vpack.c.b16 %v4114, %v4113
        %v4120 = vpack.c.b16 %v4116, %v4115
        %v4126 = vsel %vm2497, %v4092, 0
        %4128 = vmatprep.subr.bf16.mxu0 0
        %4129 = vmatpush1.bf16.msra.mxu0 %v4117
        %4130 = vmatprep.subr.bf16.mxu0 0
        %4131 = vmatpush1.bf16.msra.mxu0 %v4118
        %4132 = vmatprep.subr.bf16.mxu0 0
        %4133 = vmatpush1.bf16.msra.mxu0 %v4119
        %4134 = vmatprep.subr.bf16.mxu0 0
        %4135 = vmatpush1.bf16.msra.mxu0 %v4120
        %4136 = vmatprep.subr.bf16.mxu0 0
        %4137 = vmatpush1.bf16.msra.mxu0 0
        %4138 = vmatprep.subr.bf16.mxu0 0
        %4139 = vmatpush1.bf16.msra.mxu0 0
        %4140 = vmatprep.subr.bf16.mxu0 0
        %4141 = vmatpush1.bf16.msra.mxu0 0
        %4142 = vmatprep.subr.bf16.mxu0 0
        %4143 = vmatpush1.bf16.msra.mxu0 0
        %4144 = vmatprep.subr.bf16.mxu0 0
        %4145 = vmatpush1.bf16.msra.mxu0 0
        %4146 = vmatprep.subr.bf16.mxu0 0
        %4147 = vmatpush1.bf16.msra.mxu0 0
        %4148 = vmatprep.subr.bf16.mxu0 0
        %4149 = vmatpush1.bf16.msra.mxu0 0
        %4150 = vmatprep.subr.bf16.mxu0 0
        %4151 = vmatpush1.bf16.msra.mxu0 0
        %4152 = vmatprep.subr.bf16.mxu0 0
        %4153 = vmatpush1.bf16.msra.mxu0 0
        %4154 = vmatprep.subr.bf16.mxu0 0
        %4155 = vmatpush1.bf16.msra.mxu0 0
        %4156 = vmatprep.subr.bf16.mxu0 0
        %4157 = vmatpush1.bf16.msra.mxu0 0
        %4158 = vmatprep.subr.bf16.mxu0 0
        %4159 = vmatpush1.bf16.msra.mxu0 0
        %4160 = vmatprep.mubr.bf16.mxu0 0
        %4161 = vmatmul.mubr.bf16.gmra.mrb[0].mxu0 %v2939
        %v4162 = vpop.f32.mrb[0].mxu0
        %v4163 = vadd.f32 0.0, %v4162
        %v4164 = vpop.f32.mrb[0].mxu0
        %v4165 = vpop.f32.mrb[0].mxu0
        %v4166 = vadd.f32 0.0, %v4165
        %v4167 = vpop.f32.mrb[0].mxu0
        %4168 = vmatprep.mubr.bf16.mxu0 0
        %4169 = vmatmul.mubr.bf16.gmra.mrb[0].mxu0 %v2942
        %v4170 = vpop.f32.mrb[0].mxu0
        %v4171 = vadd.f32 0.0, %v4170
        %v4172 = vpop.f32.mrb[0].mxu0
        %v4173 = vpop.f32.mrb[0].mxu0
        %v4174 = vadd.f32 0.0, %v4173
        %v4175 = vpop.f32.mrb[0].mxu0
        %4176 = vmatprep.mubr.bf16.mxu0 0
        %4177 = vmatmul.mubr.bf16.gmra.mrb[0].mxu0 %v2945
        %v4178 = vpop.f32.mrb[0].mxu0
        %v4179 = vadd.f32 0.0, %v4178
        %v4180 = vpop.f32.mrb[0].mxu0
        %v4181 = vpop.f32.mrb[0].mxu0
        %v4182 = vadd.f32 0.0, %v4181
        %v4183 = vpop.f32.mrb[0].mxu0
        %4184 = vmatprep.mubr.bf16.mxu0 0
        %4185 = vmatmul.mubr.bf16.gmra.mrb[0].mxu0 %v2948
        %v4186 = vpop.f32.mrb[0].mxu0
        %v4187 = vadd.f32 0.0, %v4186
        %v4188 = vpop.f32.mrb[0].mxu0
        %v4189 = vpop.f32.mrb[0].mxu0
        %v4190 = vadd.f32 0.0, %v4189
        %v4191 = vpop.f32.mrb[0].mxu0
        %4192 = vmatprep.mubr.bf16.mxu0 0
        %4193 = vmatmul.mubr.bf16.gmra.mrb[0].mxu0 %v2951
        %v4194 = vpop.f32.mrb[0].mxu0
        %v4195 = vadd.f32 0.0, %v4194
        %v4196 = vpop.f32.mrb[0].mxu0
        %v4197 = vpop.f32.mrb[0].mxu0
        %v4198 = vadd.f32 0.0, %v4197
        %v4199 = vpop.f32.mrb[0].mxu0
        %4200 = vmatprep.mubr.bf16.mxu0 0
        %4201 = vmatmul.mubr.bf16.gmra.mrb[0].mxu0 %v2954
        %v4202 = vpop.f32.mrb[0].mxu0
        %v4203 = vadd.f32 0.0, %v4202
        %v4204 = vpop.f32.mrb[0].mxu0
        %v4205 = vpop.f32.mrb[0].mxu0
        %v4206 = vadd.f32 0.0, %v4205
        %v4207 = vpop.f32.mrb[0].mxu0
        %4208 = vmatprep.mubr.bf16.mxu0 0
        %4209 = vmatmul.mubr.bf16.gmra.mrb[0].mxu0 %v2957
        %v4210 = vpop.f32.mrb[0].mxu0
        %v4211 = vadd.f32 0.0, %v4210
        %v4212 = vpop.f32.mrb[0].mxu0
        %v4213 = vpop.f32.mrb[0].mxu0
        %v4214 = vadd.f32 0.0, %v4213
        %v4215 = vpop.f32.mrb[0].mxu0
        %4216 = vmatprep.mubr.bf16.mxu0 0
        %4217 = vmatmul.mubr.bf16.gmra.mrb[0].mxu0 %v2960
        %v4218 = vpop.f32.mrb[0].mxu0
        %v4219 = vadd.f32 0.0, %v4218
        %v4220 = vpop.f32.mrb[0].mxu0
        %v4221 = vpop.f32.mrb[0].mxu0
        %v4222 = vadd.f32 0.0, %v4221
        %v4223 = vpop.f32.mrb[0].mxu0
        %4224 = vmatprep.mubr.bf16.mxu0 0
        %4225 = vmatmul.mubr.bf16.gmra.mrb[0].mxu0 %v2963
        %v4226 = vpop.f32.mrb[0].mxu0
        %v4227 = vadd.f32 0.0, %v4226
        %v4228 = vpop.f32.mrb[0].mxu0
        %v4229 = vpop.f32.mrb[0].mxu0
        %v4230 = vadd.f32 0.0, %v4229
        %v4231 = vpop.f32.mrb[0].mxu0
        %4232 = vmatprep.mubr.bf16.mxu0 0
        %4233 = vmatmul.mubr.bf16.gmra.mrb[0].mxu0 %v2966
        %v4234 = vpop.f32.mrb[0].mxu0
        %v4235 = vadd.f32 0.0, %v4234
        %v4236 = vpop.f32.mrb[0].mxu0
        %v4237 = vpop.f32.mrb[0].mxu0
        %v4238 = vadd.f32 0.0, %v4237
        %v4239 = vpop.f32.mrb[0].mxu0
        %4240 = vmatprep.mubr.bf16.mxu0 0
        %4241 = vmatmul.mubr.bf16.gmra.mrb[0].mxu0 %v3546
        %v4242 = vpop.f32.mrb[0].mxu0
        %v4243 = vadd.f32 0.0, %v4242
        %v4244 = vpop.f32.mrb[0].mxu0
        %v4245 = vpop.f32.mrb[0].mxu0
        %v4246 = vadd.f32 0.0, %v4245
        %v4247 = vpop.f32.mrb[0].mxu0
        %4248 = vmatprep.mubr.bf16.mxu0 0
        %4249 = vmatmul.mubr.bf16.gmra.mrb[0].mxu0 %v4126
        %v4250 = vpop.f32.mrb[0].mxu0
        %v4251 = vadd.f32 0.0, %v4250
        %v4252 = vpop.f32.mrb[0].mxu0
        %v4253 = vpop.f32.mrb[0].mxu0
        %v4254 = vadd.f32 0.0, %v4253
        %v4255 = vpop.f32.mrb[0].mxu0
        %4256 = vdwg.mxu0
        %v4257 = vadd.f32 %v4064, %v4163
        %v4258 = vadd.f32 %v4065, %v4166
        %v4259 = vadd.f32 %v4066, %v4171
        %v4260 = vadd.f32 %v4067, %v4174
        %v4261 = vadd.f32 %v4068, %v4179
        %v4262 = vadd.f32 %v4069, %v4182
        %v4263 = vadd.f32 %v4070, %v4187
        %v4264 = vadd.f32 %v4071, %v4190
        %v4265 = vadd.f32 %v4072, %v4195
        %v4266 = vadd.f32 %v4073, %v4198
        %v4267 = vadd.f32 %v4074, %v4203
        %v4268 = vadd.f32 %v4075, %v4206
        %v4269 = vadd.f32 %v4076, %v4211
        %v4270 = vadd.f32 %v4077, %v4214
        %v4271 = vadd.f32 %v4078, %v4219
        %v4272 = vadd.f32 %v4079, %v4222
        %v4273 = vadd.f32 %v4080, %v4227
        %v4274 = vadd.f32 %v4081, %v4230
        %v4275 = vadd.f32 %v4082, %v4235
        %v4276 = vadd.f32 %v4083, %v4238
        %v4277 = vadd.f32 %v4084, %v4243
        %v4278 = vadd.f32 %v4085, %v4246
        %v4279 = vadd.f32 %v4086, %v4251
        %v4280 = vadd.f32 %v4087, %v4254
        %v4281 = vld [vmem:[%s4] sm:$0x1]
        %v4283 = vlaneseq
        %v4284 = vshrl.u32 %v4283, 7
        %v4285 = vsub.s32 0, %v4284
        %v4286 = vrot.slane %v4281, %v4285
        %v4288 = vadd.f32 %v4257, %v4286
        %v4289 = vadd.f32 %v4258, %v4286
        %v4290 = vadd.f32 %v4259, %v4286
        %v4291 = vadd.f32 %v4260, %v4286
        %v4292 = vadd.f32 %v4261, %v4286
        %v4293 = vadd.f32 %v4262, %v4286
        %v4294 = vadd.f32 %v4263, %v4286
        %v4295 = vadd.f32 %v4264, %v4286
        %v4296 = vadd.f32 %v4265, %v4286
        %v4297 = vadd.f32 %v4266, %v4286
        %v4298 = vadd.f32 %v4267, %v4286
        %v4299 = vadd.f32 %v4268, %v4286
        %v4300 = vadd.f32 %v4269, %v4286
        %v4301 = vadd.f32 %v4270, %v4286
        %v4302 = vadd.f32 %v4271, %v4286
        %v4303 = vadd.f32 %v4272, %v4286
        %v4304 = vadd.f32 %v4273, %v4286
        %v4305 = vadd.f32 %v4274, %v4286
        %v4306 = vadd.f32 %v4275, %v4286
        %v4307 = vadd.f32 %v4276, %v4286
        %v4308 = vadd.f32 %v4277, %v4286
        %v4309 = vadd.f32 %v4278, %v4286
        %v4310 = vadd.f32 %v4279, %v4286
        %v4311 = vadd.f32 %v4280, %v4286
        %v4312 = vmax.f32 %v4288, 0.0
        %v4313 = vmax.f32 %v4289, 0.0
        %v4314 = vmax.f32 %v4290, 0.0
        %v4315 = vmax.f32 %v4291, 0.0
        %v4316 = vmax.f32 %v4292, 0.0
        %v4317 = vmax.f32 %v4293, 0.0
        %v4318 = vmax.f32 %v4294, 0.0
        %v4319 = vmax.f32 %v4295, 0.0
        %v4320 = vmax.f32 %v4296, 0.0
        %v4321 = vmax.f32 %v4297, 0.0
        %v4322 = vmax.f32 %v4298, 0.0
        %v4323 = vmax.f32 %v4299, 0.0
        %v4324 = vmax.f32 %v4300, 0.0
        %v4325 = vmax.f32 %v4301, 0.0
        %v4326 = vmax.f32 %v4302, 0.0
        %v4327 = vmax.f32 %v4303, 0.0
        %v4328 = vmax.f32 %v4304, 0.0
        %v4329 = vmax.f32 %v4305, 0.0
        %v4330 = vmax.f32 %v4306, 0.0
        %v4331 = vmax.f32 %v4307, 0.0
        %v4332 = vmax.f32 %v4308, 0.0
        %v4333 = vmax.f32 %v4309, 0.0
        %v4334 = vmax.f32 %v4310, 0.0
        %v4335 = vmax.f32 %v4311, 0.0
        %s4336 = ssub.s32 %s401, 2
        %v4337 = vstv %s4336
        %v4338 = vadd.s32 %v4337, 1
        %v4339 = vadd.s32 %v4337, 2
        %v4340 = vadd.s32 %v4337, 3
        %v4341 = vadd.s32 %v4337, 4
        %v4342 = vadd.s32 %v4337, 5
        %v4343 = vadd.s32 %v4337, 6
        %v4344 = vadd.s32 %v4337, 7
        %v4345 = vadd.s32 %v4337, 8
        %v4346 = vadd.s32 %v4337, 9
        %v4347 = vadd.s32 %v4337, 10
        %v4348 = vadd.s32 %v4337, 11
        %vm4349 = vcmp.ge.s32.totalorder %v4337, 0
        %vm4350 = vcmp.ge.s32.totalorder %v4338, 0
        %vm4351 = vcmp.ge.s32.totalorder %v4339, 0
        %vm4352 = vcmp.ge.s32.totalorder %v4340, 0
        %vm4353 = vcmp.ge.s32.totalorder %v4341, 0
        %vm4354 = vcmp.ge.s32.totalorder %v4342, 0
        %vm4355 = vcmp.ge.s32.totalorder %v4343, 0
        %vm4356 = vcmp.ge.s32.totalorder %v4344, 0
        %vm4357 = vcmp.ge.s32.totalorder %v4345, 0
        %vm4358 = vcmp.ge.s32.totalorder %v4346, 0
        %vm4359 = vcmp.ge.s32.totalorder %v4347, 0
        %vm4360 = vcmp.ge.s32.totalorder %v4348, 0
        %vm4361 = vcmp.lt.s32.totalorder %v4337, 16
        %vm4362 = vcmp.lt.s32.totalorder %v4338, 16
        %vm4363 = vcmp.lt.s32.totalorder %v4339, 16
        %vm4364 = vcmp.lt.s32.totalorder %v4340, 16
        %vm4365 = vcmp.lt.s32.totalorder %v4341, 16
        %vm4366 = vcmp.lt.s32.totalorder %v4342, 16
        %vm4367 = vcmp.lt.s32.totalorder %v4343, 16
        %vm4368 = vcmp.lt.s32.totalorder %v4344, 16
        %vm4369 = vcmp.lt.s32.totalorder %v4345, 16
        %vm4370 = vcmp.lt.s32.totalorder %v4346, 16
        %vm4371 = vcmp.lt.s32.totalorder %v4347, 16
        %vm4372 = vcmp.lt.s32.totalorder %v4348, 16
        %vm4373 = vmand %vm4349, %vm4361
        %vm4374 = vmand %vm4350, %vm4362
        %vm4375 = vmand %vm4351, %vm4363
        %vm4376 = vmand %vm4352, %vm4364
        %vm4377 = vmand %vm4353, %vm4365
        %vm4378 = vmand %vm4354, %vm4366
        %vm4379 = vmand %vm4355, %vm4367
        %vm4380 = vmand %vm4356, %vm4368
        %vm4381 = vmand %vm4357, %vm4369
        %vm4382 = vmand %vm4358, %vm4370
        %vm4383 = vmand %vm4359, %vm4371
        %vm4384 = vmand %vm4360, %vm4372
        %v4385 = vsel %vm4373, 1, 0
        %v4386 = vsel %vm4374, 1, 0
        %v4387 = vsel %vm4375, 1, 0
        %v4388 = vsel %vm4376, 1, 0
        %v4389 = vsel %vm4377, 1, 0
        %v4390 = vsel %vm4378, 1, 0
        %v4391 = vsel %vm4379, 1, 0
        %v4392 = vsel %vm4380, 1, 0
        %v4393 = vsel %vm4381, 1, 0
        %v4394 = vsel %vm4382, 1, 0
        %v4395 = vsel %vm4383, 1, 0
        %v4396 = vsel %vm4384, 1, 0
        %v4397 = vcvt.s32.f32 %v4385
        %v4398 = vcvt.s32.f32 %v4386
        %v4399 = vcvt.s32.f32 %v4387
        %v4400 = vcvt.s32.f32 %v4388
        %v4401 = vcvt.s32.f32 %v4389
        %v4402 = vcvt.s32.f32 %v4390
        %v4403 = vcvt.s32.f32 %v4391
        %v4404 = vcvt.s32.f32 %v4392
        %v4405 = vcvt.s32.f32 %v4393
        %v4406 = vcvt.s32.f32 %v4394
        %v4407 = vcvt.s32.f32 %v4395
        %v4408 = vcvt.s32.f32 %v4396
        %v4409 = vmul.f32 %v4312, %v4397
        %v4410 = vmul.f32 %v4313, %v4397
        %v4411 = vmul.f32 %v4314, %v4398
        %v4412 = vmul.f32 %v4315, %v4398
        %v4413 = vmul.f32 %v4316, %v4399
        %v4414 = vmul.f32 %v4317, %v4399
        %v4415 = vmul.f32 %v4318, %v4400
        %v4416 = vmul.f32 %v4319, %v4400
        %v4417 = vmul.f32 %v4320, %v4401
        %v4418 = vmul.f32 %v4321, %v4401
        %v4419 = vmul.f32 %v4322, %v4402
        %v4420 = vmul.f32 %v4323, %v4402
        %v4421 = vmul.f32 %v4324, %v4403
        %v4422 = vmul.f32 %v4325, %v4403
        %v4423 = vmul.f32 %v4326, %v4404
        %v4424 = vmul.f32 %v4327, %v4404
        %v4425 = vmul.f32 %v4328, %v4405
        %v4426 = vmul.f32 %v4329, %v4405
        %v4427 = vmul.f32 %v4330, %v4406
        %v4428 = vmul.f32 %v4331, %v4406
        %v4429 = vmul.f32 %v4332, %v4407
        %v4430 = vmul.f32 %v4333, %v4407
        %v4431 = vmul.f32 %v4334, %v4408
        %v4432 = vmul.f32 %v4335, %v4408
        %v4433 = vpack.c.bf16 %v4410, %v4409
        %v4434 = vpack.c.bf16 %v4412, %v4411
        %v4435 = vpack.c.bf16 %v4414, %v4413
        %v4436 = vpack.c.bf16 %v4416, %v4415
        %v4437 = vpack.c.bf16 %v4418, %v4417
        %v4438 = vpack.c.bf16 %v4420, %v4419
        %v4439 = vpack.c.bf16 %v4422, %v4421
        %v4440 = vpack.c.bf16 %v4424, %v4423
        %v4441 = vpack.c.bf16 %v4426, %v4425
        %v4442 = vpack.c.bf16 %v4428, %v4427
        %v4443 = vpack.c.bf16 %v4430, %v4429
        %v4444 = vpack.c.bf16 %v4432, %v4431
        %v4446 = vshrl.u32 %v4433, 16
        %v4448 = vrot.slane %v4446, 7
        %v4449 = vshll.u32 %v4433, 16
        %v4451 = vor.u32 %v4448, %v4449
        %v4453 = vshrl.u32 %v4434, 16
        %v4455 = vrot.slane %v4453, 7
        %v4456 = vshll.u32 %v4434, 16
        %v4458 = vor.u32 %v4455, %v4456
        %v4460 = vshrl.u32 %v4435, 16
        %v4462 = vrot.slane %v4460, 7
        %v4463 = vshll.u32 %v4435, 16
        %v4465 = vor.u32 %v4462, %v4463
        %v4467 = vshrl.u32 %v4436, 16
        %v4469 = vrot.slane %v4467, 7
        %v4470 = vshll.u32 %v4436, 16
        %v4472 = vor.u32 %v4469, %v4470
        %v4474 = vshrl.u32 %v4437, 16
        %v4476 = vrot.slane %v4474, 7
        %v4477 = vshll.u32 %v4437, 16
        %v4479 = vor.u32 %v4476, %v4477
        %v4481 = vshrl.u32 %v4438, 16
        %v4483 = vrot.slane %v4481, 7
        %v4484 = vshll.u32 %v4438, 16
        %v4486 = vor.u32 %v4483, %v4484
        %v4488 = vshrl.u32 %v4439, 16
        %v4490 = vrot.slane %v4488, 7
        %v4491 = vshll.u32 %v4439, 16
        %v4493 = vor.u32 %v4490, %v4491
        %v4495 = vshrl.u32 %v4440, 16
        %v4497 = vrot.slane %v4495, 7
        %v4498 = vshll.u32 %v4440, 16
        %v4500 = vor.u32 %v4497, %v4498
        %v4502 = vshrl.u32 %v4441, 16
        %v4504 = vrot.slane %v4502, 7
        %v4505 = vshll.u32 %v4441, 16
        %v4507 = vor.u32 %v4504, %v4505
        %v4509 = vshrl.u32 %v4442, 16
        %v4511 = vrot.slane %v4509, 7
        %v4512 = vshll.u32 %v4442, 16
        %v4514 = vor.u32 %v4511, %v4512
        %v4516 = vshrl.u32 %v4443, 16
        %v4518 = vrot.slane %v4516, 7
        %v4519 = vshll.u32 %v4443, 16
        %v4521 = vor.u32 %v4518, %v4519
        %v4523 = vshrl.u32 %v4444, 16
        %v4525 = vrot.slane %v4523, 7
        %v4526 = vshll.u32 %v4444, 16
        %v4528 = vor.u32 %v4525, %v4526
        %v4553 = vsel %vm784, 0, %v4451
        %v4554 = vsel %vm784, 0, %v4458
        %v4555 = vsel %vm784, 0, %v4465
        %v4556 = vsel %vm784, 0, %v4472
        %v4557 = vsel %vm784, 0, %v4479
        %v4558 = vsel %vm784, 0, %v4486
        %v4559 = vsel %vm784, 0, %v4493
        %v4560 = vsel %vm784, 0, %v4500
        %v4561 = vsel %vm784, 0, %v4507
        %v4562 = vsel %vm784, 0, %v4514
        %v4563 = vsel %vm784, 0, %v4521
        %v4564 = vsel %vm784, 0, %v4528
        %v4565 = vsel %vm784, %v4448, 0
        %v4566 = vsel %vm784, %v4455, 0
        %v4567 = vsel %vm784, %v4462, 0
        %v4568 = vsel %vm784, %v4469, 0
        %v4569 = vsel %vm784, %v4476, 0
        %v4570 = vsel %vm784, %v4483, 0
        %v4571 = vsel %vm784, %v4490, 0
        %v4572 = vsel %vm784, %v4497, 0
        %v4573 = vsel %vm784, %v4504, 0
        %v4574 = vsel %vm784, %v4511, 0
        %v4575 = vsel %vm784, %v4518, 0
        %v4576 = vsel %vm784, %v4525, 0
        %v4577 = vld [vmem:[%s5] sm:$0xf]
        %v4578 = vld [vmem:[%s5 + $0x4] sm:$0xf]
        %v4579 = vld [vmem:[%s5 + $0x8] sm:$0xf]
        %v4580 = vld [vmem:[%s5 + $0xc] sm:$0xf]
        %v4581 = vld [vmem:[%s5 + $0x10] sm:$0xf]
        %v4582 = vld [vmem:[%s5 + $0x14] sm:$0xf]
        %v4583 = vld [vmem:[%s5 + $0x18] sm:$0xf]
        %v4584 = vld [vmem:[%s5 + $0x1c] sm:$0xf]
        %v4586 = vshrl.u32 %v4553, 16
        %v4588 = vshll.u32 %v4553, 16
        %v4590 = vrot.slane %v4588, 1
        %v4591 = vor.u32 %v4586, %v4590
        %v4593 = vshll.u32 %v4565, 16
        %v4595 = vrot.slane %v4593, 1
        %v4596 = vsel %vm1277, %v4591, %v4595
        %v4598 = vshrl.u32 %v4554, 16
        %v4600 = vshll.u32 %v4554, 16
        %v4602 = vrot.slane %v4600, 1
        %v4603 = vor.u32 %v4598, %v4602
        %v4605 = vshll.u32 %v4566, 16
        %v4607 = vrot.slane %v4605, 1
        %v4608 = vsel %vm1277, %v4603, %v4607
        %v4610 = vshrl.u32 %v4555, 16
        %v4612 = vshll.u32 %v4555, 16
        %v4614 = vrot.slane %v4612, 1
        %v4615 = vor.u32 %v4610, %v4614
        %v4617 = vshll.u32 %v4567, 16
        %v4619 = vrot.slane %v4617, 1
        %v4620 = vsel %vm1277, %v4615, %v4619
        %v4622 = vshrl.u32 %v4556, 16
        %v4624 = vshll.u32 %v4556, 16
        %v4626 = vrot.slane %v4624, 1
        %v4627 = vor.u32 %v4622, %v4626
        %v4629 = vshll.u32 %v4568, 16
        %v4631 = vrot.slane %v4629, 1
        %v4632 = vsel %vm1277, %v4627, %v4631
        %v4634 = vshrl.u32 %v4557, 16
        %v4636 = vshll.u32 %v4557, 16
        %v4638 = vrot.slane %v4636, 1
        %v4639 = vor.u32 %v4634, %v4638
        %v4641 = vshll.u32 %v4569, 16
        %v4643 = vrot.slane %v4641, 1
        %v4644 = vsel %vm1277, %v4639, %v4643
        %v4646 = vshrl.u32 %v4558, 16
        %v4648 = vshll.u32 %v4558, 16
        %v4650 = vrot.slane %v4648, 1
        %v4651 = vor.u32 %v4646, %v4650
        %v4653 = vshll.u32 %v4570, 16
        %v4655 = vrot.slane %v4653, 1
        %v4656 = vsel %vm1277, %v4651, %v4655
        %v4658 = vshrl.u32 %v4559, 16
        %v4660 = vshll.u32 %v4559, 16
        %v4662 = vrot.slane %v4660, 1
        %v4663 = vor.u32 %v4658, %v4662
        %v4665 = vshll.u32 %v4571, 16
        %v4667 = vrot.slane %v4665, 1
        %v4668 = vsel %vm1277, %v4663, %v4667
        %v4670 = vshrl.u32 %v4560, 16
        %v4672 = vshll.u32 %v4560, 16
        %v4674 = vrot.slane %v4672, 1
        %v4675 = vor.u32 %v4670, %v4674
        %v4677 = vshll.u32 %v4572, 16
        %v4679 = vrot.slane %v4677, 1
        %v4680 = vsel %vm1277, %v4675, %v4679
        %v4682 = vshrl.u32 %v4561, 16
        %v4684 = vshll.u32 %v4561, 16
        %v4686 = vrot.slane %v4684, 1
        %v4687 = vor.u32 %v4682, %v4686
        %v4689 = vshll.u32 %v4573, 16
        %v4691 = vrot.slane %v4689, 1
        %v4692 = vsel %vm1277, %v4687, %v4691
        %v4694 = vshrl.u32 %v4562, 16
        %v4696 = vshll.u32 %v4562, 16
        %v4698 = vrot.slane %v4696, 1
        %v4699 = vor.u32 %v4694, %v4698
        %v4701 = vshll.u32 %v4574, 16
        %v4703 = vrot.slane %v4701, 1
        %v4704 = vsel %vm1277, %v4699, %v4703
        %v4705 = vld [vmem:[%s5 + $0x20] sm:$0xf]
        %v4706 = vld [vmem:[%s5 + $0x24] sm:$0xf]
        %v4707 = vld [vmem:[%s5 + $0x28] sm:$0xf]
        %v4708 = vld [vmem:[%s5 + $0x2c] sm:$0xf]
        %v4709 = vld [vmem:[%s5 + $0x30] sm:$0xf]
        %v4710 = vld [vmem:[%s5 + $0x34] sm:$0xf]
        %v4711 = vld [vmem:[%s5 + $0x38] sm:$0xf]
        %v4712 = vld [vmem:[%s5 + $0x3c] sm:$0xf]
        %v4721 = vunpack.c.l.b16 %v4705
        %v4722 = vunpack.c.l.b16 %v4706
        %v4723 = vunpack.c.l.b16 %v4707
        %v4724 = vunpack.c.l.b16 %v4708
        %v4725 = vunpack.c.l.b16 %v4709
        %v4726 = vunpack.c.l.b16 %v4710
        %v4727 = vunpack.c.l.b16 %v4711
        %v4728 = vunpack.c.l.b16 %v4712
        %v4729 = vpack.c.b16 %v4722, %v4721
        %v4730 = vpack.c.b16 %v4724, %v4723
        %v4731 = vpack.c.b16 %v4726, %v4725
        %v4732 = vpack.c.b16 %v4728, %v4727
        %v4738 = vsel %vm2497, %v4596, 0
        %v4741 = vsel %vm2497, %v4608, 0
        %v4744 = vsel %vm2497, %v4620, 0
        %v4747 = vsel %vm2497, %v4632, 0
        %v4750 = vsel %vm2497, %v4644, 0
        %v4753 = vsel %vm2497, %v4656, 0
        %v4756 = vsel %vm2497, %v4668, 0
        %v4759 = vsel %vm2497, %v4680, 0
        %v4762 = vsel %vm2497, %v4692, 0
        %v4765 = vsel %vm2497, %v4704, 0
        %4767 = vmatprep.subr.bf16.mxu0 0
        %4768 = vmatpush1.bf16.msra.mxu0 %v4729
        %4769 = vmatprep.subr.bf16.mxu0 0
        %4770 = vmatpush1.bf16.msra.mxu0 %v4730
        %4771 = vmatprep.subr.bf16.mxu0 0
        %4772 = vmatpush1.bf16.msra.mxu0 %v4731
        %4773 = vmatprep.subr.bf16.mxu0 0
        %4774 = vmatpush1.bf16.msra.mxu0 %v4732
        %4775 = vmatprep.subr.bf16.mxu0 0
        %4776 = vmatpush1.bf16.msra.mxu0 0
        %4777 = vmatprep.subr.bf16.mxu0 0
        %4778 = vmatpush1.bf16.msra.mxu0 0
        %4779 = vmatprep.subr.bf16.mxu0 0
        %4780 = vmatpush1.bf16.msra.mxu0 0
        %4781 = vmatprep.subr.bf16.mxu0 0
        %4782 = vmatpush1.bf16.msra.mxu0 0
        %4783 = vmatprep.subr.bf16.mxu0 0
        %4784 = vmatpush1.bf16.msra.mxu0 0
        %4785 = vmatprep.subr.bf16.mxu0 0
        %4786 = vmatpush1.bf16.msra.mxu0 0
        %4787 = vmatprep.subr.bf16.mxu0 0
        %4788 = vmatpush1.bf16.msra.mxu0 0
        %4789 = vmatprep.subr.bf16.mxu0 0
        %4790 = vmatpush1.bf16.msra.mxu0 0
        %4791 = vmatprep.subr.bf16.mxu0 0
        %4792 = vmatpush1.bf16.msra.mxu0 0
        %4793 = vmatprep.subr.bf16.mxu0 0
        %4794 = vmatpush1.bf16.msra.mxu0 0
        %4795 = vmatprep.subr.bf16.mxu0 0
        %4796 = vmatpush1.bf16.msra.mxu0 0
        %4797 = vmatprep.subr.bf16.mxu0 0
        %4798 = vmatpush1.bf16.msra.mxu0 0
        %4799 = vmatprep.mubr.bf16.mxu0 0
        %4800 = vmatmul.mubr.bf16.gmra.mrb[0].mxu0 %v4738
        %v4801 = vpop.f32.mrb[0].mxu0
        %v4802 = vadd.f32 0.0, %v4801
        %v4803 = vpop.f32.mrb[0].mxu0
        %v4804 = vpop.f32.mrb[0].mxu0
        %v4805 = vadd.f32 0.0, %v4804
        %v4806 = vpop.f32.mrb[0].mxu0
        %4807 = vmatprep.mubr.bf16.mxu0 0
        %4808 = vmatmul.mubr.bf16.gmra.mrb[0].mxu0 %v4741
        %v4809 = vpop.f32.mrb[0].mxu0
        %v4810 = vadd.f32 0.0, %v4809
        %v4811 = vpop.f32.mrb[0].mxu0
        %v4812 = vpop.f32.mrb[0].mxu0
        %v4813 = vadd.f32 0.0, %v4812
        %v4814 = vpop.f32.mrb[0].mxu0
        %4815 = vmatprep.mubr.bf16.mxu0 0
        %4816 = vmatmul.mubr.bf16.gmra.mrb[0].mxu0 %v4744
        %v4817 = vpop.f32.mrb[0].mxu0
        %v4818 = vadd.f32 0.0, %v4817
        %v4819 = vpop.f32.mrb[0].mxu0
        %v4820 = vpop.f32.mrb[0].mxu0
        %v4821 = vadd.f32 0.0, %v4820
        %v4822 = vpop.f32.mrb[0].mxu0
        %4823 = vmatprep.mubr.bf16.mxu0 0
        %4824 = vmatmul.mubr.bf16.gmra.mrb[0].mxu0 %v4747
        %v4825 = vpop.f32.mrb[0].mxu0
        %v4826 = vadd.f32 0.0, %v4825
        %v4827 = vpop.f32.mrb[0].mxu0
        %v4828 = vpop.f32.mrb[0].mxu0
        %v4829 = vadd.f32 0.0, %v4828
        %v4830 = vpop.f32.mrb[0].mxu0
        %4831 = vmatprep.mubr.bf16.mxu0 0
        %4832 = vmatmul.mubr.bf16.gmra.mrb[0].mxu0 %v4750
        %v4833 = vpop.f32.mrb[0].mxu0
        %v4834 = vadd.f32 0.0, %v4833
        %v4835 = vpop.f32.mrb[0].mxu0
        %v4836 = vpop.f32.mrb[0].mxu0
        %v4837 = vadd.f32 0.0, %v4836
        %v4838 = vpop.f32.mrb[0].mxu0
        %4839 = vmatprep.mubr.bf16.mxu0 0
        %4840 = vmatmul.mubr.bf16.gmra.mrb[0].mxu0 %v4753
        %v4841 = vpop.f32.mrb[0].mxu0
        %v4842 = vadd.f32 0.0, %v4841
        %v4843 = vpop.f32.mrb[0].mxu0
        %v4844 = vpop.f32.mrb[0].mxu0
        %v4845 = vadd.f32 0.0, %v4844
        %v4846 = vpop.f32.mrb[0].mxu0
        %4847 = vmatprep.mubr.bf16.mxu0 0
        %4848 = vmatmul.mubr.bf16.gmra.mrb[0].mxu0 %v4756
        %v4849 = vpop.f32.mrb[0].mxu0
        %v4850 = vadd.f32 0.0, %v4849
        %v4851 = vpop.f32.mrb[0].mxu0
        %v4852 = vpop.f32.mrb[0].mxu0
        %v4853 = vadd.f32 0.0, %v4852
        %v4854 = vpop.f32.mrb[0].mxu0
        %4855 = vmatprep.mubr.bf16.mxu0 0
        %4856 = vmatmul.mubr.bf16.gmra.mrb[0].mxu0 %v4759
        %v4857 = vpop.f32.mrb[0].mxu0
        %v4858 = vadd.f32 0.0, %v4857
        %v4859 = vpop.f32.mrb[0].mxu0
        %v4860 = vpop.f32.mrb[0].mxu0
        %v4861 = vadd.f32 0.0, %v4860
        %v4862 = vpop.f32.mrb[0].mxu0
        %4863 = vmatprep.mubr.bf16.mxu0 0
        %4864 = vmatmul.mubr.bf16.gmra.mrb[0].mxu0 %v4762
        %v4865 = vpop.f32.mrb[0].mxu0
        %v4866 = vadd.f32 0.0, %v4865
        %v4867 = vpop.f32.mrb[0].mxu0
        %v4868 = vpop.f32.mrb[0].mxu0
        %v4869 = vadd.f32 0.0, %v4868
        %v4870 = vpop.f32.mrb[0].mxu0
        %4871 = vmatprep.mubr.bf16.mxu0 0
        %4872 = vmatmul.mubr.bf16.gmra.mrb[0].mxu0 %v4765
        %v4873 = vpop.f32.mrb[0].mxu0
        %v4874 = vadd.f32 0.0, %v4873
        %v4875 = vpop.f32.mrb[0].mxu0
        %v4876 = vpop.f32.mrb[0].mxu0
        %v4877 = vadd.f32 0.0, %v4876
        %v4878 = vpop.f32.mrb[0].mxu0
        %4879 = vdwg.mxu0
        %v4888 = vunpack.c.l.b16 %v4577
        %v4889 = vunpack.c.l.b16 %v4578
        %v4890 = vunpack.c.l.b16 %v4579
        %v4891 = vunpack.c.l.b16 %v4580
        %v4892 = vunpack.c.l.b16 %v4581
        %v4893 = vunpack.c.l.b16 %v4582
        %v4894 = vunpack.c.l.b16 %v4583
        %v4895 = vunpack.c.l.b16 %v4584
        %v4896 = vpack.c.b16 %v4889, %v4888
        %v4897 = vpack.c.b16 %v4891, %v4890
        %v4898 = vpack.c.b16 %v4893, %v4892
        %v4899 = vpack.c.b16 %v4895, %v4894
        %v4904 = vsel %vm2497, %v4553, 0
        %v4906 = vsel %vm2497, %v4554, 0
        %v4908 = vsel %vm2497, %v4555, 0
        %v4910 = vsel %vm2497, %v4556, 0
        %v4912 = vsel %vm2497, %v4557, 0
        %v4914 = vsel %vm2497, %v4558, 0
        %v4916 = vsel %vm2497, %v4559, 0
        %v4918 = vsel %vm2497, %v4560, 0
        %v4920 = vsel %vm2497, %v4561, 0
        %v4922 = vsel %vm2497, %v4562, 0
        %4924 = vmatprep.subr.bf16.mxu0 0
        %4925 = vmatpush1.bf16.msra.mxu0 %v4896
        %4926 = vmatprep.subr.bf16.mxu0 0
        %4927 = vmatpush1.bf16.msra.mxu0 %v4897
        %4928 = vmatprep.subr.bf16.mxu0 0
        %4929 = vmatpush1.bf16.msra.mxu0 %v4898
        %4930 = vmatprep.subr.bf16.mxu0 0
        %4931 = vmatpush1.bf16.msra.mxu0 %v4899
        %4932 = vmatprep.subr.bf16.mxu0 0
        %4933 = vmatpush1.bf16.msra.mxu0 0
        %4934 = vmatprep.subr.bf16.mxu0 0
        %4935 = vmatpush1.bf16.msra.mxu0 0
        %4936 = vmatprep.subr.bf16.mxu0 0
        %4937 = vmatpush1.bf16.msra.mxu0 0
        %4938 = vmatprep.subr.bf16.mxu0 0
        %4939 = vmatpush1.bf16.msra.mxu0 0
        %4940 = vmatprep.subr.bf16.mxu0 0
        %4941 = vmatpush1.bf16.msra.mxu0 0
        %4942 = vmatprep.subr.bf16.mxu0 0
        %4943 = vmatpush1.bf16.msra.mxu0 0
        %4944 = vmatprep.subr.bf16.mxu0 0
        %4945 = vmatpush1.bf16.msra.mxu0 0
        %4946 = vmatprep.subr.bf16.mxu0 0
        %4947 = vmatpush1.bf16.msra.mxu0 0
        %4948 = vmatprep.subr.bf16.mxu0 0
        %4949 = vmatpush1.bf16.msra.mxu0 0
        %4950 = vmatprep.subr.bf16.mxu0 0
        %4951 = vmatpush1.bf16.msra.mxu0 0
        %4952 = vmatprep.subr.bf16.mxu0 0
        %4953 = vmatpush1.bf16.msra.mxu0 0
        %4954 = vmatprep.subr.bf16.mxu0 0
        %4955 = vmatpush1.bf16.msra.mxu0 0
        %4956 = vmatprep.mubr.bf16.mxu0 0
        %4957 = vmatmul.mubr.bf16.gmra.mrb[0].mxu0 %v4904
        %v4958 = vpop.f32.mrb[0].mxu0
        %v4959 = vadd.f32 %v4802, %v4958
        %v4960 = vpop.f32.mrb[0].mxu0
        %v4961 = vpop.f32.mrb[0].mxu0
        %v4962 = vadd.f32 %v4805, %v4961
        %v4963 = vpop.f32.mrb[0].mxu0
        %4964 = vmatprep.mubr.bf16.mxu0 0
        %4965 = vmatmul.mubr.bf16.gmra.mrb[0].mxu0 %v4906
        %v4966 = vpop.f32.mrb[0].mxu0
        %v4967 = vadd.f32 %v4810, %v4966
        %v4968 = vpop.f32.mrb[0].mxu0
        %v4969 = vpop.f32.mrb[0].mxu0
        %v4970 = vadd.f32 %v4813, %v4969
        %v4971 = vpop.f32.mrb[0].mxu0
        %4972 = vmatprep.mubr.bf16.mxu0 0
        %4973 = vmatmul.mubr.bf16.gmra.mrb[0].mxu0 %v4908
        %v4974 = vpop.f32.mrb[0].mxu0
        %v4975 = vadd.f32 %v4818, %v4974
        %v4976 = vpop.f32.mrb[0].mxu0
        %v4977 = vpop.f32.mrb[0].mxu0
        %v4978 = vadd.f32 %v4821, %v4977
        %v4979 = vpop.f32.mrb[0].mxu0
        %4980 = vmatprep.mubr.bf16.mxu0 0
        %4981 = vmatmul.mubr.bf16.gmra.mrb[0].mxu0 %v4910
        %v4982 = vpop.f32.mrb[0].mxu0
        %v4983 = vadd.f32 %v4826, %v4982
        %v4984 = vpop.f32.mrb[0].mxu0
        %v4985 = vpop.f32.mrb[0].mxu0
        %v4986 = vadd.f32 %v4829, %v4985
        %v4987 = vpop.f32.mrb[0].mxu0
        %4988 = vmatprep.mubr.bf16.mxu0 0
        %4989 = vmatmul.mubr.bf16.gmra.mrb[0].mxu0 %v4912
        %v4990 = vpop.f32.mrb[0].mxu0
        %v4991 = vadd.f32 %v4834, %v4990
        %v4992 = vpop.f32.mrb[0].mxu0
        %v4993 = vpop.f32.mrb[0].mxu0
        %v4994 = vadd.f32 %v4837, %v4993
        %v4995 = vpop.f32.mrb[0].mxu0
        %4996 = vmatprep.mubr.bf16.mxu0 0
        %4997 = vmatmul.mubr.bf16.gmra.mrb[0].mxu0 %v4914
        %v4998 = vpop.f32.mrb[0].mxu0
        %v4999 = vadd.f32 %v4842, %v4998
        %v5000 = vpop.f32.mrb[0].mxu0
        %v5001 = vpop.f32.mrb[0].mxu0
        %v5002 = vadd.f32 %v4845, %v5001
        %v5003 = vpop.f32.mrb[0].mxu0
        %5004 = vmatprep.mubr.bf16.mxu0 0
        %5005 = vmatmul.mubr.bf16.gmra.mrb[0].mxu0 %v4916
        %v5006 = vpop.f32.mrb[0].mxu0
        %v5007 = vadd.f32 %v4850, %v5006
        %v5008 = vpop.f32.mrb[0].mxu0
        %v5009 = vpop.f32.mrb[0].mxu0
        %v5010 = vadd.f32 %v4853, %v5009
        %v5011 = vpop.f32.mrb[0].mxu0
        %5012 = vmatprep.mubr.bf16.mxu0 0
        %5013 = vmatmul.mubr.bf16.gmra.mrb[0].mxu0 %v4918
        %v5014 = vpop.f32.mrb[0].mxu0
        %v5015 = vadd.f32 %v4858, %v5014
        %v5016 = vpop.f32.mrb[0].mxu0
        %v5017 = vpop.f32.mrb[0].mxu0
        %v5018 = vadd.f32 %v4861, %v5017
        %v5019 = vpop.f32.mrb[0].mxu0
        %5020 = vmatprep.mubr.bf16.mxu0 0
        %5021 = vmatmul.mubr.bf16.gmra.mrb[0].mxu0 %v4920
        %v5022 = vpop.f32.mrb[0].mxu0
        %v5023 = vadd.f32 %v4866, %v5022
        %v5024 = vpop.f32.mrb[0].mxu0
        %v5025 = vpop.f32.mrb[0].mxu0
        %v5026 = vadd.f32 %v4869, %v5025
        %v5027 = vpop.f32.mrb[0].mxu0
        %5028 = vmatprep.mubr.bf16.mxu0 0
        %5029 = vmatmul.mubr.bf16.gmra.mrb[0].mxu0 %v4922
        %v5030 = vpop.f32.mrb[0].mxu0
        %v5031 = vadd.f32 %v4874, %v5030
        %v5032 = vpop.f32.mrb[0].mxu0
        %v5033 = vpop.f32.mrb[0].mxu0
        %v5034 = vadd.f32 %v4877, %v5033
        %v5035 = vpop.f32.mrb[0].mxu0
        %5036 = vdwg.mxu0
        %v5057 = vrot.slane %v4553, 1
        %v5058 = vrot.slane %v4565, 1
        %v5059 = vsel %vm1214, %v5057, %v5058
        %v5060 = vrot.slane %v4554, 1
        %v5061 = vrot.slane %v4566, 1
        %v5062 = vsel %vm1214, %v5060, %v5061
        %v5063 = vrot.slane %v4555, 1
        %v5064 = vrot.slane %v4567, 1
        %v5065 = vsel %vm1214, %v5063, %v5064
        %v5066 = vrot.slane %v4556, 1
        %v5067 = vrot.slane %v4568, 1
        %v5068 = vsel %vm1214, %v5066, %v5067
        %v5069 = vrot.slane %v4557, 1
        %v5070 = vrot.slane %v4569, 1
        %v5071 = vsel %vm1214, %v5069, %v5070
        %v5072 = vrot.slane %v4558, 1
        %v5073 = vrot.slane %v4570, 1
        %v5074 = vsel %vm1214, %v5072, %v5073
        %v5075 = vrot.slane %v4559, 1
        %v5076 = vrot.slane %v4571, 1
        %v5077 = vsel %vm1214, %v5075, %v5076
        %v5078 = vrot.slane %v4560, 1
        %v5079 = vrot.slane %v4572, 1
        %v5080 = vsel %vm1214, %v5078, %v5079
        %v5081 = vrot.slane %v4561, 1
        %v5082 = vrot.slane %v4573, 1
        %v5083 = vsel %vm1214, %v5081, %v5082
        %v5084 = vrot.slane %v4562, 1
        %v5085 = vrot.slane %v4574, 1
        %v5086 = vsel %vm1214, %v5084, %v5085
        %v5087 = vld [vmem:[%s5 + $0x40] sm:$0xf]
        %v5088 = vld [vmem:[%s5 + $0x44] sm:$0xf]
        %v5089 = vld [vmem:[%s5 + $0x48] sm:$0xf]
        %v5090 = vld [vmem:[%s5 + $0x4c] sm:$0xf]
        %v5091 = vld [vmem:[%s5 + $0x50] sm:$0xf]
        %v5092 = vld [vmem:[%s5 + $0x54] sm:$0xf]
        %v5093 = vld [vmem:[%s5 + $0x58] sm:$0xf]
        %v5094 = vld [vmem:[%s5 + $0x5c] sm:$0xf]
        %v5103 = vunpack.c.l.b16 %v5087
        %v5104 = vunpack.c.l.b16 %v5088
        %v5105 = vunpack.c.l.b16 %v5089
        %v5106 = vunpack.c.l.b16 %v5090
        %v5107 = vunpack.c.l.b16 %v5091
        %v5108 = vunpack.c.l.b16 %v5092
        %v5109 = vunpack.c.l.b16 %v5093
        %v5110 = vunpack.c.l.b16 %v5094
        %v5111 = vpack.c.b16 %v5104, %v5103
        %v5112 = vpack.c.b16 %v5106, %v5105
        %v5113 = vpack.c.b16 %v5108, %v5107
        %v5114 = vpack.c.b16 %v5110, %v5109
        %v5120 = vsel %vm2497, %v5059, 0
        %v5123 = vsel %vm2497, %v5062, 0
        %v5126 = vsel %vm2497, %v5065, 0
        %v5129 = vsel %vm2497, %v5068, 0
        %v5132 = vsel %vm2497, %v5071, 0
        %v5135 = vsel %vm2497, %v5074, 0
        %v5138 = vsel %vm2497, %v5077, 0
        %v5141 = vsel %vm2497, %v5080, 0
        %v5144 = vsel %vm2497, %v5083, 0
        %v5147 = vsel %vm2497, %v5086, 0
        %5149 = vmatprep.subr.bf16.mxu0 0
        %5150 = vmatpush1.bf16.msra.mxu0 %v5111
        %5151 = vmatprep.subr.bf16.mxu0 0
        %5152 = vmatpush1.bf16.msra.mxu0 %v5112
        %5153 = vmatprep.subr.bf16.mxu0 0
        %5154 = vmatpush1.bf16.msra.mxu0 %v5113
        %5155 = vmatprep.subr.bf16.mxu0 0
        %5156 = vmatpush1.bf16.msra.mxu0 %v5114
        %5157 = vmatprep.subr.bf16.mxu0 0
        %5158 = vmatpush1.bf16.msra.mxu0 0
        %5159 = vmatprep.subr.bf16.mxu0 0
        %5160 = vmatpush1.bf16.msra.mxu0 0
        %5161 = vmatprep.subr.bf16.mxu0 0
        %5162 = vmatpush1.bf16.msra.mxu0 0
        %5163 = vmatprep.subr.bf16.mxu0 0
        %5164 = vmatpush1.bf16.msra.mxu0 0
        %5165 = vmatprep.subr.bf16.mxu0 0
        %5166 = vmatpush1.bf16.msra.mxu0 0
        %5167 = vmatprep.subr.bf16.mxu0 0
        %5168 = vmatpush1.bf16.msra.mxu0 0
        %5169 = vmatprep.subr.bf16.mxu0 0
        %5170 = vmatpush1.bf16.msra.mxu0 0
        %5171 = vmatprep.subr.bf16.mxu0 0
        %5172 = vmatpush1.bf16.msra.mxu0 0
        %5173 = vmatprep.subr.bf16.mxu0 0
        %5174 = vmatpush1.bf16.msra.mxu0 0
        %5175 = vmatprep.subr.bf16.mxu0 0
        %5176 = vmatpush1.bf16.msra.mxu0 0
        %5177 = vmatprep.subr.bf16.mxu0 0
        %5178 = vmatpush1.bf16.msra.mxu0 0
        %5179 = vmatprep.subr.bf16.mxu0 0
        %5180 = vmatpush1.bf16.msra.mxu0 0
        %5181 = vmatprep.mubr.bf16.mxu0 0
        %5182 = vmatmul.mubr.bf16.gmra.mrb[0].mxu0 %v5120
        %v5183 = vpop.f32.mrb[0].mxu0
        %v5184 = vadd.f32 0.0, %v5183
        %v5185 = vpop.f32.mrb[0].mxu0
        %v5186 = vpop.f32.mrb[0].mxu0
        %v5187 = vadd.f32 0.0, %v5186
        %v5188 = vpop.f32.mrb[0].mxu0
        %5189 = vmatprep.mubr.bf16.mxu0 0
        %5190 = vmatmul.mubr.bf16.gmra.mrb[0].mxu0 %v5123
        %v5191 = vpop.f32.mrb[0].mxu0
        %v5192 = vadd.f32 0.0, %v5191
        %v5193 = vpop.f32.mrb[0].mxu0
        %v5194 = vpop.f32.mrb[0].mxu0
        %v5195 = vadd.f32 0.0, %v5194
        %v5196 = vpop.f32.mrb[0].mxu0
        %5197 = vmatprep.mubr.bf16.mxu0 0
        %5198 = vmatmul.mubr.bf16.gmra.mrb[0].mxu0 %v5126
        %v5199 = vpop.f32.mrb[0].mxu0
        %v5200 = vadd.f32 0.0, %v5199
        %v5201 = vpop.f32.mrb[0].mxu0
        %v5202 = vpop.f32.mrb[0].mxu0
        %v5203 = vadd.f32 0.0, %v5202
        %v5204 = vpop.f32.mrb[0].mxu0
        %5205 = vmatprep.mubr.bf16.mxu0 0
        %5206 = vmatmul.mubr.bf16.gmra.mrb[0].mxu0 %v5129
        %v5207 = vpop.f32.mrb[0].mxu0
        %v5208 = vadd.f32 0.0, %v5207
        %v5209 = vpop.f32.mrb[0].mxu0
        %v5210 = vpop.f32.mrb[0].mxu0
        %v5211 = vadd.f32 0.0, %v5210
        %v5212 = vpop.f32.mrb[0].mxu0
        %5213 = vmatprep.mubr.bf16.mxu0 0
        %5214 = vmatmul.mubr.bf16.gmra.mrb[0].mxu0 %v5132
        %v5215 = vpop.f32.mrb[0].mxu0
        %v5216 = vadd.f32 0.0, %v5215
        %v5217 = vpop.f32.mrb[0].mxu0
        %v5218 = vpop.f32.mrb[0].mxu0
        %v5219 = vadd.f32 0.0, %v5218
        %v5220 = vpop.f32.mrb[0].mxu0
        %5221 = vmatprep.mubr.bf16.mxu0 0
        %5222 = vmatmul.mubr.bf16.gmra.mrb[0].mxu0 %v5135
        %v5223 = vpop.f32.mrb[0].mxu0
        %v5224 = vadd.f32 0.0, %v5223
        %v5225 = vpop.f32.mrb[0].mxu0
        %v5226 = vpop.f32.mrb[0].mxu0
        %v5227 = vadd.f32 0.0, %v5226
        %v5228 = vpop.f32.mrb[0].mxu0
        %5229 = vmatprep.mubr.bf16.mxu0 0
        %5230 = vmatmul.mubr.bf16.gmra.mrb[0].mxu0 %v5138
        %v5231 = vpop.f32.mrb[0].mxu0
        %v5232 = vadd.f32 0.0, %v5231
        %v5233 = vpop.f32.mrb[0].mxu0
        %v5234 = vpop.f32.mrb[0].mxu0
        %v5235 = vadd.f32 0.0, %v5234
        %v5236 = vpop.f32.mrb[0].mxu0
        %5237 = vmatprep.mubr.bf16.mxu0 0
        %5238 = vmatmul.mubr.bf16.gmra.mrb[0].mxu0 %v5141
        %v5239 = vpop.f32.mrb[0].mxu0
        %v5240 = vadd.f32 0.0, %v5239
        %v5241 = vpop.f32.mrb[0].mxu0
        %v5242 = vpop.f32.mrb[0].mxu0
        %v5243 = vadd.f32 0.0, %v5242
        %v5244 = vpop.f32.mrb[0].mxu0
        %5245 = vmatprep.mubr.bf16.mxu0 0
        %5246 = vmatmul.mubr.bf16.gmra.mrb[0].mxu0 %v5144
        %v5247 = vpop.f32.mrb[0].mxu0
        %v5248 = vadd.f32 0.0, %v5247
        %v5249 = vpop.f32.mrb[0].mxu0
        %v5250 = vpop.f32.mrb[0].mxu0
        %v5251 = vadd.f32 0.0, %v5250
        %v5252 = vpop.f32.mrb[0].mxu0
        %5253 = vmatprep.mubr.bf16.mxu0 0
        %5254 = vmatmul.mubr.bf16.gmra.mrb[0].mxu0 %v5147
        %v5255 = vpop.f32.mrb[0].mxu0
        %v5256 = vadd.f32 0.0, %v5255
        %v5257 = vpop.f32.mrb[0].mxu0
        %v5258 = vpop.f32.mrb[0].mxu0
        %v5259 = vadd.f32 0.0, %v5258
        %v5260 = vpop.f32.mrb[0].mxu0
        %5261 = vdwg.mxu0
        %v5262 = vadd.f32 %v4959, %v5184
        %v5263 = vadd.f32 %v4962, %v5187
        %v5264 = vadd.f32 %v4967, %v5192
        %v5265 = vadd.f32 %v4970, %v5195
        %v5266 = vadd.f32 %v4975, %v5200
        %v5267 = vadd.f32 %v4978, %v5203
        %v5268 = vadd.f32 %v4983, %v5208
        %v5269 = vadd.f32 %v4986, %v5211
        %v5270 = vadd.f32 %v4991, %v5216
        %v5271 = vadd.f32 %v4994, %v5219
        %v5272 = vadd.f32 %v4999, %v5224
        %v5273 = vadd.f32 %v5002, %v5227
        %v5274 = vadd.f32 %v5007, %v5232
        %v5275 = vadd.f32 %v5010, %v5235
        %v5276 = vadd.f32 %v5015, %v5240
        %v5277 = vadd.f32 %v5018, %v5243
        %v5278 = vadd.f32 %v5023, %v5248
        %v5279 = vadd.f32 %v5026, %v5251
        %v5280 = vadd.f32 %v5031, %v5256
        %v5281 = vadd.f32 %v5034, %v5259
        %v5282 = vld [vmem:[%s5 + $0x60] sm:$0xf]
        %v5283 = vld [vmem:[%s5 + $0x64] sm:$0xf]
        %v5284 = vld [vmem:[%s5 + $0x68] sm:$0xf]
        %v5285 = vld [vmem:[%s5 + $0x6c] sm:$0xf]
        %v5286 = vld [vmem:[%s5 + $0x70] sm:$0xf]
        %v5287 = vld [vmem:[%s5 + $0x74] sm:$0xf]
        %v5288 = vld [vmem:[%s5 + $0x78] sm:$0xf]
        %v5289 = vld [vmem:[%s5 + $0x7c] sm:$0xf]
        %v5298 = vunpack.c.l.b16 %v5282
        %v5299 = vunpack.c.l.b16 %v5283
        %v5300 = vunpack.c.l.b16 %v5284
        %v5301 = vunpack.c.l.b16 %v5285
        %v5302 = vunpack.c.l.b16 %v5286
        %v5303 = vunpack.c.l.b16 %v5287
        %v5304 = vunpack.c.l.b16 %v5288
        %v5305 = vunpack.c.l.b16 %v5289
        %v5306 = vpack.c.b16 %v5299, %v5298
        %v5307 = vpack.c.b16 %v5301, %v5300
        %v5308 = vpack.c.b16 %v5303, %v5302
        %v5309 = vpack.c.b16 %v5305, %v5304
        %v5315 = vsel %vm2497, %v4563, 0
        %5317 = vmatprep.subr.bf16.mxu0 0
        %5318 = vmatpush1.bf16.msra.mxu0 %v5306
        %5319 = vmatprep.subr.bf16.mxu0 0
        %5320 = vmatpush1.bf16.msra.mxu0 %v5307
        %5321 = vmatprep.subr.bf16.mxu0 0
        %5322 = vmatpush1.bf16.msra.mxu0 %v5308
        %5323 = vmatprep.subr.bf16.mxu0 0
        %5324 = vmatpush1.bf16.msra.mxu0 %v5309
        %5325 = vmatprep.subr.bf16.mxu0 0
        %5326 = vmatpush1.bf16.msra.mxu0 0
        %5327 = vmatprep.subr.bf16.mxu0 0
        %5328 = vmatpush1.bf16.msra.mxu0 0
        %5329 = vmatprep.subr.bf16.mxu0 0
        %5330 = vmatpush1.bf16.msra.mxu0 0
        %5331 = vmatprep.subr.bf16.mxu0 0
        %5332 = vmatpush1.bf16.msra.mxu0 0
        %5333 = vmatprep.subr.bf16.mxu0 0
        %5334 = vmatpush1.bf16.msra.mxu0 0
        %5335 = vmatprep.subr.bf16.mxu0 0
        %5336 = vmatpush1.bf16.msra.mxu0 0
        %5337 = vmatprep.subr.bf16.mxu0 0
        %5338 = vmatpush1.bf16.msra.mxu0 0
        %5339 = vmatprep.subr.bf16.mxu0 0
        %5340 = vmatpush1.bf16.msra.mxu0 0
        %5341 = vmatprep.subr.bf16.mxu0 0
        %5342 = vmatpush1.bf16.msra.mxu0 0
        %5343 = vmatprep.subr.bf16.mxu0 0
        %5344 = vmatpush1.bf16.msra.mxu0 0
        %5345 = vmatprep.subr.bf16.mxu0 0
        %5346 = vmatpush1.bf16.msra.mxu0 0
        %5347 = vmatprep.subr.bf16.mxu0 0
        %5348 = vmatpush1.bf16.msra.mxu0 0
        %5349 = vmatprep.mubr.bf16.mxu0 0
        %5350 = vmatmul.mubr.bf16.gmra.mrb[0].mxu0 %v4906
        %v5351 = vpop.f32.mrb[0].mxu0
        %v5352 = vadd.f32 0.0, %v5351
        %v5353 = vpop.f32.mrb[0].mxu0
        %v5354 = vpop.f32.mrb[0].mxu0
        %v5355 = vadd.f32 0.0, %v5354
        %v5356 = vpop.f32.mrb[0].mxu0
        %5357 = vmatprep.mubr.bf16.mxu0 0
        %5358 = vmatmul.mubr.bf16.gmra.mrb[0].mxu0 %v4908
        %v5359 = vpop.f32.mrb[0].mxu0
        %v5360 = vadd.f32 0.0, %v5359
        %v5361 = vpop.f32.mrb[0].mxu0
        %v5362 = vpop.f32.mrb[0].mxu0
        %v5363 = vadd.f32 0.0, %v5362
        %v5364 = vpop.f32.mrb[0].mxu0
        %5365 = vmatprep.mubr.bf16.mxu0 0
        %5366 = vmatmul.mubr.bf16.gmra.mrb[0].mxu0 %v4910
        %v5367 = vpop.f32.mrb[0].mxu0
        %v5368 = vadd.f32 0.0, %v5367
        %v5369 = vpop.f32.mrb[0].mxu0
        %v5370 = vpop.f32.mrb[0].mxu0
        %v5371 = vadd.f32 0.0, %v5370
        %v5372 = vpop.f32.mrb[0].mxu0
        %5373 = vmatprep.mubr.bf16.mxu0 0
        %5374 = vmatmul.mubr.bf16.gmra.mrb[0].mxu0 %v4912
        %v5375 = vpop.f32.mrb[0].mxu0
        %v5376 = vadd.f32 0.0, %v5375
        %v5377 = vpop.f32.mrb[0].mxu0
        %v5378 = vpop.f32.mrb[0].mxu0
        %v5379 = vadd.f32 0.0, %v5378
        %v5380 = vpop.f32.mrb[0].mxu0
        %5381 = vmatprep.mubr.bf16.mxu0 0
        %5382 = vmatmul.mubr.bf16.gmra.mrb[0].mxu0 %v4914
        %v5383 = vpop.f32.mrb[0].mxu0
        %v5384 = vadd.f32 0.0, %v5383
        %v5385 = vpop.f32.mrb[0].mxu0
        %v5386 = vpop.f32.mrb[0].mxu0
        %v5387 = vadd.f32 0.0, %v5386
        %v5388 = vpop.f32.mrb[0].mxu0
        %5389 = vmatprep.mubr.bf16.mxu0 0
        %5390 = vmatmul.mubr.bf16.gmra.mrb[0].mxu0 %v4916
        %v5391 = vpop.f32.mrb[0].mxu0
        %v5392 = vadd.f32 0.0, %v5391
        %v5393 = vpop.f32.mrb[0].mxu0
        %v5394 = vpop.f32.mrb[0].mxu0
        %v5395 = vadd.f32 0.0, %v5394
        %v5396 = vpop.f32.mrb[0].mxu0
        %5397 = vmatprep.mubr.bf16.mxu0 0
        %5398 = vmatmul.mubr.bf16.gmra.mrb[0].mxu0 %v4918
        %v5399 = vpop.f32.mrb[0].mxu0
        %v5400 = vadd.f32 0.0, %v5399
        %v5401 = vpop.f32.mrb[0].mxu0
        %v5402 = vpop.f32.mrb[0].mxu0
        %v5403 = vadd.f32 0.0, %v5402
        %v5404 = vpop.f32.mrb[0].mxu0
        %5405 = vmatprep.mubr.bf16.mxu0 0
        %5406 = vmatmul.mubr.bf16.gmra.mrb[0].mxu0 %v4920
        %v5407 = vpop.f32.mrb[0].mxu0
        %v5408 = vadd.f32 0.0, %v5407
        %v5409 = vpop.f32.mrb[0].mxu0
        %v5410 = vpop.f32.mrb[0].mxu0
        %v5411 = vadd.f32 0.0, %v5410
        %v5412 = vpop.f32.mrb[0].mxu0
        %5413 = vmatprep.mubr.bf16.mxu0 0
        %5414 = vmatmul.mubr.bf16.gmra.mrb[0].mxu0 %v4922
        %v5415 = vpop.f32.mrb[0].mxu0
        %v5416 = vadd.f32 0.0, %v5415
        %v5417 = vpop.f32.mrb[0].mxu0
        %v5418 = vpop.f32.mrb[0].mxu0
        %v5419 = vadd.f32 0.0, %v5418
        %v5420 = vpop.f32.mrb[0].mxu0
        %5421 = vmatprep.mubr.bf16.mxu0 0
        %5422 = vmatmul.mubr.bf16.gmra.mrb[0].mxu0 %v5315
        %v5423 = vpop.f32.mrb[0].mxu0
        %v5424 = vadd.f32 0.0, %v5423
        %v5425 = vpop.f32.mrb[0].mxu0
        %v5426 = vpop.f32.mrb[0].mxu0
        %v5427 = vadd.f32 0.0, %v5426
        %v5428 = vpop.f32.mrb[0].mxu0
        %5429 = vdwg.mxu0
        %v5430 = vadd.f32 %v5262, %v5352
        %v5431 = vadd.f32 %v5263, %v5355
        %v5432 = vadd.f32 %v5264, %v5360
        %v5433 = vadd.f32 %v5265, %v5363
        %v5434 = vadd.f32 %v5266, %v5368
        %v5435 = vadd.f32 %v5267, %v5371
        %v5436 = vadd.f32 %v5268, %v5376
        %v5437 = vadd.f32 %v5269, %v5379
        %v5438 = vadd.f32 %v5270, %v5384
        %v5439 = vadd.f32 %v5271, %v5387
        %v5440 = vadd.f32 %v5272, %v5392
        %v5441 = vadd.f32 %v5273, %v5395
        %v5442 = vadd.f32 %v5274, %v5400
        %v5443 = vadd.f32 %v5275, %v5403
        %v5444 = vadd.f32 %v5276, %v5408
        %v5445 = vadd.f32 %v5277, %v5411
        %v5446 = vadd.f32 %v5278, %v5416
        %v5447 = vadd.f32 %v5279, %v5419
        %v5448 = vadd.f32 %v5280, %v5424
        %v5449 = vadd.f32 %v5281, %v5427
        %v5450 = vshrl.u32 %v4563, 16
        %v5452 = vshll.u32 %v4563, 16
        %v5454 = vrot.slane %v5452, 1
        %v5455 = vor.u32 %v5450, %v5454
        %v5457 = vshll.u32 %v4575, 16
        %v5459 = vrot.slane %v5457, 1
        %v5460 = vsel %vm1277, %v5455, %v5459
        %v5461 = vld [vmem:[%s5 + $0x80] sm:$0xf]
        %v5462 = vld [vmem:[%s5 + $0x84] sm:$0xf]
        %v5463 = vld [vmem:[%s5 + $0x88] sm:$0xf]
        %v5464 = vld [vmem:[%s5 + $0x8c] sm:$0xf]
        %v5465 = vld [vmem:[%s5 + $0x90] sm:$0xf]
        %v5466 = vld [vmem:[%s5 + $0x94] sm:$0xf]
        %v5467 = vld [vmem:[%s5 + $0x98] sm:$0xf]
        %v5468 = vld [vmem:[%s5 + $0x9c] sm:$0xf]
        %v5477 = vunpack.c.l.b16 %v5461
        %v5478 = vunpack.c.l.b16 %v5462
        %v5479 = vunpack.c.l.b16 %v5463
        %v5480 = vunpack.c.l.b16 %v5464
        %v5481 = vunpack.c.l.b16 %v5465
        %v5482 = vunpack.c.l.b16 %v5466
        %v5483 = vunpack.c.l.b16 %v5467
        %v5484 = vunpack.c.l.b16 %v5468
        %v5485 = vpack.c.b16 %v5478, %v5477
        %v5486 = vpack.c.b16 %v5480, %v5479
        %v5487 = vpack.c.b16 %v5482, %v5481
        %v5488 = vpack.c.b16 %v5484, %v5483
        %v5494 = vsel %vm2497, %v5460, 0
        %5496 = vmatprep.subr.bf16.mxu0 0
        %5497 = vmatpush1.bf16.msra.mxu0 %v5485
        %5498 = vmatprep.subr.bf16.mxu0 0
        %5499 = vmatpush1.bf16.msra.mxu0 %v5486
        %5500 = vmatprep.subr.bf16.mxu0 0
        %5501 = vmatpush1.bf16.msra.mxu0 %v5487
        %5502 = vmatprep.subr.bf16.mxu0 0
        %5503 = vmatpush1.bf16.msra.mxu0 %v5488
        %5504 = vmatprep.subr.bf16.mxu0 0
        %5505 = vmatpush1.bf16.msra.mxu0 0
        %5506 = vmatprep.subr.bf16.mxu0 0
        %5507 = vmatpush1.bf16.msra.mxu0 0
        %5508 = vmatprep.subr.bf16.mxu0 0
        %5509 = vmatpush1.bf16.msra.mxu0 0
        %5510 = vmatprep.subr.bf16.mxu0 0
        %5511 = vmatpush1.bf16.msra.mxu0 0
        %5512 = vmatprep.subr.bf16.mxu0 0
        %5513 = vmatpush1.bf16.msra.mxu0 0
        %5514 = vmatprep.subr.bf16.mxu0 0
        %5515 = vmatpush1.bf16.msra.mxu0 0
        %5516 = vmatprep.subr.bf16.mxu0 0
        %5517 = vmatpush1.bf16.msra.mxu0 0
        %5518 = vmatprep.subr.bf16.mxu0 0
        %5519 = vmatpush1.bf16.msra.mxu0 0
        %5520 = vmatprep.subr.bf16.mxu0 0
        %5521 = vmatpush1.bf16.msra.mxu0 0
        %5522 = vmatprep.subr.bf16.mxu0 0
        %5523 = vmatpush1.bf16.msra.mxu0 0
        %5524 = vmatprep.subr.bf16.mxu0 0
        %5525 = vmatpush1.bf16.msra.mxu0 0
        %5526 = vmatprep.subr.bf16.mxu0 0
        %5527 = vmatpush1.bf16.msra.mxu0 0
        %5528 = vmatprep.mubr.bf16.mxu0 0
        %5529 = vmatmul.mubr.bf16.gmra.mrb[0].mxu0 %v4741
        %v5530 = vpop.f32.mrb[0].mxu0
        %v5531 = vadd.f32 0.0, %v5530
        %v5532 = vpop.f32.mrb[0].mxu0
        %v5533 = vpop.f32.mrb[0].mxu0
        %v5534 = vadd.f32 0.0, %v5533
        %v5535 = vpop.f32.mrb[0].mxu0
        %5536 = vmatprep.mubr.bf16.mxu0 0
        %5537 = vmatmul.mubr.bf16.gmra.mrb[0].mxu0 %v4744
        %v5538 = vpop.f32.mrb[0].mxu0
        %v5539 = vadd.f32 0.0, %v5538
        %v5540 = vpop.f32.mrb[0].mxu0
        %v5541 = vpop.f32.mrb[0].mxu0
        %v5542 = vadd.f32 0.0, %v5541
        %v5543 = vpop.f32.mrb[0].mxu0
        %5544 = vmatprep.mubr.bf16.mxu0 0
        %5545 = vmatmul.mubr.bf16.gmra.mrb[0].mxu0 %v4747
        %v5546 = vpop.f32.mrb[0].mxu0
        %v5547 = vadd.f32 0.0, %v5546
        %v5548 = vpop.f32.mrb[0].mxu0
        %v5549 = vpop.f32.mrb[0].mxu0
        %v5550 = vadd.f32 0.0, %v5549
        %v5551 = vpop.f32.mrb[0].mxu0
        %5552 = vmatprep.mubr.bf16.mxu0 0
        %5553 = vmatmul.mubr.bf16.gmra.mrb[0].mxu0 %v4750
        %v5554 = vpop.f32.mrb[0].mxu0
        %v5555 = vadd.f32 0.0, %v5554
        %v5556 = vpop.f32.mrb[0].mxu0
        %v5557 = vpop.f32.mrb[0].mxu0
        %v5558 = vadd.f32 0.0, %v5557
        %v5559 = vpop.f32.mrb[0].mxu0
        %5560 = vmatprep.mubr.bf16.mxu0 0
        %5561 = vmatmul.mubr.bf16.gmra.mrb[0].mxu0 %v4753
        %v5562 = vpop.f32.mrb[0].mxu0
        %v5563 = vadd.f32 0.0, %v5562
        %v5564 = vpop.f32.mrb[0].mxu0
        %v5565 = vpop.f32.mrb[0].mxu0
        %v5566 = vadd.f32 0.0, %v5565
        %v5567 = vpop.f32.mrb[0].mxu0
        %5568 = vmatprep.mubr.bf16.mxu0 0
        %5569 = vmatmul.mubr.bf16.gmra.mrb[0].mxu0 %v4756
        %v5570 = vpop.f32.mrb[0].mxu0
        %v5571 = vadd.f32 0.0, %v5570
        %v5572 = vpop.f32.mrb[0].mxu0
        %v5573 = vpop.f32.mrb[0].mxu0
        %v5574 = vadd.f32 0.0, %v5573
        %v5575 = vpop.f32.mrb[0].mxu0
        %5576 = vmatprep.mubr.bf16.mxu0 0
        %5577 = vmatmul.mubr.bf16.gmra.mrb[0].mxu0 %v4759
        %v5578 = vpop.f32.mrb[0].mxu0
        %v5579 = vadd.f32 0.0, %v5578
        %v5580 = vpop.f32.mrb[0].mxu0
        %v5581 = vpop.f32.mrb[0].mxu0
        %v5582 = vadd.f32 0.0, %v5581
        %v5583 = vpop.f32.mrb[0].mxu0
        %5584 = vmatprep.mubr.bf16.mxu0 0
        %5585 = vmatmul.mubr.bf16.gmra.mrb[0].mxu0 %v4762
        %v5586 = vpop.f32.mrb[0].mxu0
        %v5587 = vadd.f32 0.0, %v5586
        %v5588 = vpop.f32.mrb[0].mxu0
        %v5589 = vpop.f32.mrb[0].mxu0
        %v5590 = vadd.f32 0.0, %v5589
        %v5591 = vpop.f32.mrb[0].mxu0
        %5592 = vmatprep.mubr.bf16.mxu0 0
        %5593 = vmatmul.mubr.bf16.gmra.mrb[0].mxu0 %v4765
        %v5594 = vpop.f32.mrb[0].mxu0
        %v5595 = vadd.f32 0.0, %v5594
        %v5596 = vpop.f32.mrb[0].mxu0
        %v5597 = vpop.f32.mrb[0].mxu0
        %v5598 = vadd.f32 0.0, %v5597
        %v5599 = vpop.f32.mrb[0].mxu0
        %5600 = vmatprep.mubr.bf16.mxu0 0
        %5601 = vmatmul.mubr.bf16.gmra.mrb[0].mxu0 %v5494
        %v5602 = vpop.f32.mrb[0].mxu0
        %v5603 = vadd.f32 0.0, %v5602
        %v5604 = vpop.f32.mrb[0].mxu0
        %v5605 = vpop.f32.mrb[0].mxu0
        %v5606 = vadd.f32 0.0, %v5605
        %v5607 = vpop.f32.mrb[0].mxu0
        %5608 = vdwg.mxu0
        %v5609 = vadd.f32 %v5430, %v5531
        %v5610 = vadd.f32 %v5431, %v5534
        %v5611 = vadd.f32 %v5432, %v5539
        %v5612 = vadd.f32 %v5433, %v5542
        %v5613 = vadd.f32 %v5434, %v5547
        %v5614 = vadd.f32 %v5435, %v5550
        %v5615 = vadd.f32 %v5436, %v5555
        %v5616 = vadd.f32 %v5437, %v5558
        %v5617 = vadd.f32 %v5438, %v5563
        %v5618 = vadd.f32 %v5439, %v5566
        %v5619 = vadd.f32 %v5440, %v5571
        %v5620 = vadd.f32 %v5441, %v5574
        %v5621 = vadd.f32 %v5442, %v5579
        %v5622 = vadd.f32 %v5443, %v5582
        %v5623 = vadd.f32 %v5444, %v5587
        %v5624 = vadd.f32 %v5445, %v5590
        %v5625 = vadd.f32 %v5446, %v5595
        %v5626 = vadd.f32 %v5447, %v5598
        %v5627 = vadd.f32 %v5448, %v5603
        %v5628 = vadd.f32 %v5449, %v5606
        %v5631 = vrot.slane %v4563, 1
        %v5632 = vrot.slane %v4575, 1
        %v5633 = vsel %vm1214, %v5631, %v5632
        %v5634 = vld [vmem:[%s5 + $0xa0] sm:$0xf]
        %v5635 = vld [vmem:[%s5 + $0xa4] sm:$0xf]
        %v5636 = vld [vmem:[%s5 + $0xa8] sm:$0xf]
        %v5637 = vld [vmem:[%s5 + $0xac] sm:$0xf]
        %v5638 = vld [vmem:[%s5 + $0xb0] sm:$0xf]
        %v5639 = vld [vmem:[%s5 + $0xb4] sm:$0xf]
        %v5640 = vld [vmem:[%s5 + $0xb8] sm:$0xf]
        %v5641 = vld [vmem:[%s5 + $0xbc] sm:$0xf]
        %v5650 = vunpack.c.l.b16 %v5634
        %v5651 = vunpack.c.l.b16 %v5635
        %v5652 = vunpack.c.l.b16 %v5636
        %v5653 = vunpack.c.l.b16 %v5637
        %v5654 = vunpack.c.l.b16 %v5638
        %v5655 = vunpack.c.l.b16 %v5639
        %v5656 = vunpack.c.l.b16 %v5640
        %v5657 = vunpack.c.l.b16 %v5641
        %v5658 = vpack.c.b16 %v5651, %v5650
        %v5659 = vpack.c.b16 %v5653, %v5652
        %v5660 = vpack.c.b16 %v5655, %v5654
        %v5661 = vpack.c.b16 %v5657, %v5656
        %v5667 = vsel %vm2497, %v5633, 0
        %5669 = vmatprep.subr.bf16.mxu0 0
        %5670 = vmatpush1.bf16.msra.mxu0 %v5658
        %5671 = vmatprep.subr.bf16.mxu0 0
        %5672 = vmatpush1.bf16.msra.mxu0 %v5659
        %5673 = vmatprep.subr.bf16.mxu0 0
        %5674 = vmatpush1.bf16.msra.mxu0 %v5660
        %5675 = vmatprep.subr.bf16.mxu0 0
        %5676 = vmatpush1.bf16.msra.mxu0 %v5661
        %5677 = vmatprep.subr.bf16.mxu0 0
        %5678 = vmatpush1.bf16.msra.mxu0 0
        %5679 = vmatprep.subr.bf16.mxu0 0
        %5680 = vmatpush1.bf16.msra.mxu0 0
        %5681 = vmatprep.subr.bf16.mxu0 0
        %5682 = vmatpush1.bf16.msra.mxu0 0
        %5683 = vmatprep.subr.bf16.mxu0 0
        %5684 = vmatpush1.bf16.msra.mxu0 0
        %5685 = vmatprep.subr.bf16.mxu0 0
        %5686 = vmatpush1.bf16.msra.mxu0 0
        %5687 = vmatprep.subr.bf16.mxu0 0
        %5688 = vmatpush1.bf16.msra.mxu0 0
        %5689 = vmatprep.subr.bf16.mxu0 0
        %5690 = vmatpush1.bf16.msra.mxu0 0
        %5691 = vmatprep.subr.bf16.mxu0 0
        %5692 = vmatpush1.bf16.msra.mxu0 0
        %5693 = vmatprep.subr.bf16.mxu0 0
        %5694 = vmatpush1.bf16.msra.mxu0 0
        %5695 = vmatprep.subr.bf16.mxu0 0
        %5696 = vmatpush1.bf16.msra.mxu0 0
        %5697 = vmatprep.subr.bf16.mxu0 0
        %5698 = vmatpush1.bf16.msra.mxu0 0
        %5699 = vmatprep.subr.bf16.mxu0 0
        %5700 = vmatpush1.bf16.msra.mxu0 0
        %5701 = vmatprep.mubr.bf16.mxu0 0
        %5702 = vmatmul.mubr.bf16.gmra.mrb[0].mxu0 %v5123
        %v5703 = vpop.f32.mrb[0].mxu0
        %v5704 = vadd.f32 0.0, %v5703
        %v5705 = vpop.f32.mrb[0].mxu0
        %v5706 = vpop.f32.mrb[0].mxu0
        %v5707 = vadd.f32 0.0, %v5706
        %v5708 = vpop.f32.mrb[0].mxu0
        %5709 = vmatprep.mubr.bf16.mxu0 0
        %5710 = vmatmul.mubr.bf16.gmra.mrb[0].mxu0 %v5126
        %v5711 = vpop.f32.mrb[0].mxu0
        %v5712 = vadd.f32 0.0, %v5711
        %v5713 = vpop.f32.mrb[0].mxu0
        %v5714 = vpop.f32.mrb[0].mxu0
        %v5715 = vadd.f32 0.0, %v5714
        %v5716 = vpop.f32.mrb[0].mxu0
        %5717 = vmatprep.mubr.bf16.mxu0 0
        %5718 = vmatmul.mubr.bf16.gmra.mrb[0].mxu0 %v5129
        %v5719 = vpop.f32.mrb[0].mxu0
        %v5720 = vadd.f32 0.0, %v5719
        %v5721 = vpop.f32.mrb[0].mxu0
        %v5722 = vpop.f32.mrb[0].mxu0
        %v5723 = vadd.f32 0.0, %v5722
        %v5724 = vpop.f32.mrb[0].mxu0
        %5725 = vmatprep.mubr.bf16.mxu0 0
        %5726 = vmatmul.mubr.bf16.gmra.mrb[0].mxu0 %v5132
        %v5727 = vpop.f32.mrb[0].mxu0
        %v5728 = vadd.f32 0.0, %v5727
        %v5729 = vpop.f32.mrb[0].mxu0
        %v5730 = vpop.f32.mrb[0].mxu0
        %v5731 = vadd.f32 0.0, %v5730
        %v5732 = vpop.f32.mrb[0].mxu0
        %5733 = vmatprep.mubr.bf16.mxu0 0
        %5734 = vmatmul.mubr.bf16.gmra.mrb[0].mxu0 %v5135
        %v5735 = vpop.f32.mrb[0].mxu0
        %v5736 = vadd.f32 0.0, %v5735
        %v5737 = vpop.f32.mrb[0].mxu0
        %v5738 = vpop.f32.mrb[0].mxu0
        %v5739 = vadd.f32 0.0, %v5738
        %v5740 = vpop.f32.mrb[0].mxu0
        %5741 = vmatprep.mubr.bf16.mxu0 0
        %5742 = vmatmul.mubr.bf16.gmra.mrb[0].mxu0 %v5138
        %v5743 = vpop.f32.mrb[0].mxu0
        %v5744 = vadd.f32 0.0, %v5743
        %v5745 = vpop.f32.mrb[0].mxu0
        %v5746 = vpop.f32.mrb[0].mxu0
        %v5747 = vadd.f32 0.0, %v5746
        %v5748 = vpop.f32.mrb[0].mxu0
        %5749 = vmatprep.mubr.bf16.mxu0 0
        %5750 = vmatmul.mubr.bf16.gmra.mrb[0].mxu0 %v5141
        %v5751 = vpop.f32.mrb[0].mxu0
        %v5752 = vadd.f32 0.0, %v5751
        %v5753 = vpop.f32.mrb[0].mxu0
        %v5754 = vpop.f32.mrb[0].mxu0
        %v5755 = vadd.f32 0.0, %v5754
        %v5756 = vpop.f32.mrb[0].mxu0
        %5757 = vmatprep.mubr.bf16.mxu0 0
        %5758 = vmatmul.mubr.bf16.gmra.mrb[0].mxu0 %v5144
        %v5759 = vpop.f32.mrb[0].mxu0
        %v5760 = vadd.f32 0.0, %v5759
        %v5761 = vpop.f32.mrb[0].mxu0
        %v5762 = vpop.f32.mrb[0].mxu0
        %v5763 = vadd.f32 0.0, %v5762
        %v5764 = vpop.f32.mrb[0].mxu0
        %5765 = vmatprep.mubr.bf16.mxu0 0
        %5766 = vmatmul.mubr.bf16.gmra.mrb[0].mxu0 %v5147
        %v5767 = vpop.f32.mrb[0].mxu0
        %v5768 = vadd.f32 0.0, %v5767
        %v5769 = vpop.f32.mrb[0].mxu0
        %v5770 = vpop.f32.mrb[0].mxu0
        %v5771 = vadd.f32 0.0, %v5770
        %v5772 = vpop.f32.mrb[0].mxu0
        %5773 = vmatprep.mubr.bf16.mxu0 0
        %5774 = vmatmul.mubr.bf16.gmra.mrb[0].mxu0 %v5667
        %v5775 = vpop.f32.mrb[0].mxu0
        %v5776 = vadd.f32 0.0, %v5775
        %v5777 = vpop.f32.mrb[0].mxu0
        %v5778 = vpop.f32.mrb[0].mxu0
        %v5779 = vadd.f32 0.0, %v5778
        %v5780 = vpop.f32.mrb[0].mxu0
        %5781 = vdwg.mxu0
        %v5782 = vadd.f32 %v5609, %v5704
        %v5783 = vadd.f32 %v5610, %v5707
        %v5784 = vadd.f32 %v5611, %v5712
        %v5785 = vadd.f32 %v5612, %v5715
        %v5786 = vadd.f32 %v5613, %v5720
        %v5787 = vadd.f32 %v5614, %v5723
        %v5788 = vadd.f32 %v5615, %v5728
        %v5789 = vadd.f32 %v5616, %v5731
        %v5790 = vadd.f32 %v5617, %v5736
        %v5791 = vadd.f32 %v5618, %v5739
        %v5792 = vadd.f32 %v5619, %v5744
        %v5793 = vadd.f32 %v5620, %v5747
        %v5794 = vadd.f32 %v5621, %v5752
        %v5795 = vadd.f32 %v5622, %v5755
        %v5796 = vadd.f32 %v5623, %v5760
        %v5797 = vadd.f32 %v5624, %v5763
        %v5798 = vadd.f32 %v5625, %v5768
        %v5799 = vadd.f32 %v5626, %v5771
        %v5800 = vadd.f32 %v5627, %v5776
        %v5801 = vadd.f32 %v5628, %v5779
        %v5802 = vld [vmem:[%s5 + $0xc0] sm:$0xf]
        %v5803 = vld [vmem:[%s5 + $0xc4] sm:$0xf]
        %v5804 = vld [vmem:[%s5 + $0xc8] sm:$0xf]
        %v5805 = vld [vmem:[%s5 + $0xcc] sm:$0xf]
        %v5806 = vld [vmem:[%s5 + $0xd0] sm:$0xf]
        %v5807 = vld [vmem:[%s5 + $0xd4] sm:$0xf]
        %v5808 = vld [vmem:[%s5 + $0xd8] sm:$0xf]
        %v5809 = vld [vmem:[%s5 + $0xdc] sm:$0xf]
        %v5818 = vunpack.c.l.b16 %v5802
        %v5819 = vunpack.c.l.b16 %v5803
        %v5820 = vunpack.c.l.b16 %v5804
        %v5821 = vunpack.c.l.b16 %v5805
        %v5822 = vunpack.c.l.b16 %v5806
        %v5823 = vunpack.c.l.b16 %v5807
        %v5824 = vunpack.c.l.b16 %v5808
        %v5825 = vunpack.c.l.b16 %v5809
        %v5826 = vpack.c.b16 %v5819, %v5818
        %v5827 = vpack.c.b16 %v5821, %v5820
        %v5828 = vpack.c.b16 %v5823, %v5822
        %v5829 = vpack.c.b16 %v5825, %v5824
        %v5835 = vsel %vm2497, %v4564, 0
        %5837 = vmatprep.subr.bf16.mxu0 0
        %5838 = vmatpush1.bf16.msra.mxu0 %v5826
        %5839 = vmatprep.subr.bf16.mxu0 0
        %5840 = vmatpush1.bf16.msra.mxu0 %v5827
        %5841 = vmatprep.subr.bf16.mxu0 0
        %5842 = vmatpush1.bf16.msra.mxu0 %v5828
        %5843 = vmatprep.subr.bf16.mxu0 0
        %5844 = vmatpush1.bf16.msra.mxu0 %v5829
        %5845 = vmatprep.subr.bf16.mxu0 0
        %5846 = vmatpush1.bf16.msra.mxu0 0
        %5847 = vmatprep.subr.bf16.mxu0 0
        %5848 = vmatpush1.bf16.msra.mxu0 0
        %5849 = vmatprep.subr.bf16.mxu0 0
        %5850 = vmatpush1.bf16.msra.mxu0 0
        %5851 = vmatprep.subr.bf16.mxu0 0
        %5852 = vmatpush1.bf16.msra.mxu0 0
        %5853 = vmatprep.subr.bf16.mxu0 0
        %5854 = vmatpush1.bf16.msra.mxu0 0
        %5855 = vmatprep.subr.bf16.mxu0 0
        %5856 = vmatpush1.bf16.msra.mxu0 0
        %5857 = vmatprep.subr.bf16.mxu0 0
        %5858 = vmatpush1.bf16.msra.mxu0 0
        %5859 = vmatprep.subr.bf16.mxu0 0
        %5860 = vmatpush1.bf16.msra.mxu0 0
        %5861 = vmatprep.subr.bf16.mxu0 0
        %5862 = vmatpush1.bf16.msra.mxu0 0
        %5863 = vmatprep.subr.bf16.mxu0 0
        %5864 = vmatpush1.bf16.msra.mxu0 0
        %5865 = vmatprep.subr.bf16.mxu0 0
        %5866 = vmatpush1.bf16.msra.mxu0 0
        %5867 = vmatprep.subr.bf16.mxu0 0
        %5868 = vmatpush1.bf16.msra.mxu0 0
        %5869 = vmatprep.mubr.bf16.mxu0 0
        %5870 = vmatmul.mubr.bf16.gmra.mrb[0].mxu0 %v4908
        %v5871 = vpop.f32.mrb[0].mxu0
        %v5872 = vadd.f32 0.0, %v5871
        %v5873 = vpop.f32.mrb[0].mxu0
        %v5874 = vpop.f32.mrb[0].mxu0
        %v5875 = vadd.f32 0.0, %v5874
        %v5876 = vpop.f32.mrb[0].mxu0
        %5877 = vmatprep.mubr.bf16.mxu0 0
        %5878 = vmatmul.mubr.bf16.gmra.mrb[0].mxu0 %v4910
        %v5879 = vpop.f32.mrb[0].mxu0
        %v5880 = vadd.f32 0.0, %v5879
        %v5881 = vpop.f32.mrb[0].mxu0
        %v5882 = vpop.f32.mrb[0].mxu0
        %v5883 = vadd.f32 0.0, %v5882
        %v5884 = vpop.f32.mrb[0].mxu0
        %5885 = vmatprep.mubr.bf16.mxu0 0
        %5886 = vmatmul.mubr.bf16.gmra.mrb[0].mxu0 %v4912
        %v5887 = vpop.f32.mrb[0].mxu0
        %v5888 = vadd.f32 0.0, %v5887
        %v5889 = vpop.f32.mrb[0].mxu0
        %v5890 = vpop.f32.mrb[0].mxu0
        %v5891 = vadd.f32 0.0, %v5890
        %v5892 = vpop.f32.mrb[0].mxu0
        %5893 = vmatprep.mubr.bf16.mxu0 0
        %5894 = vmatmul.mubr.bf16.gmra.mrb[0].mxu0 %v4914
        %v5895 = vpop.f32.mrb[0].mxu0
        %v5896 = vadd.f32 0.0, %v5895
        %v5897 = vpop.f32.mrb[0].mxu0
        %v5898 = vpop.f32.mrb[0].mxu0
        %v5899 = vadd.f32 0.0, %v5898
        %v5900 = vpop.f32.mrb[0].mxu0
        %5901 = vmatprep.mubr.bf16.mxu0 0
        %5902 = vmatmul.mubr.bf16.gmra.mrb[0].mxu0 %v4916
        %v5903 = vpop.f32.mrb[0].mxu0
        %v5904 = vadd.f32 0.0, %v5903
        %v5905 = vpop.f32.mrb[0].mxu0
        %v5906 = vpop.f32.mrb[0].mxu0
        %v5907 = vadd.f32 0.0, %v5906
        %v5908 = vpop.f32.mrb[0].mxu0
        %5909 = vmatprep.mubr.bf16.mxu0 0
        %5910 = vmatmul.mubr.bf16.gmra.mrb[0].mxu0 %v4918
        %v5911 = vpop.f32.mrb[0].mxu0
        %v5912 = vadd.f32 0.0, %v5911
        %v5913 = vpop.f32.mrb[0].mxu0
        %v5914 = vpop.f32.mrb[0].mxu0
        %v5915 = vadd.f32 0.0, %v5914
        %v5916 = vpop.f32.mrb[0].mxu0
        %5917 = vmatprep.mubr.bf16.mxu0 0
        %5918 = vmatmul.mubr.bf16.gmra.mrb[0].mxu0 %v4920
        %v5919 = vpop.f32.mrb[0].mxu0
        %v5920 = vadd.f32 0.0, %v5919
        %v5921 = vpop.f32.mrb[0].mxu0
        %v5922 = vpop.f32.mrb[0].mxu0
        %v5923 = vadd.f32 0.0, %v5922
        %v5924 = vpop.f32.mrb[0].mxu0
        %5925 = vmatprep.mubr.bf16.mxu0 0
        %5926 = vmatmul.mubr.bf16.gmra.mrb[0].mxu0 %v4922
        %v5927 = vpop.f32.mrb[0].mxu0
        %v5928 = vadd.f32 0.0, %v5927
        %v5929 = vpop.f32.mrb[0].mxu0
        %v5930 = vpop.f32.mrb[0].mxu0
        %v5931 = vadd.f32 0.0, %v5930
        %v5932 = vpop.f32.mrb[0].mxu0
        %5933 = vmatprep.mubr.bf16.mxu0 0
        %5934 = vmatmul.mubr.bf16.gmra.mrb[0].mxu0 %v5315
        %v5935 = vpop.f32.mrb[0].mxu0
        %v5936 = vadd.f32 0.0, %v5935
        %v5937 = vpop.f32.mrb[0].mxu0
        %v5938 = vpop.f32.mrb[0].mxu0
        %v5939 = vadd.f32 0.0, %v5938
        %v5940 = vpop.f32.mrb[0].mxu0
        %5941 = vmatprep.mubr.bf16.mxu0 0
        %5942 = vmatmul.mubr.bf16.gmra.mrb[0].mxu0 %v5835
        %v5943 = vpop.f32.mrb[0].mxu0
        %v5944 = vadd.f32 0.0, %v5943
        %v5945 = vpop.f32.mrb[0].mxu0
        %v5946 = vpop.f32.mrb[0].mxu0
        %v5947 = vadd.f32 0.0, %v5946
        %v5948 = vpop.f32.mrb[0].mxu0
        %5949 = vdwg.mxu0
        %v5950 = vadd.f32 %v5782, %v5872
        %v5951 = vadd.f32 %v5783, %v5875
        %v5952 = vadd.f32 %v5784, %v5880
        %v5953 = vadd.f32 %v5785, %v5883
        %v5954 = vadd.f32 %v5786, %v5888
        %v5955 = vadd.f32 %v5787, %v5891
        %v5956 = vadd.f32 %v5788, %v5896
        %v5957 = vadd.f32 %v5789, %v5899
        %v5958 = vadd.f32 %v5790, %v5904
        %v5959 = vadd.f32 %v5791, %v5907
        %v5960 = vadd.f32 %v5792, %v5912
        %v5961 = vadd.f32 %v5793, %v5915
        %v5962 = vadd.f32 %v5794, %v5920
        %v5963 = vadd.f32 %v5795, %v5923
        %v5964 = vadd.f32 %v5796, %v5928
        %v5965 = vadd.f32 %v5797, %v5931
        %v5966 = vadd.f32 %v5798, %v5936
        %v5967 = vadd.f32 %v5799, %v5939
        %v5968 = vadd.f32 %v5800, %v5944
        %v5969 = vadd.f32 %v5801, %v5947
        %v5970 = vshrl.u32 %v4564, 16
        %v5972 = vshll.u32 %v4564, 16
        %v5974 = vrot.slane %v5972, 1
        %v5975 = vor.u32 %v5970, %v5974
        %v5977 = vshll.u32 %v4576, 16
        %v5979 = vrot.slane %v5977, 1
        %v5980 = vsel %vm1277, %v5975, %v5979
        %v5981 = vld [vmem:[%s5 + $0xe0] sm:$0xf]
        %v5982 = vld [vmem:[%s5 + $0xe4] sm:$0xf]
        %v5983 = vld [vmem:[%s5 + $0xe8] sm:$0xf]
        %v5984 = vld [vmem:[%s5 + $0xec] sm:$0xf]
        %v5985 = vld [vmem:[%s5 + $0xf0] sm:$0xf]
        %v5986 = vld [vmem:[%s5 + $0xf4] sm:$0xf]
        %v5987 = vld [vmem:[%s5 + $0xf8] sm:$0xf]
        %v5988 = vld [vmem:[%s5 + $0xfc] sm:$0xf]
        %v5997 = vunpack.c.l.b16 %v5981
        %v5998 = vunpack.c.l.b16 %v5982
        %v5999 = vunpack.c.l.b16 %v5983
        %v6000 = vunpack.c.l.b16 %v5984
        %v6001 = vunpack.c.l.b16 %v5985
        %v6002 = vunpack.c.l.b16 %v5986
        %v6003 = vunpack.c.l.b16 %v5987
        %v6004 = vunpack.c.l.b16 %v5988
        %v6005 = vpack.c.b16 %v5998, %v5997
        %v6006 = vpack.c.b16 %v6000, %v5999
        %v6007 = vpack.c.b16 %v6002, %v6001
        %v6008 = vpack.c.b16 %v6004, %v6003
        %v6014 = vsel %vm2497, %v5980, 0
        %6016 = vmatprep.subr.bf16.mxu0 0
        %6017 = vmatpush1.bf16.msra.mxu0 %v6005
        %6018 = vmatprep.subr.bf16.mxu0 0
        %6019 = vmatpush1.bf16.msra.mxu0 %v6006
        %6020 = vmatprep.subr.bf16.mxu0 0
        %6021 = vmatpush1.bf16.msra.mxu0 %v6007
        %6022 = vmatprep.subr.bf16.mxu0 0
        %6023 = vmatpush1.bf16.msra.mxu0 %v6008
        %6024 = vmatprep.subr.bf16.mxu0 0
        %6025 = vmatpush1.bf16.msra.mxu0 0
        %6026 = vmatprep.subr.bf16.mxu0 0
        %6027 = vmatpush1.bf16.msra.mxu0 0
        %6028 = vmatprep.subr.bf16.mxu0 0
        %6029 = vmatpush1.bf16.msra.mxu0 0
        %6030 = vmatprep.subr.bf16.mxu0 0
        %6031 = vmatpush1.bf16.msra.mxu0 0
        %6032 = vmatprep.subr.bf16.mxu0 0
        %6033 = vmatpush1.bf16.msra.mxu0 0
        %6034 = vmatprep.subr.bf16.mxu0 0
        %6035 = vmatpush1.bf16.msra.mxu0 0
        %6036 = vmatprep.subr.bf16.mxu0 0
        %6037 = vmatpush1.bf16.msra.mxu0 0
        %6038 = vmatprep.subr.bf16.mxu0 0
        %6039 = vmatpush1.bf16.msra.mxu0 0
        %6040 = vmatprep.subr.bf16.mxu0 0
        %6041 = vmatpush1.bf16.msra.mxu0 0
        %6042 = vmatprep.subr.bf16.mxu0 0
        %6043 = vmatpush1.bf16.msra.mxu0 0
        %6044 = vmatprep.subr.bf16.mxu0 0
        %6045 = vmatpush1.bf16.msra.mxu0 0
        %6046 = vmatprep.subr.bf16.mxu0 0
        %6047 = vmatpush1.bf16.msra.mxu0 0
        %6048 = vmatprep.mubr.bf16.mxu0 0
        %6049 = vmatmul.mubr.bf16.gmra.mrb[0].mxu0 %v4744
        %v6050 = vpop.f32.mrb[0].mxu0
        %v6051 = vadd.f32 0.0, %v6050
        %v6052 = vpop.f32.mrb[0].mxu0
        %v6053 = vpop.f32.mrb[0].mxu0
        %v6054 = vadd.f32 0.0, %v6053
        %v6055 = vpop.f32.mrb[0].mxu0
        %6056 = vmatprep.mubr.bf16.mxu0 0
        %6057 = vmatmul.mubr.bf16.gmra.mrb[0].mxu0 %v4747
        %v6058 = vpop.f32.mrb[0].mxu0
        %v6059 = vadd.f32 0.0, %v6058
        %v6060 = vpop.f32.mrb[0].mxu0
        %v6061 = vpop.f32.mrb[0].mxu0
        %v6062 = vadd.f32 0.0, %v6061
        %v6063 = vpop.f32.mrb[0].mxu0
        %6064 = vmatprep.mubr.bf16.mxu0 0
        %6065 = vmatmul.mubr.bf16.gmra.mrb[0].mxu0 %v4750
        %v6066 = vpop.f32.mrb[0].mxu0
        %v6067 = vadd.f32 0.0, %v6066
        %v6068 = vpop.f32.mrb[0].mxu0
        %v6069 = vpop.f32.mrb[0].mxu0
        %v6070 = vadd.f32 0.0, %v6069
        %v6071 = vpop.f32.mrb[0].mxu0
        %6072 = vmatprep.mubr.bf16.mxu0 0
        %6073 = vmatmul.mubr.bf16.gmra.mrb[0].mxu0 %v4753
        %v6074 = vpop.f32.mrb[0].mxu0
        %v6075 = vadd.f32 0.0, %v6074
        %v6076 = vpop.f32.mrb[0].mxu0
        %v6077 = vpop.f32.mrb[0].mxu0
        %v6078 = vadd.f32 0.0, %v6077
        %v6079 = vpop.f32.mrb[0].mxu0
        %6080 = vmatprep.mubr.bf16.mxu0 0
        %6081 = vmatmul.mubr.bf16.gmra.mrb[0].mxu0 %v4756
        %v6082 = vpop.f32.mrb[0].mxu0
        %v6083 = vadd.f32 0.0, %v6082
        %v6084 = vpop.f32.mrb[0].mxu0
        %v6085 = vpop.f32.mrb[0].mxu0
        %v6086 = vadd.f32 0.0, %v6085
        %v6087 = vpop.f32.mrb[0].mxu0
        %6088 = vmatprep.mubr.bf16.mxu0 0
        %6089 = vmatmul.mubr.bf16.gmra.mrb[0].mxu0 %v4759
        %v6090 = vpop.f32.mrb[0].mxu0
        %v6091 = vadd.f32 0.0, %v6090
        %v6092 = vpop.f32.mrb[0].mxu0
        %v6093 = vpop.f32.mrb[0].mxu0
        %v6094 = vadd.f32 0.0, %v6093
        %v6095 = vpop.f32.mrb[0].mxu0
        %6096 = vmatprep.mubr.bf16.mxu0 0
        %6097 = vmatmul.mubr.bf16.gmra.mrb[0].mxu0 %v4762
        %v6098 = vpop.f32.mrb[0].mxu0
        %v6099 = vadd.f32 0.0, %v6098
        %v6100 = vpop.f32.mrb[0].mxu0
        %v6101 = vpop.f32.mrb[0].mxu0
        %v6102 = vadd.f32 0.0, %v6101
        %v6103 = vpop.f32.mrb[0].mxu0
        %6104 = vmatprep.mubr.bf16.mxu0 0
        %6105 = vmatmul.mubr.bf16.gmra.mrb[0].mxu0 %v4765
        %v6106 = vpop.f32.mrb[0].mxu0
        %v6107 = vadd.f32 0.0, %v6106
        %v6108 = vpop.f32.mrb[0].mxu0
        %v6109 = vpop.f32.mrb[0].mxu0
        %v6110 = vadd.f32 0.0, %v6109
        %v6111 = vpop.f32.mrb[0].mxu0
        %6112 = vmatprep.mubr.bf16.mxu0 0
        %6113 = vmatmul.mubr.bf16.gmra.mrb[0].mxu0 %v5494
        %v6114 = vpop.f32.mrb[0].mxu0
        %v6115 = vadd.f32 0.0, %v6114
        %v6116 = vpop.f32.mrb[0].mxu0
        %v6117 = vpop.f32.mrb[0].mxu0
        %v6118 = vadd.f32 0.0, %v6117
        %v6119 = vpop.f32.mrb[0].mxu0
        %6120 = vmatprep.mubr.bf16.mxu0 0
        %6121 = vmatmul.mubr.bf16.gmra.mrb[0].mxu0 %v6014
        %v6122 = vpop.f32.mrb[0].mxu0
        %v6123 = vadd.f32 0.0, %v6122
        %v6124 = vpop.f32.mrb[0].mxu0
        %v6125 = vpop.f32.mrb[0].mxu0
        %v6126 = vadd.f32 0.0, %v6125
        %v6127 = vpop.f32.mrb[0].mxu0
        %6128 = vdwg.mxu0
        %v6129 = vadd.f32 %v5950, %v6051
        %v6130 = vadd.f32 %v5951, %v6054
        %v6131 = vadd.f32 %v5952, %v6059
        %v6132 = vadd.f32 %v5953, %v6062
        %v6133 = vadd.f32 %v5954, %v6067
        %v6134 = vadd.f32 %v5955, %v6070
        %v6135 = vadd.f32 %v5956, %v6075
        %v6136 = vadd.f32 %v5957, %v6078
        %v6137 = vadd.f32 %v5958, %v6083
        %v6138 = vadd.f32 %v5959, %v6086
        %v6139 = vadd.f32 %v5960, %v6091
        %v6140 = vadd.f32 %v5961, %v6094
        %v6141 = vadd.f32 %v5962, %v6099
        %v6142 = vadd.f32 %v5963, %v6102
        %v6143 = vadd.f32 %v5964, %v6107
        %v6144 = vadd.f32 %v5965, %v6110
        %v6145 = vadd.f32 %v5966, %v6115
        %v6146 = vadd.f32 %v5967, %v6118
        %v6147 = vadd.f32 %v5968, %v6123
        %v6148 = vadd.f32 %v5969, %v6126
        %v6151 = vrot.slane %v4564, 1
        %v6152 = vrot.slane %v4576, 1
        %v6153 = vsel %vm1214, %v6151, %v6152
        %v6154 = vld [vmem:[%s5 + $0x100] sm:$0xf]
        %v6155 = vld [vmem:[%s5 + $0x104] sm:$0xf]
        %v6156 = vld [vmem:[%s5 + $0x108] sm:$0xf]
        %v6157 = vld [vmem:[%s5 + $0x10c] sm:$0xf]
        %v6158 = vld [vmem:[%s5 + $0x110] sm:$0xf]
        %v6159 = vld [vmem:[%s5 + $0x114] sm:$0xf]
        %v6160 = vld [vmem:[%s5 + $0x118] sm:$0xf]
        %v6161 = vld [vmem:[%s5 + $0x11c] sm:$0xf]
        %v6170 = vunpack.c.l.b16 %v6154
        %v6171 = vunpack.c.l.b16 %v6155
        %v6172 = vunpack.c.l.b16 %v6156
        %v6173 = vunpack.c.l.b16 %v6157
        %v6174 = vunpack.c.l.b16 %v6158
        %v6175 = vunpack.c.l.b16 %v6159
        %v6176 = vunpack.c.l.b16 %v6160
        %v6177 = vunpack.c.l.b16 %v6161
        %v6178 = vpack.c.b16 %v6171, %v6170
        %v6179 = vpack.c.b16 %v6173, %v6172
        %v6180 = vpack.c.b16 %v6175, %v6174
        %v6181 = vpack.c.b16 %v6177, %v6176
        %v6187 = vsel %vm2497, %v6153, 0
        %6189 = vmatprep.subr.bf16.mxu0 0
        %6190 = vmatpush1.bf16.msra.mxu0 %v6178
        %6191 = vmatprep.subr.bf16.mxu0 0
        %6192 = vmatpush1.bf16.msra.mxu0 %v6179
        %6193 = vmatprep.subr.bf16.mxu0 0
        %6194 = vmatpush1.bf16.msra.mxu0 %v6180
        %6195 = vmatprep.subr.bf16.mxu0 0
        %6196 = vmatpush1.bf16.msra.mxu0 %v6181
        %6197 = vmatprep.subr.bf16.mxu0 0
        %6198 = vmatpush1.bf16.msra.mxu0 0
        %6199 = vmatprep.subr.bf16.mxu0 0
        %6200 = vmatpush1.bf16.msra.mxu0 0
        %6201 = vmatprep.subr.bf16.mxu0 0
        %6202 = vmatpush1.bf16.msra.mxu0 0
        %6203 = vmatprep.subr.bf16.mxu0 0
        %6204 = vmatpush1.bf16.msra.mxu0 0
        %6205 = vmatprep.subr.bf16.mxu0 0
        %6206 = vmatpush1.bf16.msra.mxu0 0
        %6207 = vmatprep.subr.bf16.mxu0 0
        %6208 = vmatpush1.bf16.msra.mxu0 0
        %6209 = vmatprep.subr.bf16.mxu0 0
        %6210 = vmatpush1.bf16.msra.mxu0 0
        %6211 = vmatprep.subr.bf16.mxu0 0
        %6212 = vmatpush1.bf16.msra.mxu0 0
        %6213 = vmatprep.subr.bf16.mxu0 0
        %6214 = vmatpush1.bf16.msra.mxu0 0
        %6215 = vmatprep.subr.bf16.mxu0 0
        %6216 = vmatpush1.bf16.msra.mxu0 0
        %6217 = vmatprep.subr.bf16.mxu0 0
        %6218 = vmatpush1.bf16.msra.mxu0 0
        %6219 = vmatprep.subr.bf16.mxu0 0
        %6220 = vmatpush1.bf16.msra.mxu0 0
        %6221 = vmatprep.mubr.bf16.mxu0 0
        %6222 = vmatmul.mubr.bf16.gmra.mrb[0].mxu0 %v5126
        %v6223 = vpop.f32.mrb[0].mxu0
        %v6224 = vadd.f32 0.0, %v6223
        %v6225 = vpop.f32.mrb[0].mxu0
        %v6226 = vpop.f32.mrb[0].mxu0
        %v6227 = vadd.f32 0.0, %v6226
        %v6228 = vpop.f32.mrb[0].mxu0
        %6229 = vmatprep.mubr.bf16.mxu0 0
        %6230 = vmatmul.mubr.bf16.gmra.mrb[0].mxu0 %v5129
        %v6231 = vpop.f32.mrb[0].mxu0
        %v6232 = vadd.f32 0.0, %v6231
        %v6233 = vpop.f32.mrb[0].mxu0
        %v6234 = vpop.f32.mrb[0].mxu0
        %v6235 = vadd.f32 0.0, %v6234
        %v6236 = vpop.f32.mrb[0].mxu0
        %6237 = vmatprep.mubr.bf16.mxu0 0
        %6238 = vmatmul.mubr.bf16.gmra.mrb[0].mxu0 %v5132
        %v6239 = vpop.f32.mrb[0].mxu0
        %v6240 = vadd.f32 0.0, %v6239
        %v6241 = vpop.f32.mrb[0].mxu0
        %v6242 = vpop.f32.mrb[0].mxu0
        %v6243 = vadd.f32 0.0, %v6242
        %v6244 = vpop.f32.mrb[0].mxu0
        %6245 = vmatprep.mubr.bf16.mxu0 0
        %6246 = vmatmul.mubr.bf16.gmra.mrb[0].mxu0 %v5135
        %v6247 = vpop.f32.mrb[0].mxu0
        %v6248 = vadd.f32 0.0, %v6247
        %v6249 = vpop.f32.mrb[0].mxu0
        %v6250 = vpop.f32.mrb[0].mxu0
        %v6251 = vadd.f32 0.0, %v6250
        %v6252 = vpop.f32.mrb[0].mxu0
        %6253 = vmatprep.mubr.bf16.mxu0 0
        %6254 = vmatmul.mubr.bf16.gmra.mrb[0].mxu0 %v5138
        %v6255 = vpop.f32.mrb[0].mxu0
        %v6256 = vadd.f32 0.0, %v6255
        %v6257 = vpop.f32.mrb[0].mxu0
        %v6258 = vpop.f32.mrb[0].mxu0
        %v6259 = vadd.f32 0.0, %v6258
        %v6260 = vpop.f32.mrb[0].mxu0
        %6261 = vmatprep.mubr.bf16.mxu0 0
        %6262 = vmatmul.mubr.bf16.gmra.mrb[0].mxu0 %v5141
        %v6263 = vpop.f32.mrb[0].mxu0
        %v6264 = vadd.f32 0.0, %v6263
        %v6265 = vpop.f32.mrb[0].mxu0
        %v6266 = vpop.f32.mrb[0].mxu0
        %v6267 = vadd.f32 0.0, %v6266
        %v6268 = vpop.f32.mrb[0].mxu0
        %6269 = vmatprep.mubr.bf16.mxu0 0
        %6270 = vmatmul.mubr.bf16.gmra.mrb[0].mxu0 %v5144
        %v6271 = vpop.f32.mrb[0].mxu0
        %v6272 = vadd.f32 0.0, %v6271
        %v6273 = vpop.f32.mrb[0].mxu0
        %v6274 = vpop.f32.mrb[0].mxu0
        %v6275 = vadd.f32 0.0, %v6274
        %v6276 = vpop.f32.mrb[0].mxu0
        %6277 = vmatprep.mubr.bf16.mxu0 0
        %6278 = vmatmul.mubr.bf16.gmra.mrb[0].mxu0 %v5147
        %v6279 = vpop.f32.mrb[0].mxu0
        %v6280 = vadd.f32 0.0, %v6279
        %v6281 = vpop.f32.mrb[0].mxu0
        %v6282 = vpop.f32.mrb[0].mxu0
        %v6283 = vadd.f32 0.0, %v6282
        %v6284 = vpop.f32.mrb[0].mxu0
        %6285 = vmatprep.mubr.bf16.mxu0 0
        %6286 = vmatmul.mubr.bf16.gmra.mrb[0].mxu0 %v5667
        %v6287 = vpop.f32.mrb[0].mxu0
        %v6288 = vadd.f32 0.0, %v6287
        %v6289 = vpop.f32.mrb[0].mxu0
        %v6290 = vpop.f32.mrb[0].mxu0
        %v6291 = vadd.f32 0.0, %v6290
        %v6292 = vpop.f32.mrb[0].mxu0
        %6293 = vmatprep.mubr.bf16.mxu0 0
        %6294 = vmatmul.mubr.bf16.gmra.mrb[0].mxu0 %v6187
        %v6295 = vpop.f32.mrb[0].mxu0
        %v6296 = vadd.f32 0.0, %v6295
        %v6297 = vpop.f32.mrb[0].mxu0
        %v6298 = vpop.f32.mrb[0].mxu0
        %v6299 = vadd.f32 0.0, %v6298
        %v6300 = vpop.f32.mrb[0].mxu0
        %6301 = vdwg.mxu0
        %v6302 = vadd.f32 %v6129, %v6224
        %v6303 = vadd.f32 %v6130, %v6227
        %v6304 = vadd.f32 %v6131, %v6232
        %v6305 = vadd.f32 %v6132, %v6235
        %v6306 = vadd.f32 %v6133, %v6240
        %v6307 = vadd.f32 %v6134, %v6243
        %v6308 = vadd.f32 %v6135, %v6248
        %v6309 = vadd.f32 %v6136, %v6251
        %v6310 = vadd.f32 %v6137, %v6256
        %v6311 = vadd.f32 %v6138, %v6259
        %v6312 = vadd.f32 %v6139, %v6264
        %v6313 = vadd.f32 %v6140, %v6267
        %v6314 = vadd.f32 %v6141, %v6272
        %v6315 = vadd.f32 %v6142, %v6275
        %v6316 = vadd.f32 %v6143, %v6280
        %v6317 = vadd.f32 %v6144, %v6283
        %v6318 = vadd.f32 %v6145, %v6288
        %v6319 = vadd.f32 %v6146, %v6291
        %v6320 = vadd.f32 %v6147, %v6296
        %v6321 = vadd.f32 %v6148, %v6299
        %v6322 = vld [vmem:[%s6] sm:$0x1]
        %v6324 = vlaneseq
        %v6325 = vshrl.u32 %v6324, 7
        %v6326 = vsub.s32 0, %v6325
        %v6327 = vrot.slane %v6322, %v6326
        %v6329 = vadd.f32 %v6302, %v6327
        %v6330 = vadd.f32 %v6303, %v6327
        %v6331 = vadd.f32 %v6304, %v6327
        %v6332 = vadd.f32 %v6305, %v6327
        %v6333 = vadd.f32 %v6306, %v6327
        %v6334 = vadd.f32 %v6307, %v6327
        %v6335 = vadd.f32 %v6308, %v6327
        %v6336 = vadd.f32 %v6309, %v6327
        %v6337 = vadd.f32 %v6310, %v6327
        %v6338 = vadd.f32 %v6311, %v6327
        %v6339 = vadd.f32 %v6312, %v6327
        %v6340 = vadd.f32 %v6313, %v6327
        %v6341 = vadd.f32 %v6314, %v6327
        %v6342 = vadd.f32 %v6315, %v6327
        %v6343 = vadd.f32 %v6316, %v6327
        %v6344 = vadd.f32 %v6317, %v6327
        %v6345 = vadd.f32 %v6318, %v6327
        %v6346 = vadd.f32 %v6319, %v6327
        %v6347 = vadd.f32 %v6320, %v6327
        %v6348 = vadd.f32 %v6321, %v6327
        %v6349 = vmax.f32 %v6329, 0.0
        %v6350 = vmax.f32 %v6330, 0.0
        %v6351 = vmax.f32 %v6331, 0.0
        %v6352 = vmax.f32 %v6332, 0.0
        %v6353 = vmax.f32 %v6333, 0.0
        %v6354 = vmax.f32 %v6334, 0.0
        %v6355 = vmax.f32 %v6335, 0.0
        %v6356 = vmax.f32 %v6336, 0.0
        %v6357 = vmax.f32 %v6337, 0.0
        %v6358 = vmax.f32 %v6338, 0.0
        %v6359 = vmax.f32 %v6339, 0.0
        %v6360 = vmax.f32 %v6340, 0.0
        %v6361 = vmax.f32 %v6341, 0.0
        %v6362 = vmax.f32 %v6342, 0.0
        %v6363 = vmax.f32 %v6343, 0.0
        %v6364 = vmax.f32 %v6344, 0.0
        %v6365 = vmax.f32 %v6345, 0.0
        %v6366 = vmax.f32 %v6346, 0.0
        %v6367 = vmax.f32 %v6347, 0.0
        %v6368 = vmax.f32 %v6348, 0.0
        %s6369 = ssub.s32 %s401, 1
        %v6370 = vstv %s6369
        %v6371 = vadd.s32 %v6370, 1
        %v6372 = vadd.s32 %v6370, 2
        %v6373 = vadd.s32 %v6370, 3
        %v6374 = vadd.s32 %v6370, 4
        %v6375 = vadd.s32 %v6370, 5
        %v6376 = vadd.s32 %v6370, 6
        %v6377 = vadd.s32 %v6370, 7
        %v6378 = vadd.s32 %v6370, 8
        %v6379 = vadd.s32 %v6370, 9
        %vm6380 = vcmp.ge.s32.totalorder %v6370, 0
        %vm6381 = vcmp.ge.s32.totalorder %v6371, 0
        %vm6382 = vcmp.ge.s32.totalorder %v6372, 0
        %vm6383 = vcmp.ge.s32.totalorder %v6373, 0
        %vm6384 = vcmp.ge.s32.totalorder %v6374, 0
        %vm6385 = vcmp.ge.s32.totalorder %v6375, 0
        %vm6386 = vcmp.ge.s32.totalorder %v6376, 0
        %vm6387 = vcmp.ge.s32.totalorder %v6377, 0
        %vm6388 = vcmp.ge.s32.totalorder %v6378, 0
        %vm6389 = vcmp.ge.s32.totalorder %v6379, 0
        %vm6390 = vcmp.lt.s32.totalorder %v6370, 16
        %vm6391 = vcmp.lt.s32.totalorder %v6371, 16
        %vm6392 = vcmp.lt.s32.totalorder %v6372, 16
        %vm6393 = vcmp.lt.s32.totalorder %v6373, 16
        %vm6394 = vcmp.lt.s32.totalorder %v6374, 16
        %vm6395 = vcmp.lt.s32.totalorder %v6375, 16
        %vm6396 = vcmp.lt.s32.totalorder %v6376, 16
        %vm6397 = vcmp.lt.s32.totalorder %v6377, 16
        %vm6398 = vcmp.lt.s32.totalorder %v6378, 16
        %vm6399 = vcmp.lt.s32.totalorder %v6379, 16
        %vm6400 = vmand %vm6380, %vm6390
        %vm6401 = vmand %vm6381, %vm6391
        %vm6402 = vmand %vm6382, %vm6392
        %vm6403 = vmand %vm6383, %vm6393
        %vm6404 = vmand %vm6384, %vm6394
        %vm6405 = vmand %vm6385, %vm6395
        %vm6406 = vmand %vm6386, %vm6396
        %vm6407 = vmand %vm6387, %vm6397
        %vm6408 = vmand %vm6388, %vm6398
        %vm6409 = vmand %vm6389, %vm6399
        %v6410 = vsel %vm6400, 1, 0
        %v6411 = vsel %vm6401, 1, 0
        %v6412 = vsel %vm6402, 1, 0
        %v6413 = vsel %vm6403, 1, 0
        %v6414 = vsel %vm6404, 1, 0
        %v6415 = vsel %vm6405, 1, 0
        %v6416 = vsel %vm6406, 1, 0
        %v6417 = vsel %vm6407, 1, 0
        %v6418 = vsel %vm6408, 1, 0
        %v6419 = vsel %vm6409, 1, 0
        %v6420 = vcvt.s32.f32 %v6410
        %v6421 = vcvt.s32.f32 %v6411
        %v6422 = vcvt.s32.f32 %v6412
        %v6423 = vcvt.s32.f32 %v6413
        %v6424 = vcvt.s32.f32 %v6414
        %v6425 = vcvt.s32.f32 %v6415
        %v6426 = vcvt.s32.f32 %v6416
        %v6427 = vcvt.s32.f32 %v6417
        %v6428 = vcvt.s32.f32 %v6418
        %v6429 = vcvt.s32.f32 %v6419
        %v6430 = vmul.f32 %v6349, %v6420
        %v6431 = vmul.f32 %v6350, %v6420
        %v6432 = vmul.f32 %v6351, %v6421
        %v6433 = vmul.f32 %v6352, %v6421
        %v6434 = vmul.f32 %v6353, %v6422
        %v6435 = vmul.f32 %v6354, %v6422
        %v6436 = vmul.f32 %v6355, %v6423
        %v6437 = vmul.f32 %v6356, %v6423
        %v6438 = vmul.f32 %v6357, %v6424
        %v6439 = vmul.f32 %v6358, %v6424
        %v6440 = vmul.f32 %v6359, %v6425
        %v6441 = vmul.f32 %v6360, %v6425
        %v6442 = vmul.f32 %v6361, %v6426
        %v6443 = vmul.f32 %v6362, %v6426
        %v6444 = vmul.f32 %v6363, %v6427
        %v6445 = vmul.f32 %v6364, %v6427
        %v6446 = vmul.f32 %v6365, %v6428
        %v6447 = vmul.f32 %v6366, %v6428
        %v6448 = vmul.f32 %v6367, %v6429
        %v6449 = vmul.f32 %v6368, %v6429
        %v6450 = vpack.c.bf16 %v6431, %v6430
        %v6451 = vpack.c.bf16 %v6433, %v6432
        %v6452 = vpack.c.bf16 %v6435, %v6434
        %v6453 = vpack.c.bf16 %v6437, %v6436
        %v6454 = vpack.c.bf16 %v6439, %v6438
        %v6455 = vpack.c.bf16 %v6441, %v6440
        %v6456 = vpack.c.bf16 %v6443, %v6442
        %v6457 = vpack.c.bf16 %v6445, %v6444
        %v6458 = vpack.c.bf16 %v6447, %v6446
        %v6459 = vpack.c.bf16 %v6449, %v6448
        %v6461 = vshrl.u32 %v6450, 16
        %v6463 = vrot.slane %v6461, 7
        %v6464 = vshll.u32 %v6450, 16
        %v6466 = vor.u32 %v6463, %v6464
        %v6468 = vshrl.u32 %v6451, 16
        %v6470 = vrot.slane %v6468, 7
        %v6471 = vshll.u32 %v6451, 16
        %v6473 = vor.u32 %v6470, %v6471
        %v6475 = vshrl.u32 %v6452, 16
        %v6477 = vrot.slane %v6475, 7
        %v6478 = vshll.u32 %v6452, 16
        %v6480 = vor.u32 %v6477, %v6478
        %v6482 = vshrl.u32 %v6453, 16
        %v6484 = vrot.slane %v6482, 7
        %v6485 = vshll.u32 %v6453, 16
        %v6487 = vor.u32 %v6484, %v6485
        %v6489 = vshrl.u32 %v6454, 16
        %v6491 = vrot.slane %v6489, 7
        %v6492 = vshll.u32 %v6454, 16
        %v6494 = vor.u32 %v6491, %v6492
        %v6496 = vshrl.u32 %v6455, 16
        %v6498 = vrot.slane %v6496, 7
        %v6499 = vshll.u32 %v6455, 16
        %v6501 = vor.u32 %v6498, %v6499
        %v6503 = vshrl.u32 %v6456, 16
        %v6505 = vrot.slane %v6503, 7
        %v6506 = vshll.u32 %v6456, 16
        %v6508 = vor.u32 %v6505, %v6506
        %v6510 = vshrl.u32 %v6457, 16
        %v6512 = vrot.slane %v6510, 7
        %v6513 = vshll.u32 %v6457, 16
        %v6515 = vor.u32 %v6512, %v6513
        %v6517 = vshrl.u32 %v6458, 16
        %v6519 = vrot.slane %v6517, 7
        %v6520 = vshll.u32 %v6458, 16
        %v6522 = vor.u32 %v6519, %v6520
        %v6524 = vshrl.u32 %v6459, 16
        %v6526 = vrot.slane %v6524, 7
        %v6527 = vshll.u32 %v6459, 16
        %v6529 = vor.u32 %v6526, %v6527
        %v6550 = vsel %vm784, 0, %v6466
        %v6551 = vsel %vm784, 0, %v6473
        %v6552 = vsel %vm784, 0, %v6480
        %v6553 = vsel %vm784, 0, %v6487
        %v6554 = vsel %vm784, 0, %v6494
        %v6555 = vsel %vm784, 0, %v6501
        %v6556 = vsel %vm784, 0, %v6508
        %v6557 = vsel %vm784, 0, %v6515
        %v6558 = vsel %vm784, 0, %v6522
        %v6559 = vsel %vm784, 0, %v6529
        %v6560 = vsel %vm784, %v6463, 0
        %v6561 = vsel %vm784, %v6470, 0
        %v6562 = vsel %vm784, %v6477, 0
        %v6563 = vsel %vm784, %v6484, 0
        %v6564 = vsel %vm784, %v6491, 0
        %v6565 = vsel %vm784, %v6498, 0
        %v6566 = vsel %vm784, %v6505, 0
        %v6567 = vsel %vm784, %v6512, 0
        %v6568 = vsel %vm784, %v6519, 0
        %v6569 = vsel %vm784, %v6526, 0
        %v6570 = vld [vmem:[%s7] sm:$0xf]
        %v6571 = vld [vmem:[%s7 + $0x4] sm:$0xf]
        %v6572 = vld [vmem:[%s7 + $0x8] sm:$0xf]
        %v6573 = vld [vmem:[%s7 + $0xc] sm:$0xf]
        %v6575 = vshrl.u32 %v6550, 16
        %v6577 = vshll.u32 %v6550, 16
        %v6579 = vrot.slane %v6577, 1
        %v6580 = vor.u32 %v6575, %v6579
        %v6582 = vshll.u32 %v6560, 16
        %v6584 = vrot.slane %v6582, 1
        %v6585 = vsel %vm1277, %v6580, %v6584
        %v6587 = vshrl.u32 %v6551, 16
        %v6589 = vshll.u32 %v6551, 16
        %v6591 = vrot.slane %v6589, 1
        %v6592 = vor.u32 %v6587, %v6591
        %v6594 = vshll.u32 %v6561, 16
        %v6596 = vrot.slane %v6594, 1
        %v6597 = vsel %vm1277, %v6592, %v6596
        %v6599 = vshrl.u32 %v6552, 16
        %v6601 = vshll.u32 %v6552, 16
        %v6603 = vrot.slane %v6601, 1
        %v6604 = vor.u32 %v6599, %v6603
        %v6606 = vshll.u32 %v6562, 16
        %v6608 = vrot.slane %v6606, 1
        %v6609 = vsel %vm1277, %v6604, %v6608
        %v6611 = vshrl.u32 %v6553, 16
        %v6613 = vshll.u32 %v6553, 16
        %v6615 = vrot.slane %v6613, 1
        %v6616 = vor.u32 %v6611, %v6615
        %v6618 = vshll.u32 %v6563, 16
        %v6620 = vrot.slane %v6618, 1
        %v6621 = vsel %vm1277, %v6616, %v6620
        %v6623 = vshrl.u32 %v6554, 16
        %v6625 = vshll.u32 %v6554, 16
        %v6627 = vrot.slane %v6625, 1
        %v6628 = vor.u32 %v6623, %v6627
        %v6630 = vshll.u32 %v6564, 16
        %v6632 = vrot.slane %v6630, 1
        %v6633 = vsel %vm1277, %v6628, %v6632
        %v6635 = vshrl.u32 %v6555, 16
        %v6637 = vshll.u32 %v6555, 16
        %v6639 = vrot.slane %v6637, 1
        %v6640 = vor.u32 %v6635, %v6639
        %v6642 = vshll.u32 %v6565, 16
        %v6644 = vrot.slane %v6642, 1
        %v6645 = vsel %vm1277, %v6640, %v6644
        %v6647 = vshrl.u32 %v6556, 16
        %v6649 = vshll.u32 %v6556, 16
        %v6651 = vrot.slane %v6649, 1
        %v6652 = vor.u32 %v6647, %v6651
        %v6654 = vshll.u32 %v6566, 16
        %v6656 = vrot.slane %v6654, 1
        %v6657 = vsel %vm1277, %v6652, %v6656
        %v6659 = vshrl.u32 %v6557, 16
        %v6661 = vshll.u32 %v6557, 16
        %v6663 = vrot.slane %v6661, 1
        %v6664 = vor.u32 %v6659, %v6663
        %v6666 = vshll.u32 %v6567, 16
        %v6668 = vrot.slane %v6666, 1
        %v6669 = vsel %vm1277, %v6664, %v6668
        %v6670 = vld [vmem:[%s7 + $0x10] sm:$0xf]
        %v6671 = vld [vmem:[%s7 + $0x14] sm:$0xf]
        %v6672 = vld [vmem:[%s7 + $0x18] sm:$0xf]
        %v6673 = vld [vmem:[%s7 + $0x1c] sm:$0xf]
        %v6678 = vunpack.c.l.b16 %v6670
        %v6679 = vunpack.c.l.b16 %v6671
        %v6680 = vunpack.c.l.b16 %v6672
        %v6681 = vunpack.c.l.b16 %v6673
        %v6682 = vpack.c.b16 %v6679, %v6678
        %v6683 = vpack.c.b16 %v6681, %v6680
        %vm6686 = vcmask 261120
        %v6688 = vsel %vm6686, %v6585, 0
        %v6691 = vsel %vm6686, %v6597, 0
        %v6694 = vsel %vm6686, %v6609, 0
        %v6697 = vsel %vm6686, %v6621, 0
        %v6700 = vsel %vm6686, %v6633, 0
        %v6703 = vsel %vm6686, %v6645, 0
        %v6706 = vsel %vm6686, %v6657, 0
        %v6709 = vsel %vm6686, %v6669, 0
        %6711 = vmatprep.subr.bf16.mxu0 0
        %6712 = vmatpush1.bf16.msra.mxu0 %v6682
        %6713 = vmatprep.subr.bf16.mxu0 0
        %6714 = vmatpush1.bf16.msra.mxu0 %v6683
        %6715 = vmatprep.subr.bf16.mxu0 0
        %6716 = vmatpush1.bf16.msra.mxu0 0
        %6717 = vmatprep.subr.bf16.mxu0 0
        %6718 = vmatpush1.bf16.msra.mxu0 0
        %6719 = vmatprep.subr.bf16.mxu0 0
        %6720 = vmatpush1.bf16.msra.mxu0 0
        %6721 = vmatprep.subr.bf16.mxu0 0
        %6722 = vmatpush1.bf16.msra.mxu0 0
        %6723 = vmatprep.subr.bf16.mxu0 0
        %6724 = vmatpush1.bf16.msra.mxu0 0
        %6725 = vmatprep.subr.bf16.mxu0 0
        %6726 = vmatpush1.bf16.msra.mxu0 0
        %6727 = vmatprep.subr.bf16.mxu0 0
        %6728 = vmatpush1.bf16.msra.mxu0 0
        %6729 = vmatprep.subr.bf16.mxu0 0
        %6730 = vmatpush1.bf16.msra.mxu0 0
        %6731 = vmatprep.subr.bf16.mxu0 0
        %6732 = vmatpush1.bf16.msra.mxu0 0
        %6733 = vmatprep.subr.bf16.mxu0 0
        %6734 = vmatpush1.bf16.msra.mxu0 0
        %6735 = vmatprep.subr.bf16.mxu0 0
        %6736 = vmatpush1.bf16.msra.mxu0 0
        %6737 = vmatprep.subr.bf16.mxu0 0
        %6738 = vmatpush1.bf16.msra.mxu0 0
        %6739 = vmatprep.subr.bf16.mxu0 0
        %6740 = vmatpush1.bf16.msra.mxu0 0
        %6741 = vmatprep.subr.bf16.mxu0 0
        %6742 = vmatpush1.bf16.msra.mxu0 0
        %6743 = vmatprep.mubr.bf16.mxu0 0
        %6744 = vmatmul.mubr.bf16.gmra.mrb[0].mxu0 %v6688
        %v6745 = vpop.f32.mrb[0].mxu0
        %v6746 = vadd.f32 0.0, %v6745
        %v6747 = vpop.f32.mrb[0].mxu0
        %v6748 = vpop.f32.mrb[0].mxu0
        %v6749 = vadd.f32 0.0, %v6748
        %v6750 = vpop.f32.mrb[0].mxu0
        %6751 = vmatprep.mubr.bf16.mxu0 0
        %6752 = vmatmul.mubr.bf16.gmra.mrb[0].mxu0 %v6691
        %v6753 = vpop.f32.mrb[0].mxu0
        %v6754 = vadd.f32 0.0, %v6753
        %v6755 = vpop.f32.mrb[0].mxu0
        %v6756 = vpop.f32.mrb[0].mxu0
        %v6757 = vadd.f32 0.0, %v6756
        %v6758 = vpop.f32.mrb[0].mxu0
        %6759 = vmatprep.mubr.bf16.mxu0 0
        %6760 = vmatmul.mubr.bf16.gmra.mrb[0].mxu0 %v6694
        %v6761 = vpop.f32.mrb[0].mxu0
        %v6762 = vadd.f32 0.0, %v6761
        %v6763 = vpop.f32.mrb[0].mxu0
        %v6764 = vpop.f32.mrb[0].mxu0
        %v6765 = vadd.f32 0.0, %v6764
        %v6766 = vpop.f32.mrb[0].mxu0
        %6767 = vmatprep.mubr.bf16.mxu0 0
        %6768 = vmatmul.mubr.bf16.gmra.mrb[0].mxu0 %v6697
        %v6769 = vpop.f32.mrb[0].mxu0
        %v6770 = vadd.f32 0.0, %v6769
        %v6771 = vpop.f32.mrb[0].mxu0
        %v6772 = vpop.f32.mrb[0].mxu0
        %v6773 = vadd.f32 0.0, %v6772
        %v6774 = vpop.f32.mrb[0].mxu0
        %6775 = vmatprep.mubr.bf16.mxu0 0
        %6776 = vmatmul.mubr.bf16.gmra.mrb[0].mxu0 %v6700
        %v6777 = vpop.f32.mrb[0].mxu0
        %v6778 = vadd.f32 0.0, %v6777
        %v6779 = vpop.f32.mrb[0].mxu0
        %v6780 = vpop.f32.mrb[0].mxu0
        %v6781 = vadd.f32 0.0, %v6780
        %v6782 = vpop.f32.mrb[0].mxu0
        %6783 = vmatprep.mubr.bf16.mxu0 0
        %6784 = vmatmul.mubr.bf16.gmra.mrb[0].mxu0 %v6703
        %v6785 = vpop.f32.mrb[0].mxu0
        %v6786 = vadd.f32 0.0, %v6785
        %v6787 = vpop.f32.mrb[0].mxu0
        %v6788 = vpop.f32.mrb[0].mxu0
        %v6789 = vadd.f32 0.0, %v6788
        %v6790 = vpop.f32.mrb[0].mxu0
        %6791 = vmatprep.mubr.bf16.mxu0 0
        %6792 = vmatmul.mubr.bf16.gmra.mrb[0].mxu0 %v6706
        %v6793 = vpop.f32.mrb[0].mxu0
        %v6794 = vadd.f32 0.0, %v6793
        %v6795 = vpop.f32.mrb[0].mxu0
        %v6796 = vpop.f32.mrb[0].mxu0
        %v6797 = vadd.f32 0.0, %v6796
        %v6798 = vpop.f32.mrb[0].mxu0
        %6799 = vmatprep.mubr.bf16.mxu0 0
        %6800 = vmatmul.mubr.bf16.gmra.mrb[0].mxu0 %v6709
        %v6801 = vpop.f32.mrb[0].mxu0
        %v6802 = vadd.f32 0.0, %v6801
        %v6803 = vpop.f32.mrb[0].mxu0
        %v6804 = vpop.f32.mrb[0].mxu0
        %v6805 = vadd.f32 0.0, %v6804
        %v6806 = vpop.f32.mrb[0].mxu0
        %6807 = vdwg.mxu0
        %v6812 = vunpack.c.l.b16 %v6570
        %v6813 = vunpack.c.l.b16 %v6571
        %v6814 = vunpack.c.l.b16 %v6572
        %v6815 = vunpack.c.l.b16 %v6573
        %v6816 = vpack.c.b16 %v6813, %v6812
        %v6817 = vpack.c.b16 %v6815, %v6814
        %v6820 = vsel %vm6686, %v6550, 0
        %v6822 = vsel %vm6686, %v6551, 0
        %v6824 = vsel %vm6686, %v6552, 0
        %v6826 = vsel %vm6686, %v6553, 0
        %v6828 = vsel %vm6686, %v6554, 0
        %v6830 = vsel %vm6686, %v6555, 0
        %v6832 = vsel %vm6686, %v6556, 0
        %v6834 = vsel %vm6686, %v6557, 0
        %6836 = vmatprep.subr.bf16.mxu0 0
        %6837 = vmatpush1.bf16.msra.mxu0 %v6816
        %6838 = vmatprep.subr.bf16.mxu0 0
        %6839 = vmatpush1.bf16.msra.mxu0 %v6817
        %6840 = vmatprep.subr.bf16.mxu0 0
        %6841 = vmatpush1.bf16.msra.mxu0 0
        %6842 = vmatprep.subr.bf16.mxu0 0
        %6843 = vmatpush1.bf16.msra.mxu0 0
        %6844 = vmatprep.subr.bf16.mxu0 0
        %6845 = vmatpush1.bf16.msra.mxu0 0
        %6846 = vmatprep.subr.bf16.mxu0 0
        %6847 = vmatpush1.bf16.msra.mxu0 0
        %6848 = vmatprep.subr.bf16.mxu0 0
        %6849 = vmatpush1.bf16.msra.mxu0 0
        %6850 = vmatprep.subr.bf16.mxu0 0
        %6851 = vmatpush1.bf16.msra.mxu0 0
        %6852 = vmatprep.subr.bf16.mxu0 0
        %6853 = vmatpush1.bf16.msra.mxu0 0
        %6854 = vmatprep.subr.bf16.mxu0 0
        %6855 = vmatpush1.bf16.msra.mxu0 0
        %6856 = vmatprep.subr.bf16.mxu0 0
        %6857 = vmatpush1.bf16.msra.mxu0 0
        %6858 = vmatprep.subr.bf16.mxu0 0
        %6859 = vmatpush1.bf16.msra.mxu0 0
        %6860 = vmatprep.subr.bf16.mxu0 0
        %6861 = vmatpush1.bf16.msra.mxu0 0
        %6862 = vmatprep.subr.bf16.mxu0 0
        %6863 = vmatpush1.bf16.msra.mxu0 0
        %6864 = vmatprep.subr.bf16.mxu0 0
        %6865 = vmatpush1.bf16.msra.mxu0 0
        %6866 = vmatprep.subr.bf16.mxu0 0
        %6867 = vmatpush1.bf16.msra.mxu0 0
        %6868 = vmatprep.mubr.bf16.mxu0 0
        %6869 = vmatmul.mubr.bf16.gmra.mrb[0].mxu0 %v6820
        %v6870 = vpop.f32.mrb[0].mxu0
        %v6871 = vadd.f32 %v6746, %v6870
        %v6872 = vpop.f32.mrb[0].mxu0
        %v6873 = vpop.f32.mrb[0].mxu0
        %v6874 = vadd.f32 %v6749, %v6873
        %v6875 = vpop.f32.mrb[0].mxu0
        %6876 = vmatprep.mubr.bf16.mxu0 0
        %6877 = vmatmul.mubr.bf16.gmra.mrb[0].mxu0 %v6822
        %v6878 = vpop.f32.mrb[0].mxu0
        %v6879 = vadd.f32 %v6754, %v6878
        %v6880 = vpop.f32.mrb[0].mxu0
        %v6881 = vpop.f32.mrb[0].mxu0
        %v6882 = vadd.f32 %v6757, %v6881
        %v6883 = vpop.f32.mrb[0].mxu0
        %6884 = vmatprep.mubr.bf16.mxu0 0
        %6885 = vmatmul.mubr.bf16.gmra.mrb[0].mxu0 %v6824
        %v6886 = vpop.f32.mrb[0].mxu0
        %v6887 = vadd.f32 %v6762, %v6886
        %v6888 = vpop.f32.mrb[0].mxu0
        %v6889 = vpop.f32.mrb[0].mxu0
        %v6890 = vadd.f32 %v6765, %v6889
        %v6891 = vpop.f32.mrb[0].mxu0
        %6892 = vmatprep.mubr.bf16.mxu0 0
        %6893 = vmatmul.mubr.bf16.gmra.mrb[0].mxu0 %v6826
        %v6894 = vpop.f32.mrb[0].mxu0
        %v6895 = vadd.f32 %v6770, %v6894
        %v6896 = vpop.f32.mrb[0].mxu0
        %v6897 = vpop.f32.mrb[0].mxu0
        %v6898 = vadd.f32 %v6773, %v6897
        %v6899 = vpop.f32.mrb[0].mxu0
        %6900 = vmatprep.mubr.bf16.mxu0 0
        %6901 = vmatmul.mubr.bf16.gmra.mrb[0].mxu0 %v6828
        %v6902 = vpop.f32.mrb[0].mxu0
        %v6903 = vadd.f32 %v6778, %v6902
        %v6904 = vpop.f32.mrb[0].mxu0
        %v6905 = vpop.f32.mrb[0].mxu0
        %v6906 = vadd.f32 %v6781, %v6905
        %v6907 = vpop.f32.mrb[0].mxu0
        %6908 = vmatprep.mubr.bf16.mxu0 0
        %6909 = vmatmul.mubr.bf16.gmra.mrb[0].mxu0 %v6830
        %v6910 = vpop.f32.mrb[0].mxu0
        %v6911 = vadd.f32 %v6786, %v6910
        %v6912 = vpop.f32.mrb[0].mxu0
        %v6913 = vpop.f32.mrb[0].mxu0
        %v6914 = vadd.f32 %v6789, %v6913
        %v6915 = vpop.f32.mrb[0].mxu0
        %6916 = vmatprep.mubr.bf16.mxu0 0
        %6917 = vmatmul.mubr.bf16.gmra.mrb[0].mxu0 %v6832
        %v6918 = vpop.f32.mrb[0].mxu0
        %v6919 = vadd.f32 %v6794, %v6918
        %v6920 = vpop.f32.mrb[0].mxu0
        %v6921 = vpop.f32.mrb[0].mxu0
        %v6922 = vadd.f32 %v6797, %v6921
        %v6923 = vpop.f32.mrb[0].mxu0
        %6924 = vmatprep.mubr.bf16.mxu0 0
        %6925 = vmatmul.mubr.bf16.gmra.mrb[0].mxu0 %v6834
        %v6926 = vpop.f32.mrb[0].mxu0
        %v6927 = vadd.f32 %v6802, %v6926
        %v6928 = vpop.f32.mrb[0].mxu0
        %v6929 = vpop.f32.mrb[0].mxu0
        %v6930 = vadd.f32 %v6805, %v6929
        %v6931 = vpop.f32.mrb[0].mxu0
        %6932 = vdwg.mxu0
        %v6949 = vrot.slane %v6550, 1
        %v6950 = vrot.slane %v6560, 1
        %v6951 = vsel %vm1214, %v6949, %v6950
        %v6952 = vrot.slane %v6551, 1
        %v6953 = vrot.slane %v6561, 1
        %v6954 = vsel %vm1214, %v6952, %v6953
        %v6955 = vrot.slane %v6552, 1
        %v6956 = vrot.slane %v6562, 1
        %v6957 = vsel %vm1214, %v6955, %v6956
        %v6958 = vrot.slane %v6553, 1
        %v6959 = vrot.slane %v6563, 1
        %v6960 = vsel %vm1214, %v6958, %v6959
        %v6961 = vrot.slane %v6554, 1
        %v6962 = vrot.slane %v6564, 1
        %v6963 = vsel %vm1214, %v6961, %v6962
        %v6964 = vrot.slane %v6555, 1
        %v6965 = vrot.slane %v6565, 1
        %v6966 = vsel %vm1214, %v6964, %v6965
        %v6967 = vrot.slane %v6556, 1
        %v6968 = vrot.slane %v6566, 1
        %v6969 = vsel %vm1214, %v6967, %v6968
        %v6970 = vrot.slane %v6557, 1
        %v6971 = vrot.slane %v6567, 1
        %v6972 = vsel %vm1214, %v6970, %v6971
        %v6973 = vld [vmem:[%s7 + $0x20] sm:$0xf]
        %v6974 = vld [vmem:[%s7 + $0x24] sm:$0xf]
        %v6975 = vld [vmem:[%s7 + $0x28] sm:$0xf]
        %v6976 = vld [vmem:[%s7 + $0x2c] sm:$0xf]
        %v6981 = vunpack.c.l.b16 %v6973
        %v6982 = vunpack.c.l.b16 %v6974
        %v6983 = vunpack.c.l.b16 %v6975
        %v6984 = vunpack.c.l.b16 %v6976
        %v6985 = vpack.c.b16 %v6982, %v6981
        %v6986 = vpack.c.b16 %v6984, %v6983
        %v6990 = vsel %vm6686, %v6951, 0
        %v6993 = vsel %vm6686, %v6954, 0
        %v6996 = vsel %vm6686, %v6957, 0
        %v6999 = vsel %vm6686, %v6960, 0
        %v7002 = vsel %vm6686, %v6963, 0
        %v7005 = vsel %vm6686, %v6966, 0
        %v7008 = vsel %vm6686, %v6969, 0
        %v7011 = vsel %vm6686, %v6972, 0
        %7013 = vmatprep.subr.bf16.mxu0 0
        %7014 = vmatpush1.bf16.msra.mxu0 %v6985
        %7015 = vmatprep.subr.bf16.mxu0 0
        %7016 = vmatpush1.bf16.msra.mxu0 %v6986
        %7017 = vmatprep.subr.bf16.mxu0 0
        %7018 = vmatpush1.bf16.msra.mxu0 0
        %7019 = vmatprep.subr.bf16.mxu0 0
        %7020 = vmatpush1.bf16.msra.mxu0 0
        %7021 = vmatprep.subr.bf16.mxu0 0
        %7022 = vmatpush1.bf16.msra.mxu0 0
        %7023 = vmatprep.subr.bf16.mxu0 0
        %7024 = vmatpush1.bf16.msra.mxu0 0
        %7025 = vmatprep.subr.bf16.mxu0 0
        %7026 = vmatpush1.bf16.msra.mxu0 0
        %7027 = vmatprep.subr.bf16.mxu0 0
        %7028 = vmatpush1.bf16.msra.mxu0 0
        %7029 = vmatprep.subr.bf16.mxu0 0
        %7030 = vmatpush1.bf16.msra.mxu0 0
        %7031 = vmatprep.subr.bf16.mxu0 0
        %7032 = vmatpush1.bf16.msra.mxu0 0
        %7033 = vmatprep.subr.bf16.mxu0 0
        %7034 = vmatpush1.bf16.msra.mxu0 0
        %7035 = vmatprep.subr.bf16.mxu0 0
        %7036 = vmatpush1.bf16.msra.mxu0 0
        %7037 = vmatprep.subr.bf16.mxu0 0
        %7038 = vmatpush1.bf16.msra.mxu0 0
        %7039 = vmatprep.subr.bf16.mxu0 0
        %7040 = vmatpush1.bf16.msra.mxu0 0
        %7041 = vmatprep.subr.bf16.mxu0 0
        %7042 = vmatpush1.bf16.msra.mxu0 0
        %7043 = vmatprep.subr.bf16.mxu0 0
        %7044 = vmatpush1.bf16.msra.mxu0 0
        %7045 = vmatprep.mubr.bf16.mxu0 0
        %7046 = vmatmul.mubr.bf16.gmra.mrb[0].mxu0 %v6990
        %v7047 = vpop.f32.mrb[0].mxu0
        %v7048 = vadd.f32 0.0, %v7047
        %v7049 = vpop.f32.mrb[0].mxu0
        %v7050 = vpop.f32.mrb[0].mxu0
        %v7051 = vadd.f32 0.0, %v7050
        %v7052 = vpop.f32.mrb[0].mxu0
        %7053 = vmatprep.mubr.bf16.mxu0 0
        %7054 = vmatmul.mubr.bf16.gmra.mrb[0].mxu0 %v6993
        %v7055 = vpop.f32.mrb[0].mxu0
        %v7056 = vadd.f32 0.0, %v7055
        %v7057 = vpop.f32.mrb[0].mxu0
        %v7058 = vpop.f32.mrb[0].mxu0
        %v7059 = vadd.f32 0.0, %v7058
        %v7060 = vpop.f32.mrb[0].mxu0
        %7061 = vmatprep.mubr.bf16.mxu0 0
        %7062 = vmatmul.mubr.bf16.gmra.mrb[0].mxu0 %v6996
        %v7063 = vpop.f32.mrb[0].mxu0
        %v7064 = vadd.f32 0.0, %v7063
        %v7065 = vpop.f32.mrb[0].mxu0
        %v7066 = vpop.f32.mrb[0].mxu0
        %v7067 = vadd.f32 0.0, %v7066
        %v7068 = vpop.f32.mrb[0].mxu0
        %7069 = vmatprep.mubr.bf16.mxu0 0
        %7070 = vmatmul.mubr.bf16.gmra.mrb[0].mxu0 %v6999
        %v7071 = vpop.f32.mrb[0].mxu0
        %v7072 = vadd.f32 0.0, %v7071
        %v7073 = vpop.f32.mrb[0].mxu0
        %v7074 = vpop.f32.mrb[0].mxu0
        %v7075 = vadd.f32 0.0, %v7074
        %v7076 = vpop.f32.mrb[0].mxu0
        %7077 = vmatprep.mubr.bf16.mxu0 0
        %7078 = vmatmul.mubr.bf16.gmra.mrb[0].mxu0 %v7002
        %v7079 = vpop.f32.mrb[0].mxu0
        %v7080 = vadd.f32 0.0, %v7079
        %v7081 = vpop.f32.mrb[0].mxu0
        %v7082 = vpop.f32.mrb[0].mxu0
        %v7083 = vadd.f32 0.0, %v7082
        %v7084 = vpop.f32.mrb[0].mxu0
        %7085 = vmatprep.mubr.bf16.mxu0 0
        %7086 = vmatmul.mubr.bf16.gmra.mrb[0].mxu0 %v7005
        %v7087 = vpop.f32.mrb[0].mxu0
        %v7088 = vadd.f32 0.0, %v7087
        %v7089 = vpop.f32.mrb[0].mxu0
        %v7090 = vpop.f32.mrb[0].mxu0
        %v7091 = vadd.f32 0.0, %v7090
        %v7092 = vpop.f32.mrb[0].mxu0
        %7093 = vmatprep.mubr.bf16.mxu0 0
        %7094 = vmatmul.mubr.bf16.gmra.mrb[0].mxu0 %v7008
        %v7095 = vpop.f32.mrb[0].mxu0
        %v7096 = vadd.f32 0.0, %v7095
        %v7097 = vpop.f32.mrb[0].mxu0
        %v7098 = vpop.f32.mrb[0].mxu0
        %v7099 = vadd.f32 0.0, %v7098
        %v7100 = vpop.f32.mrb[0].mxu0
        %7101 = vmatprep.mubr.bf16.mxu0 0
        %7102 = vmatmul.mubr.bf16.gmra.mrb[0].mxu0 %v7011
        %v7103 = vpop.f32.mrb[0].mxu0
        %v7104 = vadd.f32 0.0, %v7103
        %v7105 = vpop.f32.mrb[0].mxu0
        %v7106 = vpop.f32.mrb[0].mxu0
        %v7107 = vadd.f32 0.0, %v7106
        %v7108 = vpop.f32.mrb[0].mxu0
        %7109 = vdwg.mxu0
        %v7110 = vadd.f32 %v6871, %v7048
        %v7111 = vadd.f32 %v6874, %v7051
        %v7112 = vadd.f32 %v6879, %v7056
        %v7113 = vadd.f32 %v6882, %v7059
        %v7114 = vadd.f32 %v6887, %v7064
        %v7115 = vadd.f32 %v6890, %v7067
        %v7116 = vadd.f32 %v6895, %v7072
        %v7117 = vadd.f32 %v6898, %v7075
        %v7118 = vadd.f32 %v6903, %v7080
        %v7119 = vadd.f32 %v6906, %v7083
        %v7120 = vadd.f32 %v6911, %v7088
        %v7121 = vadd.f32 %v6914, %v7091
        %v7122 = vadd.f32 %v6919, %v7096
        %v7123 = vadd.f32 %v6922, %v7099
        %v7124 = vadd.f32 %v6927, %v7104
        %v7125 = vadd.f32 %v6930, %v7107
        %v7126 = vld [vmem:[%s7 + $0x30] sm:$0xf]
        %v7127 = vld [vmem:[%s7 + $0x34] sm:$0xf]
        %v7128 = vld [vmem:[%s7 + $0x38] sm:$0xf]
        %v7129 = vld [vmem:[%s7 + $0x3c] sm:$0xf]
        %v7134 = vunpack.c.l.b16 %v7126
        %v7135 = vunpack.c.l.b16 %v7127
        %v7136 = vunpack.c.l.b16 %v7128
        %v7137 = vunpack.c.l.b16 %v7129
        %v7138 = vpack.c.b16 %v7135, %v7134
        %v7139 = vpack.c.b16 %v7137, %v7136
        %v7143 = vsel %vm6686, %v6558, 0
        %7145 = vmatprep.subr.bf16.mxu0 0
        %7146 = vmatpush1.bf16.msra.mxu0 %v7138
        %7147 = vmatprep.subr.bf16.mxu0 0
        %7148 = vmatpush1.bf16.msra.mxu0 %v7139
        %7149 = vmatprep.subr.bf16.mxu0 0
        %7150 = vmatpush1.bf16.msra.mxu0 0
        %7151 = vmatprep.subr.bf16.mxu0 0
        %7152 = vmatpush1.bf16.msra.mxu0 0
        %7153 = vmatprep.subr.bf16.mxu0 0
        %7154 = vmatpush1.bf16.msra.mxu0 0
        %7155 = vmatprep.subr.bf16.mxu0 0
        %7156 = vmatpush1.bf16.msra.mxu0 0
        %7157 = vmatprep.subr.bf16.mxu0 0
        %7158 = vmatpush1.bf16.msra.mxu0 0
        %7159 = vmatprep.subr.bf16.mxu0 0
        %7160 = vmatpush1.bf16.msra.mxu0 0
        %7161 = vmatprep.subr.bf16.mxu0 0
        %7162 = vmatpush1.bf16.msra.mxu0 0
        %7163 = vmatprep.subr.bf16.mxu0 0
        %7164 = vmatpush1.bf16.msra.mxu0 0
        %7165 = vmatprep.subr.bf16.mxu0 0
        %7166 = vmatpush1.bf16.msra.mxu0 0
        %7167 = vmatprep.subr.bf16.mxu0 0
        %7168 = vmatpush1.bf16.msra.mxu0 0
        %7169 = vmatprep.subr.bf16.mxu0 0
        %7170 = vmatpush1.bf16.msra.mxu0 0
        %7171 = vmatprep.subr.bf16.mxu0 0
        %7172 = vmatpush1.bf16.msra.mxu0 0
        %7173 = vmatprep.subr.bf16.mxu0 0
        %7174 = vmatpush1.bf16.msra.mxu0 0
        %7175 = vmatprep.subr.bf16.mxu0 0
        %7176 = vmatpush1.bf16.msra.mxu0 0
        %7177 = vmatprep.mubr.bf16.mxu0 0
        %7178 = vmatmul.mubr.bf16.gmra.mrb[0].mxu0 %v6822
        %v7179 = vpop.f32.mrb[0].mxu0
        %v7180 = vadd.f32 0.0, %v7179
        %v7181 = vpop.f32.mrb[0].mxu0
        %v7182 = vpop.f32.mrb[0].mxu0
        %v7183 = vadd.f32 0.0, %v7182
        %v7184 = vpop.f32.mrb[0].mxu0
        %7185 = vmatprep.mubr.bf16.mxu0 0
        %7186 = vmatmul.mubr.bf16.gmra.mrb[0].mxu0 %v6824
        %v7187 = vpop.f32.mrb[0].mxu0
        %v7188 = vadd.f32 0.0, %v7187
        %v7189 = vpop.f32.mrb[0].mxu0
        %v7190 = vpop.f32.mrb[0].mxu0
        %v7191 = vadd.f32 0.0, %v7190
        %v7192 = vpop.f32.mrb[0].mxu0
        %7193 = vmatprep.mubr.bf16.mxu0 0
        %7194 = vmatmul.mubr.bf16.gmra.mrb[0].mxu0 %v6826
        %v7195 = vpop.f32.mrb[0].mxu0
        %v7196 = vadd.f32 0.0, %v7195
        %v7197 = vpop.f32.mrb[0].mxu0
        %v7198 = vpop.f32.mrb[0].mxu0
        %v7199 = vadd.f32 0.0, %v7198
        %v7200 = vpop.f32.mrb[0].mxu0
        %7201 = vmatprep.mubr.bf16.mxu0 0
        %7202 = vmatmul.mubr.bf16.gmra.mrb[0].mxu0 %v6828
        %v7203 = vpop.f32.mrb[0].mxu0
        %v7204 = vadd.f32 0.0, %v7203
        %v7205 = vpop.f32.mrb[0].mxu0
        %v7206 = vpop.f32.mrb[0].mxu0
        %v7207 = vadd.f32 0.0, %v7206
        %v7208 = vpop.f32.mrb[0].mxu0
        %7209 = vmatprep.mubr.bf16.mxu0 0
        %7210 = vmatmul.mubr.bf16.gmra.mrb[0].mxu0 %v6830
        %v7211 = vpop.f32.mrb[0].mxu0
        %v7212 = vadd.f32 0.0, %v7211
        %v7213 = vpop.f32.mrb[0].mxu0
        %v7214 = vpop.f32.mrb[0].mxu0
        %v7215 = vadd.f32 0.0, %v7214
        %v7216 = vpop.f32.mrb[0].mxu0
        %7217 = vmatprep.mubr.bf16.mxu0 0
        %7218 = vmatmul.mubr.bf16.gmra.mrb[0].mxu0 %v6832
        %v7219 = vpop.f32.mrb[0].mxu0
        %v7220 = vadd.f32 0.0, %v7219
        %v7221 = vpop.f32.mrb[0].mxu0
        %v7222 = vpop.f32.mrb[0].mxu0
        %v7223 = vadd.f32 0.0, %v7222
        %v7224 = vpop.f32.mrb[0].mxu0
        %7225 = vmatprep.mubr.bf16.mxu0 0
        %7226 = vmatmul.mubr.bf16.gmra.mrb[0].mxu0 %v6834
        %v7227 = vpop.f32.mrb[0].mxu0
        %v7228 = vadd.f32 0.0, %v7227
        %v7229 = vpop.f32.mrb[0].mxu0
        %v7230 = vpop.f32.mrb[0].mxu0
        %v7231 = vadd.f32 0.0, %v7230
        %v7232 = vpop.f32.mrb[0].mxu0
        %7233 = vmatprep.mubr.bf16.mxu0 0
        %7234 = vmatmul.mubr.bf16.gmra.mrb[0].mxu0 %v7143
        %v7235 = vpop.f32.mrb[0].mxu0
        %v7236 = vadd.f32 0.0, %v7235
        %v7237 = vpop.f32.mrb[0].mxu0
        %v7238 = vpop.f32.mrb[0].mxu0
        %v7239 = vadd.f32 0.0, %v7238
        %v7240 = vpop.f32.mrb[0].mxu0
        %7241 = vdwg.mxu0
        %v7242 = vadd.f32 %v7110, %v7180
        %v7243 = vadd.f32 %v7111, %v7183
        %v7244 = vadd.f32 %v7112, %v7188
        %v7245 = vadd.f32 %v7113, %v7191
        %v7246 = vadd.f32 %v7114, %v7196
        %v7247 = vadd.f32 %v7115, %v7199
        %v7248 = vadd.f32 %v7116, %v7204
        %v7249 = vadd.f32 %v7117, %v7207
        %v7250 = vadd.f32 %v7118, %v7212
        %v7251 = vadd.f32 %v7119, %v7215
        %v7252 = vadd.f32 %v7120, %v7220
        %v7253 = vadd.f32 %v7121, %v7223
        %v7254 = vadd.f32 %v7122, %v7228
        %v7255 = vadd.f32 %v7123, %v7231
        %v7256 = vadd.f32 %v7124, %v7236
        %v7257 = vadd.f32 %v7125, %v7239
        %v7258 = vshrl.u32 %v6558, 16
        %v7260 = vshll.u32 %v6558, 16
        %v7262 = vrot.slane %v7260, 1
        %v7263 = vor.u32 %v7258, %v7262
        %v7265 = vshll.u32 %v6568, 16
        %v7267 = vrot.slane %v7265, 1
        %v7268 = vsel %vm1277, %v7263, %v7267
        %v7269 = vld [vmem:[%s7 + $0x40] sm:$0xf]
        %v7270 = vld [vmem:[%s7 + $0x44] sm:$0xf]
        %v7271 = vld [vmem:[%s7 + $0x48] sm:$0xf]
        %v7272 = vld [vmem:[%s7 + $0x4c] sm:$0xf]
        %v7277 = vunpack.c.l.b16 %v7269
        %v7278 = vunpack.c.l.b16 %v7270
        %v7279 = vunpack.c.l.b16 %v7271
        %v7280 = vunpack.c.l.b16 %v7272
        %v7281 = vpack.c.b16 %v7278, %v7277
        %v7282 = vpack.c.b16 %v7280, %v7279
        %v7286 = vsel %vm6686, %v7268, 0
        %7288 = vmatprep.subr.bf16.mxu0 0
        %7289 = vmatpush1.bf16.msra.mxu0 %v7281
        %7290 = vmatprep.subr.bf16.mxu0 0
        %7291 = vmatpush1.bf16.msra.mxu0 %v7282
        %7292 = vmatprep.subr.bf16.mxu0 0
        %7293 = vmatpush1.bf16.msra.mxu0 0
        %7294 = vmatprep.subr.bf16.mxu0 0
        %7295 = vmatpush1.bf16.msra.mxu0 0
        %7296 = vmatprep.subr.bf16.mxu0 0
        %7297 = vmatpush1.bf16.msra.mxu0 0
        %7298 = vmatprep.subr.bf16.mxu0 0
        %7299 = vmatpush1.bf16.msra.mxu0 0
        %7300 = vmatprep.subr.bf16.mxu0 0
        %7301 = vmatpush1.bf16.msra.mxu0 0
        %7302 = vmatprep.subr.bf16.mxu0 0
        %7303 = vmatpush1.bf16.msra.mxu0 0
        %7304 = vmatprep.subr.bf16.mxu0 0
        %7305 = vmatpush1.bf16.msra.mxu0 0
        %7306 = vmatprep.subr.bf16.mxu0 0
        %7307 = vmatpush1.bf16.msra.mxu0 0
        %7308 = vmatprep.subr.bf16.mxu0 0
        %7309 = vmatpush1.bf16.msra.mxu0 0
        %7310 = vmatprep.subr.bf16.mxu0 0
        %7311 = vmatpush1.bf16.msra.mxu0 0
        %7312 = vmatprep.subr.bf16.mxu0 0
        %7313 = vmatpush1.bf16.msra.mxu0 0
        %7314 = vmatprep.subr.bf16.mxu0 0
        %7315 = vmatpush1.bf16.msra.mxu0 0
        %7316 = vmatprep.subr.bf16.mxu0 0
        %7317 = vmatpush1.bf16.msra.mxu0 0
        %7318 = vmatprep.subr.bf16.mxu0 0
        %7319 = vmatpush1.bf16.msra.mxu0 0
        %7320 = vmatprep.mubr.bf16.mxu0 0
        %7321 = vmatmul.mubr.bf16.gmra.mrb[0].mxu0 %v6691
        %v7322 = vpop.f32.mrb[0].mxu0
        %v7323 = vadd.f32 0.0, %v7322
        %v7324 = vpop.f32.mrb[0].mxu0
        %v7325 = vpop.f32.mrb[0].mxu0
        %v7326 = vadd.f32 0.0, %v7325
        %v7327 = vpop.f32.mrb[0].mxu0
        %7328 = vmatprep.mubr.bf16.mxu0 0
        %7329 = vmatmul.mubr.bf16.gmra.mrb[0].mxu0 %v6694
        %v7330 = vpop.f32.mrb[0].mxu0
        %v7331 = vadd.f32 0.0, %v7330
        %v7332 = vpop.f32.mrb[0].mxu0
        %v7333 = vpop.f32.mrb[0].mxu0
        %v7334 = vadd.f32 0.0, %v7333
        %v7335 = vpop.f32.mrb[0].mxu0
        %7336 = vmatprep.mubr.bf16.mxu0 0
        %7337 = vmatmul.mubr.bf16.gmra.mrb[0].mxu0 %v6697
        %v7338 = vpop.f32.mrb[0].mxu0
        %v7339 = vadd.f32 0.0, %v7338
        %v7340 = vpop.f32.mrb[0].mxu0
        %v7341 = vpop.f32.mrb[0].mxu0
        %v7342 = vadd.f32 0.0, %v7341
        %v7343 = vpop.f32.mrb[0].mxu0
        %7344 = vmatprep.mubr.bf16.mxu0 0
        %7345 = vmatmul.mubr.bf16.gmra.mrb[0].mxu0 %v6700
        %v7346 = vpop.f32.mrb[0].mxu0
        %v7347 = vadd.f32 0.0, %v7346
        %v7348 = vpop.f32.mrb[0].mxu0
        %v7349 = vpop.f32.mrb[0].mxu0
        %v7350 = vadd.f32 0.0, %v7349
        %v7351 = vpop.f32.mrb[0].mxu0
        %7352 = vmatprep.mubr.bf16.mxu0 0
        %7353 = vmatmul.mubr.bf16.gmra.mrb[0].mxu0 %v6703
        %v7354 = vpop.f32.mrb[0].mxu0
        %v7355 = vadd.f32 0.0, %v7354
        %v7356 = vpop.f32.mrb[0].mxu0
        %v7357 = vpop.f32.mrb[0].mxu0
        %v7358 = vadd.f32 0.0, %v7357
        %v7359 = vpop.f32.mrb[0].mxu0
        %7360 = vmatprep.mubr.bf16.mxu0 0
        %7361 = vmatmul.mubr.bf16.gmra.mrb[0].mxu0 %v6706
        %v7362 = vpop.f32.mrb[0].mxu0
        %v7363 = vadd.f32 0.0, %v7362
        %v7364 = vpop.f32.mrb[0].mxu0
        %v7365 = vpop.f32.mrb[0].mxu0
        %v7366 = vadd.f32 0.0, %v7365
        %v7367 = vpop.f32.mrb[0].mxu0
        %7368 = vmatprep.mubr.bf16.mxu0 0
        %7369 = vmatmul.mubr.bf16.gmra.mrb[0].mxu0 %v6709
        %v7370 = vpop.f32.mrb[0].mxu0
        %v7371 = vadd.f32 0.0, %v7370
        %v7372 = vpop.f32.mrb[0].mxu0
        %v7373 = vpop.f32.mrb[0].mxu0
        %v7374 = vadd.f32 0.0, %v7373
        %v7375 = vpop.f32.mrb[0].mxu0
        %7376 = vmatprep.mubr.bf16.mxu0 0
        %7377 = vmatmul.mubr.bf16.gmra.mrb[0].mxu0 %v7286
        %v7378 = vpop.f32.mrb[0].mxu0
        %v7379 = vadd.f32 0.0, %v7378
        %v7380 = vpop.f32.mrb[0].mxu0
        %v7381 = vpop.f32.mrb[0].mxu0
        %v7382 = vadd.f32 0.0, %v7381
        %v7383 = vpop.f32.mrb[0].mxu0
        %7384 = vdwg.mxu0
        %v7385 = vadd.f32 %v7242, %v7323
        %v7386 = vadd.f32 %v7243, %v7326
        %v7387 = vadd.f32 %v7244, %v7331
        %v7388 = vadd.f32 %v7245, %v7334
        %v7389 = vadd.f32 %v7246, %v7339
        %v7390 = vadd.f32 %v7247, %v7342
        %v7391 = vadd.f32 %v7248, %v7347
        %v7392 = vadd.f32 %v7249, %v7350
        %v7393 = vadd.f32 %v7250, %v7355
        %v7394 = vadd.f32 %v7251, %v7358
        %v7395 = vadd.f32 %v7252, %v7363
        %v7396 = vadd.f32 %v7253, %v7366
        %v7397 = vadd.f32 %v7254, %v7371
        %v7398 = vadd.f32 %v7255, %v7374
        %v7399 = vadd.f32 %v7256, %v7379
        %v7400 = vadd.f32 %v7257, %v7382
        %v7403 = vrot.slane %v6558, 1
        %v7404 = vrot.slane %v6568, 1
        %v7405 = vsel %vm1214, %v7403, %v7404
        %v7406 = vld [vmem:[%s7 + $0x50] sm:$0xf]
        %v7407 = vld [vmem:[%s7 + $0x54] sm:$0xf]
        %v7408 = vld [vmem:[%s7 + $0x58] sm:$0xf]
        %v7409 = vld [vmem:[%s7 + $0x5c] sm:$0xf]
        %v7414 = vunpack.c.l.b16 %v7406
        %v7415 = vunpack.c.l.b16 %v7407
        %v7416 = vunpack.c.l.b16 %v7408
        %v7417 = vunpack.c.l.b16 %v7409
        %v7418 = vpack.c.b16 %v7415, %v7414
        %v7419 = vpack.c.b16 %v7417, %v7416
        %v7423 = vsel %vm6686, %v7405, 0
        %7425 = vmatprep.subr.bf16.mxu0 0
        %7426 = vmatpush1.bf16.msra.mxu0 %v7418
        %7427 = vmatprep.subr.bf16.mxu0 0
        %7428 = vmatpush1.bf16.msra.mxu0 %v7419
        %7429 = vmatprep.subr.bf16.mxu0 0
        %7430 = vmatpush1.bf16.msra.mxu0 0
        %7431 = vmatprep.subr.bf16.mxu0 0
        %7432 = vmatpush1.bf16.msra.mxu0 0
        %7433 = vmatprep.subr.bf16.mxu0 0
        %7434 = vmatpush1.bf16.msra.mxu0 0
        %7435 = vmatprep.subr.bf16.mxu0 0
        %7436 = vmatpush1.bf16.msra.mxu0 0
        %7437 = vmatprep.subr.bf16.mxu0 0
        %7438 = vmatpush1.bf16.msra.mxu0 0
        %7439 = vmatprep.subr.bf16.mxu0 0
        %7440 = vmatpush1.bf16.msra.mxu0 0
        %7441 = vmatprep.subr.bf16.mxu0 0
        %7442 = vmatpush1.bf16.msra.mxu0 0
        %7443 = vmatprep.subr.bf16.mxu0 0
        %7444 = vmatpush1.bf16.msra.mxu0 0
        %7445 = vmatprep.subr.bf16.mxu0 0
        %7446 = vmatpush1.bf16.msra.mxu0 0
        %7447 = vmatprep.subr.bf16.mxu0 0
        %7448 = vmatpush1.bf16.msra.mxu0 0
        %7449 = vmatprep.subr.bf16.mxu0 0
        %7450 = vmatpush1.bf16.msra.mxu0 0
        %7451 = vmatprep.subr.bf16.mxu0 0
        %7452 = vmatpush1.bf16.msra.mxu0 0
        %7453 = vmatprep.subr.bf16.mxu0 0
        %7454 = vmatpush1.bf16.msra.mxu0 0
        %7455 = vmatprep.subr.bf16.mxu0 0
        %7456 = vmatpush1.bf16.msra.mxu0 0
        %7457 = vmatprep.mubr.bf16.mxu0 0
        %7458 = vmatmul.mubr.bf16.gmra.mrb[0].mxu0 %v6993
        %v7459 = vpop.f32.mrb[0].mxu0
        %v7460 = vadd.f32 0.0, %v7459
        %v7461 = vpop.f32.mrb[0].mxu0
        %v7462 = vpop.f32.mrb[0].mxu0
        %v7463 = vadd.f32 0.0, %v7462
        %v7464 = vpop.f32.mrb[0].mxu0
        %7465 = vmatprep.mubr.bf16.mxu0 0
        %7466 = vmatmul.mubr.bf16.gmra.mrb[0].mxu0 %v6996
        %v7467 = vpop.f32.mrb[0].mxu0
        %v7468 = vadd.f32 0.0, %v7467
        %v7469 = vpop.f32.mrb[0].mxu0
        %v7470 = vpop.f32.mrb[0].mxu0
        %v7471 = vadd.f32 0.0, %v7470
        %v7472 = vpop.f32.mrb[0].mxu0
        %7473 = vmatprep.mubr.bf16.mxu0 0
        %7474 = vmatmul.mubr.bf16.gmra.mrb[0].mxu0 %v6999
        %v7475 = vpop.f32.mrb[0].mxu0
        %v7476 = vadd.f32 0.0, %v7475
        %v7477 = vpop.f32.mrb[0].mxu0
        %v7478 = vpop.f32.mrb[0].mxu0
        %v7479 = vadd.f32 0.0, %v7478
        %v7480 = vpop.f32.mrb[0].mxu0
        %7481 = vmatprep.mubr.bf16.mxu0 0
        %7482 = vmatmul.mubr.bf16.gmra.mrb[0].mxu0 %v7002
        %v7483 = vpop.f32.mrb[0].mxu0
        %v7484 = vadd.f32 0.0, %v7483
        %v7485 = vpop.f32.mrb[0].mxu0
        %v7486 = vpop.f32.mrb[0].mxu0
        %v7487 = vadd.f32 0.0, %v7486
        %v7488 = vpop.f32.mrb[0].mxu0
        %7489 = vmatprep.mubr.bf16.mxu0 0
        %7490 = vmatmul.mubr.bf16.gmra.mrb[0].mxu0 %v7005
        %v7491 = vpop.f32.mrb[0].mxu0
        %v7492 = vadd.f32 0.0, %v7491
        %v7493 = vpop.f32.mrb[0].mxu0
        %v7494 = vpop.f32.mrb[0].mxu0
        %v7495 = vadd.f32 0.0, %v7494
        %v7496 = vpop.f32.mrb[0].mxu0
        %7497 = vmatprep.mubr.bf16.mxu0 0
        %7498 = vmatmul.mubr.bf16.gmra.mrb[0].mxu0 %v7008
        %v7499 = vpop.f32.mrb[0].mxu0
        %v7500 = vadd.f32 0.0, %v7499
        %v7501 = vpop.f32.mrb[0].mxu0
        %v7502 = vpop.f32.mrb[0].mxu0
        %v7503 = vadd.f32 0.0, %v7502
        %v7504 = vpop.f32.mrb[0].mxu0
        %7505 = vmatprep.mubr.bf16.mxu0 0
        %7506 = vmatmul.mubr.bf16.gmra.mrb[0].mxu0 %v7011
        %v7507 = vpop.f32.mrb[0].mxu0
        %v7508 = vadd.f32 0.0, %v7507
        %v7509 = vpop.f32.mrb[0].mxu0
        %v7510 = vpop.f32.mrb[0].mxu0
        %v7511 = vadd.f32 0.0, %v7510
        %v7512 = vpop.f32.mrb[0].mxu0
        %7513 = vmatprep.mubr.bf16.mxu0 0
        %7514 = vmatmul.mubr.bf16.gmra.mrb[0].mxu0 %v7423
        %v7515 = vpop.f32.mrb[0].mxu0
        %v7516 = vadd.f32 0.0, %v7515
        %v7517 = vpop.f32.mrb[0].mxu0
        %v7518 = vpop.f32.mrb[0].mxu0
        %v7519 = vadd.f32 0.0, %v7518
        %v7520 = vpop.f32.mrb[0].mxu0
        %7521 = vdwg.mxu0
        %v7522 = vadd.f32 %v7385, %v7460
        %v7523 = vadd.f32 %v7386, %v7463
        %v7524 = vadd.f32 %v7387, %v7468
        %v7525 = vadd.f32 %v7388, %v7471
        %v7526 = vadd.f32 %v7389, %v7476
        %v7527 = vadd.f32 %v7390, %v7479
        %v7528 = vadd.f32 %v7391, %v7484
        %v7529 = vadd.f32 %v7392, %v7487
        %v7530 = vadd.f32 %v7393, %v7492
        %v7531 = vadd.f32 %v7394, %v7495
        %v7532 = vadd.f32 %v7395, %v7500
        %v7533 = vadd.f32 %v7396, %v7503
        %v7534 = vadd.f32 %v7397, %v7508
        %v7535 = vadd.f32 %v7398, %v7511
        %v7536 = vadd.f32 %v7399, %v7516
        %v7537 = vadd.f32 %v7400, %v7519
        %v7538 = vld [vmem:[%s7 + $0x60] sm:$0xf]
        %v7539 = vld [vmem:[%s7 + $0x64] sm:$0xf]
        %v7540 = vld [vmem:[%s7 + $0x68] sm:$0xf]
        %v7541 = vld [vmem:[%s7 + $0x6c] sm:$0xf]
        %v7546 = vunpack.c.l.b16 %v7538
        %v7547 = vunpack.c.l.b16 %v7539
        %v7548 = vunpack.c.l.b16 %v7540
        %v7549 = vunpack.c.l.b16 %v7541
        %v7550 = vpack.c.b16 %v7547, %v7546
        %v7551 = vpack.c.b16 %v7549, %v7548
        %v7555 = vsel %vm6686, %v6559, 0
        %7557 = vmatprep.subr.bf16.mxu0 0
        %7558 = vmatpush1.bf16.msra.mxu0 %v7550
        %7559 = vmatprep.subr.bf16.mxu0 0
        %7560 = vmatpush1.bf16.msra.mxu0 %v7551
        %7561 = vmatprep.subr.bf16.mxu0 0
        %7562 = vmatpush1.bf16.msra.mxu0 0
        %7563 = vmatprep.subr.bf16.mxu0 0
        %7564 = vmatpush1.bf16.msra.mxu0 0
        %7565 = vmatprep.subr.bf16.mxu0 0
        %7566 = vmatpush1.bf16.msra.mxu0 0
        %7567 = vmatprep.subr.bf16.mxu0 0
        %7568 = vmatpush1.bf16.msra.mxu0 0
        %7569 = vmatprep.subr.bf16.mxu0 0
        %7570 = vmatpush1.bf16.msra.mxu0 0
        %7571 = vmatprep.subr.bf16.mxu0 0
        %7572 = vmatpush1.bf16.msra.mxu0 0
        %7573 = vmatprep.subr.bf16.mxu0 0
        %7574 = vmatpush1.bf16.msra.mxu0 0
        %7575 = vmatprep.subr.bf16.mxu0 0
        %7576 = vmatpush1.bf16.msra.mxu0 0
        %7577 = vmatprep.subr.bf16.mxu0 0
        %7578 = vmatpush1.bf16.msra.mxu0 0
        %7579 = vmatprep.subr.bf16.mxu0 0
        %7580 = vmatpush1.bf16.msra.mxu0 0
        %7581 = vmatprep.subr.bf16.mxu0 0
        %7582 = vmatpush1.bf16.msra.mxu0 0
        %7583 = vmatprep.subr.bf16.mxu0 0
        %7584 = vmatpush1.bf16.msra.mxu0 0
        %7585 = vmatprep.subr.bf16.mxu0 0
        %7586 = vmatpush1.bf16.msra.mxu0 0
        %7587 = vmatprep.subr.bf16.mxu0 0
        %7588 = vmatpush1.bf16.msra.mxu0 0
        %7589 = vmatprep.mubr.bf16.mxu0 0
        %7590 = vmatmul.mubr.bf16.gmra.mrb[0].mxu0 %v6824
        %v7591 = vpop.f32.mrb[0].mxu0
        %v7592 = vadd.f32 0.0, %v7591
        %v7593 = vpop.f32.mrb[0].mxu0
        %v7594 = vpop.f32.mrb[0].mxu0
        %v7595 = vadd.f32 0.0, %v7594
        %v7596 = vpop.f32.mrb[0].mxu0
        %7597 = vmatprep.mubr.bf16.mxu0 0
        %7598 = vmatmul.mubr.bf16.gmra.mrb[0].mxu0 %v6826
        %v7599 = vpop.f32.mrb[0].mxu0
        %v7600 = vadd.f32 0.0, %v7599
        %v7601 = vpop.f32.mrb[0].mxu0
        %v7602 = vpop.f32.mrb[0].mxu0
        %v7603 = vadd.f32 0.0, %v7602
        %v7604 = vpop.f32.mrb[0].mxu0
        %7605 = vmatprep.mubr.bf16.mxu0 0
        %7606 = vmatmul.mubr.bf16.gmra.mrb[0].mxu0 %v6828
        %v7607 = vpop.f32.mrb[0].mxu0
        %v7608 = vadd.f32 0.0, %v7607
        %v7609 = vpop.f32.mrb[0].mxu0
        %v7610 = vpop.f32.mrb[0].mxu0
        %v7611 = vadd.f32 0.0, %v7610
        %v7612 = vpop.f32.mrb[0].mxu0
        %7613 = vmatprep.mubr.bf16.mxu0 0
        %7614 = vmatmul.mubr.bf16.gmra.mrb[0].mxu0 %v6830
        %v7615 = vpop.f32.mrb[0].mxu0
        %v7616 = vadd.f32 0.0, %v7615
        %v7617 = vpop.f32.mrb[0].mxu0
        %v7618 = vpop.f32.mrb[0].mxu0
        %v7619 = vadd.f32 0.0, %v7618
        %v7620 = vpop.f32.mrb[0].mxu0
        %7621 = vmatprep.mubr.bf16.mxu0 0
        %7622 = vmatmul.mubr.bf16.gmra.mrb[0].mxu0 %v6832
        %v7623 = vpop.f32.mrb[0].mxu0
        %v7624 = vadd.f32 0.0, %v7623
        %v7625 = vpop.f32.mrb[0].mxu0
        %v7626 = vpop.f32.mrb[0].mxu0
        %v7627 = vadd.f32 0.0, %v7626
        %v7628 = vpop.f32.mrb[0].mxu0
        %7629 = vmatprep.mubr.bf16.mxu0 0
        %7630 = vmatmul.mubr.bf16.gmra.mrb[0].mxu0 %v6834
        %v7631 = vpop.f32.mrb[0].mxu0
        %v7632 = vadd.f32 0.0, %v7631
        %v7633 = vpop.f32.mrb[0].mxu0
        %v7634 = vpop.f32.mrb[0].mxu0
        %v7635 = vadd.f32 0.0, %v7634
        %v7636 = vpop.f32.mrb[0].mxu0
        %7637 = vmatprep.mubr.bf16.mxu0 0
        %7638 = vmatmul.mubr.bf16.gmra.mrb[0].mxu0 %v7143
        %v7639 = vpop.f32.mrb[0].mxu0
        %v7640 = vadd.f32 0.0, %v7639
        %v7641 = vpop.f32.mrb[0].mxu0
        %v7642 = vpop.f32.mrb[0].mxu0
        %v7643 = vadd.f32 0.0, %v7642
        %v7644 = vpop.f32.mrb[0].mxu0
        %7645 = vmatprep.mubr.bf16.mxu0 0
        %7646 = vmatmul.mubr.bf16.gmra.mrb[0].mxu0 %v7555
        %v7647 = vpop.f32.mrb[0].mxu0
        %v7648 = vadd.f32 0.0, %v7647
        %v7649 = vpop.f32.mrb[0].mxu0
        %v7650 = vpop.f32.mrb[0].mxu0
        %v7651 = vadd.f32 0.0, %v7650
        %v7652 = vpop.f32.mrb[0].mxu0
        %7653 = vdwg.mxu0
        %v7654 = vadd.f32 %v7522, %v7592
        %v7655 = vadd.f32 %v7523, %v7595
        %v7656 = vadd.f32 %v7524, %v7600
        %v7657 = vadd.f32 %v7525, %v7603
        %v7658 = vadd.f32 %v7526, %v7608
        %v7659 = vadd.f32 %v7527, %v7611
        %v7660 = vadd.f32 %v7528, %v7616
        %v7661 = vadd.f32 %v7529, %v7619
        %v7662 = vadd.f32 %v7530, %v7624
        %v7663 = vadd.f32 %v7531, %v7627
        %v7664 = vadd.f32 %v7532, %v7632
        %v7665 = vadd.f32 %v7533, %v7635
        %v7666 = vadd.f32 %v7534, %v7640
        %v7667 = vadd.f32 %v7535, %v7643
        %v7668 = vadd.f32 %v7536, %v7648
        %v7669 = vadd.f32 %v7537, %v7651
        %v7670 = vshrl.u32 %v6559, 16
        %v7672 = vshll.u32 %v6559, 16
        %v7674 = vrot.slane %v7672, 1
        %v7675 = vor.u32 %v7670, %v7674
        %v7677 = vshll.u32 %v6569, 16
        %v7679 = vrot.slane %v7677, 1
        %v7680 = vsel %vm1277, %v7675, %v7679
        %v7681 = vld [vmem:[%s7 + $0x70] sm:$0xf]
        %v7682 = vld [vmem:[%s7 + $0x74] sm:$0xf]
        %v7683 = vld [vmem:[%s7 + $0x78] sm:$0xf]
        %v7684 = vld [vmem:[%s7 + $0x7c] sm:$0xf]
        %v7689 = vunpack.c.l.b16 %v7681
        %v7690 = vunpack.c.l.b16 %v7682
        %v7691 = vunpack.c.l.b16 %v7683
        %v7692 = vunpack.c.l.b16 %v7684
        %v7693 = vpack.c.b16 %v7690, %v7689
        %v7694 = vpack.c.b16 %v7692, %v7691
        %v7698 = vsel %vm6686, %v7680, 0
        %7700 = vmatprep.subr.bf16.mxu0 0
        %7701 = vmatpush1.bf16.msra.mxu0 %v7693
        %7702 = vmatprep.subr.bf16.mxu0 0
        %7703 = vmatpush1.bf16.msra.mxu0 %v7694
        %7704 = vmatprep.subr.bf16.mxu0 0
        %7705 = vmatpush1.bf16.msra.mxu0 0
        %7706 = vmatprep.subr.bf16.mxu0 0
        %7707 = vmatpush1.bf16.msra.mxu0 0
        %7708 = vmatprep.subr.bf16.mxu0 0
        %7709 = vmatpush1.bf16.msra.mxu0 0
        %7710 = vmatprep.subr.bf16.mxu0 0
        %7711 = vmatpush1.bf16.msra.mxu0 0
        %7712 = vmatprep.subr.bf16.mxu0 0
        %7713 = vmatpush1.bf16.msra.mxu0 0
        %7714 = vmatprep.subr.bf16.mxu0 0
        %7715 = vmatpush1.bf16.msra.mxu0 0
        %7716 = vmatprep.subr.bf16.mxu0 0
        %7717 = vmatpush1.bf16.msra.mxu0 0
        %7718 = vmatprep.subr.bf16.mxu0 0
        %7719 = vmatpush1.bf16.msra.mxu0 0
        %7720 = vmatprep.subr.bf16.mxu0 0
        %7721 = vmatpush1.bf16.msra.mxu0 0
        %7722 = vmatprep.subr.bf16.mxu0 0
        %7723 = vmatpush1.bf16.msra.mxu0 0
        %7724 = vmatprep.subr.bf16.mxu0 0
        %7725 = vmatpush1.bf16.msra.mxu0 0
        %7726 = vmatprep.subr.bf16.mxu0 0
        %7727 = vmatpush1.bf16.msra.mxu0 0
        %7728 = vmatprep.subr.bf16.mxu0 0
        %7729 = vmatpush1.bf16.msra.mxu0 0
        %7730 = vmatprep.subr.bf16.mxu0 0
        %7731 = vmatpush1.bf16.msra.mxu0 0
        %7732 = vmatprep.mubr.bf16.mxu0 0
        %7733 = vmatmul.mubr.bf16.gmra.mrb[0].mxu0 %v6694
        %v7734 = vpop.f32.mrb[0].mxu0
        %v7735 = vadd.f32 0.0, %v7734
        %v7736 = vpop.f32.mrb[0].mxu0
        %v7737 = vpop.f32.mrb[0].mxu0
        %v7738 = vadd.f32 0.0, %v7737
        %v7739 = vpop.f32.mrb[0].mxu0
        %7740 = vmatprep.mubr.bf16.mxu0 0
        %7741 = vmatmul.mubr.bf16.gmra.mrb[0].mxu0 %v6697
        %v7742 = vpop.f32.mrb[0].mxu0
        %v7743 = vadd.f32 0.0, %v7742
        %v7744 = vpop.f32.mrb[0].mxu0
        %v7745 = vpop.f32.mrb[0].mxu0
        %v7746 = vadd.f32 0.0, %v7745
        %v7747 = vpop.f32.mrb[0].mxu0
        %7748 = vmatprep.mubr.bf16.mxu0 0
        %7749 = vmatmul.mubr.bf16.gmra.mrb[0].mxu0 %v6700
        %v7750 = vpop.f32.mrb[0].mxu0
        %v7751 = vadd.f32 0.0, %v7750
        %v7752 = vpop.f32.mrb[0].mxu0
        %v7753 = vpop.f32.mrb[0].mxu0
        %v7754 = vadd.f32 0.0, %v7753
        %v7755 = vpop.f32.mrb[0].mxu0
        %7756 = vmatprep.mubr.bf16.mxu0 0
        %7757 = vmatmul.mubr.bf16.gmra.mrb[0].mxu0 %v6703
        %v7758 = vpop.f32.mrb[0].mxu0
        %v7759 = vadd.f32 0.0, %v7758
        %v7760 = vpop.f32.mrb[0].mxu0
        %v7761 = vpop.f32.mrb[0].mxu0
        %v7762 = vadd.f32 0.0, %v7761
        %v7763 = vpop.f32.mrb[0].mxu0
        %7764 = vmatprep.mubr.bf16.mxu0 0
        %7765 = vmatmul.mubr.bf16.gmra.mrb[0].mxu0 %v6706
        %v7766 = vpop.f32.mrb[0].mxu0
        %v7767 = vadd.f32 0.0, %v7766
        %v7768 = vpop.f32.mrb[0].mxu0
        %v7769 = vpop.f32.mrb[0].mxu0
        %v7770 = vadd.f32 0.0, %v7769
        %v7771 = vpop.f32.mrb[0].mxu0
        %7772 = vmatprep.mubr.bf16.mxu0 0
        %7773 = vmatmul.mubr.bf16.gmra.mrb[0].mxu0 %v6709
        %v7774 = vpop.f32.mrb[0].mxu0
        %v7775 = vadd.f32 0.0, %v7774
        %v7776 = vpop.f32.mrb[0].mxu0
        %v7777 = vpop.f32.mrb[0].mxu0
        %v7778 = vadd.f32 0.0, %v7777
        %v7779 = vpop.f32.mrb[0].mxu0
        %7780 = vmatprep.mubr.bf16.mxu0 0
        %7781 = vmatmul.mubr.bf16.gmra.mrb[0].mxu0 %v7286
        %v7782 = vpop.f32.mrb[0].mxu0
        %v7783 = vadd.f32 0.0, %v7782
        %v7784 = vpop.f32.mrb[0].mxu0
        %v7785 = vpop.f32.mrb[0].mxu0
        %v7786 = vadd.f32 0.0, %v7785
        %v7787 = vpop.f32.mrb[0].mxu0
        %7788 = vmatprep.mubr.bf16.mxu0 0
        %7789 = vmatmul.mubr.bf16.gmra.mrb[0].mxu0 %v7698
        %v7790 = vpop.f32.mrb[0].mxu0
        %v7791 = vadd.f32 0.0, %v7790
        %v7792 = vpop.f32.mrb[0].mxu0
        %v7793 = vpop.f32.mrb[0].mxu0
        %v7794 = vadd.f32 0.0, %v7793
        %v7795 = vpop.f32.mrb[0].mxu0
        %7796 = vdwg.mxu0
        %v7797 = vadd.f32 %v7654, %v7735
        %v7798 = vadd.f32 %v7655, %v7738
        %v7799 = vadd.f32 %v7656, %v7743
        %v7800 = vadd.f32 %v7657, %v7746
        %v7801 = vadd.f32 %v7658, %v7751
        %v7802 = vadd.f32 %v7659, %v7754
        %v7803 = vadd.f32 %v7660, %v7759
        %v7804 = vadd.f32 %v7661, %v7762
        %v7805 = vadd.f32 %v7662, %v7767
        %v7806 = vadd.f32 %v7663, %v7770
        %v7807 = vadd.f32 %v7664, %v7775
        %v7808 = vadd.f32 %v7665, %v7778
        %v7809 = vadd.f32 %v7666, %v7783
        %v7810 = vadd.f32 %v7667, %v7786
        %v7811 = vadd.f32 %v7668, %v7791
        %v7812 = vadd.f32 %v7669, %v7794
        %v7815 = vrot.slane %v6559, 1
        %v7816 = vrot.slane %v6569, 1
        %v7817 = vsel %vm1214, %v7815, %v7816
        %v7818 = vld [vmem:[%s7 + $0x80] sm:$0xf]
        %v7819 = vld [vmem:[%s7 + $0x84] sm:$0xf]
        %v7820 = vld [vmem:[%s7 + $0x88] sm:$0xf]
        %v7821 = vld [vmem:[%s7 + $0x8c] sm:$0xf]
        %v7826 = vunpack.c.l.b16 %v7818
        %v7827 = vunpack.c.l.b16 %v7819
        %v7828 = vunpack.c.l.b16 %v7820
        %v7829 = vunpack.c.l.b16 %v7821
        %v7830 = vpack.c.b16 %v7827, %v7826
        %v7831 = vpack.c.b16 %v7829, %v7828
        %v7835 = vsel %vm6686, %v7817, 0
        %7837 = vmatprep.subr.bf16.mxu0 0
        %7838 = vmatpush1.bf16.msra.mxu0 %v7830
        %7839 = vmatprep.subr.bf16.mxu0 0
        %7840 = vmatpush1.bf16.msra.mxu0 %v7831
        %7841 = vmatprep.subr.bf16.mxu0 0
        %7842 = vmatpush1.bf16.msra.mxu0 0
        %7843 = vmatprep.subr.bf16.mxu0 0
        %7844 = vmatpush1.bf16.msra.mxu0 0
        %7845 = vmatprep.subr.bf16.mxu0 0
        %7846 = vmatpush1.bf16.msra.mxu0 0
        %7847 = vmatprep.subr.bf16.mxu0 0
        %7848 = vmatpush1.bf16.msra.mxu0 0
        %7849 = vmatprep.subr.bf16.mxu0 0
        %7850 = vmatpush1.bf16.msra.mxu0 0
        %7851 = vmatprep.subr.bf16.mxu0 0
        %7852 = vmatpush1.bf16.msra.mxu0 0
        %7853 = vmatprep.subr.bf16.mxu0 0
        %7854 = vmatpush1.bf16.msra.mxu0 0
        %7855 = vmatprep.subr.bf16.mxu0 0
        %7856 = vmatpush1.bf16.msra.mxu0 0
        %7857 = vmatprep.subr.bf16.mxu0 0
        %7858 = vmatpush1.bf16.msra.mxu0 0
        %7859 = vmatprep.subr.bf16.mxu0 0
        %7860 = vmatpush1.bf16.msra.mxu0 0
        %7861 = vmatprep.subr.bf16.mxu0 0
        %7862 = vmatpush1.bf16.msra.mxu0 0
        %7863 = vmatprep.subr.bf16.mxu0 0
        %7864 = vmatpush1.bf16.msra.mxu0 0
        %7865 = vmatprep.subr.bf16.mxu0 0
        %7866 = vmatpush1.bf16.msra.mxu0 0
        %7867 = vmatprep.subr.bf16.mxu0 0
        %7868 = vmatpush1.bf16.msra.mxu0 0
        %7869 = vmatprep.mubr.bf16.mxu0 0
        %7870 = vmatmul.mubr.bf16.gmra.mrb[0].mxu0 %v6996
        %v7871 = vpop.f32.mrb[0].mxu0
        %v7872 = vadd.f32 0.0, %v7871
        %v7873 = vpop.f32.mrb[0].mxu0
        %v7874 = vpop.f32.mrb[0].mxu0
        %v7875 = vadd.f32 0.0, %v7874
        %v7876 = vpop.f32.mrb[0].mxu0
        %7877 = vmatprep.mubr.bf16.mxu0 0
        %7878 = vmatmul.mubr.bf16.gmra.mrb[0].mxu0 %v6999
        %v7879 = vpop.f32.mrb[0].mxu0
        %v7880 = vadd.f32 0.0, %v7879
        %v7881 = vpop.f32.mrb[0].mxu0
        %v7882 = vpop.f32.mrb[0].mxu0
        %v7883 = vadd.f32 0.0, %v7882
        %v7884 = vpop.f32.mrb[0].mxu0
        %7885 = vmatprep.mubr.bf16.mxu0 0
        %7886 = vmatmul.mubr.bf16.gmra.mrb[0].mxu0 %v7002
        %v7887 = vpop.f32.mrb[0].mxu0
        %v7888 = vadd.f32 0.0, %v7887
        %v7889 = vpop.f32.mrb[0].mxu0
        %v7890 = vpop.f32.mrb[0].mxu0
        %v7891 = vadd.f32 0.0, %v7890
        %v7892 = vpop.f32.mrb[0].mxu0
        %7893 = vmatprep.mubr.bf16.mxu0 0
        %7894 = vmatmul.mubr.bf16.gmra.mrb[0].mxu0 %v7005
        %v7895 = vpop.f32.mrb[0].mxu0
        %v7896 = vadd.f32 0.0, %v7895
        %v7897 = vpop.f32.mrb[0].mxu0
        %v7898 = vpop.f32.mrb[0].mxu0
        %v7899 = vadd.f32 0.0, %v7898
        %v7900 = vpop.f32.mrb[0].mxu0
        %7901 = vmatprep.mubr.bf16.mxu0 0
        %7902 = vmatmul.mubr.bf16.gmra.mrb[0].mxu0 %v7008
        %v7903 = vpop.f32.mrb[0].mxu0
        %v7904 = vadd.f32 0.0, %v7903
        %v7905 = vpop.f32.mrb[0].mxu0
        %v7906 = vpop.f32.mrb[0].mxu0
        %v7907 = vadd.f32 0.0, %v7906
        %v7908 = vpop.f32.mrb[0].mxu0
        %7909 = vmatprep.mubr.bf16.mxu0 0
        %7910 = vmatmul.mubr.bf16.gmra.mrb[0].mxu0 %v7011
        %v7911 = vpop.f32.mrb[0].mxu0
        %v7912 = vadd.f32 0.0, %v7911
        %v7913 = vpop.f32.mrb[0].mxu0
        %v7914 = vpop.f32.mrb[0].mxu0
        %v7915 = vadd.f32 0.0, %v7914
        %v7916 = vpop.f32.mrb[0].mxu0
        %7917 = vmatprep.mubr.bf16.mxu0 0
        %7918 = vmatmul.mubr.bf16.gmra.mrb[0].mxu0 %v7423
        %v7919 = vpop.f32.mrb[0].mxu0
        %v7920 = vadd.f32 0.0, %v7919
        %v7921 = vpop.f32.mrb[0].mxu0
        %v7922 = vpop.f32.mrb[0].mxu0
        %v7923 = vadd.f32 0.0, %v7922
        %v7924 = vpop.f32.mrb[0].mxu0
        %7925 = vmatprep.mubr.bf16.mxu0 0
        %7926 = vmatmul.mubr.bf16.gmra.mrb[0].mxu0 %v7835
        %v7927 = vpop.f32.mrb[0].mxu0
        %v7928 = vadd.f32 0.0, %v7927
        %v7929 = vpop.f32.mrb[0].mxu0
        %v7930 = vpop.f32.mrb[0].mxu0
        %v7931 = vadd.f32 0.0, %v7930
        %v7932 = vpop.f32.mrb[0].mxu0
        %7933 = vdwg.mxu0
        %v7934 = vadd.f32 %v7797, %v7872
        %v7935 = vadd.f32 %v7798, %v7875
        %v7936 = vadd.f32 %v7799, %v7880
        %v7937 = vadd.f32 %v7800, %v7883
        %v7938 = vadd.f32 %v7801, %v7888
        %v7939 = vadd.f32 %v7802, %v7891
        %v7940 = vadd.f32 %v7803, %v7896
        %v7941 = vadd.f32 %v7804, %v7899
        %v7942 = vadd.f32 %v7805, %v7904
        %v7943 = vadd.f32 %v7806, %v7907
        %v7944 = vadd.f32 %v7807, %v7912
        %v7945 = vadd.f32 %v7808, %v7915
        %v7946 = vadd.f32 %v7809, %v7920
        %v7947 = vadd.f32 %v7810, %v7923
        %v7948 = vadd.f32 %v7811, %v7928
        %v7949 = vadd.f32 %v7812, %v7931
        %v7950 = vld [vmem:[%s8] sm:$0x1]
        %v7952 = vlaneseq
        %v7953 = vshrl.u32 %v7952, 7
        %v7954 = vsub.s32 0, %v7953
        %v7955 = vrot.slane %v7950, %v7954
        %v7957 = vadd.f32 %v7934, %v7955
        %v7958 = vadd.f32 %v7935, %v7955
        %v7959 = vadd.f32 %v7936, %v7955
        %v7960 = vadd.f32 %v7937, %v7955
        %v7961 = vadd.f32 %v7938, %v7955
        %v7962 = vadd.f32 %v7939, %v7955
        %v7963 = vadd.f32 %v7940, %v7955
        %v7964 = vadd.f32 %v7941, %v7955
        %v7965 = vadd.f32 %v7942, %v7955
        %v7966 = vadd.f32 %v7943, %v7955
        %v7967 = vadd.f32 %v7944, %v7955
        %v7968 = vadd.f32 %v7945, %v7955
        %v7969 = vadd.f32 %v7946, %v7955
        %v7970 = vadd.f32 %v7947, %v7955
        %v7971 = vadd.f32 %v7948, %v7955
        %v7972 = vadd.f32 %v7949, %v7955
        %v7973 = vpack.c.bf16 %v7958, %v7957
        %v7974 = vpack.c.bf16 %v7960, %v7959
        %v7975 = vpack.c.bf16 %v7962, %v7961
        %v7976 = vpack.c.bf16 %v7964, %v7963
        %v7977 = vpack.c.bf16 %v7966, %v7965
        %v7978 = vpack.c.bf16 %v7968, %v7967
        %v7979 = vpack.c.bf16 %v7970, %v7969
        %v7980 = vpack.c.bf16 %v7972, %v7971
        %7981 = vxpose.xlu0.c.b16.start [1/8] %v7973, 128
        %7982 = vxpose.xlu0.c.b16.cont [2/8] 0, 128
        %7983 = vxpose.xlu0.c.b16.cont [3/8] 0, 128
        %7984 = vxpose.xlu0.c.b16.cont [4/8] 0, 128
        %7985 = vxpose.xlu0.c.b16.cont [5/8] 0, 128
        %7986 = vxpose.xlu0.c.b16.cont [6/8] 0, 128
        %7987 = vxpose.xlu0.c.b16.cont [7/8] 0, 128
        %7988 = vxpose.xlu0.c.b16.end [8/8] 0, 128
        %v7989 = vpop.trf.xlu0
        %v7990 = vpop.trf.xlu0
        %v7991 = vpop.trf.xlu0
        %v7992 = vpop.trf.xlu0
        %v7993 = vpop.trf.xlu0
        %v7994 = vpop.trf.xlu0
        %v7995 = vpop.trf.xlu0
        %v7996 = vpop.trf.xlu0
        %7997 = vxpose.xlu0.c.b16.start [1/8] %v7974, 128
        %7998 = vxpose.xlu0.c.b16.cont [2/8] 0, 128
        %7999 = vxpose.xlu0.c.b16.cont [3/8] 0, 128
        %8000 = vxpose.xlu0.c.b16.cont [4/8] 0, 128
        %8001 = vxpose.xlu0.c.b16.cont [5/8] 0, 128
        %8002 = vxpose.xlu0.c.b16.cont [6/8] 0, 128
        %8003 = vxpose.xlu0.c.b16.cont [7/8] 0, 128
        %8004 = vxpose.xlu0.c.b16.end [8/8] 0, 128
        %v8005 = vpop.trf.xlu0
        %v8006 = vpop.trf.xlu0
        %v8007 = vpop.trf.xlu0
        %v8008 = vpop.trf.xlu0
        %v8009 = vpop.trf.xlu0
        %v8010 = vpop.trf.xlu0
        %v8011 = vpop.trf.xlu0
        %v8012 = vpop.trf.xlu0
        %8013 = vxpose.xlu0.c.b16.start [1/8] %v7975, 128
        %8014 = vxpose.xlu0.c.b16.cont [2/8] 0, 128
        %8015 = vxpose.xlu0.c.b16.cont [3/8] 0, 128
        %8016 = vxpose.xlu0.c.b16.cont [4/8] 0, 128
        %8017 = vxpose.xlu0.c.b16.cont [5/8] 0, 128
        %8018 = vxpose.xlu0.c.b16.cont [6/8] 0, 128
        %8019 = vxpose.xlu0.c.b16.cont [7/8] 0, 128
        %8020 = vxpose.xlu0.c.b16.end [8/8] 0, 128
        %v8021 = vpop.trf.xlu0
        %v8022 = vpop.trf.xlu0
        %v8023 = vpop.trf.xlu0
        %v8024 = vpop.trf.xlu0
        %v8025 = vpop.trf.xlu0
        %v8026 = vpop.trf.xlu0
        %v8027 = vpop.trf.xlu0
        %v8028 = vpop.trf.xlu0
        %8029 = vxpose.xlu0.c.b16.start [1/8] %v7976, 128
        %8030 = vxpose.xlu0.c.b16.cont [2/8] 0, 128
        %8031 = vxpose.xlu0.c.b16.cont [3/8] 0, 128
        %8032 = vxpose.xlu0.c.b16.cont [4/8] 0, 128
        %8033 = vxpose.xlu0.c.b16.cont [5/8] 0, 128
        %8034 = vxpose.xlu0.c.b16.cont [6/8] 0, 128
        %8035 = vxpose.xlu0.c.b16.cont [7/8] 0, 128
        %8036 = vxpose.xlu0.c.b16.end [8/8] 0, 128
        %v8037 = vpop.trf.xlu0
        %v8038 = vpop.trf.xlu0
        %v8039 = vpop.trf.xlu0
        %v8040 = vpop.trf.xlu0
        %v8041 = vpop.trf.xlu0
        %v8042 = vpop.trf.xlu0
        %v8043 = vpop.trf.xlu0
        %v8044 = vpop.trf.xlu0
        %8045 = vxpose.xlu0.c.b16.start [1/8] %v7977, 128
        %8046 = vxpose.xlu0.c.b16.cont [2/8] 0, 128
        %8047 = vxpose.xlu0.c.b16.cont [3/8] 0, 128
        %8048 = vxpose.xlu0.c.b16.cont [4/8] 0, 128
        %8049 = vxpose.xlu0.c.b16.cont [5/8] 0, 128
        %8050 = vxpose.xlu0.c.b16.cont [6/8] 0, 128
        %8051 = vxpose.xlu0.c.b16.cont [7/8] 0, 128
        %8052 = vxpose.xlu0.c.b16.end [8/8] 0, 128
        %v8053 = vpop.trf.xlu0
        %v8054 = vpop.trf.xlu0
        %v8055 = vpop.trf.xlu0
        %v8056 = vpop.trf.xlu0
        %v8057 = vpop.trf.xlu0
        %v8058 = vpop.trf.xlu0
        %v8059 = vpop.trf.xlu0
        %v8060 = vpop.trf.xlu0
        %8061 = vxpose.xlu0.c.b16.start [1/8] %v7978, 128
        %8062 = vxpose.xlu0.c.b16.cont [2/8] 0, 128
        %8063 = vxpose.xlu0.c.b16.cont [3/8] 0, 128
        %8064 = vxpose.xlu0.c.b16.cont [4/8] 0, 128
        %8065 = vxpose.xlu0.c.b16.cont [5/8] 0, 128
        %8066 = vxpose.xlu0.c.b16.cont [6/8] 0, 128
        %8067 = vxpose.xlu0.c.b16.cont [7/8] 0, 128
        %8068 = vxpose.xlu0.c.b16.end [8/8] 0, 128
        %v8069 = vpop.trf.xlu0
        %v8070 = vpop.trf.xlu0
        %v8071 = vpop.trf.xlu0
        %v8072 = vpop.trf.xlu0
        %v8073 = vpop.trf.xlu0
        %v8074 = vpop.trf.xlu0
        %v8075 = vpop.trf.xlu0
        %v8076 = vpop.trf.xlu0
        %8077 = vxpose.xlu0.c.b16.start [1/8] %v7979, 128
        %8078 = vxpose.xlu0.c.b16.cont [2/8] 0, 128
        %8079 = vxpose.xlu0.c.b16.cont [3/8] 0, 128
        %8080 = vxpose.xlu0.c.b16.cont [4/8] 0, 128
        %8081 = vxpose.xlu0.c.b16.cont [5/8] 0, 128
        %8082 = vxpose.xlu0.c.b16.cont [6/8] 0, 128
        %8083 = vxpose.xlu0.c.b16.cont [7/8] 0, 128
        %8084 = vxpose.xlu0.c.b16.end [8/8] 0, 128
        %v8085 = vpop.trf.xlu0
        %v8086 = vpop.trf.xlu0
        %v8087 = vpop.trf.xlu0
        %v8088 = vpop.trf.xlu0
        %v8089 = vpop.trf.xlu0
        %v8090 = vpop.trf.xlu0
        %v8091 = vpop.trf.xlu0
        %v8092 = vpop.trf.xlu0
        %8093 = vxpose.xlu0.c.b16.start [1/8] %v7980, 128
        %8094 = vxpose.xlu0.c.b16.cont [2/8] 0, 128
        %8095 = vxpose.xlu0.c.b16.cont [3/8] 0, 128
        %8096 = vxpose.xlu0.c.b16.cont [4/8] 0, 128
        %8097 = vxpose.xlu0.c.b16.cont [5/8] 0, 128
        %8098 = vxpose.xlu0.c.b16.cont [6/8] 0, 128
        %8099 = vxpose.xlu0.c.b16.cont [7/8] 0, 128
        %8100 = vxpose.xlu0.c.b16.end [8/8] 0, 128
        %v8101 = vpop.trf.xlu0
        %v8102 = vpop.trf.xlu0
        %v8103 = vpop.trf.xlu0
        %v8104 = vpop.trf.xlu0
        %v8105 = vpop.trf.xlu0
        %v8106 = vpop.trf.xlu0
        %v8107 = vpop.trf.xlu0
        %v8108 = vpop.trf.xlu0
        %v8117 = vunpack.c.l.b16 %v7989
        %v8118 = vunpack.c.l.b16 %v8005
        %v8119 = vunpack.c.l.b16 %v8021
        %v8120 = vunpack.c.l.b16 %v8037
        %v8121 = vunpack.c.l.b16 %v8053
        %v8122 = vunpack.c.l.b16 %v8069
        %v8123 = vunpack.c.l.b16 %v8085
        %v8124 = vunpack.c.l.b16 %v8101
        %v8125 = vrot.slane %v8118, 7
        %vm8126 = vcmask 1041409
        %v8127 = vsel %vm8126, %v8125, %v8117
        %v8128 = vrot.slane %v8119, 6
        %vm8129 = vcmask 1042434
        %v8130 = vsel %vm8129, %v8128, %v8127
        %v8131 = vrot.slane %v8120, 5
        %vm8132 = vcmask 1043459
        %v8133 = vsel %vm8132, %v8131, %v8130
        %v8134 = vrot.slane %v8121, 4
        %vm8135 = vcmask 1044484
        %v8136 = vsel %vm8135, %v8134, %v8133
        %v8137 = vrot.slane %v8122, 3
        %vm8138 = vcmask 1045509
        %v8139 = vsel %vm8138, %v8137, %v8136
        %v8140 = vrot.slane %v8123, 2
        %vm8141 = vcmask 1046534
        %v8142 = vsel %vm8141, %v8140, %v8139
        %v8143 = vrot.slane %v8124, 1
        %vm8144 = vcmask 1047559
        %v8145 = vsel %vm8144, %v8143, %v8142
        %v8146 = vpack.c.b16 %v8145, %v8145
        %v8147 = vrot.slane %v8117, 3
        %v8148 = vrot.slane %v8118, 2
        %v8149 = vsel %vm8126, %v8148, %v8147
        %v8150 = vrot.slane %v8119, 1
        %v8151 = vsel %vm8129, %v8150, %v8149
        %v8152 = vsel %vm8132, %v8120, %v8151
        %v8153 = vrot.slane %v8121, 7
        %v8154 = vsel %vm8135, %v8153, %v8152
        %v8155 = vrot.slane %v8122, 6
        %v8156 = vsel %vm8138, %v8155, %v8154
        %v8157 = vrot.slane %v8123, 5
        %v8158 = vsel %vm8141, %v8157, %v8156
        %v8159 = vrot.slane %v8124, 4
        %v8160 = vsel %vm8144, %v8159, %v8158
        %v8161 = vpack.c.b16 %v8160, %v8160
        %v8162 = vrot.slane %v8117, 6
        %v8163 = vrot.slane %v8118, 5
        %v8164 = vsel %vm8126, %v8163, %v8162
        %v8165 = vrot.slane %v8119, 4
        %v8166 = vsel %vm8129, %v8165, %v8164
        %v8167 = vrot.slane %v8120, 3
        %v8168 = vsel %vm8132, %v8167, %v8166
        %v8169 = vrot.slane %v8121, 2
        %v8170 = vsel %vm8135, %v8169, %v8168
        %v8171 = vrot.slane %v8122, 1
        %v8172 = vsel %vm8138, %v8171, %v8170
        %v8173 = vsel %vm8141, %v8123, %v8172
        %v8174 = vrot.slane %v8124, 7
        %v8175 = vsel %vm8144, %v8174, %v8173
        %v8176 = vpack.c.b16 %v8175, %v8175
        %v8179 = vsel %vm1021, %v8146, %v8161
        %v8180 = vrot.slane %v8117, 1
        %v8181 = vsel %vm8126, %v8118, %v8180
        %v8182 = vrot.slane %v8119, 7
        %v8183 = vsel %vm8129, %v8182, %v8181
        %v8184 = vrot.slane %v8120, 6
        %v8185 = vsel %vm8132, %v8184, %v8183
        %v8186 = vrot.slane %v8121, 5
        %v8187 = vsel %vm8135, %v8186, %v8185
        %v8188 = vrot.slane %v8122, 4
        %v8189 = vsel %vm8138, %v8188, %v8187
        %v8190 = vrot.slane %v8123, 3
        %v8191 = vsel %vm8141, %v8190, %v8189
        %v8192 = vrot.slane %v8124, 2
        %v8193 = vsel %vm8144, %v8192, %v8191
        %v8194 = vpack.c.b16 %v8193, %v8193
        %v8195 = vrot.slane %v8117, 4
        %v8196 = vrot.slane %v8118, 3
        %v8197 = vsel %vm8126, %v8196, %v8195
        %v8198 = vrot.slane %v8119, 2
        %v8199 = vsel %vm8129, %v8198, %v8197
        %v8200 = vrot.slane %v8120, 1
        %v8201 = vsel %vm8132, %v8200, %v8199
        %v8202 = vsel %vm8135, %v8121, %v8201
        %v8203 = vrot.slane %v8122, 7
        %v8204 = vsel %vm8138, %v8203, %v8202
        %v8205 = vrot.slane %v8123, 6
        %v8206 = vsel %vm8141, %v8205, %v8204
        %v8207 = vrot.slane %v8124, 5
        %v8208 = vsel %vm8144, %v8207, %v8206
        %v8209 = vpack.c.b16 %v8208, %v8208
        %v8210 = vrot.slane %v8117, 7
        %v8211 = vrot.slane %v8118, 6
        %v8212 = vsel %vm8126, %v8211, %v8210
        %v8213 = vrot.slane %v8119, 5
        %v8214 = vsel %vm8129, %v8213, %v8212
        %v8215 = vrot.slane %v8120, 4
        %v8216 = vsel %vm8132, %v8215, %v8214
        %v8217 = vrot.slane %v8121, 3
        %v8218 = vsel %vm8135, %v8217, %v8216
        %v8219 = vrot.slane %v8122, 2
        %v8220 = vsel %vm8138, %v8219, %v8218
        %v8221 = vrot.slane %v8123, 1
        %v8222 = vsel %vm8141, %v8221, %v8220
        %v8223 = vsel %vm8144, %v8124, %v8222
        %v8224 = vpack.c.b16 %v8223, %v8223
        %v8227 = vsel %vm1021, %v8194, %v8209
        %v8228 = vrot.slane %v8117, 2
        %v8229 = vrot.slane %v8118, 1
        %v8230 = vsel %vm8126, %v8229, %v8228
        %v8231 = vsel %vm8129, %v8119, %v8230
        %v8232 = vrot.slane %v8120, 7
        %v8233 = vsel %vm8132, %v8232, %v8231
        %v8234 = vrot.slane %v8121, 6
        %v8235 = vsel %vm8135, %v8234, %v8233
        %v8236 = vrot.slane %v8122, 5
        %v8237 = vsel %vm8138, %v8236, %v8235
        %v8238 = vrot.slane %v8123, 4
        %v8239 = vsel %vm8141, %v8238, %v8237
        %v8240 = vrot.slane %v8124, 3
        %v8241 = vsel %vm8144, %v8240, %v8239
        %v8242 = vpack.c.b16 %v8241, %v8241
        %v8243 = vrot.slane %v8117, 5
        %v8244 = vrot.slane %v8118, 4
        %v8245 = vsel %vm8126, %v8244, %v8243
        %v8246 = vrot.slane %v8119, 3
        %v8247 = vsel %vm8129, %v8246, %v8245
        %v8248 = vrot.slane %v8120, 2
        %v8249 = vsel %vm8132, %v8248, %v8247
        %v8250 = vrot.slane %v8121, 1
        %v8251 = vsel %vm8135, %v8250, %v8249
        %v8252 = vsel %vm8138, %v8122, %v8251
        %v8253 = vrot.slane %v8123, 7
        %v8254 = vsel %vm8141, %v8253, %v8252
        %v8255 = vrot.slane %v8124, 6
        %v8256 = vsel %vm8144, %v8255, %v8254
        %v8257 = vpack.c.b16 %v8256, %v8256
        %v8258 = vunpack.c.h.b16 %v7989
        %v8259 = vunpack.c.h.b16 %v8005
        %v8260 = vunpack.c.h.b16 %v8021
        %v8261 = vunpack.c.h.b16 %v8037
        %v8262 = vunpack.c.h.b16 %v8053
        %v8263 = vunpack.c.h.b16 %v8069
        %v8264 = vunpack.c.h.b16 %v8085
        %v8265 = vunpack.c.h.b16 %v8101
        %v8266 = vrot.slane %v8259, 7
        %v8267 = vsel %vm8126, %v8266, %v8258
        %v8268 = vrot.slane %v8260, 6
        %v8269 = vsel %vm8129, %v8268, %v8267
        %v8270 = vrot.slane %v8261, 5
        %v8271 = vsel %vm8132, %v8270, %v8269
        %v8272 = vrot.slane %v8262, 4
        %v8273 = vsel %vm8135, %v8272, %v8271
        %v8274 = vrot.slane %v8263, 3
        %v8275 = vsel %vm8138, %v8274, %v8273
        %v8276 = vrot.slane %v8264, 2
        %v8277 = vsel %vm8141, %v8276, %v8275
        %v8278 = vrot.slane %v8265, 1
        %v8279 = vsel %vm8144, %v8278, %v8277
        %v8280 = vpack.c.b16 %v8279, %v8279
        %v8283 = vsel %vm1021, %v8242, %v8257
        %8285 = vrot.lane.b32.xlu0 %v8227, 16
        %v8286 = vpop.permute.xlu0 %8285
        %8287 = vrot.lane.b32.xlu0 %v8224, 16
        %v8288 = vpop.permute.xlu0 %8287
        %8290 = vrot.lane.b32.xlu0 %v8283, 32
        %v8291 = vpop.permute.xlu0 %8290
        %8292 = vrot.lane.b32.xlu0 %v8280, 32
        %v8293 = vpop.permute.xlu0 %8292
        %vm8294 = vcmask 130048
        %v8296 = vsel %vm8294, %v8179, %v8286
        %v8299 = vsel %vm8294, %v8176, %v8288
        %v8301 = vsel %vm6686, %v8296, %v8291
        %v8303 = vsel %vm6686, %v8299, %v8293
        %v8304 = vld [vmem:[%s10] sm:$0xf]
        %v8305 = vld [vmem:[%s10 + $0x4] sm:$0xf]
        %v8306 = vld [vmem:[%s10 + $0x8] sm:$0xf]
        %v8307 = vld [vmem:[%s10 + $0xc] sm:$0xf]
        %v8308 = vld [vmem:[%s10 + $0x10] sm:$0xf]
        %v8309 = vld [vmem:[%s10 + $0x14] sm:$0xf]
        %v8316 = vunpack.c.l.b16 %v8304
        %v8317 = vunpack.c.l.b16 %v8305
        %v8318 = vunpack.c.l.b16 %v8306
        %v8319 = vunpack.c.l.b16 %v8307
        %v8320 = vunpack.c.l.b16 %v8308
        %v8321 = vunpack.c.l.b16 %v8309
        %v8322 = vpack.c.b16 %v8317, %v8316
        %v8323 = vpack.c.b16 %v8319, %v8318
        %v8324 = vpack.c.b16 %v8321, %v8320
        %vm8328 = vcmask 392192
        %v8329 = vsel %vm8328, %v8301, 0
        %v8331 = vsel %vm8328, %v8303, 0
        %8333 = vmatprep.subr.bf16.mxu0 0
        %8334 = vmatpush1.bf16.msra.mxu0 %v8322
        %8335 = vmatprep.subr.bf16.mxu0 0
        %8336 = vmatpush1.bf16.msra.mxu0 %v8323
        %8337 = vmatprep.subr.bf16.mxu0 0
        %8338 = vmatpush1.bf16.msra.mxu0 %v8324
        %8339 = vmatprep.subr.bf16.mxu0 0
        %8340 = vmatpush1.bf16.msra.mxu0 0
        %8341 = vmatprep.subr.bf16.mxu0 0
        %8342 = vmatpush1.bf16.msra.mxu0 0
        %8343 = vmatprep.subr.bf16.mxu0 0
        %8344 = vmatpush1.bf16.msra.mxu0 0
        %8345 = vmatprep.subr.bf16.mxu0 0
        %8346 = vmatpush1.bf16.msra.mxu0 0
        %8347 = vmatprep.subr.bf16.mxu0 0
        %8348 = vmatpush1.bf16.msra.mxu0 0
        %8349 = vmatprep.subr.bf16.mxu0 0
        %8350 = vmatpush1.bf16.msra.mxu0 0
        %8351 = vmatprep.subr.bf16.mxu0 0
        %8352 = vmatpush1.bf16.msra.mxu0 0
        %8353 = vmatprep.subr.bf16.mxu0 0
        %8354 = vmatpush1.bf16.msra.mxu0 0
        %8355 = vmatprep.subr.bf16.mxu0 0
        %8356 = vmatpush1.bf16.msra.mxu0 0
        %8357 = vmatprep.subr.bf16.mxu0 0
        %8358 = vmatpush1.bf16.msra.mxu0 0
        %8359 = vmatprep.subr.bf16.mxu0 0
        %8360 = vmatpush1.bf16.msra.mxu0 0
        %8361 = vmatprep.subr.bf16.mxu0 0
        %8362 = vmatpush1.bf16.msra.mxu0 0
        %8363 = vmatprep.subr.bf16.mxu0 0
        %8364 = vmatpush1.bf16.msra.mxu0 0
        %8365 = vmatprep.mubr.bf16.mxu0 0
        %8366 = vmatmul.mubr.bf16.gmra.mrb[0].mxu0 %v8329
        %v8367 = vpop.f32.mrb[0].mxu0
        %v8368 = vadd.f32 0.0, %v8367
        %v8369 = vpop.f32.mrb[0].mxu0
        %v8370 = vpop.f32.mrb[0].mxu0
        %v8371 = vadd.f32 0.0, %v8370
        %v8372 = vpop.f32.mrb[0].mxu0
        %8373 = vmatprep.mubr.bf16.mxu0 0
        %8374 = vmatmul.mubr.bf16.gmra.mrb[0].mxu0 %v8331
        %v8375 = vpop.f32.mrb[0].mxu0
        %v8376 = vadd.f32 0.0, %v8375
        %v8377 = vpop.f32.mrb[0].mxu0
        %v8378 = vpop.f32.mrb[0].mxu0
        %v8379 = vpop.f32.mrb[0].mxu0
        %8380 = vdwg.mxu0
        %v8381 = vld [vmem:[%s9] sm:$0xf]
        %v8382 = vld [vmem:[%s9 + $0x4] sm:$0xf]
        %v8383 = vld [vmem:[%s9 + $0x8] sm:$0xf]
        %v8384 = vpack.c.bf16 %v8371, %v8368
        %v8385 = vpack.c.bf16 %v8376, %v8376
        %v8389 = vunpack.c.l.b16 %v8381
        %v8390 = vunpack.c.l.b16 %v8382
        %v8391 = vunpack.c.l.b16 %v8383
        %v8392 = vpack.c.b16 %v8390, %v8389
        %v8393 = vpack.c.b16 %v8391, %v8391
        %vm8394 = vcmask 195584
        %v8396 = vsel %vm8394, %v8392, 0
        %v8399 = vsel %vm8394, %v8393, 0
        %v8402 = vsel %vm1021, %v8385, 0
        %8404 = vmatprep.subr.bf16.mxu0 0
        %8405 = vmatpush1.bf16.msra.mxu0 %v8384
        %8406 = vmatprep.subr.bf16.mxu0 0
        %8407 = vmatpush1.bf16.msra.mxu0 %v8402
        %8408 = vmatprep.subr.bf16.mxu0 0
        %8409 = vmatpush1.bf16.msra.mxu0 0
        %8410 = vmatprep.subr.bf16.mxu0 0
        %8411 = vmatpush1.bf16.msra.mxu0 0
        %8412 = vmatprep.subr.bf16.mxu0 0
        %8413 = vmatpush1.bf16.msra.mxu0 0
        %8414 = vmatprep.subr.bf16.mxu0 0
        %8415 = vmatpush1.bf16.msra.mxu0 0
        %8416 = vmatprep.subr.bf16.mxu0 0
        %8417 = vmatpush1.bf16.msra.mxu0 0
        %8418 = vmatprep.subr.bf16.mxu0 0
        %8419 = vmatpush1.bf16.msra.mxu0 0
        %8420 = vmatprep.subr.bf16.mxu0 0
        %8421 = vmatpush1.bf16.msra.mxu0 0
        %8422 = vmatprep.subr.bf16.mxu0 0
        %8423 = vmatpush1.bf16.msra.mxu0 0
        %8424 = vmatprep.subr.bf16.mxu0 0
        %8425 = vmatpush1.bf16.msra.mxu0 0
        %8426 = vmatprep.subr.bf16.mxu0 0
        %8427 = vmatpush1.bf16.msra.mxu0 0
        %8428 = vmatprep.subr.bf16.mxu0 0
        %8429 = vmatpush1.bf16.msra.mxu0 0
        %8430 = vmatprep.subr.bf16.mxu0 0
        %8431 = vmatpush1.bf16.msra.mxu0 0
        %8432 = vmatprep.subr.bf16.mxu0 0
        %8433 = vmatpush1.bf16.msra.mxu0 0
        %8434 = vmatprep.subr.bf16.mxu0 0
        %8435 = vmatpush1.bf16.msra.mxu0 0
        %8436 = vmatprep.mubr.bf16.mxu0 0
        %8437 = vmatmul.mubr.bf16.gmra.mrb[0].mxu0 %v8396
        %v8438 = vpop.f32.mrb[0].mxu0
        %v8439 = vadd.f32 0.0, %v8438
        %v8440 = vpop.f32.mrb[0].mxu0
        %v8441 = vpop.f32.mrb[0].mxu0
        %v8442 = vadd.f32 0.0, %v8441
        %v8443 = vpop.f32.mrb[0].mxu0
        %8444 = vmatprep.mubr.bf16.mxu0 0
        %8445 = vmatmul.mubr.bf16.gmra.mrb[0].mxu0 %v8399
        %v8446 = vpop.f32.mrb[0].mxu0
        %v8447 = vadd.f32 0.0, %v8446
        %v8448 = vpop.f32.mrb[0].mxu0
        %v8449 = vpop.f32.mrb[0].mxu0
        %v8450 = vpop.f32.mrb[0].mxu0
        %8451 = vdwg.mxu0
        %8452 = vst.msk [vmem:[%s393] sm:$0xff] %vm8328, %v8439
        %8453 = vst.msk [vmem:[%s393 + $0x8] sm:$0xff] %vm8328, %v8442
        %8454 = vst.msk [vmem:[%s393 + $0x10] sm:$0xff] %vm8328, %v8447
        %s8455 = sand.u32 %s283, 1
        %s8456 = scalar_lea.sflag [#allocation3], %s8455
        %s8457 = sand.u32 %s283, 1
        %s8458 = smul.addr %s8457, 24
        %s8459 = scalar_lea.vmem [#allocation2], %s8458
        // Predicated region
        $region65: #{tpu_custom_call.1} parent=63 // pred_check
          %p8460 = pneg %p293
        $region66: #{tpu_custom_call.1} parent=63 // pred_check_branch
          %8462 = sbr.rel (%p8460) target = $region68
        $region67: #{tpu_custom_call.1} parent=63 // pred_region
          %s8463 = smul.u32 3, %s30
          %s8465 = ssub.s32 384, 384
          %8466 = vsyncadd %s8456, %s8465
          %s8467 = smul.addr %s29, 6
          %s8468 = sadd.s32 %s8463, %s8467
          %s8469 = smul.addr %s8468, 128
          %s8470 = scalar_lea.hbm %s11, %s8469
          %s8471 = sshll.u32 %s8459, 4
          %s8472 = int_to_ptr.vmem [resolvable:$true] %s8471
          %8477 = dma.vmem_to_hbm [thread:$0]  %s8472, 384, %s8470, %s8456, 128, 128, 8
        $region68: #{tpu_custom_call.1} parent=63 // pred_fallthru
          _
      $region64: #{tpu_custom_call.1} parent=5 // pred_fallthru
        _
      %p8478 = scmp.le.s32.totalorder 2, %s20
      // Predicated region
      $region69: #{tpu_custom_call.1} parent=5 // pred_check
        %p8479 = pneg %p8478
      $region70: #{tpu_custom_call.1} parent=5 // pred_check_branch
        %8481 = sbr.rel (%p8479) target = $region72
      $region71: #{tpu_custom_call.1} parent=5 // pred_region
        %s8482 = ssub.s32 %s20, 2
        // Predicated region
        $region73: #{tpu_custom_call.1} parent=71 // pred_check
          %p8483 = pneg %p299
        $region74: #{tpu_custom_call.1} parent=71 // pred_check_branch
          %8485 = sbr.rel (%p8483) target = $region76
        $region75: #{tpu_custom_call.1} parent=71 // pred_region
          %s8486 = sand.u32 %s284, 1
          %s8487 = scalar_lea.sflag [#allocation3], %s8486
          %s8488 = sand.u32 %s284, 1
          %s8489 = smul.addr %s8488, 24
          %s8490 = scalar_lea.vmem [#allocation2], %s8489
          %8491 = dma.done %s8487, 384
        $region76: #{tpu_custom_call.1} parent=71 // pred_fallthru
          _
      $region72: #{tpu_custom_call.1} parent=5 // pred_fallthru
        _
    $region6: #{tpu_custom_call.1} parent=1 // loop_footer
      %s24 = sadd.s32 1, %s20
    $region7: #{tpu_custom_call.1} parent=1 // loop_footer_branch
      %19 = sbr.rel target = $region3
    $region8: #{tpu_custom_call.1} parent=1 // loop_exit
      _
    %8492 = vsyncpa [#allocation3], 1
    %s8493 = scalar_lea.sflag [#allocation3], 1
    %8494 = vsyncpa %s8493, 1

</llo_original>
